<compile_context>
chip_gen: v6e
topology: v6e:2x2x1
jax: 0.10.0
libtpu: 0.0.40
codegen_flags: <defaults>
</compile_context>

<pallas_src>
import functools

import jax
import jax.numpy as jnp
from jax import lax
from jax.experimental import pallas as pl
from jax.experimental.pallas import tpu as pltpu

# ---------------- model configuration (small, forward-consistent) -----------
NODE_IN = 4        # node_in_channels
HIDDEN = 32        # hidden_channels (d_model)
NHEAD = 4          # nhead
NUM_LAYERS = 2     # num_encoder_layers
MAX_LEN = 16       # max_len (position embeddings / layer_index head width)
ACTION_DIM = 6     # action_dim
DIM_FF = 2048      # nn.TransformerEncoderLayer default dim_feedforward
LN_EPS = 1e-5      # nn.LayerNorm default eps
HEAD_DIM = HIDDEN // NHEAD

HEAD_OUT = ACTION_DIM + MAX_LEN + 1 + 1   # 24: [action | layer_idx | param | value]
HEAD_PAD = 128                            # lane-dense padded head-output width


def _layer_norm(x, w, b):
    mu = jnp.mean(x, axis=-1, keepdims=True)
    var = jnp.mean((x - mu) ** 2, axis=-1, keepdims=True)
    return (x - mu) * lax.rsqrt(var + LN_EPS) * w + b


def _softmax_last(x):
    x = x - jnp.max(x, axis=-1, keepdims=True)
    e = jnp.exp(x)
    denom = jnp.sum(e, axis=-1, keepdims=True)
    return e * pl.reciprocal(denom, approx=True)


# --------------------------------- kernel -----------------------------------
def transformer_kernel(
    x_ref,            # (B_TILE*S, NODE_IN)  bf16
    pos_ref,          # (B_TILE*S, D)        f32 (pos table pre-tiled over batch)
    emb_w_ref,        # (NODE_IN, D)         bf16
    emb_b_ref,        # (1, D)               f32
    wq_ref, bq_ref,   # (L, D, D) bf16 / (L, 1, D) f32
    wk_ref, bk_ref,   # (L, D, D) bf16 / (L, 1, D) f32
    wv_ref, bv_ref,   # (L, D, D) bf16 / (L, 1, D) f32
    wo_ref, bo_ref,   # (L, D, D) bf16 / (L, 1, D) f32
    ln1_w_ref, ln1_b_ref,   # (L, 1, D) f32
    ln2_w_ref, ln2_b_ref,   # (L, 1, D) f32
    ff1_w_ref, ff1_b_ref,   # (L, D, DFF) bf16 / (L, 1, DFF) f32
    ff2_w_ref, ff2_b_ref,   # (L, DFF, D) bf16 / (L, 1, D) f32
    heads_w_ref,      # (D, HEAD_PAD) bf16  (act|layer|param|value, zero padded)
    heads_b_ref,      # (1, HEAD_PAD) f32
    out_ref,          # (B_TILE, HEAD_PAD)   f32
    *, seq_len, b_tile,
):
    S, Bt = seq_len, b_tile
    D, Dh = HIDDEN, HEAD_DIM
    M = Bt * S
    scale = 1.0 / (Dh ** 0.5)
    bf16, f32 = jnp.bfloat16, jnp.float32

    # ----- embedding + position embedding (batch folded into M) -----
    h = (jnp.dot(x_ref[...], emb_w_ref[...], preferred_element_type=f32)
         + emb_b_ref[...] + pos_ref[...])                        # (M, D) f32

    # ----- transformer encoder layers (post-norm, ReLU FFN) -----
    for l in range(NUM_LAYERS):
        hb = h.astype(bf16)
        q = jnp.dot(hb, wq_ref[l], preferred_element_type=f32) + bq_ref[l]
        k = jnp.dot(hb, wk_ref[l], preferred_element_type=f32) + bk_ref[l]
        v = jnp.dot(hb, wv_ref[l], preferred_element_type=f32) + bv_ref[l]
        q = q * scale

        q3 = q.reshape(Bt, S, D).astype(bf16)
        k3 = k.reshape(Bt, S, D).astype(bf16)
        v3 = v.reshape(Bt, S, D).astype(bf16)

        ctx_heads = []
        for hd in range(NHEAD):
            lo = hd * Dh
            qh = q3[:, :, lo:lo + Dh]                            # (Bt, S, Dh)
            kh = k3[:, :, lo:lo + Dh]
            vh = v3[:, :, lo:lo + Dh]
            s = jnp.einsum('bqd,bkd->bqk', qh, kh,
                           preferred_element_type=f32)           # (Bt, S, S) f32
            p = _softmax_last(s)                                 # f32 softmax
            ctx_heads.append(
                jnp.einsum('bqk,bkd->bqd', p.astype(bf16), vh,
                           preferred_element_type=f32))          # (Bt, S, Dh)
        ctx = jnp.concatenate(ctx_heads, axis=-1).reshape(M, D)  # (M, D) f32

        # single fused output projection across all heads
        attn = jnp.dot(ctx.astype(bf16), wo_ref[l],
                       preferred_element_type=f32) + bo_ref[l]

        h = _layer_norm(h + attn, ln1_w_ref[l], ln1_b_ref[l])

        ff = jnp.dot(h.astype(bf16), ff1_w_ref[l],
                     preferred_element_type=f32) + ff1_b_ref[l]
        ff = jnp.maximum(ff, 0.0)                                # ReLU (f32)
        ff = jnp.dot(ff.astype(bf16), ff2_w_ref[l],
                     preferred_element_type=f32) + ff2_b_ref[l]

        h = _layer_norm(h + ff, ln2_w_ref[l], ln2_b_ref[l])

    # ----- mean pooling over sequence (per batch element) -----
    pooled = jnp.sum(h.reshape(Bt, S, D), axis=1) * (1.0 / S)    # (Bt, D) f32

    # ----- fused, lane-padded output heads (one matmul, one output slab) -----
    out_ref[...] = (jnp.dot(pooled.astype(bf16), heads_w_ref[...],
                            preferred_element_type=f32)
                    + heads_b_ref[...])


# ------------------------------ wrapper --------------------------------------
def _replicated_spec(shape):
    nd = len(shape)
    return pl.BlockSpec(shape, lambda i, _nd=nd: (0,) * _nd)


def _pick_batch_tile(B, S):
    """Pick a batch tile so M = B_TILE*S is tall-ish and all blocks stay
    sublane-aligned (multiple of 8) or full-extent."""
    b_tile = max(1, min(B, max(1, 128 // S)))
    n_tiles = -(-B // b_tile)
    if n_tiles > 1 and (b_tile % 8 != 0):
        # fall back to a single full-extent tile (always layout-legal)
        b_tile, n_tiles = B, 1
    return b_tile, n_tiles


@jax.jit
def _forward(x, params):
    B, S, Din = x.shape
    D = HIDDEN
    bf16 = jnp.bfloat16

    # --- batch tiling: fold batch into the matmul M dimension ---
    B_TILE, n_tiles = _pick_batch_tile(B, S)
    Bp = n_tiles * B_TILE
    if Bp != B:
        x = jnp.concatenate([x, jnp.zeros((Bp - B, S, Din), x.dtype)], axis=0)
    x_flat = x.reshape(Bp * S, Din).astype(bf16)

    # position table rows 0..S-1, pre-tiled over the batch tile
    pos_tile = jnp.tile(params["pos"][:S], (B_TILE, 1))          # (B_TILE*S, D)

    # split the fused in_proj into three clean (D, D) matmul weights
    wq = params["inproj_w"][:, :, 0:D].astype(bf16)
    wk = params["inproj_w"][:, :, D:2 * D].astype(bf16)
    wv = params["inproj_w"][:, :, 2 * D:3 * D].astype(bf16)
    bq = params["inproj_b"][:, :, 0:D]
    bk = params["inproj_b"][:, :, D:2 * D]
    bv = params["inproj_b"][:, :, 2 * D:3 * D]

    # fuse the four output heads into one lane-padded matmul
    heads_w = jnp.concatenate(
        [params["act_w"], params["li_w"], params["pv_w"], params["val_w"]],
        axis=1)                                                  # (D, 24)
    heads_b = jnp.concatenate(
        [params["act_b"], params["li_b"], params["pv_b"], params["val_b"]],
        axis=1)                                                  # (1, 24)
    heads_w = jnp.pad(heads_w, ((0, 0), (0, HEAD_PAD - HEAD_OUT))).astype(bf16)
    heads_b = jnp.pad(heads_b, ((0, 0), (0, HEAD_PAD - HEAD_OUT)))

    args = [
        x_flat, pos_tile,
        params["emb_w"].astype(bf16), params["emb_b"],
        wq, bq, wk, bk, wv, bv,
        params["outproj_w"].astype(bf16), params["outproj_b"],
        params["ln1_w"], params["ln1_b"], params["ln2_w"], params["ln2_b"],
        params["ff1_w"].astype(bf16), params["ff1_b"],
        params["ff2_w"].astype(bf16), params["ff2_b"],
        heads_w, heads_b,
    ]

    in_specs = [pl.BlockSpec((B_TILE * S, Din), lambda i: (i, 0))]
    in_specs += [_replicated_spec(a.shape) for a in args[1:]]

    out = pl.pallas_call(
        functools.partial(transformer_kernel, seq_len=S, b_tile=B_TILE),
        out_shape=jax.ShapeDtypeStruct((Bp, HEAD_PAD), jnp.float32),
        grid=(n_tiles,),
        in_specs=in_specs,
        out_specs=pl.BlockSpec((B_TILE, HEAD_PAD), lambda i: (i, 0)),
        compiler_params=pltpu.CompilerParams(
            dimension_semantics=("parallel",)),
    )(*args)

    out = out[:B, :HEAD_OUT]
    act_logits = out[:, :ACTION_DIM]
    li_logits = out[:, ACTION_DIM:ACTION_DIM + MAX_LEN]
    pv = out[:, ACTION_DIM + MAX_LEN:ACTION_DIM + MAX_LEN + 1]
    value = out[:, ACTION_DIM + MAX_LEN + 1:]

    action = jax.nn.softmax(act_logits, axis=1)                  # (B, ACTION_DIM)
    layer_index = jnp.argmax(li_logits, axis=1)                  # (B,) int
    parameter_value = jax.nn.sigmoid(pv)                         # (B, 1)
    return action, layer_index, parameter_value, value


def transformer_forward(x, params, mask=None):
    if mask is not None:
        # TODO(synk): attention mask path is not implemented; fail loudly.
        raise NotImplementedError("attention mask (mask != None) is not supported")
    if x.ndim != 3:
        raise ValueError(f"Expected input tensor with 3 dims, got {x.ndim}.")
    if x.shape[1] > MAX_LEN:
        raise ValueError("Sequence length exceeds number of position embeddings.")
    return _forward(x, params)


# --------------------------- deterministic params ----------------------------
def init_params(key):
    ks = jax.random.split(key, 24)

    def rnd(k, shape, scale=0.1):
        return (scale * jax.random.normal(k, shape)).astype(jnp.float32)

    L, D, DFF = NUM_LAYERS, HIDDEN, DIM_FF
    p = {
        "emb_w": rnd(ks[0], (NODE_IN, D)),
        "emb_b": rnd(ks[1], (1, D)),
        "pos": rnd(ks[2], (MAX_LEN, D)),
        "inproj_w": rnd(ks[3], (L, D, 3 * D)),
        "inproj_b": rnd(ks[4], (L, 1, 3 * D)),
        "outproj_w": rnd(ks[5], (L, D, D)),
        "outproj_b": rnd(ks[6], (L, 1, D)),
        "ln1_w": jnp.ones((L, 1, D), jnp.float32),
        "ln1_b": jnp.zeros((L, 1, D), jnp.float32),
        "ln2_w": jnp.ones((L, 1, D), jnp.float32),
        "ln2_b": jnp.zeros((L, 1, D), jnp.float32),
        "ff1_w": rnd(ks[7], (L, D, DFF), 0.05),
        "ff1_b": rnd(ks[8], (L, 1, DFF), 0.05),
        "ff2_w": rnd(ks[9], (L, DFF, D), 0.02),
        "ff2_b": rnd(ks[10], (L, 1, D), 0.05),
        "act_w": rnd(ks[11], (D, ACTION_DIM)),
        "act_b": rnd(ks[12], (1, ACTION_DIM)),
        "li_w": rnd(ks[13], (D, MAX_LEN)),
        "li_b": rnd(ks[14], (1, MAX_LEN)),
        "pv_w": rnd(ks[15], (D, 1)),
        "pv_b": rnd(ks[16], (1, 1)),
        "val_w": rnd(ks[17], (D, 1)),
        "val_b": rnd(ks[18], (1, 1)),
    }
    return p


if __name__ == "__main__":
    key = jax.random.PRNGKey(0)
    pkey, xkey = jax.random.split(key)
    params = init_params(pkey)

    B, S = 2, 8
    x = jax.random.normal(xkey, (B, S, NODE_IN), dtype=jnp.float32)

    action, layer_index, parameter_value, value = transformer_forward(x, params)
    jax.block_until_ready((action, layer_index, parameter_value, value))

    assert action.shape == (B, ACTION_DIM)
    assert layer_index.shape == (B,)
    assert parameter_value.shape == (B, 1)
    assert value.shape == (B, 1)
    assert jnp.allclose(jnp.sum(action, axis=1), 1.0, atol=1e-5)
    assert bool(jnp.all(jnp.isfinite(action)))
    assert bool(jnp.all(jnp.isfinite(value)))

    print("KERNEL_OK")
</pallas_src>

<mosaic_0001>
module attributes {stable_mosaic.version = 11 : i64} {
  func.func @transformer_kernel(%arg0: i32, %arg1: memref<16x4xbf16, #tpu.memory_space<vmem>>, %arg2: memref<16x32xf32, #tpu.memory_space<vmem>>, %arg3: memref<4x32xbf16, #tpu.memory_space<vmem>>, %arg4: memref<1x32xf32, #tpu.memory_space<vmem>>, %arg5: memref<2x32x32xbf16, #tpu.memory_space<vmem>>, %arg6: memref<2x1x32xf32, #tpu.memory_space<vmem>>, %arg7: memref<2x32x32xbf16, #tpu.memory_space<vmem>>, %arg8: memref<2x1x32xf32, #tpu.memory_space<vmem>>, %arg9: memref<2x32x32xbf16, #tpu.memory_space<vmem>>, %arg10: memref<2x1x32xf32, #tpu.memory_space<vmem>>, %arg11: memref<2x32x32xbf16, #tpu.memory_space<vmem>>, %arg12: memref<2x1x32xf32, #tpu.memory_space<vmem>>, %arg13: memref<2x1x32xf32, #tpu.memory_space<vmem>>, %arg14: memref<2x1x32xf32, #tpu.memory_space<vmem>>, %arg15: memref<2x1x32xf32, #tpu.memory_space<vmem>>, %arg16: memref<2x1x32xf32, #tpu.memory_space<vmem>>, %arg17: memref<2x32x2048xbf16, #tpu.memory_space<vmem>>, %arg18: memref<2x1x2048xf32, #tpu.memory_space<vmem>>, %arg19: memref<2x2048x32xbf16, #tpu.memory_space<vmem>>, %arg20: memref<2x1x32xf32, #tpu.memory_space<vmem>>, %arg21: memref<32x128xbf16, #tpu.memory_space<vmem>>, %arg22: memref<1x128xf32, #tpu.memory_space<vmem>>, %arg23: memref<2x128xf32, #tpu.memory_space<vmem>>) attributes {dimension_semantics = [#tpu.dimension_semantics<parallel>], iteration_bounds = array<i64: 1>, scalar_prefetch = 0 : i64, scratch_operands = 0 : i64, tpu.core_type = #tpu.core_type<tc>, window_params = [{transform_indices = @transform_0, window_bounds = array<i64: 16, 4>}, {pipeline_mode = #tpu.pipeline_mode<synchronous>, transform_indices = @transform_1, window_bounds = array<i64: 16, 32>}, {pipeline_mode = #tpu.pipeline_mode<synchronous>, transform_indices = @transform_2, window_bounds = array<i64: 4, 32>}, {pipeline_mode = #tpu.pipeline_mode<synchronous>, transform_indices = @transform_3, window_bounds = array<i64: 1, 32>}, {pipeline_mode = #tpu.pipeline_mode<synchronous>, transform_indices = @transform_4, window_bounds = array<i64: 2, 32, 32>}, {pipeline_mode = #tpu.pipeline_mode<synchronous>, transform_indices = @transform_5, window_bounds = array<i64: 2, 1, 32>}, {pipeline_mode = #tpu.pipeline_mode<synchronous>, transform_indices = @transform_6, window_bounds = array<i64: 2, 32, 32>}, {pipeline_mode = #tpu.pipeline_mode<synchronous>, transform_indices = @transform_7, window_bounds = array<i64: 2, 1, 32>}, {pipeline_mode = #tpu.pipeline_mode<synchronous>, transform_indices = @transform_8, window_bounds = array<i64: 2, 32, 32>}, {pipeline_mode = #tpu.pipeline_mode<synchronous>, transform_indices = @transform_9, window_bounds = array<i64: 2, 1, 32>}, {pipeline_mode = #tpu.pipeline_mode<synchronous>, transform_indices = @transform_10, window_bounds = array<i64: 2, 32, 32>}, {pipeline_mode = #tpu.pipeline_mode<synchronous>, transform_indices = @transform_11, window_bounds = array<i64: 2, 1, 32>}, {pipeline_mode = #tpu.pipeline_mode<synchronous>, transform_indices = @transform_12, window_bounds = array<i64: 2, 1, 32>}, {pipeline_mode = #tpu.pipeline_mode<synchronous>, transform_indices = @transform_13, window_bounds = array<i64: 2, 1, 32>}, {pipeline_mode = #tpu.pipeline_mode<synchronous>, transform_indices = @transform_14, window_bounds = array<i64: 2, 1, 32>}, {pipeline_mode = #tpu.pipeline_mode<synchronous>, transform_indices = @transform_15, window_bounds = array<i64: 2, 1, 32>}, {pipeline_mode = #tpu.pipeline_mode<synchronous>, transform_indices = @transform_16, window_bounds = array<i64: 2, 32, 2048>}, {pipeline_mode = #tpu.pipeline_mode<synchronous>, transform_indices = @transform_17, window_bounds = array<i64: 2, 1, 2048>}, {pipeline_mode = #tpu.pipeline_mode<synchronous>, transform_indices = @transform_18, window_bounds = array<i64: 2, 2048, 32>}, {pipeline_mode = #tpu.pipeline_mode<synchronous>, transform_indices = @transform_19, window_bounds = array<i64: 2, 1, 32>}, {pipeline_mode = #tpu.pipeline_mode<synchronous>, transform_indices = @transform_20, window_bounds = array<i64: 32, 128>}, {pipeline_mode = #tpu.pipeline_mode<synchronous>, transform_indices = @transform_21, window_bounds = array<i64: 1, 128>}, {transform_indices = @transform_22, window_bounds = array<i64: 2, 128>}]} {
    %c0 = arith.constant 0 : index
    %c0_0 = arith.constant 0 : index
    %0 = vector.load %arg1[%c0, %c0_0] : memref<16x4xbf16, #tpu.memory_space<vmem>>, vector<16x4xbf16>
    %c0_1 = arith.constant 0 : index
    %c0_2 = arith.constant 0 : index
    %1 = vector.load %arg3[%c0_1, %c0_2] : memref<4x32xbf16, #tpu.memory_space<vmem>>, vector<4x32xbf16>
    %cst = arith.constant dense<0.000000e+00> : vector<16x32xf32>
    %2 = tpu.matmul %0, %1, %cst {dimension_numbers = #tpu.dot_dimension_numbers<[1], [0], [0], [1], [0, 0, 1, 1], [], []>} : vector<16x4xbf16>, vector<4x32xbf16>, vector<16x32xf32> -> vector<16x32xf32>
    %c0_3 = arith.constant 0 : index
    %c0_4 = arith.constant 0 : index
    %3 = vector.load %arg4[%c0_3, %c0_4] : memref<1x32xf32, #tpu.memory_space<vmem>>, vector<1x32xf32>
    %4 = vector.broadcast %3 : vector<1x32xf32> to vector<16x32xf32>
    %5 = arith.addf %2, %4 : vector<16x32xf32>
    %c0_5 = arith.constant 0 : index
    %c0_6 = arith.constant 0 : index
    %6 = vector.load %arg2[%c0_5, %c0_6] : memref<16x32xf32, #tpu.memory_space<vmem>>, vector<16x32xf32>
    %7 = arith.addf %5, %6 : vector<16x32xf32>
    %8 = arith.truncf %7 : vector<16x32xf32> to vector<16x32xbf16>
    %c0_7 = arith.constant 0 : index
    %c0_8 = arith.constant 0 : index
    %c0_9 = arith.constant 0 : index
    %9 = vector.load %arg5[%c0_7, %c0_8, %c0_9] : memref<2x32x32xbf16, #tpu.memory_space<vmem>>, vector<1x32x32xbf16>
    %10 = vector.shape_cast %9 : vector<1x32x32xbf16> to vector<32x32xbf16>
    %cst_10 = arith.constant dense<0.000000e+00> : vector<16x32xf32>
    %11 = tpu.matmul %8, %10, %cst_10 {dimension_numbers = #tpu.dot_dimension_numbers<[1], [0], [0], [1], [0, 0, 1, 1], [], []>} : vector<16x32xbf16>, vector<32x32xbf16>, vector<16x32xf32> -> vector<16x32xf32>
    %c0_11 = arith.constant 0 : index
    %c0_12 = arith.constant 0 : index
    %c0_13 = arith.constant 0 : index
    %12 = vector.load %arg6[%c0_11, %c0_12, %c0_13] : memref<2x1x32xf32, #tpu.memory_space<vmem>>, vector<1x1x32xf32>
    %13 = vector.shape_cast %12 : vector<1x1x32xf32> to vector<1x32xf32>
    %14 = vector.broadcast %13 : vector<1x32xf32> to vector<16x32xf32>
    %15 = arith.addf %11, %14 : vector<16x32xf32>
    %c0_14 = arith.constant 0 : index
    %c0_15 = arith.constant 0 : index
    %c0_16 = arith.constant 0 : index
    %16 = vector.load %arg7[%c0_14, %c0_15, %c0_16] : memref<2x32x32xbf16, #tpu.memory_space<vmem>>, vector<1x32x32xbf16>
    %17 = vector.shape_cast %16 : vector<1x32x32xbf16> to vector<32x32xbf16>
    %cst_17 = arith.constant dense<0.000000e+00> : vector<16x32xf32>
    %18 = tpu.matmul %8, %17, %cst_17 {dimension_numbers = #tpu.dot_dimension_numbers<[1], [0], [0], [1], [0, 0, 1, 1], [], []>} : vector<16x32xbf16>, vector<32x32xbf16>, vector<16x32xf32> -> vector<16x32xf32>
    %c0_18 = arith.constant 0 : index
    %c0_19 = arith.constant 0 : index
    %c0_20 = arith.constant 0 : index
    %19 = vector.load %arg8[%c0_18, %c0_19, %c0_20] : memref<2x1x32xf32, #tpu.memory_space<vmem>>, vector<1x1x32xf32>
    %20 = vector.shape_cast %19 : vector<1x1x32xf32> to vector<1x32xf32>
    %21 = vector.broadcast %20 : vector<1x32xf32> to vector<16x32xf32>
    %22 = arith.addf %18, %21 : vector<16x32xf32>
    %c0_21 = arith.constant 0 : index
    %c0_22 = arith.constant 0 : index
    %c0_23 = arith.constant 0 : index
    %23 = vector.load %arg9[%c0_21, %c0_22, %c0_23] : memref<2x32x32xbf16, #tpu.memory_space<vmem>>, vector<1x32x32xbf16>
    %24 = vector.shape_cast %23 : vector<1x32x32xbf16> to vector<32x32xbf16>
    %cst_24 = arith.constant dense<0.000000e+00> : vector<16x32xf32>
    %25 = tpu.matmul %8, %24, %cst_24 {dimension_numbers = #tpu.dot_dimension_numbers<[1], [0], [0], [1], [0, 0, 1, 1], [], []>} : vector<16x32xbf16>, vector<32x32xbf16>, vector<16x32xf32> -> vector<16x32xf32>
    %c0_25 = arith.constant 0 : index
    %c0_26 = arith.constant 0 : index
    %c0_27 = arith.constant 0 : index
    %26 = vector.load %arg10[%c0_25, %c0_26, %c0_27] : memref<2x1x32xf32, #tpu.memory_space<vmem>>, vector<1x1x32xf32>
    %27 = vector.shape_cast %26 : vector<1x1x32xf32> to vector<1x32xf32>
    %28 = vector.broadcast %27 : vector<1x32xf32> to vector<16x32xf32>
    %29 = arith.addf %25, %28 : vector<16x32xf32>
    %cst_28 = arith.constant 0.353553385 : f32
    %30 = vector.broadcast %cst_28 : f32 to vector<16x32xf32>
    %31 = arith.mulf %15, %30 : vector<16x32xf32>
    %32 = vector.shape_cast %31 : vector<16x32xf32> to vector<2x8x32xf32>
    %33 = arith.truncf %32 : vector<2x8x32xf32> to vector<2x8x32xbf16>
    %34 = vector.shape_cast %22 : vector<16x32xf32> to vector<2x8x32xf32>
    %35 = arith.truncf %34 : vector<2x8x32xf32> to vector<2x8x32xbf16>
    %36 = vector.shape_cast %29 : vector<16x32xf32> to vector<2x8x32xf32>
    %37 = arith.truncf %36 : vector<2x8x32xf32> to vector<2x8x32xbf16>
    %38 = vector.extract_strided_slice %33 {offsets = [0, 0, 0], sizes = [2, 8, 8], strides = [1, 1, 1]} : vector<2x8x32xbf16> to vector<2x8x8xbf16>
    %39 = vector.extract_strided_slice %35 {offsets = [0, 0, 0], sizes = [2, 8, 8], strides = [1, 1, 1]} : vector<2x8x32xbf16> to vector<2x8x8xbf16>
    %40 = vector.extract_strided_slice %37 {offsets = [0, 0, 0], sizes = [2, 8, 8], strides = [1, 1, 1]} : vector<2x8x32xbf16> to vector<2x8x8xbf16>
    "tpu.trace_start"() <{level = 10 : i32, message = "bqd,bkd->bqk"}> : () -> ()
    %cst_29 = arith.constant dense<0.000000e+00> : vector<2x8x8xf32>
    %41 = tpu.matmul %38, %39, %cst_29 {dimension_numbers = #tpu.dot_dimension_numbers<[2], [2], [1], [1], [0, 0, 0, 1, 1, 1], [0], [0]>} : vector<2x8x8xbf16>, vector<2x8x8xbf16>, vector<2x8x8xf32> -> vector<2x8x8xf32>
    "tpu.trace_stop"() : () -> ()
    %cst_30 = arith.constant dense<0xFF800000> : vector<2x8xf32>
    %42 = vector.multi_reduction <maximumf>, %41, %cst_30 [2] : vector<2x8x8xf32> to vector<2x8xf32>
    %43 = vector.shape_cast %42 : vector<2x8xf32> to vector<2x8x1xf32>
    %44 = vector.broadcast %43 : vector<2x8x1xf32> to vector<2x8x8xf32>
    %45 = arith.subf %41, %44 : vector<2x8x8xf32>
    %46 = math.exp %45 : vector<2x8x8xf32>
    %cst_31 = arith.constant dense<0.000000e+00> : vector<2x8xf32>
    %47 = vector.multi_reduction <add>, %46, %cst_31 [2] : vector<2x8x8xf32> to vector<2x8xf32>
    %48 = vector.shape_cast %47 : vector<2x8xf32> to vector<2x8x1xf32>
    %49 = tpu.reciprocal %48 {approx = true} : vector<2x8x1xf32> -> vector<2x8x1xf32>
    %50 = vector.broadcast %49 : vector<2x8x1xf32> to vector<2x8x8xf32>
    %51 = arith.mulf %46, %50 : vector<2x8x8xf32>
    %52 = arith.truncf %51 : vector<2x8x8xf32> to vector<2x8x8xbf16>
    "tpu.trace_start"() <{level = 10 : i32, message = "bqk,bkd->bqd"}> : () -> ()
    %cst_32 = arith.constant dense<0.000000e+00> : vector<2x8x8xf32>
    %53 = tpu.matmul %52, %40, %cst_32 {dimension_numbers = #tpu.dot_dimension_numbers<[2], [1], [1], [2], [0, 0, 0, 1, 1, 2], [0], [0]>} : vector<2x8x8xbf16>, vector<2x8x8xbf16>, vector<2x8x8xf32> -> vector<2x8x8xf32>
    "tpu.trace_stop"() : () -> ()
    %54 = vector.extract_strided_slice %33 {offsets = [0, 0, 8], sizes = [2, 8, 8], strides = [1, 1, 1]} : vector<2x8x32xbf16> to vector<2x8x8xbf16>
    %55 = vector.extract_strided_slice %35 {offsets = [0, 0, 8], sizes = [2, 8, 8], strides = [1, 1, 1]} : vector<2x8x32xbf16> to vector<2x8x8xbf16>
    %56 = vector.extract_strided_slice %37 {offsets = [0, 0, 8], sizes = [2, 8, 8], strides = [1, 1, 1]} : vector<2x8x32xbf16> to vector<2x8x8xbf16>
    "tpu.trace_start"() <{level = 10 : i32, message = "bqd,bkd->bqk"}> : () -> ()
    %cst_33 = arith.constant dense<0.000000e+00> : vector<2x8x8xf32>
    %57 = tpu.matmul %54, %55, %cst_33 {dimension_numbers = #tpu.dot_dimension_numbers<[2], [2], [1], [1], [0, 0, 0, 1, 1, 1], [0], [0]>} : vector<2x8x8xbf16>, vector<2x8x8xbf16>, vector<2x8x8xf32> -> vector<2x8x8xf32>
    "tpu.trace_stop"() : () -> ()
    %cst_34 = arith.constant dense<0xFF800000> : vector<2x8xf32>
    %58 = vector.multi_reduction <maximumf>, %57, %cst_34 [2] : vector<2x8x8xf32> to vector<2x8xf32>
    %59 = vector.shape_cast %58 : vector<2x8xf32> to vector<2x8x1xf32>
    %60 = vector.broadcast %59 : vector<2x8x1xf32> to vector<2x8x8xf32>
    %61 = arith.subf %57, %60 : vector<2x8x8xf32>
    %62 = math.exp %61 : vector<2x8x8xf32>
    %cst_35 = arith.constant dense<0.000000e+00> : vector<2x8xf32>
    %63 = vector.multi_reduction <add>, %62, %cst_35 [2] : vector<2x8x8xf32> to vector<2x8xf32>
    %64 = vector.shape_cast %63 : vector<2x8xf32> to vector<2x8x1xf32>
    %65 = tpu.reciprocal %64 {approx = true} : vector<2x8x1xf32> -> vector<2x8x1xf32>
    %66 = vector.broadcast %65 : vector<2x8x1xf32> to vector<2x8x8xf32>
    %67 = arith.mulf %62, %66 : vector<2x8x8xf32>
    %68 = arith.truncf %67 : vector<2x8x8xf32> to vector<2x8x8xbf16>
    "tpu.trace_start"() <{level = 10 : i32, message = "bqk,bkd->bqd"}> : () -> ()
    %cst_36 = arith.constant dense<0.000000e+00> : vector<2x8x8xf32>
    %69 = tpu.matmul %68, %56, %cst_36 {dimension_numbers = #tpu.dot_dimension_numbers<[2], [1], [1], [2], [0, 0, 0, 1, 1, 2], [0], [0]>} : vector<2x8x8xbf16>, vector<2x8x8xbf16>, vector<2x8x8xf32> -> vector<2x8x8xf32>
    "tpu.trace_stop"() : () -> ()
    %70 = vector.extract_strided_slice %33 {offsets = [0, 0, 16], sizes = [2, 8, 8], strides = [1, 1, 1]} : vector<2x8x32xbf16> to vector<2x8x8xbf16>
    %71 = vector.extract_strided_slice %35 {offsets = [0, 0, 16], sizes = [2, 8, 8], strides = [1, 1, 1]} : vector<2x8x32xbf16> to vector<2x8x8xbf16>
    %72 = vector.extract_strided_slice %37 {offsets = [0, 0, 16], sizes = [2, 8, 8], strides = [1, 1, 1]} : vector<2x8x32xbf16> to vector<2x8x8xbf16>
    "tpu.trace_start"() <{level = 10 : i32, message = "bqd,bkd->bqk"}> : () -> ()
    %cst_37 = arith.constant dense<0.000000e+00> : vector<2x8x8xf32>
    %73 = tpu.matmul %70, %71, %cst_37 {dimension_numbers = #tpu.dot_dimension_numbers<[2], [2], [1], [1], [0, 0, 0, 1, 1, 1], [0], [0]>} : vector<2x8x8xbf16>, vector<2x8x8xbf16>, vector<2x8x8xf32> -> vector<2x8x8xf32>
    "tpu.trace_stop"() : () -> ()
    %cst_38 = arith.constant dense<0xFF800000> : vector<2x8xf32>
    %74 = vector.multi_reduction <maximumf>, %73, %cst_38 [2] : vector<2x8x8xf32> to vector<2x8xf32>
    %75 = vector.shape_cast %74 : vector<2x8xf32> to vector<2x8x1xf32>
    %76 = vector.broadcast %75 : vector<2x8x1xf32> to vector<2x8x8xf32>
    %77 = arith.subf %73, %76 : vector<2x8x8xf32>
    %78 = math.exp %77 : vector<2x8x8xf32>
    %cst_39 = arith.constant dense<0.000000e+00> : vector<2x8xf32>
    %79 = vector.multi_reduction <add>, %78, %cst_39 [2] : vector<2x8x8xf32> to vector<2x8xf32>
    %80 = vector.shape_cast %79 : vector<2x8xf32> to vector<2x8x1xf32>
    %81 = tpu.reciprocal %80 {approx = true} : vector<2x8x1xf32> -> vector<2x8x1xf32>
    %82 = vector.broadcast %81 : vector<2x8x1xf32> to vector<2x8x8xf32>
    %83 = arith.mulf %78, %82 : vector<2x8x8xf32>
    %84 = arith.truncf %83 : vector<2x8x8xf32> to vector<2x8x8xbf16>
    "tpu.trace_start"() <{level = 10 : i32, message = "bqk,bkd->bqd"}> : () -> ()
    %cst_40 = arith.constant dense<0.000000e+00> : vector<2x8x8xf32>
    %85 = tpu.matmul %84, %72, %cst_40 {dimension_numbers = #tpu.dot_dimension_numbers<[2], [1], [1], [2], [0, 0, 0, 1, 1, 2], [0], [0]>} : vector<2x8x8xbf16>, vector<2x8x8xbf16>, vector<2x8x8xf32> -> vector<2x8x8xf32>
    "tpu.trace_stop"() : () -> ()
    %86 = vector.extract_strided_slice %33 {offsets = [0, 0, 24], sizes = [2, 8, 8], strides = [1, 1, 1]} : vector<2x8x32xbf16> to vector<2x8x8xbf16>
    %87 = vector.extract_strided_slice %35 {offsets = [0, 0, 24], sizes = [2, 8, 8], strides = [1, 1, 1]} : vector<2x8x32xbf16> to vector<2x8x8xbf16>
    %88 = vector.extract_strided_slice %37 {offsets = [0, 0, 24], sizes = [2, 8, 8], strides = [1, 1, 1]} : vector<2x8x32xbf16> to vector<2x8x8xbf16>
    "tpu.trace_start"() <{level = 10 : i32, message = "bqd,bkd->bqk"}> : () -> ()
    %cst_41 = arith.constant dense<0.000000e+00> : vector<2x8x8xf32>
    %89 = tpu.matmul %86, %87, %cst_41 {dimension_numbers = #tpu.dot_dimension_numbers<[2], [2], [1], [1], [0, 0, 0, 1, 1, 1], [0], [0]>} : vector<2x8x8xbf16>, vector<2x8x8xbf16>, vector<2x8x8xf32> -> vector<2x8x8xf32>
    "tpu.trace_stop"() : () -> ()
    %cst_42 = arith.constant dense<0xFF800000> : vector<2x8xf32>
    %90 = vector.multi_reduction <maximumf>, %89, %cst_42 [2] : vector<2x8x8xf32> to vector<2x8xf32>
    %91 = vector.shape_cast %90 : vector<2x8xf32> to vector<2x8x1xf32>
    %92 = vector.broadcast %91 : vector<2x8x1xf32> to vector<2x8x8xf32>
    %93 = arith.subf %89, %92 : vector<2x8x8xf32>
    %94 = math.exp %93 : vector<2x8x8xf32>
    %cst_43 = arith.constant dense<0.000000e+00> : vector<2x8xf32>
    %95 = vector.multi_reduction <add>, %94, %cst_43 [2] : vector<2x8x8xf32> to vector<2x8xf32>
    %96 = vector.shape_cast %95 : vector<2x8xf32> to vector<2x8x1xf32>
    %97 = tpu.reciprocal %96 {approx = true} : vector<2x8x1xf32> -> vector<2x8x1xf32>
    %98 = vector.broadcast %97 : vector<2x8x1xf32> to vector<2x8x8xf32>
    %99 = arith.mulf %94, %98 : vector<2x8x8xf32>
    %100 = arith.truncf %99 : vector<2x8x8xf32> to vector<2x8x8xbf16>
    "tpu.trace_start"() <{level = 10 : i32, message = "bqk,bkd->bqd"}> : () -> ()
    %cst_44 = arith.constant dense<0.000000e+00> : vector<2x8x8xf32>
    %101 = tpu.matmul %100, %88, %cst_44 {dimension_numbers = #tpu.dot_dimension_numbers<[2], [1], [1], [2], [0, 0, 0, 1, 1, 2], [0], [0]>} : vector<2x8x8xbf16>, vector<2x8x8xbf16>, vector<2x8x8xf32> -> vector<2x8x8xf32>
    "tpu.trace_stop"() : () -> ()
    %102 = tpu.concatenate %53, %69, %85, %101 in 2 : vector<2x8x8xf32>, vector<2x8x8xf32>, vector<2x8x8xf32>, vector<2x8x8xf32> -> vector<2x8x32xf32>
    %103 = vector.shape_cast %102 : vector<2x8x32xf32> to vector<16x32xf32>
    %104 = arith.truncf %103 : vector<16x32xf32> to vector<16x32xbf16>
    %c0_45 = arith.constant 0 : index
    %c0_46 = arith.constant 0 : index
    %c0_47 = arith.constant 0 : index
    %105 = vector.load %arg11[%c0_45, %c0_46, %c0_47] : memref<2x32x32xbf16, #tpu.memory_space<vmem>>, vector<1x32x32xbf16>
    %106 = vector.shape_cast %105 : vector<1x32x32xbf16> to vector<32x32xbf16>
    %cst_48 = arith.constant dense<0.000000e+00> : vector<16x32xf32>
    %107 = tpu.matmul %104, %106, %cst_48 {dimension_numbers = #tpu.dot_dimension_numbers<[1], [0], [0], [1], [0, 0, 1, 1], [], []>} : vector<16x32xbf16>, vector<32x32xbf16>, vector<16x32xf32> -> vector<16x32xf32>
    %c0_49 = arith.constant 0 : index
    %c0_50 = arith.constant 0 : index
    %c0_51 = arith.constant 0 : index
    %108 = vector.load %arg12[%c0_49, %c0_50, %c0_51] : memref<2x1x32xf32, #tpu.memory_space<vmem>>, vector<1x1x32xf32>
    %109 = vector.shape_cast %108 : vector<1x1x32xf32> to vector<1x32xf32>
    %110 = vector.broadcast %109 : vector<1x32xf32> to vector<16x32xf32>
    %111 = arith.addf %107, %110 : vector<16x32xf32>
    %112 = arith.addf %7, %111 : vector<16x32xf32>
    %c0_52 = arith.constant 0 : index
    %c0_53 = arith.constant 0 : index
    %c0_54 = arith.constant 0 : index
    %113 = vector.load %arg13[%c0_52, %c0_53, %c0_54] : memref<2x1x32xf32, #tpu.memory_space<vmem>>, vector<1x1x32xf32>
    %114 = vector.shape_cast %113 : vector<1x1x32xf32> to vector<1x32xf32>
    %c0_55 = arith.constant 0 : index
    %c0_56 = arith.constant 0 : index
    %c0_57 = arith.constant 0 : index
    %115 = vector.load %arg14[%c0_55, %c0_56, %c0_57] : memref<2x1x32xf32, #tpu.memory_space<vmem>>, vector<1x1x32xf32>
    %116 = vector.shape_cast %115 : vector<1x1x32xf32> to vector<1x32xf32>
    %cst_58 = arith.constant dense<0.000000e+00> : vector<16xf32>
    %117 = vector.multi_reduction <add>, %112, %cst_58 [1] : vector<16x32xf32> to vector<16xf32>
    %118 = vector.shape_cast %117 : vector<16xf32> to vector<16x1xf32>
    %cst_59 = arith.constant 3.200000e+01 : f32
    %119 = vector.broadcast %cst_59 : f32 to vector<16x1xf32>
    %120 = arith.divf %118, %119 : vector<16x1xf32>
    %121 = vector.broadcast %120 : vector<16x1xf32> to vector<16x32xf32>
    %122 = arith.subf %112, %121 : vector<16x32xf32>
    %123 = arith.mulf %122, %122 : vector<16x32xf32>
    %cst_60 = arith.constant dense<0.000000e+00> : vector<16xf32>
    %124 = vector.multi_reduction <add>, %123, %cst_60 [1] : vector<16x32xf32> to vector<16xf32>
    %125 = vector.shape_cast %124 : vector<16xf32> to vector<16x1xf32>
    %cst_61 = arith.constant 3.200000e+01 : f32
    %126 = vector.broadcast %cst_61 : f32 to vector<16x1xf32>
    %127 = arith.divf %125, %126 : vector<16x1xf32>
    %128 = vector.broadcast %120 : vector<16x1xf32> to vector<16x32xf32>
    %129 = arith.subf %112, %128 : vector<16x32xf32>
    %cst_62 = arith.constant 9.99999974E-6 : f32
    %130 = vector.broadcast %cst_62 : f32 to vector<16x1xf32>
    %131 = arith.addf %127, %130 : vector<16x1xf32>
    %132 = math.rsqrt %131 : vector<16x1xf32>
    %133 = vector.broadcast %132 : vector<16x1xf32> to vector<16x32xf32>
    %134 = arith.mulf %129, %133 : vector<16x32xf32>
    %135 = vector.broadcast %114 : vector<1x32xf32> to vector<16x32xf32>
    %136 = arith.mulf %134, %135 : vector<16x32xf32>
    %137 = vector.broadcast %116 : vector<1x32xf32> to vector<16x32xf32>
    %138 = arith.addf %136, %137 : vector<16x32xf32>
    %139 = arith.truncf %138 : vector<16x32xf32> to vector<16x32xbf16>
    %c0_63 = arith.constant 0 : index
    %c0_64 = arith.constant 0 : index
    %c0_65 = arith.constant 0 : index
    %140 = vector.load %arg17[%c0_63, %c0_64, %c0_65] : memref<2x32x2048xbf16, #tpu.memory_space<vmem>>, vector<1x32x2048xbf16>
    %141 = vector.shape_cast %140 : vector<1x32x2048xbf16> to vector<32x2048xbf16>
    %cst_66 = arith.constant dense<0.000000e+00> : vector<16x2048xf32>
    %142 = tpu.matmul %139, %141, %cst_66 {dimension_numbers = #tpu.dot_dimension_numbers<[1], [0], [0], [1], [0, 0, 1, 1], [], []>} : vector<16x32xbf16>, vector<32x2048xbf16>, vector<16x2048xf32> -> vector<16x2048xf32>
    %c0_67 = arith.constant 0 : index
    %c0_68 = arith.constant 0 : index
    %c0_69 = arith.constant 0 : index
    %143 = vector.load %arg18[%c0_67, %c0_68, %c0_69] : memref<2x1x2048xf32, #tpu.memory_space<vmem>>, vector<1x1x2048xf32>
    %144 = vector.shape_cast %143 : vector<1x1x2048xf32> to vector<1x2048xf32>
    %145 = vector.broadcast %144 : vector<1x2048xf32> to vector<16x2048xf32>
    %146 = arith.addf %142, %145 : vector<16x2048xf32>
    %cst_70 = arith.constant 0.000000e+00 : f32
    %147 = vector.broadcast %cst_70 : f32 to vector<16x2048xf32>
    %148 = arith.maximumf %146, %147 : vector<16x2048xf32>
    %149 = arith.truncf %148 : vector<16x2048xf32> to vector<16x2048xbf16>
    %c0_71 = arith.constant 0 : index
    %c0_72 = arith.constant 0 : index
    %c0_73 = arith.constant 0 : index
    %150 = vector.load %arg19[%c0_71, %c0_72, %c0_73] : memref<2x2048x32xbf16, #tpu.memory_space<vmem>>, vector<1x2048x32xbf16>
    %151 = vector.shape_cast %150 : vector<1x2048x32xbf16> to vector<2048x32xbf16>
    %cst_74 = arith.constant dense<0.000000e+00> : vector<16x32xf32>
    %152 = tpu.matmul %149, %151, %cst_74 {dimension_numbers = #tpu.dot_dimension_numbers<[1], [0], [0], [1], [0, 0, 1, 1], [], []>} : vector<16x2048xbf16>, vector<2048x32xbf16>, vector<16x32xf32> -> vector<16x32xf32>
    %c0_75 = arith.constant 0 : index
    %c0_76 = arith.constant 0 : index
    %c0_77 = arith.constant 0 : index
    %153 = vector.load %arg20[%c0_75, %c0_76, %c0_77] : memref<2x1x32xf32, #tpu.memory_space<vmem>>, vector<1x1x32xf32>
    %154 = vector.shape_cast %153 : vector<1x1x32xf32> to vector<1x32xf32>
    %155 = vector.broadcast %154 : vector<1x32xf32> to vector<16x32xf32>
    %156 = arith.addf %152, %155 : vector<16x32xf32>
    %157 = arith.addf %138, %156 : vector<16x32xf32>
    %c0_78 = arith.constant 0 : index
    %c0_79 = arith.constant 0 : index
    %c0_80 = arith.constant 0 : index
    %158 = vector.load %arg15[%c0_78, %c0_79, %c0_80] : memref<2x1x32xf32, #tpu.memory_space<vmem>>, vector<1x1x32xf32>
    %159 = vector.shape_cast %158 : vector<1x1x32xf32> to vector<1x32xf32>
    %c0_81 = arith.constant 0 : index
    %c0_82 = arith.constant 0 : index
    %c0_83 = arith.constant 0 : index
    %160 = vector.load %arg16[%c0_81, %c0_82, %c0_83] : memref<2x1x32xf32, #tpu.memory_space<vmem>>, vector<1x1x32xf32>
    %161 = vector.shape_cast %160 : vector<1x1x32xf32> to vector<1x32xf32>
    %cst_84 = arith.constant dense<0.000000e+00> : vector<16xf32>
    %162 = vector.multi_reduction <add>, %157, %cst_84 [1] : vector<16x32xf32> to vector<16xf32>
    %163 = vector.shape_cast %162 : vector<16xf32> to vector<16x1xf32>
    %cst_85 = arith.constant 3.200000e+01 : f32
    %164 = vector.broadcast %cst_85 : f32 to vector<16x1xf32>
    %165 = arith.divf %163, %164 : vector<16x1xf32>
    %166 = vector.broadcast %165 : vector<16x1xf32> to vector<16x32xf32>
    %167 = arith.subf %157, %166 : vector<16x32xf32>
    %168 = arith.mulf %167, %167 : vector<16x32xf32>
    %cst_86 = arith.constant dense<0.000000e+00> : vector<16xf32>
    %169 = vector.multi_reduction <add>, %168, %cst_86 [1] : vector<16x32xf32> to vector<16xf32>
    %170 = vector.shape_cast %169 : vector<16xf32> to vector<16x1xf32>
    %cst_87 = arith.constant 3.200000e+01 : f32
    %171 = vector.broadcast %cst_87 : f32 to vector<16x1xf32>
    %172 = arith.divf %170, %171 : vector<16x1xf32>
    %173 = vector.broadcast %165 : vector<16x1xf32> to vector<16x32xf32>
    %174 = arith.subf %157, %173 : vector<16x32xf32>
    %cst_88 = arith.constant 9.99999974E-6 : f32
    %175 = vector.broadcast %cst_88 : f32 to vector<16x1xf32>
    %176 = arith.addf %172, %175 : vector<16x1xf32>
    %177 = math.rsqrt %176 : vector<16x1xf32>
    %178 = vector.broadcast %177 : vector<16x1xf32> to vector<16x32xf32>
    %179 = arith.mulf %174, %178 : vector<16x32xf32>
    %180 = vector.broadcast %159 : vector<1x32xf32> to vector<16x32xf32>
    %181 = arith.mulf %179, %180 : vector<16x32xf32>
    %182 = vector.broadcast %161 : vector<1x32xf32> to vector<16x32xf32>
    %183 = arith.addf %181, %182 : vector<16x32xf32>
    %184 = arith.truncf %183 : vector<16x32xf32> to vector<16x32xbf16>
    %c1 = arith.constant 1 : index
    %c0_89 = arith.constant 0 : index
    %c0_90 = arith.constant 0 : index
    %185 = vector.load %arg5[%c1, %c0_89, %c0_90] : memref<2x32x32xbf16, #tpu.memory_space<vmem>>, vector<1x32x32xbf16>
    %186 = vector.shape_cast %185 : vector<1x32x32xbf16> to vector<32x32xbf16>
    %cst_91 = arith.constant dense<0.000000e+00> : vector<16x32xf32>
    %187 = tpu.matmul %184, %186, %cst_91 {dimension_numbers = #tpu.dot_dimension_numbers<[1], [0], [0], [1], [0, 0, 1, 1], [], []>} : vector<16x32xbf16>, vector<32x32xbf16>, vector<16x32xf32> -> vector<16x32xf32>
    %c1_92 = arith.constant 1 : index
    %c0_93 = arith.constant 0 : index
    %c0_94 = arith.constant 0 : index
    %188 = vector.load %arg6[%c1_92, %c0_93, %c0_94] : memref<2x1x32xf32, #tpu.memory_space<vmem>>, vector<1x1x32xf32>
    %189 = vector.shape_cast %188 : vector<1x1x32xf32> to vector<1x32xf32>
    %190 = vector.broadcast %189 : vector<1x32xf32> to vector<16x32xf32>
    %191 = arith.addf %187, %190 : vector<16x32xf32>
    %c1_95 = arith.constant 1 : index
    %c0_96 = arith.constant 0 : index
    %c0_97 = arith.constant 0 : index
    %192 = vector.load %arg7[%c1_95, %c0_96, %c0_97] : memref<2x32x32xbf16, #tpu.memory_space<vmem>>, vector<1x32x32xbf16>
    %193 = vector.shape_cast %192 : vector<1x32x32xbf16> to vector<32x32xbf16>
    %cst_98 = arith.constant dense<0.000000e+00> : vector<16x32xf32>
    %194 = tpu.matmul %184, %193, %cst_98 {dimension_numbers = #tpu.dot_dimension_numbers<[1], [0], [0], [1], [0, 0, 1, 1], [], []>} : vector<16x32xbf16>, vector<32x32xbf16>, vector<16x32xf32> -> vector<16x32xf32>
    %c1_99 = arith.constant 1 : index
    %c0_100 = arith.constant 0 : index
    %c0_101 = arith.constant 0 : index
    %195 = vector.load %arg8[%c1_99, %c0_100, %c0_101] : memref<2x1x32xf32, #tpu.memory_space<vmem>>, vector<1x1x32xf32>
    %196 = vector.shape_cast %195 : vector<1x1x32xf32> to vector<1x32xf32>
    %197 = vector.broadcast %196 : vector<1x32xf32> to vector<16x32xf32>
    %198 = arith.addf %194, %197 : vector<16x32xf32>
    %c1_102 = arith.constant 1 : index
    %c0_103 = arith.constant 0 : index
    %c0_104 = arith.constant 0 : index
    %199 = vector.load %arg9[%c1_102, %c0_103, %c0_104] : memref<2x32x32xbf16, #tpu.memory_space<vmem>>, vector<1x32x32xbf16>
    %200 = vector.shape_cast %199 : vector<1x32x32xbf16> to vector<32x32xbf16>
    %cst_105 = arith.constant dense<0.000000e+00> : vector<16x32xf32>
    %201 = tpu.matmul %184, %200, %cst_105 {dimension_numbers = #tpu.dot_dimension_numbers<[1], [0], [0], [1], [0, 0, 1, 1], [], []>} : vector<16x32xbf16>, vector<32x32xbf16>, vector<16x32xf32> -> vector<16x32xf32>
    %c1_106 = arith.constant 1 : index
    %c0_107 = arith.constant 0 : index
    %c0_108 = arith.constant 0 : index
    %202 = vector.load %arg10[%c1_106, %c0_107, %c0_108] : memref<2x1x32xf32, #tpu.memory_space<vmem>>, vector<1x1x32xf32>
    %203 = vector.shape_cast %202 : vector<1x1x32xf32> to vector<1x32xf32>
    %204 = vector.broadcast %203 : vector<1x32xf32> to vector<16x32xf32>
    %205 = arith.addf %201, %204 : vector<16x32xf32>
    %cst_109 = arith.constant 0.353553385 : f32
    %206 = vector.broadcast %cst_109 : f32 to vector<16x32xf32>
    %207 = arith.mulf %191, %206 : vector<16x32xf32>
    %208 = vector.shape_cast %207 : vector<16x32xf32> to vector<2x8x32xf32>
    %209 = arith.truncf %208 : vector<2x8x32xf32> to vector<2x8x32xbf16>
    %210 = vector.shape_cast %198 : vector<16x32xf32> to vector<2x8x32xf32>
    %211 = arith.truncf %210 : vector<2x8x32xf32> to vector<2x8x32xbf16>
    %212 = vector.shape_cast %205 : vector<16x32xf32> to vector<2x8x32xf32>
    %213 = arith.truncf %212 : vector<2x8x32xf32> to vector<2x8x32xbf16>
    %214 = vector.extract_strided_slice %209 {offsets = [0, 0, 0], sizes = [2, 8, 8], strides = [1, 1, 1]} : vector<2x8x32xbf16> to vector<2x8x8xbf16>
    %215 = vector.extract_strided_slice %211 {offsets = [0, 0, 0], sizes = [2, 8, 8], strides = [1, 1, 1]} : vector<2x8x32xbf16> to vector<2x8x8xbf16>
    %216 = vector.extract_strided_slice %213 {offsets = [0, 0, 0], sizes = [2, 8, 8], strides = [1, 1, 1]} : vector<2x8x32xbf16> to vector<2x8x8xbf16>
    "tpu.trace_start"() <{level = 10 : i32, message = "bqd,bkd->bqk"}> : () -> ()
    %cst_110 = arith.constant dense<0.000000e+00> : vector<2x8x8xf32>
    %217 = tpu.matmul %214, %215, %cst_110 {dimension_numbers = #tpu.dot_dimension_numbers<[2], [2], [1], [1], [0, 0, 0, 1, 1, 1], [0], [0]>} : vector<2x8x8xbf16>, vector<2x8x8xbf16>, vector<2x8x8xf32> -> vector<2x8x8xf32>
    "tpu.trace_stop"() : () -> ()
    %cst_111 = arith.constant dense<0xFF800000> : vector<2x8xf32>
    %218 = vector.multi_reduction <maximumf>, %217, %cst_111 [2] : vector<2x8x8xf32> to vector<2x8xf32>
    %219 = vector.shape_cast %218 : vector<2x8xf32> to vector<2x8x1xf32>
    %220 = vector.broadcast %219 : vector<2x8x1xf32> to vector<2x8x8xf32>
    %221 = arith.subf %217, %220 : vector<2x8x8xf32>
    %222 = math.exp %221 : vector<2x8x8xf32>
    %cst_112 = arith.constant dense<0.000000e+00> : vector<2x8xf32>
    %223 = vector.multi_reduction <add>, %222, %cst_112 [2] : vector<2x8x8xf32> to vector<2x8xf32>
    %224 = vector.shape_cast %223 : vector<2x8xf32> to vector<2x8x1xf32>
    %225 = tpu.reciprocal %224 {approx = true} : vector<2x8x1xf32> -> vector<2x8x1xf32>
    %226 = vector.broadcast %225 : vector<2x8x1xf32> to vector<2x8x8xf32>
    %227 = arith.mulf %222, %226 : vector<2x8x8xf32>
    %228 = arith.truncf %227 : vector<2x8x8xf32> to vector<2x8x8xbf16>
    "tpu.trace_start"() <{level = 10 : i32, message = "bqk,bkd->bqd"}> : () -> ()
    %cst_113 = arith.constant dense<0.000000e+00> : vector<2x8x8xf32>
    %229 = tpu.matmul %228, %216, %cst_113 {dimension_numbers = #tpu.dot_dimension_numbers<[2], [1], [1], [2], [0, 0, 0, 1, 1, 2], [0], [0]>} : vector<2x8x8xbf16>, vector<2x8x8xbf16>, vector<2x8x8xf32> -> vector<2x8x8xf32>
    "tpu.trace_stop"() : () -> ()
    %230 = vector.extract_strided_slice %209 {offsets = [0, 0, 8], sizes = [2, 8, 8], strides = [1, 1, 1]} : vector<2x8x32xbf16> to vector<2x8x8xbf16>
    %231 = vector.extract_strided_slice %211 {offsets = [0, 0, 8], sizes = [2, 8, 8], strides = [1, 1, 1]} : vector<2x8x32xbf16> to vector<2x8x8xbf16>
    %232 = vector.extract_strided_slice %213 {offsets = [0, 0, 8], sizes = [2, 8, 8], strides = [1, 1, 1]} : vector<2x8x32xbf16> to vector<2x8x8xbf16>
    "tpu.trace_start"() <{level = 10 : i32, message = "bqd,bkd->bqk"}> : () -> ()
    %cst_114 = arith.constant dense<0.000000e+00> : vector<2x8x8xf32>
    %233 = tpu.matmul %230, %231, %cst_114 {dimension_numbers = #tpu.dot_dimension_numbers<[2], [2], [1], [1], [0, 0, 0, 1, 1, 1], [0], [0]>} : vector<2x8x8xbf16>, vector<2x8x8xbf16>, vector<2x8x8xf32> -> vector<2x8x8xf32>
    "tpu.trace_stop"() : () -> ()
    %cst_115 = arith.constant dense<0xFF800000> : vector<2x8xf32>
    %234 = vector.multi_reduction <maximumf>, %233, %cst_115 [2] : vector<2x8x8xf32> to vector<2x8xf32>
    %235 = vector.shape_cast %234 : vector<2x8xf32> to vector<2x8x1xf32>
    %236 = vector.broadcast %235 : vector<2x8x1xf32> to vector<2x8x8xf32>
    %237 = arith.subf %233, %236 : vector<2x8x8xf32>
    %238 = math.exp %237 : vector<2x8x8xf32>
    %cst_116 = arith.constant dense<0.000000e+00> : vector<2x8xf32>
    %239 = vector.multi_reduction <add>, %238, %cst_116 [2] : vector<2x8x8xf32> to vector<2x8xf32>
    %240 = vector.shape_cast %239 : vector<2x8xf32> to vector<2x8x1xf32>
    %241 = tpu.reciprocal %240 {approx = true} : vector<2x8x1xf32> -> vector<2x8x1xf32>
    %242 = vector.broadcast %241 : vector<2x8x1xf32> to vector<2x8x8xf32>
    %243 = arith.mulf %238, %242 : vector<2x8x8xf32>
    %244 = arith.truncf %243 : vector<2x8x8xf32> to vector<2x8x8xbf16>
    "tpu.trace_start"() <{level = 10 : i32, message = "bqk,bkd->bqd"}> : () -> ()
    %cst_117 = arith.constant dense<0.000000e+00> : vector<2x8x8xf32>
    %245 = tpu.matmul %244, %232, %cst_117 {dimension_numbers = #tpu.dot_dimension_numbers<[2], [1], [1], [2], [0, 0, 0, 1, 1, 2], [0], [0]>} : vector<2x8x8xbf16>, vector<2x8x8xbf16>, vector<2x8x8xf32> -> vector<2x8x8xf32>
    "tpu.trace_stop"() : () -> ()
    %246 = vector.extract_strided_slice %209 {offsets = [0, 0, 16], sizes = [2, 8, 8], strides = [1, 1, 1]} : vector<2x8x32xbf16> to vector<2x8x8xbf16>
    %247 = vector.extract_strided_slice %211 {offsets = [0, 0, 16], sizes = [2, 8, 8], strides = [1, 1, 1]} : vector<2x8x32xbf16> to vector<2x8x8xbf16>
    %248 = vector.extract_strided_slice %213 {offsets = [0, 0, 16], sizes = [2, 8, 8], strides = [1, 1, 1]} : vector<2x8x32xbf16> to vector<2x8x8xbf16>
    "tpu.trace_start"() <{level = 10 : i32, message = "bqd,bkd->bqk"}> : () -> ()
    %cst_118 = arith.constant dense<0.000000e+00> : vector<2x8x8xf32>
    %249 = tpu.matmul %246, %247, %cst_118 {dimension_numbers = #tpu.dot_dimension_numbers<[2], [2], [1], [1], [0, 0, 0, 1, 1, 1], [0], [0]>} : vector<2x8x8xbf16>, vector<2x8x8xbf16>, vector<2x8x8xf32> -> vector<2x8x8xf32>
    "tpu.trace_stop"() : () -> ()
    %cst_119 = arith.constant dense<0xFF800000> : vector<2x8xf32>
    %250 = vector.multi_reduction <maximumf>, %249, %cst_119 [2] : vector<2x8x8xf32> to vector<2x8xf32>
    %251 = vector.shape_cast %250 : vector<2x8xf32> to vector<2x8x1xf32>
    %252 = vector.broadcast %251 : vector<2x8x1xf32> to vector<2x8x8xf32>
    %253 = arith.subf %249, %252 : vector<2x8x8xf32>
    %254 = math.exp %253 : vector<2x8x8xf32>
    %cst_120 = arith.constant dense<0.000000e+00> : vector<2x8xf32>
    %255 = vector.multi_reduction <add>, %254, %cst_120 [2] : vector<2x8x8xf32> to vector<2x8xf32>
    %256 = vector.shape_cast %255 : vector<2x8xf32> to vector<2x8x1xf32>
    %257 = tpu.reciprocal %256 {approx = true} : vector<2x8x1xf32> -> vector<2x8x1xf32>
    %258 = vector.broadcast %257 : vector<2x8x1xf32> to vector<2x8x8xf32>
    %259 = arith.mulf %254, %258 : vector<2x8x8xf32>
    %260 = arith.truncf %259 : vector<2x8x8xf32> to vector<2x8x8xbf16>
    "tpu.trace_start"() <{level = 10 : i32, message = "bqk,bkd->bqd"}> : () -> ()
    %cst_121 = arith.constant dense<0.000000e+00> : vector<2x8x8xf32>
    %261 = tpu.matmul %260, %248, %cst_121 {dimension_numbers = #tpu.dot_dimension_numbers<[2], [1], [1], [2], [0, 0, 0, 1, 1, 2], [0], [0]>} : vector<2x8x8xbf16>, vector<2x8x8xbf16>, vector<2x8x8xf32> -> vector<2x8x8xf32>
    "tpu.trace_stop"() : () -> ()
    %262 = vector.extract_strided_slice %209 {offsets = [0, 0, 24], sizes = [2, 8, 8], strides = [1, 1, 1]} : vector<2x8x32xbf16> to vector<2x8x8xbf16>
    %263 = vector.extract_strided_slice %211 {offsets = [0, 0, 24], sizes = [2, 8, 8], strides = [1, 1, 1]} : vector<2x8x32xbf16> to vector<2x8x8xbf16>
    %264 = vector.extract_strided_slice %213 {offsets = [0, 0, 24], sizes = [2, 8, 8], strides = [1, 1, 1]} : vector<2x8x32xbf16> to vector<2x8x8xbf16>
    "tpu.trace_start"() <{level = 10 : i32, message = "bqd,bkd->bqk"}> : () -> ()
    %cst_122 = arith.constant dense<0.000000e+00> : vector<2x8x8xf32>
    %265 = tpu.matmul %262, %263, %cst_122 {dimension_numbers = #tpu.dot_dimension_numbers<[2], [2], [1], [1], [0, 0, 0, 1, 1, 1], [0], [0]>} : vector<2x8x8xbf16>, vector<2x8x8xbf16>, vector<2x8x8xf32> -> vector<2x8x8xf32>
    "tpu.trace_stop"() : () -> ()
    %cst_123 = arith.constant dense<0xFF800000> : vector<2x8xf32>
    %266 = vector.multi_reduction <maximumf>, %265, %cst_123 [2] : vector<2x8x8xf32> to vector<2x8xf32>
    %267 = vector.shape_cast %266 : vector<2x8xf32> to vector<2x8x1xf32>
    %268 = vector.broadcast %267 : vector<2x8x1xf32> to vector<2x8x8xf32>
    %269 = arith.subf %265, %268 : vector<2x8x8xf32>
    %270 = math.exp %269 : vector<2x8x8xf32>
    %cst_124 = arith.constant dense<0.000000e+00> : vector<2x8xf32>
    %271 = vector.multi_reduction <add>, %270, %cst_124 [2] : vector<2x8x8xf32> to vector<2x8xf32>
    %272 = vector.shape_cast %271 : vector<2x8xf32> to vector<2x8x1xf32>
    %273 = tpu.reciprocal %272 {approx = true} : vector<2x8x1xf32> -> vector<2x8x1xf32>
    %274 = vector.broadcast %273 : vector<2x8x1xf32> to vector<2x8x8xf32>
    %275 = arith.mulf %270, %274 : vector<2x8x8xf32>
    %276 = arith.truncf %275 : vector<2x8x8xf32> to vector<2x8x8xbf16>
    "tpu.trace_start"() <{level = 10 : i32, message = "bqk,bkd->bqd"}> : () -> ()
    %cst_125 = arith.constant dense<0.000000e+00> : vector<2x8x8xf32>
    %277 = tpu.matmul %276, %264, %cst_125 {dimension_numbers = #tpu.dot_dimension_numbers<[2], [1], [1], [2], [0, 0, 0, 1, 1, 2], [0], [0]>} : vector<2x8x8xbf16>, vector<2x8x8xbf16>, vector<2x8x8xf32> -> vector<2x8x8xf32>
    "tpu.trace_stop"() : () -> ()
    %278 = tpu.concatenate %229, %245, %261, %277 in 2 : vector<2x8x8xf32>, vector<2x8x8xf32>, vector<2x8x8xf32>, vector<2x8x8xf32> -> vector<2x8x32xf32>
    %279 = vector.shape_cast %278 : vector<2x8x32xf32> to vector<16x32xf32>
    %280 = arith.truncf %279 : vector<16x32xf32> to vector<16x32xbf16>
    %c1_126 = arith.constant 1 : index
    %c0_127 = arith.constant 0 : index
    %c0_128 = arith.constant 0 : index
    %281 = vector.load %arg11[%c1_126, %c0_127, %c0_128] : memref<2x32x32xbf16, #tpu.memory_space<vmem>>, vector<1x32x32xbf16>
    %282 = vector.shape_cast %281 : vector<1x32x32xbf16> to vector<32x32xbf16>
    %cst_129 = arith.constant dense<0.000000e+00> : vector<16x32xf32>
    %283 = tpu.matmul %280, %282, %cst_129 {dimension_numbers = #tpu.dot_dimension_numbers<[1], [0], [0], [1], [0, 0, 1, 1], [], []>} : vector<16x32xbf16>, vector<32x32xbf16>, vector<16x32xf32> -> vector<16x32xf32>
    %c1_130 = arith.constant 1 : index
    %c0_131 = arith.constant 0 : index
    %c0_132 = arith.constant 0 : index
    %284 = vector.load %arg12[%c1_130, %c0_131, %c0_132] : memref<2x1x32xf32, #tpu.memory_space<vmem>>, vector<1x1x32xf32>
    %285 = vector.shape_cast %284 : vector<1x1x32xf32> to vector<1x32xf32>
    %286 = vector.broadcast %285 : vector<1x32xf32> to vector<16x32xf32>
    %287 = arith.addf %283, %286 : vector<16x32xf32>
    %288 = arith.addf %183, %287 : vector<16x32xf32>
    %c1_133 = arith.constant 1 : index
    %c0_134 = arith.constant 0 : index
    %c0_135 = arith.constant 0 : index
    %289 = vector.load %arg13[%c1_133, %c0_134, %c0_135] : memref<2x1x32xf32, #tpu.memory_space<vmem>>, vector<1x1x32xf32>
    %290 = vector.shape_cast %289 : vector<1x1x32xf32> to vector<1x32xf32>
    %c1_136 = arith.constant 1 : index
    %c0_137 = arith.constant 0 : index
    %c0_138 = arith.constant 0 : index
    %291 = vector.load %arg14[%c1_136, %c0_137, %c0_138] : memref<2x1x32xf32, #tpu.memory_space<vmem>>, vector<1x1x32xf32>
    %292 = vector.shape_cast %291 : vector<1x1x32xf32> to vector<1x32xf32>
    %cst_139 = arith.constant dense<0.000000e+00> : vector<16xf32>
    %293 = vector.multi_reduction <add>, %288, %cst_139 [1] : vector<16x32xf32> to vector<16xf32>
    %294 = vector.shape_cast %293 : vector<16xf32> to vector<16x1xf32>
    %cst_140 = arith.constant 3.200000e+01 : f32
    %295 = vector.broadcast %cst_140 : f32 to vector<16x1xf32>
    %296 = arith.divf %294, %295 : vector<16x1xf32>
    %297 = vector.broadcast %296 : vector<16x1xf32> to vector<16x32xf32>
    %298 = arith.subf %288, %297 : vector<16x32xf32>
    %299 = arith.mulf %298, %298 : vector<16x32xf32>
    %cst_141 = arith.constant dense<0.000000e+00> : vector<16xf32>
    %300 = vector.multi_reduction <add>, %299, %cst_141 [1] : vector<16x32xf32> to vector<16xf32>
    %301 = vector.shape_cast %300 : vector<16xf32> to vector<16x1xf32>
    %cst_142 = arith.constant 3.200000e+01 : f32
    %302 = vector.broadcast %cst_142 : f32 to vector<16x1xf32>
    %303 = arith.divf %301, %302 : vector<16x1xf32>
    %304 = vector.broadcast %296 : vector<16x1xf32> to vector<16x32xf32>
    %305 = arith.subf %288, %304 : vector<16x32xf32>
    %cst_143 = arith.constant 9.99999974E-6 : f32
    %306 = vector.broadcast %cst_143 : f32 to vector<16x1xf32>
    %307 = arith.addf %303, %306 : vector<16x1xf32>
    %308 = math.rsqrt %307 : vector<16x1xf32>
    %309 = vector.broadcast %308 : vector<16x1xf32> to vector<16x32xf32>
    %310 = arith.mulf %305, %309 : vector<16x32xf32>
    %311 = vector.broadcast %290 : vector<1x32xf32> to vector<16x32xf32>
    %312 = arith.mulf %310, %311 : vector<16x32xf32>
    %313 = vector.broadcast %292 : vector<1x32xf32> to vector<16x32xf32>
    %314 = arith.addf %312, %313 : vector<16x32xf32>
    %315 = arith.truncf %314 : vector<16x32xf32> to vector<16x32xbf16>
    %c1_144 = arith.constant 1 : index
    %c0_145 = arith.constant 0 : index
    %c0_146 = arith.constant 0 : index
    %316 = vector.load %arg17[%c1_144, %c0_145, %c0_146] : memref<2x32x2048xbf16, #tpu.memory_space<vmem>>, vector<1x32x2048xbf16>
    %317 = vector.shape_cast %316 : vector<1x32x2048xbf16> to vector<32x2048xbf16>
    %cst_147 = arith.constant dense<0.000000e+00> : vector<16x2048xf32>
    %318 = tpu.matmul %315, %317, %cst_147 {dimension_numbers = #tpu.dot_dimension_numbers<[1], [0], [0], [1], [0, 0, 1, 1], [], []>} : vector<16x32xbf16>, vector<32x2048xbf16>, vector<16x2048xf32> -> vector<16x2048xf32>
    %c1_148 = arith.constant 1 : index
    %c0_149 = arith.constant 0 : index
    %c0_150 = arith.constant 0 : index
    %319 = vector.load %arg18[%c1_148, %c0_149, %c0_150] : memref<2x1x2048xf32, #tpu.memory_space<vmem>>, vector<1x1x2048xf32>
    %320 = vector.shape_cast %319 : vector<1x1x2048xf32> to vector<1x2048xf32>
    %321 = vector.broadcast %320 : vector<1x2048xf32> to vector<16x2048xf32>
    %322 = arith.addf %318, %321 : vector<16x2048xf32>
    %cst_151 = arith.constant 0.000000e+00 : f32
    %323 = vector.broadcast %cst_151 : f32 to vector<16x2048xf32>
    %324 = arith.maximumf %322, %323 : vector<16x2048xf32>
    %325 = arith.truncf %324 : vector<16x2048xf32> to vector<16x2048xbf16>
    %c1_152 = arith.constant 1 : index
    %c0_153 = arith.constant 0 : index
    %c0_154 = arith.constant 0 : index
    %326 = vector.load %arg19[%c1_152, %c0_153, %c0_154] : memref<2x2048x32xbf16, #tpu.memory_space<vmem>>, vector<1x2048x32xbf16>
    %327 = vector.shape_cast %326 : vector<1x2048x32xbf16> to vector<2048x32xbf16>
    %cst_155 = arith.constant dense<0.000000e+00> : vector<16x32xf32>
    %328 = tpu.matmul %325, %327, %cst_155 {dimension_numbers = #tpu.dot_dimension_numbers<[1], [0], [0], [1], [0, 0, 1, 1], [], []>} : vector<16x2048xbf16>, vector<2048x32xbf16>, vector<16x32xf32> -> vector<16x32xf32>
    %c1_156 = arith.constant 1 : index
    %c0_157 = arith.constant 0 : index
    %c0_158 = arith.constant 0 : index
    %329 = vector.load %arg20[%c1_156, %c0_157, %c0_158] : memref<2x1x32xf32, #tpu.memory_space<vmem>>, vector<1x1x32xf32>
    %330 = vector.shape_cast %329 : vector<1x1x32xf32> to vector<1x32xf32>
    %331 = vector.broadcast %330 : vector<1x32xf32> to vector<16x32xf32>
    %332 = arith.addf %328, %331 : vector<16x32xf32>
    %333 = arith.addf %314, %332 : vector<16x32xf32>
    %c1_159 = arith.constant 1 : index
    %c0_160 = arith.constant 0 : index
    %c0_161 = arith.constant 0 : index
    %334 = vector.load %arg15[%c1_159, %c0_160, %c0_161] : memref<2x1x32xf32, #tpu.memory_space<vmem>>, vector<1x1x32xf32>
    %335 = vector.shape_cast %334 : vector<1x1x32xf32> to vector<1x32xf32>
    %c1_162 = arith.constant 1 : index
    %c0_163 = arith.constant 0 : index
    %c0_164 = arith.constant 0 : index
    %336 = vector.load %arg16[%c1_162, %c0_163, %c0_164] : memref<2x1x32xf32, #tpu.memory_space<vmem>>, vector<1x1x32xf32>
    %337 = vector.shape_cast %336 : vector<1x1x32xf32> to vector<1x32xf32>
    %cst_165 = arith.constant dense<0.000000e+00> : vector<16xf32>
    %338 = vector.multi_reduction <add>, %333, %cst_165 [1] : vector<16x32xf32> to vector<16xf32>
    %339 = vector.shape_cast %338 : vector<16xf32> to vector<16x1xf32>
    %cst_166 = arith.constant 3.200000e+01 : f32
    %340 = vector.broadcast %cst_166 : f32 to vector<16x1xf32>
    %341 = arith.divf %339, %340 : vector<16x1xf32>
    %342 = vector.broadcast %341 : vector<16x1xf32> to vector<16x32xf32>
    %343 = arith.subf %333, %342 : vector<16x32xf32>
    %344 = arith.mulf %343, %343 : vector<16x32xf32>
    %cst_167 = arith.constant dense<0.000000e+00> : vector<16xf32>
    %345 = vector.multi_reduction <add>, %344, %cst_167 [1] : vector<16x32xf32> to vector<16xf32>
    %346 = vector.shape_cast %345 : vector<16xf32> to vector<16x1xf32>
    %cst_168 = arith.constant 3.200000e+01 : f32
    %347 = vector.broadcast %cst_168 : f32 to vector<16x1xf32>
    %348 = arith.divf %346, %347 : vector<16x1xf32>
    %349 = vector.broadcast %341 : vector<16x1xf32> to vector<16x32xf32>
    %350 = arith.subf %333, %349 : vector<16x32xf32>
    %cst_169 = arith.constant 9.99999974E-6 : f32
    %351 = vector.broadcast %cst_169 : f32 to vector<16x1xf32>
    %352 = arith.addf %348, %351 : vector<16x1xf32>
    %353 = math.rsqrt %352 : vector<16x1xf32>
    %354 = vector.broadcast %353 : vector<16x1xf32> to vector<16x32xf32>
    %355 = arith.mulf %350, %354 : vector<16x32xf32>
    %356 = vector.broadcast %335 : vector<1x32xf32> to vector<16x32xf32>
    %357 = arith.mulf %355, %356 : vector<16x32xf32>
    %358 = vector.broadcast %337 : vector<1x32xf32> to vector<16x32xf32>
    %359 = arith.addf %357, %358 : vector<16x32xf32>
    %360 = vector.shape_cast %359 : vector<16x32xf32> to vector<2x8x32xf32>
    %cst_170 = arith.constant dense<0.000000e+00> : vector<2x32xf32>
    %361 = vector.multi_reduction <add>, %360, %cst_170 [1] : vector<2x8x32xf32> to vector<2x32xf32>
    %cst_171 = arith.constant 1.250000e-01 : f32
    %362 = vector.broadcast %cst_171 : f32 to vector<2x32xf32>
    %363 = arith.mulf %361, %362 : vector<2x32xf32>
    %364 = arith.truncf %363 : vector<2x32xf32> to vector<2x32xbf16>
    %c0_172 = arith.constant 0 : index
    %c0_173 = arith.constant 0 : index
    %365 = vector.load %arg21[%c0_172, %c0_173] : memref<32x128xbf16, #tpu.memory_space<vmem>>, vector<32x128xbf16>
    %cst_174 = arith.constant dense<0.000000e+00> : vector<2x128xf32>
    %366 = tpu.matmul %364, %365, %cst_174 {dimension_numbers = #tpu.dot_dimension_numbers<[1], [0], [0], [1], [0, 0, 1, 1], [], []>} : vector<2x32xbf16>, vector<32x128xbf16>, vector<2x128xf32> -> vector<2x128xf32>
    %c0_175 = arith.constant 0 : index
    %c0_176 = arith.constant 0 : index
    %367 = vector.load %arg22[%c0_175, %c0_176] : memref<1x128xf32, #tpu.memory_space<vmem>>, vector<1x128xf32>
    %368 = vector.broadcast %367 : vector<1x128xf32> to vector<2x128xf32>
    %369 = arith.addf %366, %368 : vector<2x128xf32>
    %c0_177 = arith.constant 0 : index
    %c0_178 = arith.constant 0 : index
    %370 = vector.load %arg23[%c0_177, %c0_178] : memref<2x128xf32, #tpu.memory_space<vmem>>, vector<2x128xf32>
    tpu.vector_store %arg23[%c0_177, %c0_178], %369 {strides = array<i32>} : memref<2x128xf32, #tpu.memory_space<vmem>>, vector<2x128xf32>,
    return
  }
  func.func @transform_0(%arg0: i32) -> (i32, i32) {
    %c0_i32 = arith.constant 0 : i32
    %c0_i32_0 = arith.constant 0 : i32
    return %arg0, %c0_i32 : i32, i32
  }
  func.func @transform_1(%arg0: i32) -> (i32, i32) {
    %c0_i32 = arith.constant 0 : i32
    %c0_i32_0 = arith.constant 0 : i32
    %c0_i32_1 = arith.constant 0 : i32
    return %c0_i32, %c0_i32_0 : i32, i32
  }
  func.func @transform_2(%arg0: i32) -> (i32, i32) {
    %c0_i32 = arith.constant 0 : i32
    %c0_i32_0 = arith.constant 0 : i32
    %c0_i32_1 = arith.constant 0 : i32
    return %c0_i32, %c0_i32_0 : i32, i32
  }
  func.func @transform_3(%arg0: i32) -> (i32, i32) {
    %c0_i32 = arith.constant 0 : i32
    %c0_i32_0 = arith.constant 0 : i32
    %c0_i32_1 = arith.constant 0 : i32
    return %c0_i32, %c0_i32_0 : i32, i32
  }
  func.func @transform_4(%arg0: i32) -> (i32, i32, i32) {
    %c0_i32 = arith.constant 0 : i32
    %c0_i32_0 = arith.constant 0 : i32
    %c0_i32_1 = arith.constant 0 : i32
    %c0_i32_2 = arith.constant 0 : i32
    return %c0_i32, %c0_i32_0, %c0_i32_1 : i32, i32, i32
  }
  func.func @transform_5(%arg0: i32) -> (i32, i32, i32) {
    %c0_i32 = arith.constant 0 : i32
    %c0_i32_0 = arith.constant 0 : i32
    %c0_i32_1 = arith.constant 0 : i32
    %c0_i32_2 = arith.constant 0 : i32
    return %c0_i32, %c0_i32_0, %c0_i32_1 : i32, i32, i32
  }
  func.func @transform_6(%arg0: i32) -> (i32, i32, i32) {
    %c0_i32 = arith.constant 0 : i32
    %c0_i32_0 = arith.constant 0 : i32
    %c0_i32_1 = arith.constant 0 : i32
    %c0_i32_2 = arith.constant 0 : i32
    return %c0_i32, %c0_i32_0, %c0_i32_1 : i32, i32, i32
  }
  func.func @transform_7(%arg0: i32) -> (i32, i32, i32) {
    %c0_i32 = arith.constant 0 : i32
    %c0_i32_0 = arith.constant 0 : i32
    %c0_i32_1 = arith.constant 0 : i32
    %c0_i32_2 = arith.constant 0 : i32
    return %c0_i32, %c0_i32_0, %c0_i32_1 : i32, i32, i32
  }
  func.func @transform_8(%arg0: i32) -> (i32, i32, i32) {
    %c0_i32 = arith.constant 0 : i32
    %c0_i32_0 = arith.constant 0 : i32
    %c0_i32_1 = arith.constant 0 : i32
    %c0_i32_2 = arith.constant 0 : i32
    return %c0_i32, %c0_i32_0, %c0_i32_1 : i32, i32, i32
  }
  func.func @transform_9(%arg0: i32) -> (i32, i32, i32) {
    %c0_i32 = arith.constant 0 : i32
    %c0_i32_0 = arith.constant 0 : i32
    %c0_i32_1 = arith.constant 0 : i32
    %c0_i32_2 = arith.constant 0 : i32
    return %c0_i32, %c0_i32_0, %c0_i32_1 : i32, i32, i32
  }
  func.func @transform_10(%arg0: i32) -> (i32, i32, i32) {
    %c0_i32 = arith.constant 0 : i32
    %c0_i32_0 = arith.constant 0 : i32
    %c0_i32_1 = arith.constant 0 : i32
    %c0_i32_2 = arith.constant 0 : i32
    return %c0_i32, %c0_i32_0, %c0_i32_1 : i32, i32, i32
  }
  func.func @transform_11(%arg0: i32) -> (i32, i32, i32) {
    %c0_i32 = arith.constant 0 : i32
    %c0_i32_0 = arith.constant 0 : i32
    %c0_i32_1 = arith.constant 0 : i32
    %c0_i32_2 = arith.constant 0 : i32
    return %c0_i32, %c0_i32_0, %c0_i32_1 : i32, i32, i32
  }
  func.func @transform_12(%arg0: i32) -> (i32, i32, i32) {
    %c0_i32 = arith.constant 0 : i32
    %c0_i32_0 = arith.constant 0 : i32
    %c0_i32_1 = arith.constant 0 : i32
    %c0_i32_2 = arith.constant 0 : i32
    return %c0_i32, %c0_i32_0, %c0_i32_1 : i32, i32, i32
  }
  func.func @transform_13(%arg0: i32) -> (i32, i32, i32) {
    %c0_i32 = arith.constant 0 : i32
    %c0_i32_0 = arith.constant 0 : i32
    %c0_i32_1 = arith.constant 0 : i32
    %c0_i32_2 = arith.constant 0 : i32
    return %c0_i32, %c0_i32_0, %c0_i32_1 : i32, i32, i32
  }
  func.func @transform_14(%arg0: i32) -> (i32, i32, i32) {
    %c0_i32 = arith.constant 0 : i32
    %c0_i32_0 = arith.constant 0 : i32
    %c0_i32_1 = arith.constant 0 : i32
    %c0_i32_2 = arith.constant 0 : i32
    return %c0_i32, %c0_i32_0, %c0_i32_1 : i32, i32, i32
  }
  func.func @transform_15(%arg0: i32) -> (i32, i32, i32) {
    %c0_i32 = arith.constant 0 : i32
    %c0_i32_0 = arith.constant 0 : i32
    %c0_i32_1 = arith.constant 0 : i32
    %c0_i32_2 = arith.constant 0 : i32
    return %c0_i32, %c0_i32_0, %c0_i32_1 : i32, i32, i32
  }
  func.func @transform_16(%arg0: i32) -> (i32, i32, i32) {
    %c0_i32 = arith.constant 0 : i32
    %c0_i32_0 = arith.constant 0 : i32
    %c0_i32_1 = arith.constant 0 : i32
    %c0_i32_2 = arith.constant 0 : i32
    return %c0_i32, %c0_i32_0, %c0_i32_1 : i32, i32, i32
  }
  func.func @transform_17(%arg0: i32) -> (i32, i32, i32) {
    %c0_i32 = arith.constant 0 : i32
    %c0_i32_0 = arith.constant 0 : i32
    %c0_i32_1 = arith.constant 0 : i32
    %c0_i32_2 = arith.constant 0 : i32
    return %c0_i32, %c0_i32_0, %c0_i32_1 : i32, i32, i32
  }
  func.func @transform_18(%arg0: i32) -> (i32, i32, i32) {
    %c0_i32 = arith.constant 0 : i32
    %c0_i32_0 = arith.constant 0 : i32
    %c0_i32_1 = arith.constant 0 : i32
    %c0_i32_2 = arith.constant 0 : i32
    return %c0_i32, %c0_i32_0, %c0_i32_1 : i32, i32, i32
  }
  func.func @transform_19(%arg0: i32) -> (i32, i32, i32) {
    %c0_i32 = arith.constant 0 : i32
    %c0_i32_0 = arith.constant 0 : i32
    %c0_i32_1 = arith.constant 0 : i32
    %c0_i32_2 = arith.constant 0 : i32
    return %c0_i32, %c0_i32_0, %c0_i32_1 : i32, i32, i32
  }
  func.func @transform_20(%arg0: i32) -> (i32, i32) {
    %c0_i32 = arith.constant 0 : i32
    %c0_i32_0 = arith.constant 0 : i32
    %c0_i32_1 = arith.constant 0 : i32
    return %c0_i32, %c0_i32_0 : i32, i32
  }
  func.func @transform_21(%arg0: i32) -> (i32, i32) {
    %c0_i32 = arith.constant 0 : i32
    %c0_i32_0 = arith.constant 0 : i32
    %c0_i32_1 = arith.constant 0 : i32
    return %c0_i32, %c0_i32_0 : i32, i32
  }
  func.func @transform_22(%arg0: i32) -> (i32, i32) {
    %c0_i32 = arith.constant 0 : i32
    %c0_i32_0 = arith.constant 0 : i32
    return %arg0, %c0_i32 : i32, i32
  }
}

</mosaic_0001>

<llo_original>
// kernel: _forward.1
$region0: #{_forward.1}
  #allocation0 [shape = 'u32[]', space=smem, size = 0x4, offset = 0x4, fixed_abs, tag = 'smem constant byte address 0x4 - core index']
  #allocation1 [shape = 'u32[144,128]{1,0:T(1,128)}', space=vmem, size = 0x12000, scoped, tag = 'internal scratch']
  %s0 = inlined_call_operand.vmem [shape: bf16[16,4], index: 0, kind: input, shape index: {}]
  %s1 = inlined_call_operand.vmem [shape: f32[16,32], index: 1, kind: input, shape index: {}]
  %s2 = inlined_call_operand.vmem [shape: bf16[4,32], index: 2, kind: input, shape index: {}]
  %s3 = inlined_call_operand.vmem [shape: f32[1,32], index: 3, kind: input, shape index: {}]
  %s4 = inlined_call_operand.vmem [shape: bf16[2,32,32], index: 4, kind: input, shape index: {}]
  %s5 = inlined_call_operand.vmem [shape: f32[2,1,32], index: 5, kind: input, shape index: {}]
  %s6 = inlined_call_operand.vmem [shape: bf16[2,32,32], index: 6, kind: input, shape index: {}]
  %s7 = inlined_call_operand.vmem [shape: f32[2,1,32], index: 7, kind: input, shape index: {}]
  %s8 = inlined_call_operand.vmem [shape: bf16[2,32,32], index: 8, kind: input, shape index: {}]
  %s9 = inlined_call_operand.vmem [shape: f32[2,1,32], index: 9, kind: input, shape index: {}]
  %s10 = inlined_call_operand.vmem [shape: bf16[2,32,32], index: 10, kind: input, shape index: {}]
  %s11 = inlined_call_operand.vmem [shape: f32[2,1,32], index: 11, kind: input, shape index: {}]
  %s12 = inlined_call_operand.vmem [shape: f32[2,1,32], index: 12, kind: input, shape index: {}]
  %s13 = inlined_call_operand.vmem [shape: f32[2,1,32], index: 13, kind: input, shape index: {}]
  %s14 = inlined_call_operand.vmem [shape: f32[2,1,32], index: 14, kind: input, shape index: {}]
  %s15 = inlined_call_operand.vmem [shape: f32[2,1,32], index: 15, kind: input, shape index: {}]
  %s16 = inlined_call_operand.vmem [shape: bf16[2,32,2048], index: 16, kind: input, shape index: {}]
  %s17 = inlined_call_operand.vmem [shape: f32[2,1,2048], index: 17, kind: input, shape index: {}]
  %s18 = inlined_call_operand.vmem [shape: bf16[2,2048,32], index: 18, kind: input, shape index: {}]
  %s19 = inlined_call_operand.vmem [shape: f32[2,1,32], index: 19, kind: input, shape index: {}]
  %s20 = inlined_call_operand.vmem [shape: bf16[32,128], index: 20, kind: input, shape index: {}]
  %s21 = inlined_call_operand.vmem [shape: f32[1,128], index: 21, kind: input, shape index: {}]
  %s22 = inlined_call_operand.vmem [shape: f32[2,128], index: 22, kind: output, shape index: {}]
  %s23 = sld [smem:[#allocation0]]
  $region98: #{_forward.1} parent=0
    _
  %s25 = ssub.s32 1, %s23
  %s26 = scalar_select 0, %s25, %s23
  // Predicated region
  $region2: #{_forward.1} parent=0 // pred_check
    _
  $region3: #{_forward.1} parent=0 // pred_check_branch
    %28 = sbr.rel (0) target = $region5
  $region4: #{_forward.1} parent=0 // pred_region
    _
  $region5: #{_forward.1} parent=0 // pred_fallthru
    _
  // Predicated region
  $region6: #{_forward.1} parent=0 // pred_check
    _
  $region7: #{_forward.1} parent=0 // pred_check_branch
    %30 = sbr.rel (0) target = $region9
  $region8: #{_forward.1} parent=0 // pred_region
    _
  $region9: #{_forward.1} parent=0 // pred_fallthru
    _
  // Predicated region
  $region10: #{_forward.1} parent=0 // pred_check
    _
  $region11: #{_forward.1} parent=0 // pred_check_branch
    %32 = sbr.rel (0) target = $region13
  $region12: #{_forward.1} parent=0 // pred_region
    _
  $region13: #{_forward.1} parent=0 // pred_fallthru
    _
  // Predicated region
  $region14: #{_forward.1} parent=0 // pred_check
    _
  $region15: #{_forward.1} parent=0 // pred_check_branch
    %34 = sbr.rel (0) target = $region17
  $region16: #{_forward.1} parent=0 // pred_region
    _
  $region17: #{_forward.1} parent=0 // pred_fallthru
    _
  // Predicated region
  $region18: #{_forward.1} parent=0 // pred_check
    _
  $region19: #{_forward.1} parent=0 // pred_check_branch
    %36 = sbr.rel (0) target = $region21
  $region20: #{_forward.1} parent=0 // pred_region
    _
  $region21: #{_forward.1} parent=0 // pred_fallthru
    _
  // Predicated region
  $region22: #{_forward.1} parent=0 // pred_check
    _
  $region23: #{_forward.1} parent=0 // pred_check_branch
    %38 = sbr.rel (0) target = $region25
  $region24: #{_forward.1} parent=0 // pred_region
    _
  $region25: #{_forward.1} parent=0 // pred_fallthru
    _
  // Predicated region
  $region26: #{_forward.1} parent=0 // pred_check
    _
  $region27: #{_forward.1} parent=0 // pred_check_branch
    %40 = sbr.rel (0) target = $region29
  $region28: #{_forward.1} parent=0 // pred_region
    _
  $region29: #{_forward.1} parent=0 // pred_fallthru
    _
  // Predicated region
  $region30: #{_forward.1} parent=0 // pred_check
    _
  $region31: #{_forward.1} parent=0 // pred_check_branch
    %42 = sbr.rel (0) target = $region33
  $region32: #{_forward.1} parent=0 // pred_region
    _
  $region33: #{_forward.1} parent=0 // pred_fallthru
    _
  // Predicated region
  $region34: #{_forward.1} parent=0 // pred_check
    _
  $region35: #{_forward.1} parent=0 // pred_check_branch
    %44 = sbr.rel (0) target = $region37
  $region36: #{_forward.1} parent=0 // pred_region
    _
  $region37: #{_forward.1} parent=0 // pred_fallthru
    _
  // Predicated region
  $region38: #{_forward.1} parent=0 // pred_check
    _
  $region39: #{_forward.1} parent=0 // pred_check_branch
    %46 = sbr.rel (0) target = $region41
  $region40: #{_forward.1} parent=0 // pred_region
    _
  $region41: #{_forward.1} parent=0 // pred_fallthru
    _
  // Predicated region
  $region42: #{_forward.1} parent=0 // pred_check
    _
  $region43: #{_forward.1} parent=0 // pred_check_branch
    %48 = sbr.rel (0) target = $region45
  $region44: #{_forward.1} parent=0 // pred_region
    _
  $region45: #{_forward.1} parent=0 // pred_fallthru
    _
  // Predicated region
  $region46: #{_forward.1} parent=0 // pred_check
    _
  $region47: #{_forward.1} parent=0 // pred_check_branch
    %50 = sbr.rel (0) target = $region49
  $region48: #{_forward.1} parent=0 // pred_region
    _
  $region49: #{_forward.1} parent=0 // pred_fallthru
    _
  // Predicated region
  $region50: #{_forward.1} parent=0 // pred_check
    _
  $region51: #{_forward.1} parent=0 // pred_check_branch
    %52 = sbr.rel (0) target = $region53
  $region52: #{_forward.1} parent=0 // pred_region
    _
  $region53: #{_forward.1} parent=0 // pred_fallthru
    _
  // Predicated region
  $region54: #{_forward.1} parent=0 // pred_check
    _
  $region55: #{_forward.1} parent=0 // pred_check_branch
    %54 = sbr.rel (0) target = $region57
  $region56: #{_forward.1} parent=0 // pred_region
    _
  $region57: #{_forward.1} parent=0 // pred_fallthru
    _
  // Predicated region
  $region58: #{_forward.1} parent=0 // pred_check
    _
  $region59: #{_forward.1} parent=0 // pred_check_branch
    %56 = sbr.rel (0) target = $region61
  $region60: #{_forward.1} parent=0 // pred_region
    _
  $region61: #{_forward.1} parent=0 // pred_fallthru
    _
  // Predicated region
  $region62: #{_forward.1} parent=0 // pred_check
    _
  $region63: #{_forward.1} parent=0 // pred_check_branch
    %58 = sbr.rel (0) target = $region65
  $region64: #{_forward.1} parent=0 // pred_region
    _
  $region65: #{_forward.1} parent=0 // pred_fallthru
    _
  // Predicated region
  $region66: #{_forward.1} parent=0 // pred_check
    _
  $region67: #{_forward.1} parent=0 // pred_check_branch
    %60 = sbr.rel (0) target = $region69
  $region68: #{_forward.1} parent=0 // pred_region
    _
  $region69: #{_forward.1} parent=0 // pred_fallthru
    _
  // Predicated region
  $region70: #{_forward.1} parent=0 // pred_check
    _
  $region71: #{_forward.1} parent=0 // pred_check_branch
    %62 = sbr.rel (0) target = $region73
  $region72: #{_forward.1} parent=0 // pred_region
    _
  $region73: #{_forward.1} parent=0 // pred_fallthru
    _
  // Predicated region
  $region74: #{_forward.1} parent=0 // pred_check
    _
  $region75: #{_forward.1} parent=0 // pred_check_branch
    %64 = sbr.rel (0) target = $region77
  $region76: #{_forward.1} parent=0 // pred_region
    _
  $region77: #{_forward.1} parent=0 // pred_fallthru
    _
  // Predicated region
  $region78: #{_forward.1} parent=0 // pred_check
    _
  $region79: #{_forward.1} parent=0 // pred_check_branch
    %66 = sbr.rel (0) target = $region81
  $region80: #{_forward.1} parent=0 // pred_region
    _
  $region81: #{_forward.1} parent=0 // pred_fallthru
    _
  // Predicated region
  $region82: #{_forward.1} parent=0 // pred_check
    _
  $region83: #{_forward.1} parent=0 // pred_check_branch
    %68 = sbr.rel (0) target = $region85
  $region84: #{_forward.1} parent=0 // pred_region
    _
  $region85: #{_forward.1} parent=0 // pred_fallthru
    _
  // Predicated region
  $region86: #{_forward.1} parent=0 // pred_check
    _
  $region87: #{_forward.1} parent=0 // pred_check_branch
    %70 = sbr.rel (0) target = $region89
  $region88: #{_forward.1} parent=0 // pred_region
    _
  $region89: #{_forward.1} parent=0 // pred_fallthru
    _
  %v72 = vld [vmem:[%s0] sm:$0xf]
  %v73 = vld [vmem:[%s0 + $0x4] sm:$0xf]
  %v74 = vld [vmem:[%s2] sm:$0x3]
  %v75 = vld [vmem:[%s3] sm:$0x1]
  %v77 = vlaneseq
  %v78 = vshrl.u32 %v77, 7
  %v79 = vsub.s32 0, %v78
  %v80 = vrot.slane %v75, %v79
  %v84 = vunpack.c.l.b16 %v72
  %v85 = vunpack.c.l.b16 %v73
  %v86 = vpack.c.b16 %v85, %v84
  %vm87 = vcmask 31744
  %v89 = vsel %vm87, %v86, 0
  %vm91 = vcmask 1041408
  %v93 = vsel %vm91, %v74, 0
  %95 = vmatprep.subr.bf16.mxu0 0
  %96 = vmatpush1.bf16.msra.mxu0 0
  %97 = vmatprep.subr.bf16.mxu0 0
  %98 = vmatpush1.bf16.msra.mxu0 0
  %99 = vmatprep.subr.bf16.mxu0 0
  %100 = vmatpush1.bf16.msra.mxu0 0
  %101 = vmatprep.subr.bf16.mxu0 0
  %102 = vmatpush1.bf16.msra.mxu0 0
  %103 = vmatprep.subr.bf16.mxu0 0
  %104 = vmatpush1.bf16.msra.mxu0 0
  %105 = vmatprep.subr.bf16.mxu0 0
  %106 = vmatpush1.bf16.msra.mxu0 0
  %107 = vmatprep.subr.bf16.mxu0 0
  %108 = vmatpush1.bf16.msra.mxu0 0
  %109 = vmatprep.subr.bf16.mxu0 0
  %110 = vmatpush1.bf16.msra.mxu0 %v93
  %111 = vmatprep.subr.bf16.mxu0 0
  %112 = vmatpush2.bf16.msra.mxu0 0
  %113 = vmatprep.subr.bf16.mxu0 0
  %114 = vmatpush2.bf16.msra.mxu0 0
  %115 = vmatprep.subr.bf16.mxu0 0
  %116 = vmatpush2.bf16.msra.mxu0 0
  %117 = vmatprep.subr.bf16.mxu0 0
  %118 = vmatpush2.bf16.msra.mxu0 0
  %119 = vmatprep.subr.bf16.mxu0 0
  %120 = vmatpush2.bf16.msra.mxu0 0
  %121 = vmatprep.subr.bf16.mxu0 0
  %122 = vmatpush2.bf16.msra.mxu0 0
  %123 = vmatprep.subr.bf16.mxu0 0
  %124 = vmatpush2.bf16.msra.mxu0 0
  %125 = vmatprep.subr.bf16.mxu0 0
  %126 = vmatpush2.bf16.msra.mxu0 0
  %127 = vmatprep.mubr.bf16.mxu0 0
  %128 = vmatmul.mubr.bf16.gmra.mxu0 %v89
  %v129 = vpop.f32.mrf.mxu0
  %v130 = vadd.f32 %v80, %v129
  %v131 = vpop.f32.mrf.mxu0
  %v132 = vpop.f32.mrf.mxu0
  %v133 = vadd.f32 %v80, %v132
  %v134 = vpop.f32.mrf.mxu0
  %135 = vdwg.mxu0
  %v136 = vld [vmem:[%s1] sm:$0xff]
  %v137 = vld [vmem:[%s1 + $0x8] sm:$0xff]
  %v138 = vadd.f32 %v130, %v136
  %v139 = vadd.f32 %v133, %v137
  %v140 = vpack.c.bf16 %v139, %v138
  %v141 = vld [vmem:[%s4] sm:$0xf]
  %v142 = vld [vmem:[%s4 + $0x4] sm:$0xf]
  %v143 = vld [vmem:[%s4 + $0x8] sm:$0xf]
  %v144 = vld [vmem:[%s4 + $0xc] sm:$0xf]
  %v145 = vld [vmem:[%s5] sm:$0x1]
  %v147 = vlaneseq
  %v148 = vshrl.u32 %v147, 7
  %v149 = vsub.s32 0, %v148
  %v150 = vrot.slane %v145, %v149
  %v156 = vunpack.c.l.b16 %v141
  %v157 = vunpack.c.l.b16 %v142
  %v158 = vunpack.c.l.b16 %v143
  %v159 = vunpack.c.l.b16 %v144
  %v160 = vpack.c.b16 %v157, %v156
  %v161 = vpack.c.b16 %v159, %v158
  %vm164 = vcmask 261120
  %v166 = vsel %vm164, %v140, 0
  %168 = vmatprep.subr.bf16.mxu0 0
  %169 = vmatpush1.bf16.msra.mxu0 0
  %170 = vmatprep.subr.bf16.mxu0 0
  %171 = vmatpush1.bf16.msra.mxu0 0
  %172 = vmatprep.subr.bf16.mxu0 0
  %173 = vmatpush1.bf16.msra.mxu0 0
  %174 = vmatprep.subr.bf16.mxu0 0
  %175 = vmatpush1.bf16.msra.mxu0 0
  %176 = vmatprep.subr.bf16.mxu0 0
  %177 = vmatpush1.bf16.msra.mxu0 0
  %178 = vmatprep.subr.bf16.mxu0 0
  %179 = vmatpush1.bf16.msra.mxu0 0
  %180 = vmatprep.subr.bf16.mxu0 0
  %181 = vmatpush1.bf16.msra.mxu0 %v161
  %182 = vmatprep.subr.bf16.mxu0 0
  %183 = vmatpush1.bf16.msra.mxu0 %v160
  %184 = vmatprep.subr.bf16.mxu0 0
  %185 = vmatpush2.bf16.msra.mxu0 0
  %186 = vmatprep.subr.bf16.mxu0 0
  %187 = vmatpush2.bf16.msra.mxu0 0
  %188 = vmatprep.subr.bf16.mxu0 0
  %189 = vmatpush2.bf16.msra.mxu0 0
  %190 = vmatprep.subr.bf16.mxu0 0
  %191 = vmatpush2.bf16.msra.mxu0 0
  %192 = vmatprep.subr.bf16.mxu0 0
  %193 = vmatpush2.bf16.msra.mxu0 0
  %194 = vmatprep.subr.bf16.mxu0 0
  %195 = vmatpush2.bf16.msra.mxu0 0
  %196 = vmatprep.subr.bf16.mxu0 0
  %197 = vmatpush2.bf16.msra.mxu0 0
  %198 = vmatprep.subr.bf16.mxu0 0
  %199 = vmatpush2.bf16.msra.mxu0 0
  %200 = vmatprep.mubr.bf16.mxu0 0
  %201 = vmatmul.mubr.bf16.gmra.mxu0 %v166
  %v202 = vpop.f32.mrf.mxu0
  %v203 = vadd.f32 %v150, %v202
  %v204 = vpop.f32.mrf.mxu0
  %v205 = vpop.f32.mrf.mxu0
  %v206 = vadd.f32 %v150, %v205
  %v207 = vpop.f32.mrf.mxu0
  %208 = vdwg.mxu0
  %v209 = vld [vmem:[%s6] sm:$0xf]
  %v210 = vld [vmem:[%s6 + $0x4] sm:$0xf]
  %v211 = vld [vmem:[%s6 + $0x8] sm:$0xf]
  %v212 = vld [vmem:[%s6 + $0xc] sm:$0xf]
  %v213 = vld [vmem:[%s7] sm:$0x1]
  %v215 = vlaneseq
  %v216 = vshrl.u32 %v215, 7
  %v217 = vsub.s32 0, %v216
  %v218 = vrot.slane %v213, %v217
  %v224 = vunpack.c.l.b16 %v209
  %v225 = vunpack.c.l.b16 %v210
  %v226 = vunpack.c.l.b16 %v211
  %v227 = vunpack.c.l.b16 %v212
  %v228 = vpack.c.b16 %v225, %v224
  %v229 = vpack.c.b16 %v227, %v226
  %232 = vmatprep.subr.bf16.mxu0 0
  %233 = vmatpush1.bf16.msra.mxu0 0
  %234 = vmatprep.subr.bf16.mxu0 0
  %235 = vmatpush1.bf16.msra.mxu0 0
  %236 = vmatprep.subr.bf16.mxu0 0
  %237 = vmatpush1.bf16.msra.mxu0 0
  %238 = vmatprep.subr.bf16.mxu0 0
  %239 = vmatpush1.bf16.msra.mxu0 0
  %240 = vmatprep.subr.bf16.mxu0 0
  %241 = vmatpush1.bf16.msra.mxu0 0
  %242 = vmatprep.subr.bf16.mxu0 0
  %243 = vmatpush1.bf16.msra.mxu0 0
  %244 = vmatprep.subr.bf16.mxu0 0
  %245 = vmatpush1.bf16.msra.mxu0 %v229
  %246 = vmatprep.subr.bf16.mxu0 0
  %247 = vmatpush1.bf16.msra.mxu0 %v228
  %248 = vmatprep.subr.bf16.mxu0 0
  %249 = vmatpush2.bf16.msra.mxu0 0
  %250 = vmatprep.subr.bf16.mxu0 0
  %251 = vmatpush2.bf16.msra.mxu0 0
  %252 = vmatprep.subr.bf16.mxu0 0
  %253 = vmatpush2.bf16.msra.mxu0 0
  %254 = vmatprep.subr.bf16.mxu0 0
  %255 = vmatpush2.bf16.msra.mxu0 0
  %256 = vmatprep.subr.bf16.mxu0 0
  %257 = vmatpush2.bf16.msra.mxu0 0
  %258 = vmatprep.subr.bf16.mxu0 0
  %259 = vmatpush2.bf16.msra.mxu0 0
  %260 = vmatprep.subr.bf16.mxu0 0
  %261 = vmatpush2.bf16.msra.mxu0 0
  %262 = vmatprep.subr.bf16.mxu0 0
  %263 = vmatpush2.bf16.msra.mxu0 0
  %264 = vmatprep.mubr.bf16.mxu0 0
  %265 = vmatmul.mubr.bf16.gmra.mxu0 %v166
  %v266 = vpop.f32.mrf.mxu0
  %v267 = vadd.f32 %v218, %v266
  %v268 = vpop.f32.mrf.mxu0
  %v269 = vpop.f32.mrf.mxu0
  %v270 = vadd.f32 %v218, %v269
  %v271 = vpop.f32.mrf.mxu0
  %272 = vdwg.mxu0
  %v273 = vld [vmem:[%s8] sm:$0xf]
  %v274 = vld [vmem:[%s8 + $0x4] sm:$0xf]
  %v275 = vld [vmem:[%s8 + $0x8] sm:$0xf]
  %v276 = vld [vmem:[%s8 + $0xc] sm:$0xf]
  %v277 = vld [vmem:[%s9] sm:$0x1]
  %v279 = vlaneseq
  %v280 = vshrl.u32 %v279, 7
  %v281 = vsub.s32 0, %v280
  %v282 = vrot.slane %v277, %v281
  %v288 = vunpack.c.l.b16 %v273
  %v289 = vunpack.c.l.b16 %v274
  %v290 = vunpack.c.l.b16 %v275
  %v291 = vunpack.c.l.b16 %v276
  %v292 = vpack.c.b16 %v289, %v288
  %v293 = vpack.c.b16 %v291, %v290
  %296 = vmatprep.subr.bf16.mxu0 0
  %297 = vmatpush1.bf16.msra.mxu0 0
  %298 = vmatprep.subr.bf16.mxu0 0
  %299 = vmatpush1.bf16.msra.mxu0 0
  %300 = vmatprep.subr.bf16.mxu0 0
  %301 = vmatpush1.bf16.msra.mxu0 0
  %302 = vmatprep.subr.bf16.mxu0 0
  %303 = vmatpush1.bf16.msra.mxu0 0
  %304 = vmatprep.subr.bf16.mxu0 0
  %305 = vmatpush1.bf16.msra.mxu0 0
  %306 = vmatprep.subr.bf16.mxu0 0
  %307 = vmatpush1.bf16.msra.mxu0 0
  %308 = vmatprep.subr.bf16.mxu0 0
  %309 = vmatpush1.bf16.msra.mxu0 %v293
  %310 = vmatprep.subr.bf16.mxu0 0
  %311 = vmatpush1.bf16.msra.mxu0 %v292
  %312 = vmatprep.subr.bf16.mxu0 0
  %313 = vmatpush2.bf16.msra.mxu0 0
  %314 = vmatprep.subr.bf16.mxu0 0
  %315 = vmatpush2.bf16.msra.mxu0 0
  %316 = vmatprep.subr.bf16.mxu0 0
  %317 = vmatpush2.bf16.msra.mxu0 0
  %318 = vmatprep.subr.bf16.mxu0 0
  %319 = vmatpush2.bf16.msra.mxu0 0
  %320 = vmatprep.subr.bf16.mxu0 0
  %321 = vmatpush2.bf16.msra.mxu0 0
  %322 = vmatprep.subr.bf16.mxu0 0
  %323 = vmatpush2.bf16.msra.mxu0 0
  %324 = vmatprep.subr.bf16.mxu0 0
  %325 = vmatpush2.bf16.msra.mxu0 0
  %326 = vmatprep.subr.bf16.mxu0 0
  %327 = vmatpush2.bf16.msra.mxu0 0
  %328 = vmatprep.mubr.bf16.mxu0 0
  %329 = vmatmul.mubr.bf16.gmra.mxu0 %v166
  %v330 = vpop.f32.mrf.mxu0
  %v331 = vadd.f32 %v282, %v330
  %v332 = vpop.f32.mrf.mxu0
  %v333 = vpop.f32.mrf.mxu0
  %v334 = vadd.f32 %v282, %v333
  %v335 = vpop.f32.mrf.mxu0
  %336 = vdwg.mxu0
  %v337 = vmul.f32 %v203, 0.35355338
  %v338 = vmul.f32 %v206, 0.35355338
  %v339 = vpack.c.bf16 %v337, %v337
  %v340 = vpack.c.bf16 %v338, %v338
  %v341 = vpack.c.bf16 %v267, %v267
  %v342 = vpack.c.bf16 %v270, %v270
  %v343 = vpack.c.bf16 %v331, %v331
  %v344 = vpack.c.bf16 %v334, %v334
  %vm345 = vcmask 64512
  %v347 = vsel %vm345, %v339, 0
  %v350 = vsel %vm345, %v341, 0
  %352 = vmatprep.subr.bf16.mxu0 0
  %353 = vmatpush1.bf16.xpose.msra.mxu0 0
  %354 = vmatprep.subr.bf16.mxu0 0
  %355 = vmatpush1.bf16.xpose.msra.mxu0 0
  %356 = vmatprep.subr.bf16.mxu0 0
  %357 = vmatpush1.bf16.xpose.msra.mxu0 0
  %358 = vmatprep.subr.bf16.mxu0 0
  %359 = vmatpush1.bf16.xpose.msra.mxu0 0
  %360 = vmatprep.subr.bf16.mxu0 0
  %361 = vmatpush1.bf16.xpose.msra.mxu0 0
  %362 = vmatprep.subr.bf16.mxu0 0
  %363 = vmatpush1.bf16.xpose.msra.mxu0 0
  %364 = vmatprep.subr.bf16.mxu0 0
  %365 = vmatpush1.bf16.xpose.msra.mxu0 0
  %366 = vmatprep.subr.bf16.mxu0 0
  %367 = vmatpush1.bf16.xpose.msra.mxu0 %v350
  %368 = vmatprep.subr.bf16.mxu0 0
  %369 = vmatpush2.bf16.xpose.msra.mxu0 0
  %370 = vmatprep.subr.bf16.mxu0 0
  %371 = vmatpush2.bf16.xpose.msra.mxu0 0
  %372 = vmatprep.subr.bf16.mxu0 0
  %373 = vmatpush2.bf16.xpose.msra.mxu0 0
  %374 = vmatprep.subr.bf16.mxu0 0
  %375 = vmatpush2.bf16.xpose.msra.mxu0 0
  %376 = vmatprep.subr.bf16.mxu0 0
  %377 = vmatpush2.bf16.xpose.msra.mxu0 0
  %378 = vmatprep.subr.bf16.mxu0 0
  %379 = vmatpush2.bf16.xpose.msra.mxu0 0
  %380 = vmatprep.subr.bf16.mxu0 0
  %381 = vmatpush2.bf16.xpose.msra.mxu0 0
  %382 = vmatprep.subr.bf16.mxu0 0
  %383 = vmatpush2.bf16.xpose.msra.mxu0 0
  %384 = vmatprep.mubr.bf16.mxu0 0
  %385 = vmatmul.mubr.bf16.gmra.mxu0 %v347
  %v386 = vpop.f32.mrf.mxu0
  %v387 = vadd.f32 0.0, %v386
  %v388 = vpop.f32.mrf.mxu0
  %v389 = vpop.f32.mrf.mxu0
  %v390 = vpop.f32.mrf.mxu0
  %391 = vdwg.mxu0
  %v393 = vsel %vm345, %v340, 0
  %v396 = vsel %vm345, %v342, 0
  %398 = vmatprep.subr.bf16.mxu0 0
  %399 = vmatpush1.bf16.xpose.msra.mxu0 0
  %400 = vmatprep.subr.bf16.mxu0 0
  %401 = vmatpush1.bf16.xpose.msra.mxu0 0
  %402 = vmatprep.subr.bf16.mxu0 0
  %403 = vmatpush1.bf16.xpose.msra.mxu0 0
  %404 = vmatprep.subr.bf16.mxu0 0
  %405 = vmatpush1.bf16.xpose.msra.mxu0 0
  %406 = vmatprep.subr.bf16.mxu0 0
  %407 = vmatpush1.bf16.xpose.msra.mxu0 0
  %408 = vmatprep.subr.bf16.mxu0 0
  %409 = vmatpush1.bf16.xpose.msra.mxu0 0
  %410 = vmatprep.subr.bf16.mxu0 0
  %411 = vmatpush1.bf16.xpose.msra.mxu0 0
  %412 = vmatprep.subr.bf16.mxu0 0
  %413 = vmatpush1.bf16.xpose.msra.mxu0 %v396
  %414 = vmatprep.subr.bf16.mxu0 0
  %415 = vmatpush2.bf16.xpose.msra.mxu0 0
  %416 = vmatprep.subr.bf16.mxu0 0
  %417 = vmatpush2.bf16.xpose.msra.mxu0 0
  %418 = vmatprep.subr.bf16.mxu0 0
  %419 = vmatpush2.bf16.xpose.msra.mxu0 0
  %420 = vmatprep.subr.bf16.mxu0 0
  %421 = vmatpush2.bf16.xpose.msra.mxu0 0
  %422 = vmatprep.subr.bf16.mxu0 0
  %423 = vmatpush2.bf16.xpose.msra.mxu0 0
  %424 = vmatprep.subr.bf16.mxu0 0
  %425 = vmatpush2.bf16.xpose.msra.mxu0 0
  %426 = vmatprep.subr.bf16.mxu0 0
  %427 = vmatpush2.bf16.xpose.msra.mxu0 0
  %428 = vmatprep.subr.bf16.mxu0 0
  %429 = vmatpush2.bf16.xpose.msra.mxu0 0
  %430 = vmatprep.mubr.bf16.mxu0 0
  %431 = vmatmul.mubr.bf16.gmra.mxu0 %v393
  %v432 = vpop.f32.mrf.mxu0
  %v433 = vadd.f32 0.0, %v432
  %v434 = vpop.f32.mrf.mxu0
  %v435 = vpop.f32.mrf.mxu0
  %v436 = vpop.f32.mrf.mxu0
  %437 = vdwg.mxu0
  %v438 = vsel %vm345, %v387, -inf
  %439 = vmax.xlane.f32.xlu0 %v438
  %v440 = vpop.xlane.xlu0 %439
  %v441 = vsel %vm345, %v433, -inf
  %442 = vmax.xlane.f32.xlu0 %v441
  %v443 = vpop.xlane.xlu0 %442
  %v444 = vsub.f32 %v387, %v440
  %v445 = vsub.f32 %v433, %v443
  %v446 = vmul.f32 %v444, 1.442695
  %v447 = vpow.pop %v446
  %v448 = vmul.f32 %v445, 1.442695
  %v449 = vpow.pop %v448
  %v450 = vsel %vm345, %v447, 0.0
  %451 = vadd.xlane.f32.xlu0 %v450
  %v452 = vpop.xlane.xlu0 %451
  %v453 = vsel %vm345, %v449, 0.0
  %454 = vadd.xlane.f32.xlu0 %v453
  %v455 = vpop.xlane.xlu0 %454
  %v456 = vrcp.pop %v452
  %v457 = vrcp.pop %v455
  %v458 = vmul.f32 %v447, %v456
  %v459 = vmul.f32 %v449, %v457
  %v460 = vpack.c.bf16 %v458, %v458
  %v461 = vpack.c.bf16 %v459, %v459
  %v463 = vsel %vm345, %v460, 0
  %vm465 = vcmask 1043456
  %v467 = vsel %vm465, %v343, 0
  %469 = vmatprep.subr.bf16.mxu0 0
  %470 = vmatpush1.bf16.msra.mxu0 0
  %471 = vmatprep.subr.bf16.mxu0 0
  %472 = vmatpush1.bf16.msra.mxu0 0
  %473 = vmatprep.subr.bf16.mxu0 0
  %474 = vmatpush1.bf16.msra.mxu0 0
  %475 = vmatprep.subr.bf16.mxu0 0
  %476 = vmatpush1.bf16.msra.mxu0 0
  %477 = vmatprep.subr.bf16.mxu0 0
  %478 = vmatpush1.bf16.msra.mxu0 0
  %479 = vmatprep.subr.bf16.mxu0 0
  %480 = vmatpush1.bf16.msra.mxu0 0
  %481 = vmatprep.subr.bf16.mxu0 0
  %482 = vmatpush1.bf16.msra.mxu0 0
  %483 = vmatprep.subr.bf16.mxu0 0
  %484 = vmatpush1.bf16.msra.mxu0 %v467
  %485 = vmatprep.subr.bf16.mxu0 0
  %486 = vmatpush2.bf16.msra.mxu0 0
  %487 = vmatprep.subr.bf16.mxu0 0
  %488 = vmatpush2.bf16.msra.mxu0 0
  %489 = vmatprep.subr.bf16.mxu0 0
  %490 = vmatpush2.bf16.msra.mxu0 0
  %491 = vmatprep.subr.bf16.mxu0 0
  %492 = vmatpush2.bf16.msra.mxu0 0
  %493 = vmatprep.subr.bf16.mxu0 0
  %494 = vmatpush2.bf16.msra.mxu0 0
  %495 = vmatprep.subr.bf16.mxu0 0
  %496 = vmatpush2.bf16.msra.mxu0 0
  %497 = vmatprep.subr.bf16.mxu0 0
  %498 = vmatpush2.bf16.msra.mxu0 0
  %499 = vmatprep.subr.bf16.mxu0 0
  %500 = vmatpush2.bf16.msra.mxu0 0
  %501 = vmatprep.mubr.bf16.mxu0 0
  %502 = vmatmul.mubr.bf16.gmra.mxu0 %v463
  %v503 = vpop.f32.mrf.mxu0
  %v504 = vadd.f32 0.0, %v503
  %v505 = vpop.f32.mrf.mxu0
  %v506 = vpop.f32.mrf.mxu0
  %v507 = vpop.f32.mrf.mxu0
  %508 = vdwg.mxu0
  %v510 = vsel %vm345, %v461, 0
  %v513 = vsel %vm465, %v344, 0
  %515 = vmatprep.subr.bf16.mxu0 0
  %516 = vmatpush1.bf16.msra.mxu0 0
  %517 = vmatprep.subr.bf16.mxu0 0
  %518 = vmatpush1.bf16.msra.mxu0 0
  %519 = vmatprep.subr.bf16.mxu0 0
  %520 = vmatpush1.bf16.msra.mxu0 0
  %521 = vmatprep.subr.bf16.mxu0 0
  %522 = vmatpush1.bf16.msra.mxu0 0
  %523 = vmatprep.subr.bf16.mxu0 0
  %524 = vmatpush1.bf16.msra.mxu0 0
  %525 = vmatprep.subr.bf16.mxu0 0
  %526 = vmatpush1.bf16.msra.mxu0 0
  %527 = vmatprep.subr.bf16.mxu0 0
  %528 = vmatpush1.bf16.msra.mxu0 0
  %529 = vmatprep.subr.bf16.mxu0 0
  %530 = vmatpush1.bf16.msra.mxu0 %v513
  %531 = vmatprep.subr.bf16.mxu0 0
  %532 = vmatpush2.bf16.msra.mxu0 0
  %533 = vmatprep.subr.bf16.mxu0 0
  %534 = vmatpush2.bf16.msra.mxu0 0
  %535 = vmatprep.subr.bf16.mxu0 0
  %536 = vmatpush2.bf16.msra.mxu0 0
  %537 = vmatprep.subr.bf16.mxu0 0
  %538 = vmatpush2.bf16.msra.mxu0 0
  %539 = vmatprep.subr.bf16.mxu0 0
  %540 = vmatpush2.bf16.msra.mxu0 0
  %541 = vmatprep.subr.bf16.mxu0 0
  %542 = vmatpush2.bf16.msra.mxu0 0
  %543 = vmatprep.subr.bf16.mxu0 0
  %544 = vmatpush2.bf16.msra.mxu0 0
  %545 = vmatprep.subr.bf16.mxu0 0
  %546 = vmatpush2.bf16.msra.mxu0 0
  %547 = vmatprep.mubr.bf16.mxu0 0
  %548 = vmatmul.mubr.bf16.gmra.mxu0 %v510
  %v549 = vpop.f32.mrf.mxu0
  %v550 = vadd.f32 0.0, %v549
  %v551 = vpop.f32.mrf.mxu0
  %v552 = vpop.f32.mrf.mxu0
  %v553 = vpop.f32.mrf.mxu0
  %554 = vdwg.mxu0
  %556 = vrot.lane.b32.xlu0 %v339, 120
  %v557 = vpop.permute.xlu0 %556
  %559 = vrot.lane.b32.xlu0 %v341, 120
  %v560 = vpop.permute.xlu0 %559
  %v562 = vsel %vm345, %v557, 0
  %v565 = vsel %vm345, %v560, 0
  %567 = vmatprep.subr.bf16.mxu0 0
  %568 = vmatpush1.bf16.xpose.msra.mxu0 0
  %569 = vmatprep.subr.bf16.mxu0 0
  %570 = vmatpush1.bf16.xpose.msra.mxu0 0
  %571 = vmatprep.subr.bf16.mxu0 0
  %572 = vmatpush1.bf16.xpose.msra.mxu0 0
  %573 = vmatprep.subr.bf16.mxu0 0
  %574 = vmatpush1.bf16.xpose.msra.mxu0 0
  %575 = vmatprep.subr.bf16.mxu0 0
  %576 = vmatpush1.bf16.xpose.msra.mxu0 0
  %577 = vmatprep.subr.bf16.mxu0 0
  %578 = vmatpush1.bf16.xpose.msra.mxu0 0
  %579 = vmatprep.subr.bf16.mxu0 0
  %580 = vmatpush1.bf16.xpose.msra.mxu0 0
  %581 = vmatprep.subr.bf16.mxu0 0
  %582 = vmatpush1.bf16.xpose.msra.mxu0 %v565
  %583 = vmatprep.subr.bf16.mxu0 0
  %584 = vmatpush2.bf16.xpose.msra.mxu0 0
  %585 = vmatprep.subr.bf16.mxu0 0
  %586 = vmatpush2.bf16.xpose.msra.mxu0 0
  %587 = vmatprep.subr.bf16.mxu0 0
  %588 = vmatpush2.bf16.xpose.msra.mxu0 0
  %589 = vmatprep.subr.bf16.mxu0 0
  %590 = vmatpush2.bf16.xpose.msra.mxu0 0
  %591 = vmatprep.subr.bf16.mxu0 0
  %592 = vmatpush2.bf16.xpose.msra.mxu0 0
  %593 = vmatprep.subr.bf16.mxu0 0
  %594 = vmatpush2.bf16.xpose.msra.mxu0 0
  %595 = vmatprep.subr.bf16.mxu0 0
  %596 = vmatpush2.bf16.xpose.msra.mxu0 0
  %597 = vmatprep.subr.bf16.mxu0 0
  %598 = vmatpush2.bf16.xpose.msra.mxu0 0
  %599 = vmatprep.mubr.bf16.mxu0 0
  %600 = vmatmul.mubr.bf16.gmra.mxu0 %v562
  %v601 = vpop.f32.mrf.mxu0
  %v602 = vadd.f32 0.0, %v601
  %v603 = vpop.f32.mrf.mxu0
  %v604 = vpop.f32.mrf.mxu0
  %v605 = vpop.f32.mrf.mxu0
  %606 = vdwg.mxu0
  %608 = vrot.lane.b32.xlu0 %v340, 120
  %v609 = vpop.permute.xlu0 %608
  %611 = vrot.lane.b32.xlu0 %v342, 120
  %v612 = vpop.permute.xlu0 %611
  %v614 = vsel %vm345, %v609, 0
  %v617 = vsel %vm345, %v612, 0
  %619 = vmatprep.subr.bf16.mxu0 0
  %620 = vmatpush1.bf16.xpose.msra.mxu0 0
  %621 = vmatprep.subr.bf16.mxu0 0
  %622 = vmatpush1.bf16.xpose.msra.mxu0 0
  %623 = vmatprep.subr.bf16.mxu0 0
  %624 = vmatpush1.bf16.xpose.msra.mxu0 0
  %625 = vmatprep.subr.bf16.mxu0 0
  %626 = vmatpush1.bf16.xpose.msra.mxu0 0
  %627 = vmatprep.subr.bf16.mxu0 0
  %628 = vmatpush1.bf16.xpose.msra.mxu0 0
  %629 = vmatprep.subr.bf16.mxu0 0
  %630 = vmatpush1.bf16.xpose.msra.mxu0 0
  %631 = vmatprep.subr.bf16.mxu0 0
  %632 = vmatpush1.bf16.xpose.msra.mxu0 0
  %633 = vmatprep.subr.bf16.mxu0 0
  %634 = vmatpush1.bf16.xpose.msra.mxu0 %v617
  %635 = vmatprep.subr.bf16.mxu0 0
  %636 = vmatpush2.bf16.xpose.msra.mxu0 0
  %637 = vmatprep.subr.bf16.mxu0 0
  %638 = vmatpush2.bf16.xpose.msra.mxu0 0
  %639 = vmatprep.subr.bf16.mxu0 0
  %640 = vmatpush2.bf16.xpose.msra.mxu0 0
  %641 = vmatprep.subr.bf16.mxu0 0
  %642 = vmatpush2.bf16.xpose.msra.mxu0 0
  %643 = vmatprep.subr.bf16.mxu0 0
  %644 = vmatpush2.bf16.xpose.msra.mxu0 0
  %645 = vmatprep.subr.bf16.mxu0 0
  %646 = vmatpush2.bf16.xpose.msra.mxu0 0
  %647 = vmatprep.subr.bf16.mxu0 0
  %648 = vmatpush2.bf16.xpose.msra.mxu0 0
  %649 = vmatprep.subr.bf16.mxu0 0
  %650 = vmatpush2.bf16.xpose.msra.mxu0 0
  %651 = vmatprep.mubr.bf16.mxu0 0
  %652 = vmatmul.mubr.bf16.gmra.mxu0 %v614
  %v653 = vpop.f32.mrf.mxu0
  %v654 = vadd.f32 0.0, %v653
  %v655 = vpop.f32.mrf.mxu0
  %v656 = vpop.f32.mrf.mxu0
  %v657 = vpop.f32.mrf.mxu0
  %658 = vdwg.mxu0
  %v659 = vsel %vm345, %v602, -inf
  %660 = vmax.xlane.f32.xlu0 %v659
  %v661 = vpop.xlane.xlu0 %660
  %v662 = vsel %vm345, %v654, -inf
  %663 = vmax.xlane.f32.xlu0 %v662
  %v664 = vpop.xlane.xlu0 %663
  %v665 = vsub.f32 %v602, %v661
  %v666 = vsub.f32 %v654, %v664
  %v667 = vmul.f32 %v665, 1.442695
  %v668 = vpow.pop %v667
  %v669 = vmul.f32 %v666, 1.442695
  %v670 = vpow.pop %v669
  %v671 = vsel %vm345, %v668, 0.0
  %672 = vadd.xlane.f32.xlu0 %v671
  %v673 = vpop.xlane.xlu0 %672
  %v674 = vsel %vm345, %v670, 0.0
  %675 = vadd.xlane.f32.xlu0 %v674
  %v676 = vpop.xlane.xlu0 %675
  %v677 = vrcp.pop %v673
  %v678 = vrcp.pop %v676
  %v679 = vmul.f32 %v668, %v677
  %v680 = vmul.f32 %v670, %v678
  %v681 = vpack.c.bf16 %v679, %v679
  %v682 = vpack.c.bf16 %v680, %v680
  %684 = vrot.lane.b32.xlu0 %v343, 120
  %v685 = vpop.permute.xlu0 %684
  %v687 = vsel %vm345, %v681, 0
  %v690 = vsel %vm465, %v685, 0
  %692 = vmatprep.subr.bf16.mxu0 0
  %693 = vmatpush1.bf16.msra.mxu0 0
  %694 = vmatprep.subr.bf16.mxu0 0
  %695 = vmatpush1.bf16.msra.mxu0 0
  %696 = vmatprep.subr.bf16.mxu0 0
  %697 = vmatpush1.bf16.msra.mxu0 0
  %698 = vmatprep.subr.bf16.mxu0 0
  %699 = vmatpush1.bf16.msra.mxu0 0
  %700 = vmatprep.subr.bf16.mxu0 0
  %701 = vmatpush1.bf16.msra.mxu0 0
  %702 = vmatprep.subr.bf16.mxu0 0
  %703 = vmatpush1.bf16.msra.mxu0 0
  %704 = vmatprep.subr.bf16.mxu0 0
  %705 = vmatpush1.bf16.msra.mxu0 0
  %706 = vmatprep.subr.bf16.mxu0 0
  %707 = vmatpush1.bf16.msra.mxu0 %v690
  %708 = vmatprep.subr.bf16.mxu0 0
  %709 = vmatpush2.bf16.msra.mxu0 0
  %710 = vmatprep.subr.bf16.mxu0 0
  %711 = vmatpush2.bf16.msra.mxu0 0
  %712 = vmatprep.subr.bf16.mxu0 0
  %713 = vmatpush2.bf16.msra.mxu0 0
  %714 = vmatprep.subr.bf16.mxu0 0
  %715 = vmatpush2.bf16.msra.mxu0 0
  %716 = vmatprep.subr.bf16.mxu0 0
  %717 = vmatpush2.bf16.msra.mxu0 0
  %718 = vmatprep.subr.bf16.mxu0 0
  %719 = vmatpush2.bf16.msra.mxu0 0
  %720 = vmatprep.subr.bf16.mxu0 0
  %721 = vmatpush2.bf16.msra.mxu0 0
  %722 = vmatprep.subr.bf16.mxu0 0
  %723 = vmatpush2.bf16.msra.mxu0 0
  %724 = vmatprep.mubr.bf16.mxu0 0
  %725 = vmatmul.mubr.bf16.gmra.mxu0 %v687
  %v726 = vpop.f32.mrf.mxu0
  %v727 = vadd.f32 0.0, %v726
  %v728 = vpop.f32.mrf.mxu0
  %v729 = vpop.f32.mrf.mxu0
  %v730 = vpop.f32.mrf.mxu0
  %731 = vdwg.mxu0
  %733 = vrot.lane.b32.xlu0 %v344, 120
  %v734 = vpop.permute.xlu0 %733
  %v736 = vsel %vm345, %v682, 0
  %v739 = vsel %vm465, %v734, 0
  %741 = vmatprep.subr.bf16.mxu0 0
  %742 = vmatpush1.bf16.msra.mxu0 0
  %743 = vmatprep.subr.bf16.mxu0 0
  %744 = vmatpush1.bf16.msra.mxu0 0
  %745 = vmatprep.subr.bf16.mxu0 0
  %746 = vmatpush1.bf16.msra.mxu0 0
  %747 = vmatprep.subr.bf16.mxu0 0
  %748 = vmatpush1.bf16.msra.mxu0 0
  %749 = vmatprep.subr.bf16.mxu0 0
  %750 = vmatpush1.bf16.msra.mxu0 0
  %751 = vmatprep.subr.bf16.mxu0 0
  %752 = vmatpush1.bf16.msra.mxu0 0
  %753 = vmatprep.subr.bf16.mxu0 0
  %754 = vmatpush1.bf16.msra.mxu0 0
  %755 = vmatprep.subr.bf16.mxu0 0
  %756 = vmatpush1.bf16.msra.mxu0 %v739
  %757 = vmatprep.subr.bf16.mxu0 0
  %758 = vmatpush2.bf16.msra.mxu0 0
  %759 = vmatprep.subr.bf16.mxu0 0
  %760 = vmatpush2.bf16.msra.mxu0 0
  %761 = vmatprep.subr.bf16.mxu0 0
  %762 = vmatpush2.bf16.msra.mxu0 0
  %763 = vmatprep.subr.bf16.mxu0 0
  %764 = vmatpush2.bf16.msra.mxu0 0
  %765 = vmatprep.subr.bf16.mxu0 0
  %766 = vmatpush2.bf16.msra.mxu0 0
  %767 = vmatprep.subr.bf16.mxu0 0
  %768 = vmatpush2.bf16.msra.mxu0 0
  %769 = vmatprep.subr.bf16.mxu0 0
  %770 = vmatpush2.bf16.msra.mxu0 0
  %771 = vmatprep.subr.bf16.mxu0 0
  %772 = vmatpush2.bf16.msra.mxu0 0
  %773 = vmatprep.mubr.bf16.mxu0 0
  %774 = vmatmul.mubr.bf16.gmra.mxu0 %v736
  %v775 = vpop.f32.mrf.mxu0
  %v776 = vadd.f32 0.0, %v775
  %v777 = vpop.f32.mrf.mxu0
  %v778 = vpop.f32.mrf.mxu0
  %v779 = vpop.f32.mrf.mxu0
  %780 = vdwg.mxu0
  %781 = vrot.lane.b32.xlu0 %v339, 112
  %v782 = vpop.permute.xlu0 %781
  %783 = vrot.lane.b32.xlu0 %v341, 112
  %v784 = vpop.permute.xlu0 %783
  %v786 = vsel %vm345, %v782, 0
  %v789 = vsel %vm345, %v784, 0
  %791 = vmatprep.subr.bf16.mxu0 0
  %792 = vmatpush1.bf16.xpose.msra.mxu0 0
  %793 = vmatprep.subr.bf16.mxu0 0
  %794 = vmatpush1.bf16.xpose.msra.mxu0 0
  %795 = vmatprep.subr.bf16.mxu0 0
  %796 = vmatpush1.bf16.xpose.msra.mxu0 0
  %797 = vmatprep.subr.bf16.mxu0 0
  %798 = vmatpush1.bf16.xpose.msra.mxu0 0
  %799 = vmatprep.subr.bf16.mxu0 0
  %800 = vmatpush1.bf16.xpose.msra.mxu0 0
  %801 = vmatprep.subr.bf16.mxu0 0
  %802 = vmatpush1.bf16.xpose.msra.mxu0 0
  %803 = vmatprep.subr.bf16.mxu0 0
  %804 = vmatpush1.bf16.xpose.msra.mxu0 0
  %805 = vmatprep.subr.bf16.mxu0 0
  %806 = vmatpush1.bf16.xpose.msra.mxu0 %v789
  %807 = vmatprep.subr.bf16.mxu0 0
  %808 = vmatpush2.bf16.xpose.msra.mxu0 0
  %809 = vmatprep.subr.bf16.mxu0 0
  %810 = vmatpush2.bf16.xpose.msra.mxu0 0
  %811 = vmatprep.subr.bf16.mxu0 0
  %812 = vmatpush2.bf16.xpose.msra.mxu0 0
  %813 = vmatprep.subr.bf16.mxu0 0
  %814 = vmatpush2.bf16.xpose.msra.mxu0 0
  %815 = vmatprep.subr.bf16.mxu0 0
  %816 = vmatpush2.bf16.xpose.msra.mxu0 0
  %817 = vmatprep.subr.bf16.mxu0 0
  %818 = vmatpush2.bf16.xpose.msra.mxu0 0
  %819 = vmatprep.subr.bf16.mxu0 0
  %820 = vmatpush2.bf16.xpose.msra.mxu0 0
  %821 = vmatprep.subr.bf16.mxu0 0
  %822 = vmatpush2.bf16.xpose.msra.mxu0 0
  %823 = vmatprep.mubr.bf16.mxu0 0
  %824 = vmatmul.mubr.bf16.gmra.mxu0 %v786
  %v825 = vpop.f32.mrf.mxu0
  %v826 = vadd.f32 0.0, %v825
  %v827 = vpop.f32.mrf.mxu0
  %v828 = vpop.f32.mrf.mxu0
  %v829 = vpop.f32.mrf.mxu0
  %830 = vdwg.mxu0
  %831 = vrot.lane.b32.xlu0 %v340, 112
  %v832 = vpop.permute.xlu0 %831
  %833 = vrot.lane.b32.xlu0 %v342, 112
  %v834 = vpop.permute.xlu0 %833
  %v836 = vsel %vm345, %v832, 0
  %v839 = vsel %vm345, %v834, 0
  %841 = vmatprep.subr.bf16.mxu0 0
  %842 = vmatpush1.bf16.xpose.msra.mxu0 0
  %843 = vmatprep.subr.bf16.mxu0 0
  %844 = vmatpush1.bf16.xpose.msra.mxu0 0
  %845 = vmatprep.subr.bf16.mxu0 0
  %846 = vmatpush1.bf16.xpose.msra.mxu0 0
  %847 = vmatprep.subr.bf16.mxu0 0
  %848 = vmatpush1.bf16.xpose.msra.mxu0 0
  %849 = vmatprep.subr.bf16.mxu0 0
  %850 = vmatpush1.bf16.xpose.msra.mxu0 0
  %851 = vmatprep.subr.bf16.mxu0 0
  %852 = vmatpush1.bf16.xpose.msra.mxu0 0
  %853 = vmatprep.subr.bf16.mxu0 0
  %854 = vmatpush1.bf16.xpose.msra.mxu0 0
  %855 = vmatprep.subr.bf16.mxu0 0
  %856 = vmatpush1.bf16.xpose.msra.mxu0 %v839
  %857 = vmatprep.subr.bf16.mxu0 0
  %858 = vmatpush2.bf16.xpose.msra.mxu0 0
  %859 = vmatprep.subr.bf16.mxu0 0
  %860 = vmatpush2.bf16.xpose.msra.mxu0 0
  %861 = vmatprep.subr.bf16.mxu0 0
  %862 = vmatpush2.bf16.xpose.msra.mxu0 0
  %863 = vmatprep.subr.bf16.mxu0 0
  %864 = vmatpush2.bf16.xpose.msra.mxu0 0
  %865 = vmatprep.subr.bf16.mxu0 0
  %866 = vmatpush2.bf16.xpose.msra.mxu0 0
  %867 = vmatprep.subr.bf16.mxu0 0
  %868 = vmatpush2.bf16.xpose.msra.mxu0 0
  %869 = vmatprep.subr.bf16.mxu0 0
  %870 = vmatpush2.bf16.xpose.msra.mxu0 0
  %871 = vmatprep.subr.bf16.mxu0 0
  %872 = vmatpush2.bf16.xpose.msra.mxu0 0
  %873 = vmatprep.mubr.bf16.mxu0 0
  %874 = vmatmul.mubr.bf16.gmra.mxu0 %v836
  %v875 = vpop.f32.mrf.mxu0
  %v876 = vadd.f32 0.0, %v875
  %v877 = vpop.f32.mrf.mxu0
  %v878 = vpop.f32.mrf.mxu0
  %v879 = vpop.f32.mrf.mxu0
  %880 = vdwg.mxu0
  %v881 = vsel %vm345, %v826, -inf
  %882 = vmax.xlane.f32.xlu0 %v881
  %v883 = vpop.xlane.xlu0 %882
  %v884 = vsel %vm345, %v876, -inf
  %885 = vmax.xlane.f32.xlu0 %v884
  %v886 = vpop.xlane.xlu0 %885
  %v887 = vsub.f32 %v826, %v883
  %v888 = vsub.f32 %v876, %v886
  %v889 = vmul.f32 %v887, 1.442695
  %v890 = vpow.pop %v889
  %v891 = vmul.f32 %v888, 1.442695
  %v892 = vpow.pop %v891
  %v893 = vsel %vm345, %v890, 0.0
  %894 = vadd.xlane.f32.xlu0 %v893
  %v895 = vpop.xlane.xlu0 %894
  %v896 = vsel %vm345, %v892, 0.0
  %897 = vadd.xlane.f32.xlu0 %v896
  %v898 = vpop.xlane.xlu0 %897
  %v899 = vrcp.pop %v895
  %v900 = vrcp.pop %v898
  %v901 = vmul.f32 %v890, %v899
  %v902 = vmul.f32 %v892, %v900
  %v903 = vpack.c.bf16 %v901, %v901
  %v904 = vpack.c.bf16 %v902, %v902
  %905 = vrot.lane.b32.xlu0 %v343, 112
  %v906 = vpop.permute.xlu0 %905
  %v908 = vsel %vm345, %v903, 0
  %v911 = vsel %vm465, %v906, 0
  %913 = vmatprep.subr.bf16.mxu0 0
  %914 = vmatpush1.bf16.msra.mxu0 0
  %915 = vmatprep.subr.bf16.mxu0 0
  %916 = vmatpush1.bf16.msra.mxu0 0
  %917 = vmatprep.subr.bf16.mxu0 0
  %918 = vmatpush1.bf16.msra.mxu0 0
  %919 = vmatprep.subr.bf16.mxu0 0
  %920 = vmatpush1.bf16.msra.mxu0 0
  %921 = vmatprep.subr.bf16.mxu0 0
  %922 = vmatpush1.bf16.msra.mxu0 0
  %923 = vmatprep.subr.bf16.mxu0 0
  %924 = vmatpush1.bf16.msra.mxu0 0
  %925 = vmatprep.subr.bf16.mxu0 0
  %926 = vmatpush1.bf16.msra.mxu0 0
  %927 = vmatprep.subr.bf16.mxu0 0
  %928 = vmatpush1.bf16.msra.mxu0 %v911
  %929 = vmatprep.subr.bf16.mxu0 0
  %930 = vmatpush2.bf16.msra.mxu0 0
  %931 = vmatprep.subr.bf16.mxu0 0
  %932 = vmatpush2.bf16.msra.mxu0 0
  %933 = vmatprep.subr.bf16.mxu0 0
  %934 = vmatpush2.bf16.msra.mxu0 0
  %935 = vmatprep.subr.bf16.mxu0 0
  %936 = vmatpush2.bf16.msra.mxu0 0
  %937 = vmatprep.subr.bf16.mxu0 0
  %938 = vmatpush2.bf16.msra.mxu0 0
  %939 = vmatprep.subr.bf16.mxu0 0
  %940 = vmatpush2.bf16.msra.mxu0 0
  %941 = vmatprep.subr.bf16.mxu0 0
  %942 = vmatpush2.bf16.msra.mxu0 0
  %943 = vmatprep.subr.bf16.mxu0 0
  %944 = vmatpush2.bf16.msra.mxu0 0
  %945 = vmatprep.mubr.bf16.mxu0 0
  %946 = vmatmul.mubr.bf16.gmra.mxu0 %v908
  %v947 = vpop.f32.mrf.mxu0
  %v948 = vadd.f32 0.0, %v947
  %v949 = vpop.f32.mrf.mxu0
  %v950 = vpop.f32.mrf.mxu0
  %v951 = vpop.f32.mrf.mxu0
  %952 = vdwg.mxu0
  %953 = vrot.lane.b32.xlu0 %v344, 112
  %v954 = vpop.permute.xlu0 %953
  %v956 = vsel %vm345, %v904, 0
  %v959 = vsel %vm465, %v954, 0
  %961 = vmatprep.subr.bf16.mxu0 0
  %962 = vmatpush1.bf16.msra.mxu0 0
  %963 = vmatprep.subr.bf16.mxu0 0
  %964 = vmatpush1.bf16.msra.mxu0 0
  %965 = vmatprep.subr.bf16.mxu0 0
  %966 = vmatpush1.bf16.msra.mxu0 0
  %967 = vmatprep.subr.bf16.mxu0 0
  %968 = vmatpush1.bf16.msra.mxu0 0
  %969 = vmatprep.subr.bf16.mxu0 0
  %970 = vmatpush1.bf16.msra.mxu0 0
  %971 = vmatprep.subr.bf16.mxu0 0
  %972 = vmatpush1.bf16.msra.mxu0 0
  %973 = vmatprep.subr.bf16.mxu0 0
  %974 = vmatpush1.bf16.msra.mxu0 0
  %975 = vmatprep.subr.bf16.mxu0 0
  %976 = vmatpush1.bf16.msra.mxu0 %v959
  %977 = vmatprep.subr.bf16.mxu0 0
  %978 = vmatpush2.bf16.msra.mxu0 0
  %979 = vmatprep.subr.bf16.mxu0 0
  %980 = vmatpush2.bf16.msra.mxu0 0
  %981 = vmatprep.subr.bf16.mxu0 0
  %982 = vmatpush2.bf16.msra.mxu0 0
  %983 = vmatprep.subr.bf16.mxu0 0
  %984 = vmatpush2.bf16.msra.mxu0 0
  %985 = vmatprep.subr.bf16.mxu0 0
  %986 = vmatpush2.bf16.msra.mxu0 0
  %987 = vmatprep.subr.bf16.mxu0 0
  %988 = vmatpush2.bf16.msra.mxu0 0
  %989 = vmatprep.subr.bf16.mxu0 0
  %990 = vmatpush2.bf16.msra.mxu0 0
  %991 = vmatprep.subr.bf16.mxu0 0
  %992 = vmatpush2.bf16.msra.mxu0 0
  %993 = vmatprep.mubr.bf16.mxu0 0
  %994 = vmatmul.mubr.bf16.gmra.mxu0 %v956
  %v995 = vpop.f32.mrf.mxu0
  %v996 = vadd.f32 0.0, %v995
  %v997 = vpop.f32.mrf.mxu0
  %v998 = vpop.f32.mrf.mxu0
  %v999 = vpop.f32.mrf.mxu0
  %1000 = vdwg.mxu0
  %1001 = vrot.lane.b32.xlu0 %v339, 104
  %v1002 = vpop.permute.xlu0 %1001
  %1003 = vrot.lane.b32.xlu0 %v341, 104
  %v1004 = vpop.permute.xlu0 %1003
  %v1006 = vsel %vm345, %v1002, 0
  %v1009 = vsel %vm345, %v1004, 0
  %1011 = vmatprep.subr.bf16.mxu0 0
  %1012 = vmatpush1.bf16.xpose.msra.mxu0 0
  %1013 = vmatprep.subr.bf16.mxu0 0
  %1014 = vmatpush1.bf16.xpose.msra.mxu0 0
  %1015 = vmatprep.subr.bf16.mxu0 0
  %1016 = vmatpush1.bf16.xpose.msra.mxu0 0
  %1017 = vmatprep.subr.bf16.mxu0 0
  %1018 = vmatpush1.bf16.xpose.msra.mxu0 0
  %1019 = vmatprep.subr.bf16.mxu0 0
  %1020 = vmatpush1.bf16.xpose.msra.mxu0 0
  %1021 = vmatprep.subr.bf16.mxu0 0
  %1022 = vmatpush1.bf16.xpose.msra.mxu0 0
  %1023 = vmatprep.subr.bf16.mxu0 0
  %1024 = vmatpush1.bf16.xpose.msra.mxu0 0
  %1025 = vmatprep.subr.bf16.mxu0 0
  %1026 = vmatpush1.bf16.xpose.msra.mxu0 %v1009
  %1027 = vmatprep.subr.bf16.mxu0 0
  %1028 = vmatpush2.bf16.xpose.msra.mxu0 0
  %1029 = vmatprep.subr.bf16.mxu0 0
  %1030 = vmatpush2.bf16.xpose.msra.mxu0 0
  %1031 = vmatprep.subr.bf16.mxu0 0
  %1032 = vmatpush2.bf16.xpose.msra.mxu0 0
  %1033 = vmatprep.subr.bf16.mxu0 0
  %1034 = vmatpush2.bf16.xpose.msra.mxu0 0
  %1035 = vmatprep.subr.bf16.mxu0 0
  %1036 = vmatpush2.bf16.xpose.msra.mxu0 0
  %1037 = vmatprep.subr.bf16.mxu0 0
  %1038 = vmatpush2.bf16.xpose.msra.mxu0 0
  %1039 = vmatprep.subr.bf16.mxu0 0
  %1040 = vmatpush2.bf16.xpose.msra.mxu0 0
  %1041 = vmatprep.subr.bf16.mxu0 0
  %1042 = vmatpush2.bf16.xpose.msra.mxu0 0
  %1043 = vmatprep.mubr.bf16.mxu0 0
  %1044 = vmatmul.mubr.bf16.gmra.mxu0 %v1006
  %v1045 = vpop.f32.mrf.mxu0
  %v1046 = vadd.f32 0.0, %v1045
  %v1047 = vpop.f32.mrf.mxu0
  %v1048 = vpop.f32.mrf.mxu0
  %v1049 = vpop.f32.mrf.mxu0
  %1050 = vdwg.mxu0
  %1051 = vrot.lane.b32.xlu0 %v340, 104
  %v1052 = vpop.permute.xlu0 %1051
  %1053 = vrot.lane.b32.xlu0 %v342, 104
  %v1054 = vpop.permute.xlu0 %1053
  %v1056 = vsel %vm345, %v1052, 0
  %v1059 = vsel %vm345, %v1054, 0
  %1061 = vmatprep.subr.bf16.mxu0 0
  %1062 = vmatpush1.bf16.xpose.msra.mxu0 0
  %1063 = vmatprep.subr.bf16.mxu0 0
  %1064 = vmatpush1.bf16.xpose.msra.mxu0 0
  %1065 = vmatprep.subr.bf16.mxu0 0
  %1066 = vmatpush1.bf16.xpose.msra.mxu0 0
  %1067 = vmatprep.subr.bf16.mxu0 0
  %1068 = vmatpush1.bf16.xpose.msra.mxu0 0
  %1069 = vmatprep.subr.bf16.mxu0 0
  %1070 = vmatpush1.bf16.xpose.msra.mxu0 0
  %1071 = vmatprep.subr.bf16.mxu0 0
  %1072 = vmatpush1.bf16.xpose.msra.mxu0 0
  %1073 = vmatprep.subr.bf16.mxu0 0
  %1074 = vmatpush1.bf16.xpose.msra.mxu0 0
  %1075 = vmatprep.subr.bf16.mxu0 0
  %1076 = vmatpush1.bf16.xpose.msra.mxu0 %v1059
  %1077 = vmatprep.subr.bf16.mxu0 0
  %1078 = vmatpush2.bf16.xpose.msra.mxu0 0
  %1079 = vmatprep.subr.bf16.mxu0 0
  %1080 = vmatpush2.bf16.xpose.msra.mxu0 0
  %1081 = vmatprep.subr.bf16.mxu0 0
  %1082 = vmatpush2.bf16.xpose.msra.mxu0 0
  %1083 = vmatprep.subr.bf16.mxu0 0
  %1084 = vmatpush2.bf16.xpose.msra.mxu0 0
  %1085 = vmatprep.subr.bf16.mxu0 0
  %1086 = vmatpush2.bf16.xpose.msra.mxu0 0
  %1087 = vmatprep.subr.bf16.mxu0 0
  %1088 = vmatpush2.bf16.xpose.msra.mxu0 0
  %1089 = vmatprep.subr.bf16.mxu0 0
  %1090 = vmatpush2.bf16.xpose.msra.mxu0 0
  %1091 = vmatprep.subr.bf16.mxu0 0
  %1092 = vmatpush2.bf16.xpose.msra.mxu0 0
  %1093 = vmatprep.mubr.bf16.mxu0 0
  %1094 = vmatmul.mubr.bf16.gmra.mxu0 %v1056
  %v1095 = vpop.f32.mrf.mxu0
  %v1096 = vadd.f32 0.0, %v1095
  %v1097 = vpop.f32.mrf.mxu0
  %v1098 = vpop.f32.mrf.mxu0
  %v1099 = vpop.f32.mrf.mxu0
  %1100 = vdwg.mxu0
  %v1101 = vsel %vm345, %v1046, -inf
  %1102 = vmax.xlane.f32.xlu0 %v1101
  %v1103 = vpop.xlane.xlu0 %1102
  %v1104 = vsel %vm345, %v1096, -inf
  %1105 = vmax.xlane.f32.xlu0 %v1104
  %v1106 = vpop.xlane.xlu0 %1105
  %v1107 = vsub.f32 %v1046, %v1103
  %v1108 = vsub.f32 %v1096, %v1106
  %v1109 = vmul.f32 %v1107, 1.442695
  %v1110 = vpow.pop %v1109
  %v1111 = vmul.f32 %v1108, 1.442695
  %v1112 = vpow.pop %v1111
  %v1113 = vsel %vm345, %v1110, 0.0
  %1114 = vadd.xlane.f32.xlu0 %v1113
  %v1115 = vpop.xlane.xlu0 %1114
  %v1116 = vsel %vm345, %v1112, 0.0
  %1117 = vadd.xlane.f32.xlu0 %v1116
  %v1118 = vpop.xlane.xlu0 %1117
  %v1119 = vrcp.pop %v1115
  %v1120 = vrcp.pop %v1118
  %v1121 = vmul.f32 %v1110, %v1119
  %v1122 = vmul.f32 %v1112, %v1120
  %v1123 = vpack.c.bf16 %v1121, %v1121
  %v1124 = vpack.c.bf16 %v1122, %v1122
  %1125 = vrot.lane.b32.xlu0 %v343, 104
  %v1126 = vpop.permute.xlu0 %1125
  %v1128 = vsel %vm345, %v1123, 0
  %v1131 = vsel %vm465, %v1126, 0
  %1133 = vmatprep.subr.bf16.mxu0 0
  %1134 = vmatpush1.bf16.msra.mxu0 0
  %1135 = vmatprep.subr.bf16.mxu0 0
  %1136 = vmatpush1.bf16.msra.mxu0 0
  %1137 = vmatprep.subr.bf16.mxu0 0
  %1138 = vmatpush1.bf16.msra.mxu0 0
  %1139 = vmatprep.subr.bf16.mxu0 0
  %1140 = vmatpush1.bf16.msra.mxu0 0
  %1141 = vmatprep.subr.bf16.mxu0 0
  %1142 = vmatpush1.bf16.msra.mxu0 0
  %1143 = vmatprep.subr.bf16.mxu0 0
  %1144 = vmatpush1.bf16.msra.mxu0 0
  %1145 = vmatprep.subr.bf16.mxu0 0
  %1146 = vmatpush1.bf16.msra.mxu0 0
  %1147 = vmatprep.subr.bf16.mxu0 0
  %1148 = vmatpush1.bf16.msra.mxu0 %v1131
  %1149 = vmatprep.subr.bf16.mxu0 0
  %1150 = vmatpush2.bf16.msra.mxu0 0
  %1151 = vmatprep.subr.bf16.mxu0 0
  %1152 = vmatpush2.bf16.msra.mxu0 0
  %1153 = vmatprep.subr.bf16.mxu0 0
  %1154 = vmatpush2.bf16.msra.mxu0 0
  %1155 = vmatprep.subr.bf16.mxu0 0
  %1156 = vmatpush2.bf16.msra.mxu0 0
  %1157 = vmatprep.subr.bf16.mxu0 0
  %1158 = vmatpush2.bf16.msra.mxu0 0
  %1159 = vmatprep.subr.bf16.mxu0 0
  %1160 = vmatpush2.bf16.msra.mxu0 0
  %1161 = vmatprep.subr.bf16.mxu0 0
  %1162 = vmatpush2.bf16.msra.mxu0 0
  %1163 = vmatprep.subr.bf16.mxu0 0
  %1164 = vmatpush2.bf16.msra.mxu0 0
  %1165 = vmatprep.mubr.bf16.mxu0 0
  %1166 = vmatmul.mubr.bf16.gmra.mxu0 %v1128
  %v1167 = vpop.f32.mrf.mxu0
  %v1168 = vadd.f32 0.0, %v1167
  %v1169 = vpop.f32.mrf.mxu0
  %v1170 = vpop.f32.mrf.mxu0
  %v1171 = vpop.f32.mrf.mxu0
  %1172 = vdwg.mxu0
  %1173 = vrot.lane.b32.xlu0 %v344, 104
  %v1174 = vpop.permute.xlu0 %1173
  %v1176 = vsel %vm345, %v1124, 0
  %v1179 = vsel %vm465, %v1174, 0
  %1181 = vmatprep.subr.bf16.mxu0 0
  %1182 = vmatpush1.bf16.msra.mxu0 0
  %1183 = vmatprep.subr.bf16.mxu0 0
  %1184 = vmatpush1.bf16.msra.mxu0 0
  %1185 = vmatprep.subr.bf16.mxu0 0
  %1186 = vmatpush1.bf16.msra.mxu0 0
  %1187 = vmatprep.subr.bf16.mxu0 0
  %1188 = vmatpush1.bf16.msra.mxu0 0
  %1189 = vmatprep.subr.bf16.mxu0 0
  %1190 = vmatpush1.bf16.msra.mxu0 0
  %1191 = vmatprep.subr.bf16.mxu0 0
  %1192 = vmatpush1.bf16.msra.mxu0 0
  %1193 = vmatprep.subr.bf16.mxu0 0
  %1194 = vmatpush1.bf16.msra.mxu0 0
  %1195 = vmatprep.subr.bf16.mxu0 0
  %1196 = vmatpush1.bf16.msra.mxu0 %v1179
  %1197 = vmatprep.subr.bf16.mxu0 0
  %1198 = vmatpush2.bf16.msra.mxu0 0
  %1199 = vmatprep.subr.bf16.mxu0 0
  %1200 = vmatpush2.bf16.msra.mxu0 0
  %1201 = vmatprep.subr.bf16.mxu0 0
  %1202 = vmatpush2.bf16.msra.mxu0 0
  %1203 = vmatprep.subr.bf16.mxu0 0
  %1204 = vmatpush2.bf16.msra.mxu0 0
  %1205 = vmatprep.subr.bf16.mxu0 0
  %1206 = vmatpush2.bf16.msra.mxu0 0
  %1207 = vmatprep.subr.bf16.mxu0 0
  %1208 = vmatpush2.bf16.msra.mxu0 0
  %1209 = vmatprep.subr.bf16.mxu0 0
  %1210 = vmatpush2.bf16.msra.mxu0 0
  %1211 = vmatprep.subr.bf16.mxu0 0
  %1212 = vmatpush2.bf16.msra.mxu0 0
  %1213 = vmatprep.mubr.bf16.mxu0 0
  %1214 = vmatmul.mubr.bf16.gmra.mxu0 %v1176
  %v1215 = vpop.f32.mrf.mxu0
  %v1216 = vadd.f32 0.0, %v1215
  %v1217 = vpop.f32.mrf.mxu0
  %v1218 = vpop.f32.mrf.mxu0
  %v1219 = vpop.f32.mrf.mxu0
  %1220 = vdwg.mxu0
  %1223 = vrot.lane.b32.xlu0 %v727, 8
  %v1224 = vpop.permute.xlu0 %1223
  %1225 = vrot.lane.b32.xlu0 %v776, 8
  %v1226 = vpop.permute.xlu0 %1225
  %1231 = vrot.lane.b32.xlu0 %v948, 16
  %v1232 = vpop.permute.xlu0 %1231
  %1233 = vrot.lane.b32.xlu0 %v996, 16
  %v1234 = vpop.permute.xlu0 %1233
  %1239 = vrot.lane.b32.xlu0 %v1168, 24
  %v1240 = vpop.permute.xlu0 %1239
  %1241 = vrot.lane.b32.xlu0 %v1216, 24
  %v1242 = vpop.permute.xlu0 %1241
  %v1245 = vsel %vm345, %v504, %v1224
  %v1246 = vsel %vm345, %v550, %v1226
  %vm1247 = vcmask 130048
  %v1248 = vsel %vm1247, %v1245, %v1232
  %v1249 = vsel %vm1247, %v1246, %v1234
  %vm1250 = vcmask 195584
  %v1251 = vsel %vm1250, %v1248, %v1240
  %v1252 = vsel %vm1250, %v1249, %v1242
  %v1253 = vpack.c.bf16 %v1252, %v1251
  %v1254 = vld [vmem:[%s10] sm:$0xf]
  %v1255 = vld [vmem:[%s10 + $0x4] sm:$0xf]
  %v1256 = vld [vmem:[%s10 + $0x8] sm:$0xf]
  %v1257 = vld [vmem:[%s10 + $0xc] sm:$0xf]
  %v1258 = vld [vmem:[%s11] sm:$0x1]
  %v1260 = vlaneseq
  %v1261 = vshrl.u32 %v1260, 7
  %v1262 = vsub.s32 0, %v1261
  %v1263 = vrot.slane %v1258, %v1262
  %v1269 = vunpack.c.l.b16 %v1254
  %v1270 = vunpack.c.l.b16 %v1255
  %v1271 = vunpack.c.l.b16 %v1256
  %v1272 = vunpack.c.l.b16 %v1257
  %v1273 = vpack.c.b16 %v1270, %v1269
  %v1274 = vpack.c.b16 %v1272, %v1271
  %v1278 = vsel %vm164, %v1253, 0
  %1280 = vmatprep.subr.bf16.mxu0 0
  %1281 = vmatpush1.bf16.msra.mxu0 0
  %1282 = vmatprep.subr.bf16.mxu0 0
  %1283 = vmatpush1.bf16.msra.mxu0 0
  %1284 = vmatprep.subr.bf16.mxu0 0
  %1285 = vmatpush1.bf16.msra.mxu0 0
  %1286 = vmatprep.subr.bf16.mxu0 0
  %1287 = vmatpush1.bf16.msra.mxu0 0
  %1288 = vmatprep.subr.bf16.mxu0 0
  %1289 = vmatpush1.bf16.msra.mxu0 0
  %1290 = vmatprep.subr.bf16.mxu0 0
  %1291 = vmatpush1.bf16.msra.mxu0 0
  %1292 = vmatprep.subr.bf16.mxu0 0
  %1293 = vmatpush1.bf16.msra.mxu0 %v1274
  %1294 = vmatprep.subr.bf16.mxu0 0
  %1295 = vmatpush1.bf16.msra.mxu0 %v1273
  %1296 = vmatprep.subr.bf16.mxu0 0
  %1297 = vmatpush2.bf16.msra.mxu0 0
  %1298 = vmatprep.subr.bf16.mxu0 0
  %1299 = vmatpush2.bf16.msra.mxu0 0
  %1300 = vmatprep.subr.bf16.mxu0 0
  %1301 = vmatpush2.bf16.msra.mxu0 0
  %1302 = vmatprep.subr.bf16.mxu0 0
  %1303 = vmatpush2.bf16.msra.mxu0 0
  %1304 = vmatprep.subr.bf16.mxu0 0
  %1305 = vmatpush2.bf16.msra.mxu0 0
  %1306 = vmatprep.subr.bf16.mxu0 0
  %1307 = vmatpush2.bf16.msra.mxu0 0
  %1308 = vmatprep.subr.bf16.mxu0 0
  %1309 = vmatpush2.bf16.msra.mxu0 0
  %1310 = vmatprep.subr.bf16.mxu0 0
  %1311 = vmatpush2.bf16.msra.mxu0 0
  %1312 = vmatprep.mubr.bf16.mxu0 0
  %1313 = vmatmul.mubr.bf16.gmra.mxu0 %v1278
  %v1314 = vpop.f32.mrf.mxu0
  %v1315 = vadd.f32 %v1263, %v1314
  %v1316 = vpop.f32.mrf.mxu0
  %v1317 = vpop.f32.mrf.mxu0
  %v1318 = vadd.f32 %v1263, %v1317
  %v1319 = vpop.f32.mrf.mxu0
  %1320 = vdwg.mxu0
  %v1321 = vadd.f32 %v138, %v1315
  %v1322 = vadd.f32 %v139, %v1318
  %v1323 = vld [vmem:[%s12] sm:$0x1]
  %v1324 = vld [vmem:[%s13] sm:$0x1]
  %v1325 = vsel %vm164, %v1321, 0.0
  %1326 = vadd.xlane.f32.xlu0 %v1325
  %v1327 = vpop.xlane.xlu0 %1326
  %v1328 = vsel %vm164, %v1322, 0.0
  %1329 = vadd.xlane.f32.xlu0 %v1328
  %v1330 = vpop.xlane.xlu0 %1329
  %v1331 = vrcp.pop 32.0
  %v1332 = vmul.f32 %v1327, %v1331
  %v1333 = vmul.f32 %v1330, %v1331
  %v1334 = vsub.f32 %v1321, %v1332
  %v1335 = vsub.f32 %v1322, %v1333
  %v1336 = vmul.f32 %v1334, %v1334
  %v1337 = vmul.f32 %v1335, %v1335
  %v1338 = vsel %vm164, %v1336, 0.0
  %1339 = vadd.xlane.f32.xlu0 %v1338
  %v1340 = vpop.xlane.xlu0 %1339
  %v1341 = vsel %vm164, %v1337, 0.0
  %1342 = vadd.xlane.f32.xlu0 %v1341
  %v1343 = vpop.xlane.xlu0 %1342
  %v1344 = vmul.f32 %v1340, %v1331
  %v1345 = vmul.f32 %v1343, %v1331
  %v1346 = vadd.f32 %v1344, 1e-05
  %v1347 = vadd.f32 %v1345, 1e-05
  %v1348 = vrsqrt.pop %v1346
  %v1349 = vrsqrt.pop %v1347
  %v1350 = vmul.f32 %v1334, %v1348
  %v1351 = vmul.f32 %v1335, %v1349
  %v1353 = vlaneseq
  %v1354 = vshrl.u32 %v1353, 7
  %v1355 = vsub.s32 0, %v1354
  %v1356 = vrot.slane %v1323, %v1355
  %v1358 = vmul.f32 %v1350, %v1356
  %v1359 = vmul.f32 %v1351, %v1356
  %v1361 = vlaneseq
  %v1362 = vshrl.u32 %v1361, 7
  %v1363 = vsub.s32 0, %v1362
  %v1364 = vrot.slane %v1324, %v1363
  %v1366 = vadd.f32 %v1358, %v1364
  %v1367 = vadd.f32 %v1359, %v1364
  %v1368 = vpack.c.bf16 %v1367, %v1366
  %v1369 = vld [vmem:[%s16] sm:$0xff]
  %v1370 = vld [vmem:[%s16 + $0x8] sm:$0xff]
  %v1371 = vld [vmem:[%s16 + $0x10] sm:$0xff]
  %v1372 = vld [vmem:[%s16 + $0x18] sm:$0xff]
  %v1373 = vld [vmem:[%s16 + $0x20] sm:$0xff]
  %v1374 = vld [vmem:[%s16 + $0x28] sm:$0xff]
  %v1375 = vld [vmem:[%s16 + $0x30] sm:$0xff]
  %v1376 = vld [vmem:[%s16 + $0x38] sm:$0xff]
  %v1377 = vld [vmem:[%s16 + $0x40] sm:$0xff]
  %v1378 = vld [vmem:[%s16 + $0x48] sm:$0xff]
  %v1379 = vld [vmem:[%s16 + $0x50] sm:$0xff]
  %v1380 = vld [vmem:[%s16 + $0x58] sm:$0xff]
  %v1381 = vld [vmem:[%s16 + $0x60] sm:$0xff]
  %v1382 = vld [vmem:[%s16 + $0x68] sm:$0xff]
  %v1383 = vld [vmem:[%s16 + $0x70] sm:$0xff]
  %v1384 = vld [vmem:[%s16 + $0x78] sm:$0xff]
  %v1385 = vld [vmem:[%s16 + $0x80] sm:$0xff]
  %v1386 = vld [vmem:[%s16 + $0x88] sm:$0xff]
  %v1387 = vld [vmem:[%s16 + $0x90] sm:$0xff]
  %v1388 = vld [vmem:[%s16 + $0x98] sm:$0xff]
  %v1389 = vld [vmem:[%s16 + $0xa0] sm:$0xff]
  %v1390 = vld [vmem:[%s16 + $0xa8] sm:$0xff]
  %v1391 = vld [vmem:[%s16 + $0xb0] sm:$0xff]
  %v1392 = vld [vmem:[%s16 + $0xb8] sm:$0xff]
  %v1393 = vld [vmem:[%s16 + $0xc0] sm:$0xff]
  %v1394 = vld [vmem:[%s16 + $0xc8] sm:$0xff]
  %v1395 = vld [vmem:[%s16 + $0xd0] sm:$0xff]
  %v1396 = vld [vmem:[%s16 + $0xd8] sm:$0xff]
  %v1397 = vld [vmem:[%s16 + $0xe0] sm:$0xff]
  %v1398 = vld [vmem:[%s16 + $0xe8] sm:$0xff]
  %v1399 = vld [vmem:[%s16 + $0xf0] sm:$0xff]
  %v1400 = vld [vmem:[%s16 + $0xf8] sm:$0xff]
  %v1401 = vld [vmem:[%s17] sm:$0xff]
  %v1402 = vld [vmem:[%s17 + $0x8] sm:$0xff]
  %v1405 = vlaneseq
  %v1406 = vshrl.u32 %v1405, 7
  %v1407 = vsub.s32 0, %v1406
  %v1408 = vrot.slane %v1401, %v1407
  %v1409 = vlaneseq
  %v1410 = vshrl.u32 %v1409, 7
  %v1411 = vsub.s32 1, %v1410
  %v1412 = vrot.slane %v1401, %v1411
  %v1413 = vlaneseq
  %v1414 = vshrl.u32 %v1413, 7
  %v1415 = vsub.s32 2, %v1414
  %v1416 = vrot.slane %v1401, %v1415
  %v1417 = vlaneseq
  %v1418 = vshrl.u32 %v1417, 7
  %v1419 = vsub.s32 3, %v1418
  %v1420 = vrot.slane %v1401, %v1419
  %v1421 = vlaneseq
  %v1422 = vshrl.u32 %v1421, 7
  %v1423 = vsub.s32 4, %v1422
  %v1424 = vrot.slane %v1401, %v1423
  %v1425 = vlaneseq
  %v1426 = vshrl.u32 %v1425, 7
  %v1427 = vsub.s32 5, %v1426
  %v1428 = vrot.slane %v1401, %v1427
  %v1429 = vlaneseq
  %v1430 = vshrl.u32 %v1429, 7
  %v1431 = vsub.s32 6, %v1430
  %v1432 = vrot.slane %v1401, %v1431
  %v1433 = vlaneseq
  %v1434 = vshrl.u32 %v1433, 7
  %v1435 = vsub.s32 7, %v1434
  %v1436 = vrot.slane %v1401, %v1435
  %v1437 = vlaneseq
  %v1438 = vshrl.u32 %v1437, 7
  %v1439 = vsub.s32 0, %v1438
  %v1440 = vrot.slane %v1402, %v1439
  %v1441 = vlaneseq
  %v1442 = vshrl.u32 %v1441, 7
  %v1443 = vsub.s32 1, %v1442
  %v1444 = vrot.slane %v1402, %v1443
  %v1445 = vlaneseq
  %v1446 = vshrl.u32 %v1445, 7
  %v1447 = vsub.s32 2, %v1446
  %v1448 = vrot.slane %v1402, %v1447
  %v1449 = vlaneseq
  %v1450 = vshrl.u32 %v1449, 7
  %v1451 = vsub.s32 3, %v1450
  %v1452 = vrot.slane %v1402, %v1451
  %v1453 = vlaneseq
  %v1454 = vshrl.u32 %v1453, 7
  %v1455 = vsub.s32 4, %v1454
  %v1456 = vrot.slane %v1402, %v1455
  %v1457 = vlaneseq
  %v1458 = vshrl.u32 %v1457, 7
  %v1459 = vsub.s32 5, %v1458
  %v1460 = vrot.slane %v1402, %v1459
  %v1461 = vlaneseq
  %v1462 = vshrl.u32 %v1461, 7
  %v1463 = vsub.s32 6, %v1462
  %v1464 = vrot.slane %v1402, %v1463
  %v1465 = vlaneseq
  %v1466 = vshrl.u32 %v1465, 7
  %v1467 = vsub.s32 7, %v1466
  %v1468 = vrot.slane %v1402, %v1467
  %v1517 = vunpack.c.l.b16 %v1369
  %v1518 = vunpack.c.h.b16 %v1369
  %v1519 = vunpack.c.l.b16 %v1370
  %v1520 = vunpack.c.h.b16 %v1370
  %v1521 = vunpack.c.l.b16 %v1371
  %v1522 = vunpack.c.h.b16 %v1371
  %v1523 = vunpack.c.l.b16 %v1372
  %v1524 = vunpack.c.h.b16 %v1372
  %v1525 = vunpack.c.l.b16 %v1373
  %v1526 = vunpack.c.h.b16 %v1373
  %v1527 = vunpack.c.l.b16 %v1374
  %v1528 = vunpack.c.h.b16 %v1374
  %v1529 = vunpack.c.l.b16 %v1375
  %v1530 = vunpack.c.h.b16 %v1375
  %v1531 = vunpack.c.l.b16 %v1376
  %v1532 = vunpack.c.h.b16 %v1376
  %v1533 = vunpack.c.l.b16 %v1377
  %v1534 = vunpack.c.h.b16 %v1377
  %v1535 = vunpack.c.l.b16 %v1378
  %v1536 = vunpack.c.h.b16 %v1378
  %v1537 = vunpack.c.l.b16 %v1379
  %v1538 = vunpack.c.h.b16 %v1379
  %v1539 = vunpack.c.l.b16 %v1380
  %v1540 = vunpack.c.h.b16 %v1380
  %v1541 = vunpack.c.l.b16 %v1381
  %v1542 = vunpack.c.h.b16 %v1381
  %v1543 = vunpack.c.l.b16 %v1382
  %v1544 = vunpack.c.h.b16 %v1382
  %v1545 = vunpack.c.l.b16 %v1383
  %v1546 = vunpack.c.h.b16 %v1383
  %v1547 = vunpack.c.l.b16 %v1384
  %v1548 = vunpack.c.h.b16 %v1384
  %v1549 = vunpack.c.l.b16 %v1385
  %v1550 = vunpack.c.h.b16 %v1385
  %v1551 = vunpack.c.l.b16 %v1386
  %v1552 = vunpack.c.h.b16 %v1386
  %v1553 = vunpack.c.l.b16 %v1387
  %v1554 = vunpack.c.h.b16 %v1387
  %v1555 = vunpack.c.l.b16 %v1388
  %v1556 = vunpack.c.h.b16 %v1388
  %v1557 = vunpack.c.l.b16 %v1389
  %v1558 = vunpack.c.h.b16 %v1389
  %v1559 = vunpack.c.l.b16 %v1390
  %v1560 = vunpack.c.h.b16 %v1390
  %v1561 = vunpack.c.l.b16 %v1391
  %v1562 = vunpack.c.h.b16 %v1391
  %v1563 = vunpack.c.l.b16 %v1392
  %v1564 = vunpack.c.h.b16 %v1392
  %v1565 = vunpack.c.l.b16 %v1393
  %v1566 = vunpack.c.h.b16 %v1393
  %v1567 = vunpack.c.l.b16 %v1394
  %v1568 = vunpack.c.h.b16 %v1394
  %v1569 = vunpack.c.l.b16 %v1395
  %v1570 = vunpack.c.h.b16 %v1395
  %v1571 = vunpack.c.l.b16 %v1396
  %v1572 = vunpack.c.h.b16 %v1396
  %v1573 = vunpack.c.l.b16 %v1397
  %v1574 = vunpack.c.h.b16 %v1397
  %v1575 = vunpack.c.l.b16 %v1398
  %v1576 = vunpack.c.h.b16 %v1398
  %v1577 = vunpack.c.l.b16 %v1399
  %v1578 = vunpack.c.h.b16 %v1399
  %v1579 = vunpack.c.l.b16 %v1400
  %v1580 = vunpack.c.h.b16 %v1400
  %v1581 = vpack.c.b16 %v1533, %v1517
  %v1582 = vpack.c.b16 %v1534, %v1518
  %v1583 = vpack.c.b16 %v1535, %v1519
  %v1584 = vpack.c.b16 %v1536, %v1520
  %v1585 = vpack.c.b16 %v1537, %v1521
  %v1586 = vpack.c.b16 %v1538, %v1522
  %v1587 = vpack.c.b16 %v1539, %v1523
  %v1588 = vpack.c.b16 %v1540, %v1524
  %v1589 = vpack.c.b16 %v1541, %v1525
  %v1590 = vpack.c.b16 %v1542, %v1526
  %v1591 = vpack.c.b16 %v1543, %v1527
  %v1592 = vpack.c.b16 %v1544, %v1528
  %v1593 = vpack.c.b16 %v1545, %v1529
  %v1594 = vpack.c.b16 %v1546, %v1530
  %v1595 = vpack.c.b16 %v1547, %v1531
  %v1596 = vpack.c.b16 %v1548, %v1532
  %v1597 = vpack.c.b16 %v1565, %v1549
  %v1598 = vpack.c.b16 %v1566, %v1550
  %v1599 = vpack.c.b16 %v1567, %v1551
  %v1600 = vpack.c.b16 %v1568, %v1552
  %v1601 = vpack.c.b16 %v1569, %v1553
  %v1602 = vpack.c.b16 %v1570, %v1554
  %v1603 = vpack.c.b16 %v1571, %v1555
  %v1604 = vpack.c.b16 %v1572, %v1556
  %v1605 = vpack.c.b16 %v1573, %v1557
  %v1606 = vpack.c.b16 %v1574, %v1558
  %v1607 = vpack.c.b16 %v1575, %v1559
  %v1608 = vpack.c.b16 %v1576, %v1560
  %v1609 = vpack.c.b16 %v1577, %v1561
  %v1610 = vpack.c.b16 %v1578, %v1562
  %v1611 = vpack.c.b16 %v1579, %v1563
  %v1612 = vpack.c.b16 %v1580, %v1564
  %v1646 = vsel %vm164, %v1368, 0
  %1648 = vmatprep.subr.bf16.mxu0 0
  %1649 = vmatpush1.bf16.msra.mxu0 0
  %1650 = vmatprep.subr.bf16.mxu0 0
  %1651 = vmatpush1.bf16.msra.mxu0 0
  %1652 = vmatprep.subr.bf16.mxu0 0
  %1653 = vmatpush1.bf16.msra.mxu0 0
  %1654 = vmatprep.subr.bf16.mxu0 0
  %1655 = vmatpush1.bf16.msra.mxu0 0
  %1656 = vmatprep.subr.bf16.mxu0 0
  %1657 = vmatpush1.bf16.msra.mxu0 0
  %1658 = vmatprep.subr.bf16.mxu0 0
  %1659 = vmatpush1.bf16.msra.mxu0 0
  %1660 = vmatprep.subr.bf16.mxu0 %v1598
  %1661 = vmatpush1.bf16.msra.mxu0 %v1597
  %1662 = vmatprep.subr.bf16.mxu0 %v1582
  %1663 = vmatpush1.bf16.msra.mxu0 %v1581
  %1664 = vmatprep.subr.bf16.mxu0 0
  %1665 = vmatpush2.bf16.msra.mxu0 0
  %1666 = vmatprep.subr.bf16.mxu0 0
  %1667 = vmatpush2.bf16.msra.mxu0 0
  %1668 = vmatprep.subr.bf16.mxu0 0
  %1669 = vmatpush2.bf16.msra.mxu0 0
  %1670 = vmatprep.subr.bf16.mxu0 0
  %1671 = vmatpush2.bf16.msra.mxu0 0
  %1672 = vmatprep.subr.bf16.mxu0 0
  %1673 = vmatpush2.bf16.msra.mxu0 0
  %1674 = vmatprep.subr.bf16.mxu0 0
  %1675 = vmatpush2.bf16.msra.mxu0 0
  %1676 = vmatprep.subr.bf16.mxu0 0
  %1677 = vmatpush2.bf16.msra.mxu0 0
  %1678 = vmatprep.subr.bf16.mxu0 0
  %1679 = vmatpush2.bf16.msra.mxu0 0
  %1680 = vmatprep.mubr.bf16.mxu0 0
  %1681 = vmatmul.mubr.bf16.gmra.mxu0 %v1646
  %v1682 = vpop.f32.mrf.mxu0
  %v1683 = vadd.f32 %v1408, %v1682
  %v1684 = vpop.f32.mrf.mxu0
  %v1685 = vadd.f32 %v1412, %v1684
  %v1686 = vpop.f32.mrf.mxu0
  %v1687 = vadd.f32 %v1408, %v1686
  %v1688 = vpop.f32.mrf.mxu0
  %v1689 = vadd.f32 %v1412, %v1688
  %1690 = vdwg.mxu0
  %1691 = vmatprep.subr.bf16.mxu0 0
  %1692 = vmatpush1.bf16.msra.mxu0 0
  %1693 = vmatprep.subr.bf16.mxu0 0
  %1694 = vmatpush1.bf16.msra.mxu0 0
  %1695 = vmatprep.subr.bf16.mxu0 0
  %1696 = vmatpush1.bf16.msra.mxu0 0
  %1697 = vmatprep.subr.bf16.mxu0 0
  %1698 = vmatpush1.bf16.msra.mxu0 0
  %1699 = vmatprep.subr.bf16.mxu0 0
  %1700 = vmatpush1.bf16.msra.mxu0 0
  %1701 = vmatprep.subr.bf16.mxu0 0
  %1702 = vmatpush1.bf16.msra.mxu0 0
  %1703 = vmatprep.subr.bf16.mxu0 %v1600
  %1704 = vmatpush1.bf16.msra.mxu0 %v1599
  %1705 = vmatprep.subr.bf16.mxu0 %v1584
  %1706 = vmatpush1.bf16.msra.mxu0 %v1583
  %1707 = vmatprep.subr.bf16.mxu0 0
  %1708 = vmatpush2.bf16.msra.mxu0 0
  %1709 = vmatprep.subr.bf16.mxu0 0
  %1710 = vmatpush2.bf16.msra.mxu0 0
  %1711 = vmatprep.subr.bf16.mxu0 0
  %1712 = vmatpush2.bf16.msra.mxu0 0
  %1713 = vmatprep.subr.bf16.mxu0 0
  %1714 = vmatpush2.bf16.msra.mxu0 0
  %1715 = vmatprep.subr.bf16.mxu0 0
  %1716 = vmatpush2.bf16.msra.mxu0 0
  %1717 = vmatprep.subr.bf16.mxu0 0
  %1718 = vmatpush2.bf16.msra.mxu0 0
  %1719 = vmatprep.subr.bf16.mxu0 0
  %1720 = vmatpush2.bf16.msra.mxu0 0
  %1721 = vmatprep.subr.bf16.mxu0 0
  %1722 = vmatpush2.bf16.msra.mxu0 0
  %1723 = vmatprep.mubr.bf16.mxu0 0
  %1724 = vmatmul.mubr.bf16.gmra.mxu0 %v1646
  %v1725 = vpop.f32.mrf.mxu0
  %v1726 = vadd.f32 %v1416, %v1725
  %v1727 = vpop.f32.mrf.mxu0
  %v1728 = vadd.f32 %v1420, %v1727
  %v1729 = vpop.f32.mrf.mxu0
  %v1730 = vadd.f32 %v1416, %v1729
  %v1731 = vpop.f32.mrf.mxu0
  %v1732 = vadd.f32 %v1420, %v1731
  %1733 = vdwg.mxu0
  %1734 = vmatprep.subr.bf16.mxu0 0
  %1735 = vmatpush1.bf16.msra.mxu0 0
  %1736 = vmatprep.subr.bf16.mxu0 0
  %1737 = vmatpush1.bf16.msra.mxu0 0
  %1738 = vmatprep.subr.bf16.mxu0 0
  %1739 = vmatpush1.bf16.msra.mxu0 0
  %1740 = vmatprep.subr.bf16.mxu0 0
  %1741 = vmatpush1.bf16.msra.mxu0 0
  %1742 = vmatprep.subr.bf16.mxu0 0
  %1743 = vmatpush1.bf16.msra.mxu0 0
  %1744 = vmatprep.subr.bf16.mxu0 0
  %1745 = vmatpush1.bf16.msra.mxu0 0
  %1746 = vmatprep.subr.bf16.mxu0 %v1602
  %1747 = vmatpush1.bf16.msra.mxu0 %v1601
  %1748 = vmatprep.subr.bf16.mxu0 %v1586
  %1749 = vmatpush1.bf16.msra.mxu0 %v1585
  %1750 = vmatprep.subr.bf16.mxu0 0
  %1751 = vmatpush2.bf16.msra.mxu0 0
  %1752 = vmatprep.subr.bf16.mxu0 0
  %1753 = vmatpush2.bf16.msra.mxu0 0
  %1754 = vmatprep.subr.bf16.mxu0 0
  %1755 = vmatpush2.bf16.msra.mxu0 0
  %1756 = vmatprep.subr.bf16.mxu0 0
  %1757 = vmatpush2.bf16.msra.mxu0 0
  %1758 = vmatprep.subr.bf16.mxu0 0
  %1759 = vmatpush2.bf16.msra.mxu0 0
  %1760 = vmatprep.subr.bf16.mxu0 0
  %1761 = vmatpush2.bf16.msra.mxu0 0
  %1762 = vmatprep.subr.bf16.mxu0 0
  %1763 = vmatpush2.bf16.msra.mxu0 0
  %1764 = vmatprep.subr.bf16.mxu0 0
  %1765 = vmatpush2.bf16.msra.mxu0 0
  %1766 = vmatprep.mubr.bf16.mxu0 0
  %1767 = vmatmul.mubr.bf16.gmra.mxu0 %v1646
  %v1768 = vpop.f32.mrf.mxu0
  %v1769 = vadd.f32 %v1424, %v1768
  %v1770 = vpop.f32.mrf.mxu0
  %v1771 = vadd.f32 %v1428, %v1770
  %v1772 = vpop.f32.mrf.mxu0
  %v1773 = vadd.f32 %v1424, %v1772
  %v1774 = vpop.f32.mrf.mxu0
  %v1775 = vadd.f32 %v1428, %v1774
  %1776 = vdwg.mxu0
  %1777 = vmatprep.subr.bf16.mxu0 0
  %1778 = vmatpush1.bf16.msra.mxu0 0
  %1779 = vmatprep.subr.bf16.mxu0 0
  %1780 = vmatpush1.bf16.msra.mxu0 0
  %1781 = vmatprep.subr.bf16.mxu0 0
  %1782 = vmatpush1.bf16.msra.mxu0 0
  %1783 = vmatprep.subr.bf16.mxu0 0
  %1784 = vmatpush1.bf16.msra.mxu0 0
  %1785 = vmatprep.subr.bf16.mxu0 0
  %1786 = vmatpush1.bf16.msra.mxu0 0
  %1787 = vmatprep.subr.bf16.mxu0 0
  %1788 = vmatpush1.bf16.msra.mxu0 0
  %1789 = vmatprep.subr.bf16.mxu0 %v1604
  %1790 = vmatpush1.bf16.msra.mxu0 %v1603
  %1791 = vmatprep.subr.bf16.mxu0 %v1588
  %1792 = vmatpush1.bf16.msra.mxu0 %v1587
  %1793 = vmatprep.subr.bf16.mxu0 0
  %1794 = vmatpush2.bf16.msra.mxu0 0
  %1795 = vmatprep.subr.bf16.mxu0 0
  %1796 = vmatpush2.bf16.msra.mxu0 0
  %1797 = vmatprep.subr.bf16.mxu0 0
  %1798 = vmatpush2.bf16.msra.mxu0 0
  %1799 = vmatprep.subr.bf16.mxu0 0
  %1800 = vmatpush2.bf16.msra.mxu0 0
  %1801 = vmatprep.subr.bf16.mxu0 0
  %1802 = vmatpush2.bf16.msra.mxu0 0
  %1803 = vmatprep.subr.bf16.mxu0 0
  %1804 = vmatpush2.bf16.msra.mxu0 0
  %1805 = vmatprep.subr.bf16.mxu0 0
  %1806 = vmatpush2.bf16.msra.mxu0 0
  %1807 = vmatprep.subr.bf16.mxu0 0
  %1808 = vmatpush2.bf16.msra.mxu0 0
  %1809 = vmatprep.mubr.bf16.mxu0 0
  %1810 = vmatmul.mubr.bf16.gmra.mxu0 %v1646
  %v1811 = vpop.f32.mrf.mxu0
  %v1812 = vadd.f32 %v1432, %v1811
  %v1813 = vpop.f32.mrf.mxu0
  %v1814 = vadd.f32 %v1436, %v1813
  %v1815 = vpop.f32.mrf.mxu0
  %v1816 = vadd.f32 %v1432, %v1815
  %v1817 = vpop.f32.mrf.mxu0
  %v1818 = vadd.f32 %v1436, %v1817
  %1819 = vdwg.mxu0
  %1820 = vmatprep.subr.bf16.mxu0 0
  %1821 = vmatpush1.bf16.msra.mxu0 0
  %1822 = vmatprep.subr.bf16.mxu0 0
  %1823 = vmatpush1.bf16.msra.mxu0 0
  %1824 = vmatprep.subr.bf16.mxu0 0
  %1825 = vmatpush1.bf16.msra.mxu0 0
  %1826 = vmatprep.subr.bf16.mxu0 0
  %1827 = vmatpush1.bf16.msra.mxu0 0
  %1828 = vmatprep.subr.bf16.mxu0 0
  %1829 = vmatpush1.bf16.msra.mxu0 0
  %1830 = vmatprep.subr.bf16.mxu0 0
  %1831 = vmatpush1.bf16.msra.mxu0 0
  %1832 = vmatprep.subr.bf16.mxu0 %v1606
  %1833 = vmatpush1.bf16.msra.mxu0 %v1605
  %1834 = vmatprep.subr.bf16.mxu0 %v1590
  %1835 = vmatpush1.bf16.msra.mxu0 %v1589
  %1836 = vmatprep.subr.bf16.mxu0 0
  %1837 = vmatpush2.bf16.msra.mxu0 0
  %1838 = vmatprep.subr.bf16.mxu0 0
  %1839 = vmatpush2.bf16.msra.mxu0 0
  %1840 = vmatprep.subr.bf16.mxu0 0
  %1841 = vmatpush2.bf16.msra.mxu0 0
  %1842 = vmatprep.subr.bf16.mxu0 0
  %1843 = vmatpush2.bf16.msra.mxu0 0
  %1844 = vmatprep.subr.bf16.mxu0 0
  %1845 = vmatpush2.bf16.msra.mxu0 0
  %1846 = vmatprep.subr.bf16.mxu0 0
  %1847 = vmatpush2.bf16.msra.mxu0 0
  %1848 = vmatprep.subr.bf16.mxu0 0
  %1849 = vmatpush2.bf16.msra.mxu0 0
  %1850 = vmatprep.subr.bf16.mxu0 0
  %1851 = vmatpush2.bf16.msra.mxu0 0
  %1852 = vmatprep.mubr.bf16.mxu0 0
  %1853 = vmatmul.mubr.bf16.gmra.mxu0 %v1646
  %v1854 = vpop.f32.mrf.mxu0
  %v1855 = vadd.f32 %v1440, %v1854
  %v1856 = vpop.f32.mrf.mxu0
  %v1857 = vadd.f32 %v1444, %v1856
  %v1858 = vpop.f32.mrf.mxu0
  %v1859 = vadd.f32 %v1440, %v1858
  %v1860 = vpop.f32.mrf.mxu0
  %v1861 = vadd.f32 %v1444, %v1860
  %1862 = vdwg.mxu0
  %1863 = vmatprep.subr.bf16.mxu0 0
  %1864 = vmatpush1.bf16.msra.mxu0 0
  %1865 = vmatprep.subr.bf16.mxu0 0
  %1866 = vmatpush1.bf16.msra.mxu0 0
  %1867 = vmatprep.subr.bf16.mxu0 0
  %1868 = vmatpush1.bf16.msra.mxu0 0
  %1869 = vmatprep.subr.bf16.mxu0 0
  %1870 = vmatpush1.bf16.msra.mxu0 0
  %1871 = vmatprep.subr.bf16.mxu0 0
  %1872 = vmatpush1.bf16.msra.mxu0 0
  %1873 = vmatprep.subr.bf16.mxu0 0
  %1874 = vmatpush1.bf16.msra.mxu0 0
  %1875 = vmatprep.subr.bf16.mxu0 %v1608
  %1876 = vmatpush1.bf16.msra.mxu0 %v1607
  %1877 = vmatprep.subr.bf16.mxu0 %v1592
  %1878 = vmatpush1.bf16.msra.mxu0 %v1591
  %1879 = vmatprep.subr.bf16.mxu0 0
  %1880 = vmatpush2.bf16.msra.mxu0 0
  %1881 = vmatprep.subr.bf16.mxu0 0
  %1882 = vmatpush2.bf16.msra.mxu0 0
  %1883 = vmatprep.subr.bf16.mxu0 0
  %1884 = vmatpush2.bf16.msra.mxu0 0
  %1885 = vmatprep.subr.bf16.mxu0 0
  %1886 = vmatpush2.bf16.msra.mxu0 0
  %1887 = vmatprep.subr.bf16.mxu0 0
  %1888 = vmatpush2.bf16.msra.mxu0 0
  %1889 = vmatprep.subr.bf16.mxu0 0
  %1890 = vmatpush2.bf16.msra.mxu0 0
  %1891 = vmatprep.subr.bf16.mxu0 0
  %1892 = vmatpush2.bf16.msra.mxu0 0
  %1893 = vmatprep.subr.bf16.mxu0 0
  %1894 = vmatpush2.bf16.msra.mxu0 0
  %1895 = vmatprep.mubr.bf16.mxu0 0
  %1896 = vmatmul.mubr.bf16.gmra.mxu0 %v1646
  %v1897 = vpop.f32.mrf.mxu0
  %v1898 = vadd.f32 %v1448, %v1897
  %v1899 = vpop.f32.mrf.mxu0
  %v1900 = vadd.f32 %v1452, %v1899
  %v1901 = vpop.f32.mrf.mxu0
  %v1902 = vadd.f32 %v1448, %v1901
  %v1903 = vpop.f32.mrf.mxu0
  %v1904 = vadd.f32 %v1452, %v1903
  %1905 = vdwg.mxu0
  %1906 = vmatprep.subr.bf16.mxu0 0
  %1907 = vmatpush1.bf16.msra.mxu0 0
  %1908 = vmatprep.subr.bf16.mxu0 0
  %1909 = vmatpush1.bf16.msra.mxu0 0
  %1910 = vmatprep.subr.bf16.mxu0 0
  %1911 = vmatpush1.bf16.msra.mxu0 0
  %1912 = vmatprep.subr.bf16.mxu0 0
  %1913 = vmatpush1.bf16.msra.mxu0 0
  %1914 = vmatprep.subr.bf16.mxu0 0
  %1915 = vmatpush1.bf16.msra.mxu0 0
  %1916 = vmatprep.subr.bf16.mxu0 0
  %1917 = vmatpush1.bf16.msra.mxu0 0
  %1918 = vmatprep.subr.bf16.mxu0 %v1610
  %1919 = vmatpush1.bf16.msra.mxu0 %v1609
  %1920 = vmatprep.subr.bf16.mxu0 %v1594
  %1921 = vmatpush1.bf16.msra.mxu0 %v1593
  %1922 = vmatprep.subr.bf16.mxu0 0
  %1923 = vmatpush2.bf16.msra.mxu0 0
  %1924 = vmatprep.subr.bf16.mxu0 0
  %1925 = vmatpush2.bf16.msra.mxu0 0
  %1926 = vmatprep.subr.bf16.mxu0 0
  %1927 = vmatpush2.bf16.msra.mxu0 0
  %1928 = vmatprep.subr.bf16.mxu0 0
  %1929 = vmatpush2.bf16.msra.mxu0 0
  %1930 = vmatprep.subr.bf16.mxu0 0
  %1931 = vmatpush2.bf16.msra.mxu0 0
  %1932 = vmatprep.subr.bf16.mxu0 0
  %1933 = vmatpush2.bf16.msra.mxu0 0
  %1934 = vmatprep.subr.bf16.mxu0 0
  %1935 = vmatpush2.bf16.msra.mxu0 0
  %1936 = vmatprep.subr.bf16.mxu0 0
  %1937 = vmatpush2.bf16.msra.mxu0 0
  %1938 = vmatprep.mubr.bf16.mxu0 0
  %1939 = vmatmul.mubr.bf16.gmra.mxu0 %v1646
  %v1940 = vpop.f32.mrf.mxu0
  %v1941 = vadd.f32 %v1456, %v1940
  %v1942 = vpop.f32.mrf.mxu0
  %v1943 = vadd.f32 %v1460, %v1942
  %v1944 = vpop.f32.mrf.mxu0
  %v1945 = vadd.f32 %v1456, %v1944
  %v1946 = vpop.f32.mrf.mxu0
  %v1947 = vadd.f32 %v1460, %v1946
  %1948 = vdwg.mxu0
  %1949 = vmatprep.subr.bf16.mxu0 0
  %1950 = vmatpush1.bf16.msra.mxu0 0
  %1951 = vmatprep.subr.bf16.mxu0 0
  %1952 = vmatpush1.bf16.msra.mxu0 0
  %1953 = vmatprep.subr.bf16.mxu0 0
  %1954 = vmatpush1.bf16.msra.mxu0 0
  %1955 = vmatprep.subr.bf16.mxu0 0
  %1956 = vmatpush1.bf16.msra.mxu0 0
  %1957 = vmatprep.subr.bf16.mxu0 0
  %1958 = vmatpush1.bf16.msra.mxu0 0
  %1959 = vmatprep.subr.bf16.mxu0 0
  %1960 = vmatpush1.bf16.msra.mxu0 0
  %1961 = vmatprep.subr.bf16.mxu0 %v1612
  %1962 = vmatpush1.bf16.msra.mxu0 %v1611
  %1963 = vmatprep.subr.bf16.mxu0 %v1596
  %1964 = vmatpush1.bf16.msra.mxu0 %v1595
  %1965 = vmatprep.subr.bf16.mxu0 0
  %1966 = vmatpush2.bf16.msra.mxu0 0
  %1967 = vmatprep.subr.bf16.mxu0 0
  %1968 = vmatpush2.bf16.msra.mxu0 0
  %1969 = vmatprep.subr.bf16.mxu0 0
  %1970 = vmatpush2.bf16.msra.mxu0 0
  %1971 = vmatprep.subr.bf16.mxu0 0
  %1972 = vmatpush2.bf16.msra.mxu0 0
  %1973 = vmatprep.subr.bf16.mxu0 0
  %1974 = vmatpush2.bf16.msra.mxu0 0
  %1975 = vmatprep.subr.bf16.mxu0 0
  %1976 = vmatpush2.bf16.msra.mxu0 0
  %1977 = vmatprep.subr.bf16.mxu0 0
  %1978 = vmatpush2.bf16.msra.mxu0 0
  %1979 = vmatprep.subr.bf16.mxu0 0
  %1980 = vmatpush2.bf16.msra.mxu0 0
  %1981 = vmatprep.mubr.bf16.mxu0 0
  %1982 = vmatmul.mubr.bf16.gmra.mxu0 %v1646
  %v1983 = vpop.f32.mrf.mxu0
  %v1984 = vadd.f32 %v1464, %v1983
  %v1985 = vpop.f32.mrf.mxu0
  %v1986 = vadd.f32 %v1468, %v1985
  %v1987 = vpop.f32.mrf.mxu0
  %v1988 = vadd.f32 %v1464, %v1987
  %v1989 = vpop.f32.mrf.mxu0
  %v1990 = vadd.f32 %v1468, %v1989
  %1991 = vdwg.mxu0
  %v1992 = vmax.f32 %v1683, 0.0
  %v1993 = vmax.f32 %v1685, 0.0
  %v1994 = vmax.f32 %v1726, 0.0
  %v1995 = vmax.f32 %v1728, 0.0
  %v1996 = vmax.f32 %v1769, 0.0
  %v1997 = vmax.f32 %v1771, 0.0
  %v1998 = vmax.f32 %v1812, 0.0
  %v1999 = vmax.f32 %v1814, 0.0
  %v2000 = vmax.f32 %v1855, 0.0
  %v2001 = vmax.f32 %v1857, 0.0
  %v2002 = vmax.f32 %v1898, 0.0
  %v2003 = vmax.f32 %v1900, 0.0
  %v2004 = vmax.f32 %v1941, 0.0
  %v2005 = vmax.f32 %v1943, 0.0
  %v2006 = vmax.f32 %v1984, 0.0
  %v2007 = vmax.f32 %v1986, 0.0
  %v2008 = vmax.f32 %v1687, 0.0
  %v2009 = vmax.f32 %v1689, 0.0
  %v2010 = vmax.f32 %v1730, 0.0
  %v2011 = vmax.f32 %v1732, 0.0
  %v2012 = vmax.f32 %v1773, 0.0
  %v2013 = vmax.f32 %v1775, 0.0
  %v2014 = vmax.f32 %v1816, 0.0
  %v2015 = vmax.f32 %v1818, 0.0
  %v2016 = vmax.f32 %v1859, 0.0
  %v2017 = vmax.f32 %v1861, 0.0
  %v2018 = vmax.f32 %v1902, 0.0
  %v2019 = vmax.f32 %v1904, 0.0
  %v2020 = vmax.f32 %v1945, 0.0
  %v2021 = vmax.f32 %v1947, 0.0
  %v2022 = vmax.f32 %v1988, 0.0
  %v2023 = vmax.f32 %v1990, 0.0
  %v2024 = vpack.c.bf16 %v2008, %v1992
  %v2025 = vpack.c.bf16 %v2009, %v1993
  %v2026 = vpack.c.bf16 %v2010, %v1994
  %v2027 = vpack.c.bf16 %v2011, %v1995
  %v2028 = vpack.c.bf16 %v2012, %v1996
  %v2029 = vpack.c.bf16 %v2013, %v1997
  %v2030 = vpack.c.bf16 %v2014, %v1998
  %v2031 = vpack.c.bf16 %v2015, %v1999
  %v2032 = vpack.c.bf16 %v2016, %v2000
  %v2033 = vpack.c.bf16 %v2017, %v2001
  %v2034 = vpack.c.bf16 %v2018, %v2002
  %v2035 = vpack.c.bf16 %v2019, %v2003
  %v2036 = vpack.c.bf16 %v2020, %v2004
  %v2037 = vpack.c.bf16 %v2021, %v2005
  %v2038 = vpack.c.bf16 %v2022, %v2006
  %v2039 = vpack.c.bf16 %v2023, %v2007
  %v2040 = vld [vmem:[%s18] sm:$0xf]
  %v2041 = vld [vmem:[%s18 + $0x4] sm:$0xf]
  %v2042 = vld [vmem:[%s18 + $0x8] sm:$0xf]
  %v2043 = vld [vmem:[%s18 + $0xc] sm:$0xf]
  %v2044 = vld [vmem:[%s18 + $0x10] sm:$0xf]
  %v2045 = vld [vmem:[%s18 + $0x14] sm:$0xf]
  %v2046 = vld [vmem:[%s18 + $0x18] sm:$0xf]
  %v2047 = vld [vmem:[%s18 + $0x1c] sm:$0xf]
  %v2048 = vld [vmem:[%s18 + $0x20] sm:$0xf]
  %v2049 = vld [vmem:[%s18 + $0x24] sm:$0xf]
  %v2050 = vld [vmem:[%s18 + $0x28] sm:$0xf]
  %v2051 = vld [vmem:[%s18 + $0x2c] sm:$0xf]
  %v2052 = vld [vmem:[%s18 + $0x30] sm:$0xf]
  %v2053 = vld [vmem:[%s18 + $0x34] sm:$0xf]
  %v2054 = vld [vmem:[%s18 + $0x38] sm:$0xf]
  %v2055 = vld [vmem:[%s18 + $0x3c] sm:$0xf]
  %v2056 = vld [vmem:[%s18 + $0x40] sm:$0xf]
  %v2057 = vld [vmem:[%s18 + $0x44] sm:$0xf]
  %v2058 = vld [vmem:[%s18 + $0x48] sm:$0xf]
  %v2059 = vld [vmem:[%s18 + $0x4c] sm:$0xf]
  %v2060 = vld [vmem:[%s18 + $0x50] sm:$0xf]
  %v2061 = vld [vmem:[%s18 + $0x54] sm:$0xf]
  %v2062 = vld [vmem:[%s18 + $0x58] sm:$0xf]
  %v2063 = vld [vmem:[%s18 + $0x5c] sm:$0xf]
  %v2064 = vld [vmem:[%s18 + $0x60] sm:$0xf]
  %v2065 = vld [vmem:[%s18 + $0x64] sm:$0xf]
  %v2066 = vld [vmem:[%s18 + $0x68] sm:$0xf]
  %v2067 = vld [vmem:[%s18 + $0x6c] sm:$0xf]
  %v2068 = vld [vmem:[%s18 + $0x70] sm:$0xf]
  %v2069 = vld [vmem:[%s18 + $0x74] sm:$0xf]
  %v2070 = vld [vmem:[%s18 + $0x78] sm:$0xf]
  %v2071 = vld [vmem:[%s18 + $0x7c] sm:$0xf]
  %v2072 = vld [vmem:[%s18 + $0x80] sm:$0xf]
  %v2073 = vld [vmem:[%s18 + $0x84] sm:$0xf]
  %v2074 = vld [vmem:[%s18 + $0x88] sm:$0xf]
  %v2075 = vld [vmem:[%s18 + $0x8c] sm:$0xf]
  %v2076 = vld [vmem:[%s18 + $0x90] sm:$0xf]
  %v2077 = vld [vmem:[%s18 + $0x94] sm:$0xf]
  %v2078 = vld [vmem:[%s18 + $0x98] sm:$0xf]
  %v2079 = vld [vmem:[%s18 + $0x9c] sm:$0xf]
  %v2080 = vld [vmem:[%s18 + $0xa0] sm:$0xf]
  %v2081 = vld [vmem:[%s18 + $0xa4] sm:$0xf]
  %v2082 = vld [vmem:[%s18 + $0xa8] sm:$0xf]
  %v2083 = vld [vmem:[%s18 + $0xac] sm:$0xf]
  %v2084 = vld [vmem:[%s18 + $0xb0] sm:$0xf]
  %v2085 = vld [vmem:[%s18 + $0xb4] sm:$0xf]
  %v2086 = vld [vmem:[%s18 + $0xb8] sm:$0xf]
  %v2087 = vld [vmem:[%s18 + $0xbc] sm:$0xf]
  %v2088 = vld [vmem:[%s18 + $0xc0] sm:$0xf]
  %v2089 = vld [vmem:[%s18 + $0xc4] sm:$0xf]
  %v2090 = vld [vmem:[%s18 + $0xc8] sm:$0xf]
  %v2091 = vld [vmem:[%s18 + $0xcc] sm:$0xf]
  %v2092 = vld [vmem:[%s18 + $0xd0] sm:$0xf]
  %v2093 = vld [vmem:[%s18 + $0xd4] sm:$0xf]
  %v2094 = vld [vmem:[%s18 + $0xd8] sm:$0xf]
  %v2095 = vld [vmem:[%s18 + $0xdc] sm:$0xf]
  %v2096 = vld [vmem:[%s18 + $0xe0] sm:$0xf]
  %v2097 = vld [vmem:[%s18 + $0xe4] sm:$0xf]
  %v2098 = vld [vmem:[%s18 + $0xe8] sm:$0xf]
  %v2099 = vld [vmem:[%s18 + $0xec] sm:$0xf]
  %v2100 = vld [vmem:[%s18 + $0xf0] sm:$0xf]
  %v2101 = vld [vmem:[%s18 + $0xf4] sm:$0xf]
  %v2102 = vld [vmem:[%s18 + $0xf8] sm:$0xf]
  %v2103 = vld [vmem:[%s18 + $0xfc] sm:$0xf]
  %v2104 = vld [vmem:[%s18 + $0x100] sm:$0xf]
  %v2105 = vld [vmem:[%s18 + $0x104] sm:$0xf]
  %v2106 = vld [vmem:[%s18 + $0x108] sm:$0xf]
  %v2107 = vld [vmem:[%s18 + $0x10c] sm:$0xf]
  %v2108 = vld [vmem:[%s18 + $0x110] sm:$0xf]
  %v2109 = vld [vmem:[%s18 + $0x114] sm:$0xf]
  %v2110 = vld [vmem:[%s18 + $0x118] sm:$0xf]
  %v2111 = vld [vmem:[%s18 + $0x11c] sm:$0xf]
  %v2112 = vld [vmem:[%s18 + $0x120] sm:$0xf]
  %v2113 = vld [vmem:[%s18 + $0x124] sm:$0xf]
  %v2114 = vld [vmem:[%s18 + $0x128] sm:$0xf]
  %v2115 = vld [vmem:[%s18 + $0x12c] sm:$0xf]
  %v2116 = vld [vmem:[%s18 + $0x130] sm:$0xf]
  %v2117 = vld [vmem:[%s18 + $0x134] sm:$0xf]
  %v2118 = vld [vmem:[%s18 + $0x138] sm:$0xf]
  %v2119 = vld [vmem:[%s18 + $0x13c] sm:$0xf]
  %v2120 = vld [vmem:[%s18 + $0x140] sm:$0xf]
  %v2121 = vld [vmem:[%s18 + $0x144] sm:$0xf]
  %v2122 = vld [vmem:[%s18 + $0x148] sm:$0xf]
  %v2123 = vld [vmem:[%s18 + $0x14c] sm:$0xf]
  %v2124 = vld [vmem:[%s18 + $0x150] sm:$0xf]
  %v2125 = vld [vmem:[%s18 + $0x154] sm:$0xf]
  %v2126 = vld [vmem:[%s18 + $0x158] sm:$0xf]
  %v2127 = vld [vmem:[%s18 + $0x15c] sm:$0xf]
  %v2128 = vld [vmem:[%s18 + $0x160] sm:$0xf]
  %v2129 = vld [vmem:[%s18 + $0x164] sm:$0xf]
  %v2130 = vld [vmem:[%s18 + $0x168] sm:$0xf]
  %v2131 = vld [vmem:[%s18 + $0x16c] sm:$0xf]
  %v2132 = vld [vmem:[%s18 + $0x170] sm:$0xf]
  %v2133 = vld [vmem:[%s18 + $0x174] sm:$0xf]
  %v2134 = vld [vmem:[%s18 + $0x178] sm:$0xf]
  %v2135 = vld [vmem:[%s18 + $0x17c] sm:$0xf]
  %v2136 = vld [vmem:[%s18 + $0x180] sm:$0xf]
  %v2137 = vld [vmem:[%s18 + $0x184] sm:$0xf]
  %v2138 = vld [vmem:[%s18 + $0x188] sm:$0xf]
  %v2139 = vld [vmem:[%s18 + $0x18c] sm:$0xf]
  %v2140 = vld [vmem:[%s18 + $0x190] sm:$0xf]
  %v2141 = vld [vmem:[%s18 + $0x194] sm:$0xf]
  %v2142 = vld [vmem:[%s18 + $0x198] sm:$0xf]
  %v2143 = vld [vmem:[%s18 + $0x19c] sm:$0xf]
  %v2144 = vld [vmem:[%s18 + $0x1a0] sm:$0xf]
  %v2145 = vld [vmem:[%s18 + $0x1a4] sm:$0xf]
  %v2146 = vld [vmem:[%s18 + $0x1a8] sm:$0xf]
  %v2147 = vld [vmem:[%s18 + $0x1ac] sm:$0xf]
  %v2148 = vld [vmem:[%s18 + $0x1b0] sm:$0xf]
  %v2149 = vld [vmem:[%s18 + $0x1b4] sm:$0xf]
  %v2150 = vld [vmem:[%s18 + $0x1b8] sm:$0xf]
  %v2151 = vld [vmem:[%s18 + $0x1bc] sm:$0xf]
  %v2152 = vld [vmem:[%s18 + $0x1c0] sm:$0xf]
  %v2153 = vld [vmem:[%s18 + $0x1c4] sm:$0xf]
  %v2154 = vld [vmem:[%s18 + $0x1c8] sm:$0xf]
  %v2155 = vld [vmem:[%s18 + $0x1cc] sm:$0xf]
  %v2156 = vld [vmem:[%s18 + $0x1d0] sm:$0xf]
  %v2157 = vld [vmem:[%s18 + $0x1d4] sm:$0xf]
  %v2158 = vld [vmem:[%s18 + $0x1d8] sm:$0xf]
  %v2159 = vld [vmem:[%s18 + $0x1dc] sm:$0xf]
  %v2160 = vld [vmem:[%s18 + $0x1e0] sm:$0xf]
  %v2161 = vld [vmem:[%s18 + $0x1e4] sm:$0xf]
  %v2162 = vld [vmem:[%s18 + $0x1e8] sm:$0xf]
  %v2163 = vld [vmem:[%s18 + $0x1ec] sm:$0xf]
  %v2164 = vld [vmem:[%s18 + $0x1f0] sm:$0xf]
  %v2165 = vld [vmem:[%s18 + $0x1f4] sm:$0xf]
  %v2166 = vld [vmem:[%s18 + $0x1f8] sm:$0xf]
  %v2167 = vld [vmem:[%s18 + $0x1fc] sm:$0xf]
  %v2168 = vld [vmem:[%s18 + $0x200] sm:$0xf]
  %v2169 = vld [vmem:[%s18 + $0x204] sm:$0xf]
  %v2170 = vld [vmem:[%s18 + $0x208] sm:$0xf]
  %v2171 = vld [vmem:[%s18 + $0x20c] sm:$0xf]
  %v2172 = vld [vmem:[%s18 + $0x210] sm:$0xf]
  %v2173 = vld [vmem:[%s18 + $0x214] sm:$0xf]
  %v2174 = vld [vmem:[%s18 + $0x218] sm:$0xf]
  %v2175 = vld [vmem:[%s18 + $0x21c] sm:$0xf]
  %v2176 = vld [vmem:[%s18 + $0x220] sm:$0xf]
  %v2177 = vld [vmem:[%s18 + $0x224] sm:$0xf]
  %v2178 = vld [vmem:[%s18 + $0x228] sm:$0xf]
  %v2179 = vld [vmem:[%s18 + $0x22c] sm:$0xf]
  %v2180 = vld [vmem:[%s18 + $0x230] sm:$0xf]
  %v2181 = vld [vmem:[%s18 + $0x234] sm:$0xf]
  %v2182 = vld [vmem:[%s18 + $0x238] sm:$0xf]
  %v2183 = vld [vmem:[%s18 + $0x23c] sm:$0xf]
  %v2184 = vld [vmem:[%s18 + $0x240] sm:$0xf]
  %v2185 = vld [vmem:[%s18 + $0x244] sm:$0xf]
  %v2186 = vld [vmem:[%s18 + $0x248] sm:$0xf]
  %v2187 = vld [vmem:[%s18 + $0x24c] sm:$0xf]
  %v2188 = vld [vmem:[%s18 + $0x250] sm:$0xf]
  %v2189 = vld [vmem:[%s18 + $0x254] sm:$0xf]
  %v2190 = vld [vmem:[%s18 + $0x258] sm:$0xf]
  %v2191 = vld [vmem:[%s18 + $0x25c] sm:$0xf]
  %v2192 = vld [vmem:[%s18 + $0x260] sm:$0xf]
  %v2193 = vld [vmem:[%s18 + $0x264] sm:$0xf]
  %v2194 = vld [vmem:[%s18 + $0x268] sm:$0xf]
  %v2195 = vld [vmem:[%s18 + $0x26c] sm:$0xf]
  %v2196 = vld [vmem:[%s18 + $0x270] sm:$0xf]
  %v2197 = vld [vmem:[%s18 + $0x274] sm:$0xf]
  %v2198 = vld [vmem:[%s18 + $0x278] sm:$0xf]
  %v2199 = vld [vmem:[%s18 + $0x27c] sm:$0xf]
  %v2200 = vld [vmem:[%s18 + $0x280] sm:$0xf]
  %v2201 = vld [vmem:[%s18 + $0x284] sm:$0xf]
  %v2202 = vld [vmem:[%s18 + $0x288] sm:$0xf]
  %v2203 = vld [vmem:[%s18 + $0x28c] sm:$0xf]
  %v2204 = vld [vmem:[%s18 + $0x290] sm:$0xf]
  %v2205 = vld [vmem:[%s18 + $0x294] sm:$0xf]
  %v2206 = vld [vmem:[%s18 + $0x298] sm:$0xf]
  %v2207 = vld [vmem:[%s18 + $0x29c] sm:$0xf]
  %v2208 = vld [vmem:[%s18 + $0x2a0] sm:$0xf]
  %v2209 = vld [vmem:[%s18 + $0x2a4] sm:$0xf]
  %v2210 = vld [vmem:[%s18 + $0x2a8] sm:$0xf]
  %v2211 = vld [vmem:[%s18 + $0x2ac] sm:$0xf]
  %v2212 = vld [vmem:[%s18 + $0x2b0] sm:$0xf]
  %v2213 = vld [vmem:[%s18 + $0x2b4] sm:$0xf]
  %v2214 = vld [vmem:[%s18 + $0x2b8] sm:$0xf]
  %v2215 = vld [vmem:[%s18 + $0x2bc] sm:$0xf]
  %v2216 = vld [vmem:[%s18 + $0x2c0] sm:$0xf]
  %v2217 = vld [vmem:[%s18 + $0x2c4] sm:$0xf]
  %v2218 = vld [vmem:[%s18 + $0x2c8] sm:$0xf]
  %v2219 = vld [vmem:[%s18 + $0x2cc] sm:$0xf]
  %v2220 = vld [vmem:[%s18 + $0x2d0] sm:$0xf]
  %v2221 = vld [vmem:[%s18 + $0x2d4] sm:$0xf]
  %v2222 = vld [vmem:[%s18 + $0x2d8] sm:$0xf]
  %v2223 = vld [vmem:[%s18 + $0x2dc] sm:$0xf]
  %v2224 = vld [vmem:[%s18 + $0x2e0] sm:$0xf]
  %v2225 = vld [vmem:[%s18 + $0x2e4] sm:$0xf]
  %v2226 = vld [vmem:[%s18 + $0x2e8] sm:$0xf]
  %v2227 = vld [vmem:[%s18 + $0x2ec] sm:$0xf]
  %v2228 = vld [vmem:[%s18 + $0x2f0] sm:$0xf]
  %v2229 = vld [vmem:[%s18 + $0x2f4] sm:$0xf]
  %v2230 = vld [vmem:[%s18 + $0x2f8] sm:$0xf]
  %v2231 = vld [vmem:[%s18 + $0x2fc] sm:$0xf]
  %v2232 = vld [vmem:[%s18 + $0x300] sm:$0xf]
  %v2233 = vld [vmem:[%s18 + $0x304] sm:$0xf]
  %v2234 = vld [vmem:[%s18 + $0x308] sm:$0xf]
  %v2235 = vld [vmem:[%s18 + $0x30c] sm:$0xf]
  %v2236 = vld [vmem:[%s18 + $0x310] sm:$0xf]
  %v2237 = vld [vmem:[%s18 + $0x314] sm:$0xf]
  %v2238 = vld [vmem:[%s18 + $0x318] sm:$0xf]
  %v2239 = vld [vmem:[%s18 + $0x31c] sm:$0xf]
  %v2240 = vld [vmem:[%s18 + $0x320] sm:$0xf]
  %v2241 = vld [vmem:[%s18 + $0x324] sm:$0xf]
  %v2242 = vld [vmem:[%s18 + $0x328] sm:$0xf]
  %v2243 = vld [vmem:[%s18 + $0x32c] sm:$0xf]
  %v2244 = vld [vmem:[%s18 + $0x330] sm:$0xf]
  %v2245 = vld [vmem:[%s18 + $0x334] sm:$0xf]
  %v2246 = vld [vmem:[%s18 + $0x338] sm:$0xf]
  %v2247 = vld [vmem:[%s18 + $0x33c] sm:$0xf]
  %v2248 = vld [vmem:[%s18 + $0x340] sm:$0xf]
  %v2249 = vld [vmem:[%s18 + $0x344] sm:$0xf]
  %v2250 = vld [vmem:[%s18 + $0x348] sm:$0xf]
  %v2251 = vld [vmem:[%s18 + $0x34c] sm:$0xf]
  %v2252 = vld [vmem:[%s18 + $0x350] sm:$0xf]
  %v2253 = vld [vmem:[%s18 + $0x354] sm:$0xf]
  %v2254 = vld [vmem:[%s18 + $0x358] sm:$0xf]
  %v2255 = vld [vmem:[%s18 + $0x35c] sm:$0xf]
  %v2256 = vld [vmem:[%s18 + $0x360] sm:$0xf]
  %v2257 = vld [vmem:[%s18 + $0x364] sm:$0xf]
  %v2258 = vld [vmem:[%s18 + $0x368] sm:$0xf]
  %v2259 = vld [vmem:[%s18 + $0x36c] sm:$0xf]
  %v2260 = vld [vmem:[%s18 + $0x370] sm:$0xf]
  %v2261 = vld [vmem:[%s18 + $0x374] sm:$0xf]
  %v2262 = vld [vmem:[%s18 + $0x378] sm:$0xf]
  %v2263 = vld [vmem:[%s18 + $0x37c] sm:$0xf]
  %v2264 = vld [vmem:[%s18 + $0x380] sm:$0xf]
  %v2265 = vld [vmem:[%s18 + $0x384] sm:$0xf]
  %v2266 = vld [vmem:[%s18 + $0x388] sm:$0xf]
  %v2267 = vld [vmem:[%s18 + $0x38c] sm:$0xf]
  %v2268 = vld [vmem:[%s18 + $0x390] sm:$0xf]
  %v2269 = vld [vmem:[%s18 + $0x394] sm:$0xf]
  %v2270 = vld [vmem:[%s18 + $0x398] sm:$0xf]
  %v2271 = vld [vmem:[%s18 + $0x39c] sm:$0xf]
  %v2272 = vld [vmem:[%s18 + $0x3a0] sm:$0xf]
  %v2273 = vld [vmem:[%s18 + $0x3a4] sm:$0xf]
  %v2274 = vld [vmem:[%s18 + $0x3a8] sm:$0xf]
  %v2275 = vld [vmem:[%s18 + $0x3ac] sm:$0xf]
  %v2276 = vld [vmem:[%s18 + $0x3b0] sm:$0xf]
  %v2277 = vld [vmem:[%s18 + $0x3b4] sm:$0xf]
  %v2278 = vld [vmem:[%s18 + $0x3b8] sm:$0xf]
  %v2279 = vld [vmem:[%s18 + $0x3bc] sm:$0xf]
  %v2280 = vld [vmem:[%s18 + $0x3c0] sm:$0xf]
  %v2281 = vld [vmem:[%s18 + $0x3c4] sm:$0xf]
  %v2282 = vld [vmem:[%s18 + $0x3c8] sm:$0xf]
  %v2283 = vld [vmem:[%s18 + $0x3cc] sm:$0xf]
  %v2284 = vld [vmem:[%s18 + $0x3d0] sm:$0xf]
  %v2285 = vld [vmem:[%s18 + $0x3d4] sm:$0xf]
  %v2286 = vld [vmem:[%s18 + $0x3d8] sm:$0xf]
  %v2287 = vld [vmem:[%s18 + $0x3dc] sm:$0xf]
  %v2288 = vld [vmem:[%s18 + $0x3e0] sm:$0xf]
  %v2289 = vld [vmem:[%s18 + $0x3e4] sm:$0xf]
  %v2290 = vld [vmem:[%s18 + $0x3e8] sm:$0xf]
  %v2291 = vld [vmem:[%s18 + $0x3ec] sm:$0xf]
  %v2292 = vld [vmem:[%s18 + $0x3f0] sm:$0xf]
  %v2293 = vld [vmem:[%s18 + $0x3f4] sm:$0xf]
  %v2294 = vld [vmem:[%s18 + $0x3f8] sm:$0xf]
  %v2295 = vld [vmem:[%s18 + $0x3fc] sm:$0xf]
  %v2296 = vld [vmem:[%s19] sm:$0x1]
  %v2298 = vlaneseq
  %v2299 = vshrl.u32 %v2298, 7
  %v2300 = vsub.s32 0, %v2299
  %v2301 = vrot.slane %v2296, %v2300
  %v2559 = vunpack.c.l.b16 %v2040
  %v2560 = vunpack.c.l.b16 %v2041
  %v2561 = vunpack.c.l.b16 %v2042
  %v2562 = vunpack.c.l.b16 %v2043
  %v2563 = vunpack.c.l.b16 %v2044
  %v2564 = vunpack.c.l.b16 %v2045
  %v2565 = vunpack.c.l.b16 %v2046
  %v2566 = vunpack.c.l.b16 %v2047
  %v2567 = vunpack.c.l.b16 %v2048
  %v2568 = vunpack.c.l.b16 %v2049
  %v2569 = vunpack.c.l.b16 %v2050
  %v2570 = vunpack.c.l.b16 %v2051
  %v2571 = vunpack.c.l.b16 %v2052
  %v2572 = vunpack.c.l.b16 %v2053
  %v2573 = vunpack.c.l.b16 %v2054
  %v2574 = vunpack.c.l.b16 %v2055
  %v2575 = vunpack.c.l.b16 %v2056
  %v2576 = vunpack.c.l.b16 %v2057
  %v2577 = vunpack.c.l.b16 %v2058
  %v2578 = vunpack.c.l.b16 %v2059
  %v2579 = vunpack.c.l.b16 %v2060
  %v2580 = vunpack.c.l.b16 %v2061
  %v2581 = vunpack.c.l.b16 %v2062
  %v2582 = vunpack.c.l.b16 %v2063
  %v2583 = vunpack.c.l.b16 %v2064
  %v2584 = vunpack.c.l.b16 %v2065
  %v2585 = vunpack.c.l.b16 %v2066
  %v2586 = vunpack.c.l.b16 %v2067
  %v2587 = vunpack.c.l.b16 %v2068
  %v2588 = vunpack.c.l.b16 %v2069
  %v2589 = vunpack.c.l.b16 %v2070
  %v2590 = vunpack.c.l.b16 %v2071
  %v2591 = vunpack.c.l.b16 %v2072
  %v2592 = vunpack.c.l.b16 %v2073
  %v2593 = vunpack.c.l.b16 %v2074
  %v2594 = vunpack.c.l.b16 %v2075
  %v2595 = vunpack.c.l.b16 %v2076
  %v2596 = vunpack.c.l.b16 %v2077
  %v2597 = vunpack.c.l.b16 %v2078
  %v2598 = vunpack.c.l.b16 %v2079
  %v2599 = vunpack.c.l.b16 %v2080
  %v2600 = vunpack.c.l.b16 %v2081
  %v2601 = vunpack.c.l.b16 %v2082
  %v2602 = vunpack.c.l.b16 %v2083
  %v2603 = vunpack.c.l.b16 %v2084
  %v2604 = vunpack.c.l.b16 %v2085
  %v2605 = vunpack.c.l.b16 %v2086
  %v2606 = vunpack.c.l.b16 %v2087
  %v2607 = vunpack.c.l.b16 %v2088
  %v2608 = vunpack.c.l.b16 %v2089
  %v2609 = vunpack.c.l.b16 %v2090
  %v2610 = vunpack.c.l.b16 %v2091
  %v2611 = vunpack.c.l.b16 %v2092
  %v2612 = vunpack.c.l.b16 %v2093
  %v2613 = vunpack.c.l.b16 %v2094
  %v2614 = vunpack.c.l.b16 %v2095
  %v2615 = vunpack.c.l.b16 %v2096
  %v2616 = vunpack.c.l.b16 %v2097
  %v2617 = vunpack.c.l.b16 %v2098
  %v2618 = vunpack.c.l.b16 %v2099
  %v2619 = vunpack.c.l.b16 %v2100
  %v2620 = vunpack.c.l.b16 %v2101
  %v2621 = vunpack.c.l.b16 %v2102
  %v2622 = vunpack.c.l.b16 %v2103
  %v2623 = vunpack.c.l.b16 %v2104
  %v2624 = vunpack.c.l.b16 %v2105
  %v2625 = vunpack.c.l.b16 %v2106
  %v2626 = vunpack.c.l.b16 %v2107
  %v2627 = vunpack.c.l.b16 %v2108
  %v2628 = vunpack.c.l.b16 %v2109
  %v2629 = vunpack.c.l.b16 %v2110
  %v2630 = vunpack.c.l.b16 %v2111
  %v2631 = vunpack.c.l.b16 %v2112
  %v2632 = vunpack.c.l.b16 %v2113
  %v2633 = vunpack.c.l.b16 %v2114
  %v2634 = vunpack.c.l.b16 %v2115
  %v2635 = vunpack.c.l.b16 %v2116
  %v2636 = vunpack.c.l.b16 %v2117
  %v2637 = vunpack.c.l.b16 %v2118
  %v2638 = vunpack.c.l.b16 %v2119
  %v2639 = vunpack.c.l.b16 %v2120
  %v2640 = vunpack.c.l.b16 %v2121
  %v2641 = vunpack.c.l.b16 %v2122
  %v2642 = vunpack.c.l.b16 %v2123
  %v2643 = vunpack.c.l.b16 %v2124
  %v2644 = vunpack.c.l.b16 %v2125
  %v2645 = vunpack.c.l.b16 %v2126
  %v2646 = vunpack.c.l.b16 %v2127
  %v2647 = vunpack.c.l.b16 %v2128
  %v2648 = vunpack.c.l.b16 %v2129
  %v2649 = vunpack.c.l.b16 %v2130
  %v2650 = vunpack.c.l.b16 %v2131
  %v2651 = vunpack.c.l.b16 %v2132
  %v2652 = vunpack.c.l.b16 %v2133
  %v2653 = vunpack.c.l.b16 %v2134
  %v2654 = vunpack.c.l.b16 %v2135
  %v2655 = vunpack.c.l.b16 %v2136
  %v2656 = vunpack.c.l.b16 %v2137
  %v2657 = vunpack.c.l.b16 %v2138
  %v2658 = vunpack.c.l.b16 %v2139
  %v2659 = vunpack.c.l.b16 %v2140
  %v2660 = vunpack.c.l.b16 %v2141
  %v2661 = vunpack.c.l.b16 %v2142
  %v2662 = vunpack.c.l.b16 %v2143
  %v2663 = vunpack.c.l.b16 %v2144
  %v2664 = vunpack.c.l.b16 %v2145
  %v2665 = vunpack.c.l.b16 %v2146
  %v2666 = vunpack.c.l.b16 %v2147
  %v2667 = vunpack.c.l.b16 %v2148
  %v2668 = vunpack.c.l.b16 %v2149
  %v2669 = vunpack.c.l.b16 %v2150
  %v2670 = vunpack.c.l.b16 %v2151
  %v2671 = vunpack.c.l.b16 %v2152
  %v2672 = vunpack.c.l.b16 %v2153
  %v2673 = vunpack.c.l.b16 %v2154
  %v2674 = vunpack.c.l.b16 %v2155
  %v2675 = vunpack.c.l.b16 %v2156
  %v2676 = vunpack.c.l.b16 %v2157
  %v2677 = vunpack.c.l.b16 %v2158
  %v2678 = vunpack.c.l.b16 %v2159
  %v2679 = vunpack.c.l.b16 %v2160
  %v2680 = vunpack.c.l.b16 %v2161
  %v2681 = vunpack.c.l.b16 %v2162
  %v2682 = vunpack.c.l.b16 %v2163
  %v2683 = vunpack.c.l.b16 %v2164
  %v2684 = vunpack.c.l.b16 %v2165
  %v2685 = vunpack.c.l.b16 %v2166
  %v2686 = vunpack.c.l.b16 %v2167
  %v2687 = vunpack.c.l.b16 %v2168
  %v2688 = vunpack.c.l.b16 %v2169
  %v2689 = vunpack.c.l.b16 %v2170
  %v2690 = vunpack.c.l.b16 %v2171
  %v2691 = vunpack.c.l.b16 %v2172
  %v2692 = vunpack.c.l.b16 %v2173
  %v2693 = vunpack.c.l.b16 %v2174
  %v2694 = vunpack.c.l.b16 %v2175
  %v2695 = vunpack.c.l.b16 %v2176
  %v2696 = vunpack.c.l.b16 %v2177
  %v2697 = vunpack.c.l.b16 %v2178
  %v2698 = vunpack.c.l.b16 %v2179
  %v2699 = vunpack.c.l.b16 %v2180
  %v2700 = vunpack.c.l.b16 %v2181
  %v2701 = vunpack.c.l.b16 %v2182
  %v2702 = vunpack.c.l.b16 %v2183
  %v2703 = vunpack.c.l.b16 %v2184
  %v2704 = vunpack.c.l.b16 %v2185
  %v2705 = vunpack.c.l.b16 %v2186
  %v2706 = vunpack.c.l.b16 %v2187
  %v2707 = vunpack.c.l.b16 %v2188
  %v2708 = vunpack.c.l.b16 %v2189
  %v2709 = vunpack.c.l.b16 %v2190
  %v2710 = vunpack.c.l.b16 %v2191
  %v2711 = vunpack.c.l.b16 %v2192
  %v2712 = vunpack.c.l.b16 %v2193
  %v2713 = vunpack.c.l.b16 %v2194
  %v2714 = vunpack.c.l.b16 %v2195
  %v2715 = vunpack.c.l.b16 %v2196
  %v2716 = vunpack.c.l.b16 %v2197
  %v2717 = vunpack.c.l.b16 %v2198
  %v2718 = vunpack.c.l.b16 %v2199
  %v2719 = vunpack.c.l.b16 %v2200
  %v2720 = vunpack.c.l.b16 %v2201
  %v2721 = vunpack.c.l.b16 %v2202
  %v2722 = vunpack.c.l.b16 %v2203
  %v2723 = vunpack.c.l.b16 %v2204
  %v2724 = vunpack.c.l.b16 %v2205
  %v2725 = vunpack.c.l.b16 %v2206
  %v2726 = vunpack.c.l.b16 %v2207
  %v2727 = vunpack.c.l.b16 %v2208
  %v2728 = vunpack.c.l.b16 %v2209
  %v2729 = vunpack.c.l.b16 %v2210
  %v2730 = vunpack.c.l.b16 %v2211
  %v2731 = vunpack.c.l.b16 %v2212
  %v2732 = vunpack.c.l.b16 %v2213
  %v2733 = vunpack.c.l.b16 %v2214
  %v2734 = vunpack.c.l.b16 %v2215
  %v2735 = vunpack.c.l.b16 %v2216
  %v2736 = vunpack.c.l.b16 %v2217
  %v2737 = vunpack.c.l.b16 %v2218
  %v2738 = vunpack.c.l.b16 %v2219
  %v2739 = vunpack.c.l.b16 %v2220
  %v2740 = vunpack.c.l.b16 %v2221
  %v2741 = vunpack.c.l.b16 %v2222
  %v2742 = vunpack.c.l.b16 %v2223
  %v2743 = vunpack.c.l.b16 %v2224
  %v2744 = vunpack.c.l.b16 %v2225
  %v2745 = vunpack.c.l.b16 %v2226
  %v2746 = vunpack.c.l.b16 %v2227
  %v2747 = vunpack.c.l.b16 %v2228
  %v2748 = vunpack.c.l.b16 %v2229
  %v2749 = vunpack.c.l.b16 %v2230
  %v2750 = vunpack.c.l.b16 %v2231
  %v2751 = vunpack.c.l.b16 %v2232
  %v2752 = vunpack.c.l.b16 %v2233
  %v2753 = vunpack.c.l.b16 %v2234
  %v2754 = vunpack.c.l.b16 %v2235
  %v2755 = vunpack.c.l.b16 %v2236
  %v2756 = vunpack.c.l.b16 %v2237
  %v2757 = vunpack.c.l.b16 %v2238
  %v2758 = vunpack.c.l.b16 %v2239
  %v2759 = vunpack.c.l.b16 %v2240
  %v2760 = vunpack.c.l.b16 %v2241
  %v2761 = vunpack.c.l.b16 %v2242
  %v2762 = vunpack.c.l.b16 %v2243
  %v2763 = vunpack.c.l.b16 %v2244
  %v2764 = vunpack.c.l.b16 %v2245
  %v2765 = vunpack.c.l.b16 %v2246
  %v2766 = vunpack.c.l.b16 %v2247
  %v2767 = vunpack.c.l.b16 %v2248
  %v2768 = vunpack.c.l.b16 %v2249
  %v2769 = vunpack.c.l.b16 %v2250
  %v2770 = vunpack.c.l.b16 %v2251
  %v2771 = vunpack.c.l.b16 %v2252
  %v2772 = vunpack.c.l.b16 %v2253
  %v2773 = vunpack.c.l.b16 %v2254
  %v2774 = vunpack.c.l.b16 %v2255
  %v2775 = vunpack.c.l.b16 %v2256
  %v2776 = vunpack.c.l.b16 %v2257
  %v2777 = vunpack.c.l.b16 %v2258
  %v2778 = vunpack.c.l.b16 %v2259
  %v2779 = vunpack.c.l.b16 %v2260
  %v2780 = vunpack.c.l.b16 %v2261
  %v2781 = vunpack.c.l.b16 %v2262
  %v2782 = vunpack.c.l.b16 %v2263
  %v2783 = vunpack.c.l.b16 %v2264
  %v2784 = vunpack.c.l.b16 %v2265
  %v2785 = vunpack.c.l.b16 %v2266
  %v2786 = vunpack.c.l.b16 %v2267
  %v2787 = vunpack.c.l.b16 %v2268
  %v2788 = vunpack.c.l.b16 %v2269
  %v2789 = vunpack.c.l.b16 %v2270
  %v2790 = vunpack.c.l.b16 %v2271
  %v2791 = vunpack.c.l.b16 %v2272
  %v2792 = vunpack.c.l.b16 %v2273
  %v2793 = vunpack.c.l.b16 %v2274
  %v2794 = vunpack.c.l.b16 %v2275
  %v2795 = vunpack.c.l.b16 %v2276
  %v2796 = vunpack.c.l.b16 %v2277
  %v2797 = vunpack.c.l.b16 %v2278
  %v2798 = vunpack.c.l.b16 %v2279
  %v2799 = vunpack.c.l.b16 %v2280
  %v2800 = vunpack.c.l.b16 %v2281
  %v2801 = vunpack.c.l.b16 %v2282
  %v2802 = vunpack.c.l.b16 %v2283
  %v2803 = vunpack.c.l.b16 %v2284
  %v2804 = vunpack.c.l.b16 %v2285
  %v2805 = vunpack.c.l.b16 %v2286
  %v2806 = vunpack.c.l.b16 %v2287
  %v2807 = vunpack.c.l.b16 %v2288
  %v2808 = vunpack.c.l.b16 %v2289
  %v2809 = vunpack.c.l.b16 %v2290
  %v2810 = vunpack.c.l.b16 %v2291
  %v2811 = vunpack.c.l.b16 %v2292
  %v2812 = vunpack.c.l.b16 %v2293
  %v2813 = vunpack.c.l.b16 %v2294
  %v2814 = vunpack.c.l.b16 %v2295
  %v2815 = vpack.c.b16 %v2560, %v2559
  %v2816 = vpack.c.b16 %v2562, %v2561
  %v2817 = vpack.c.b16 %v2564, %v2563
  %v2818 = vpack.c.b16 %v2566, %v2565
  %v2819 = vpack.c.b16 %v2568, %v2567
  %v2820 = vpack.c.b16 %v2570, %v2569
  %v2821 = vpack.c.b16 %v2572, %v2571
  %v2822 = vpack.c.b16 %v2574, %v2573
  %v2823 = vpack.c.b16 %v2576, %v2575
  %v2824 = vpack.c.b16 %v2578, %v2577
  %v2825 = vpack.c.b16 %v2580, %v2579
  %v2826 = vpack.c.b16 %v2582, %v2581
  %v2827 = vpack.c.b16 %v2584, %v2583
  %v2828 = vpack.c.b16 %v2586, %v2585
  %v2829 = vpack.c.b16 %v2588, %v2587
  %v2830 = vpack.c.b16 %v2590, %v2589
  %v2831 = vpack.c.b16 %v2592, %v2591
  %v2832 = vpack.c.b16 %v2594, %v2593
  %v2833 = vpack.c.b16 %v2596, %v2595
  %v2834 = vpack.c.b16 %v2598, %v2597
  %v2835 = vpack.c.b16 %v2600, %v2599
  %v2836 = vpack.c.b16 %v2602, %v2601
  %v2837 = vpack.c.b16 %v2604, %v2603
  %v2838 = vpack.c.b16 %v2606, %v2605
  %v2839 = vpack.c.b16 %v2608, %v2607
  %v2840 = vpack.c.b16 %v2610, %v2609
  %v2841 = vpack.c.b16 %v2612, %v2611
  %v2842 = vpack.c.b16 %v2614, %v2613
  %v2843 = vpack.c.b16 %v2616, %v2615
  %v2844 = vpack.c.b16 %v2618, %v2617
  %v2845 = vpack.c.b16 %v2620, %v2619
  %v2846 = vpack.c.b16 %v2622, %v2621
  %v2847 = vpack.c.b16 %v2624, %v2623
  %v2848 = vpack.c.b16 %v2626, %v2625
  %v2849 = vpack.c.b16 %v2628, %v2627
  %v2850 = vpack.c.b16 %v2630, %v2629
  %v2851 = vpack.c.b16 %v2632, %v2631
  %v2852 = vpack.c.b16 %v2634, %v2633
  %v2853 = vpack.c.b16 %v2636, %v2635
  %v2854 = vpack.c.b16 %v2638, %v2637
  %v2855 = vpack.c.b16 %v2640, %v2639
  %v2856 = vpack.c.b16 %v2642, %v2641
  %v2857 = vpack.c.b16 %v2644, %v2643
  %v2858 = vpack.c.b16 %v2646, %v2645
  %v2859 = vpack.c.b16 %v2648, %v2647
  %v2860 = vpack.c.b16 %v2650, %v2649
  %v2861 = vpack.c.b16 %v2652, %v2651
  %v2862 = vpack.c.b16 %v2654, %v2653
  %v2863 = vpack.c.b16 %v2656, %v2655
  %v2864 = vpack.c.b16 %v2658, %v2657
  %v2865 = vpack.c.b16 %v2660, %v2659
  %v2866 = vpack.c.b16 %v2662, %v2661
  %v2867 = vpack.c.b16 %v2664, %v2663
  %v2868 = vpack.c.b16 %v2666, %v2665
  %v2869 = vpack.c.b16 %v2668, %v2667
  %v2870 = vpack.c.b16 %v2670, %v2669
  %v2871 = vpack.c.b16 %v2672, %v2671
  %v2872 = vpack.c.b16 %v2674, %v2673
  %v2873 = vpack.c.b16 %v2676, %v2675
  %v2874 = vpack.c.b16 %v2678, %v2677
  %v2875 = vpack.c.b16 %v2680, %v2679
  %v2876 = vpack.c.b16 %v2682, %v2681
  %v2877 = vpack.c.b16 %v2684, %v2683
  %v2878 = vpack.c.b16 %v2686, %v2685
  %v2879 = vpack.c.b16 %v2688, %v2687
  %v2880 = vpack.c.b16 %v2690, %v2689
  %v2881 = vpack.c.b16 %v2692, %v2691
  %v2882 = vpack.c.b16 %v2694, %v2693
  %v2883 = vpack.c.b16 %v2696, %v2695
  %v2884 = vpack.c.b16 %v2698, %v2697
  %v2885 = vpack.c.b16 %v2700, %v2699
  %v2886 = vpack.c.b16 %v2702, %v2701
  %v2887 = vpack.c.b16 %v2704, %v2703
  %v2888 = vpack.c.b16 %v2706, %v2705
  %v2889 = vpack.c.b16 %v2708, %v2707
  %v2890 = vpack.c.b16 %v2710, %v2709
  %v2891 = vpack.c.b16 %v2712, %v2711
  %v2892 = vpack.c.b16 %v2714, %v2713
  %v2893 = vpack.c.b16 %v2716, %v2715
  %v2894 = vpack.c.b16 %v2718, %v2717
  %v2895 = vpack.c.b16 %v2720, %v2719
  %v2896 = vpack.c.b16 %v2722, %v2721
  %v2897 = vpack.c.b16 %v2724, %v2723
  %v2898 = vpack.c.b16 %v2726, %v2725
  %v2899 = vpack.c.b16 %v2728, %v2727
  %v2900 = vpack.c.b16 %v2730, %v2729
  %v2901 = vpack.c.b16 %v2732, %v2731
  %v2902 = vpack.c.b16 %v2734, %v2733
  %v2903 = vpack.c.b16 %v2736, %v2735
  %v2904 = vpack.c.b16 %v2738, %v2737
  %v2905 = vpack.c.b16 %v2740, %v2739
  %v2906 = vpack.c.b16 %v2742, %v2741
  %v2907 = vpack.c.b16 %v2744, %v2743
  %v2908 = vpack.c.b16 %v2746, %v2745
  %v2909 = vpack.c.b16 %v2748, %v2747
  %v2910 = vpack.c.b16 %v2750, %v2749
  %v2911 = vpack.c.b16 %v2752, %v2751
  %v2912 = vpack.c.b16 %v2754, %v2753
  %v2913 = vpack.c.b16 %v2756, %v2755
  %v2914 = vpack.c.b16 %v2758, %v2757
  %v2915 = vpack.c.b16 %v2760, %v2759
  %v2916 = vpack.c.b16 %v2762, %v2761
  %v2917 = vpack.c.b16 %v2764, %v2763
  %v2918 = vpack.c.b16 %v2766, %v2765
  %v2919 = vpack.c.b16 %v2768, %v2767
  %v2920 = vpack.c.b16 %v2770, %v2769
  %v2921 = vpack.c.b16 %v2772, %v2771
  %v2922 = vpack.c.b16 %v2774, %v2773
  %v2923 = vpack.c.b16 %v2776, %v2775
  %v2924 = vpack.c.b16 %v2778, %v2777
  %v2925 = vpack.c.b16 %v2780, %v2779
  %v2926 = vpack.c.b16 %v2782, %v2781
  %v2927 = vpack.c.b16 %v2784, %v2783
  %v2928 = vpack.c.b16 %v2786, %v2785
  %v2929 = vpack.c.b16 %v2788, %v2787
  %v2930 = vpack.c.b16 %v2790, %v2789
  %v2931 = vpack.c.b16 %v2792, %v2791
  %v2932 = vpack.c.b16 %v2794, %v2793
  %v2933 = vpack.c.b16 %v2796, %v2795
  %v2934 = vpack.c.b16 %v2798, %v2797
  %v2935 = vpack.c.b16 %v2800, %v2799
  %v2936 = vpack.c.b16 %v2802, %v2801
  %v2937 = vpack.c.b16 %v2804, %v2803
  %v2938 = vpack.c.b16 %v2806, %v2805
  %v2939 = vpack.c.b16 %v2808, %v2807
  %v2940 = vpack.c.b16 %v2810, %v2809
  %v2941 = vpack.c.b16 %v2812, %v2811
  %v2942 = vpack.c.b16 %v2814, %v2813
  %3071 = vmatprep.subr.bf16.mxu0 0
  %3072 = vmatpush1.bf16.msra.mxu0 %v2822
  %3073 = vmatprep.subr.bf16.mxu0 0
  %3074 = vmatpush1.bf16.msra.mxu0 %v2821
  %3075 = vmatprep.subr.bf16.mxu0 0
  %3076 = vmatpush1.bf16.msra.mxu0 %v2820
  %3077 = vmatprep.subr.bf16.mxu0 0
  %3078 = vmatpush1.bf16.msra.mxu0 %v2819
  %3079 = vmatprep.subr.bf16.mxu0 0
  %3080 = vmatpush1.bf16.msra.mxu0 %v2818
  %3081 = vmatprep.subr.bf16.mxu0 0
  %3082 = vmatpush1.bf16.msra.mxu0 %v2817
  %3083 = vmatprep.subr.bf16.mxu0 0
  %3084 = vmatpush1.bf16.msra.mxu0 %v2816
  %3085 = vmatprep.subr.bf16.mxu0 0
  %3086 = vmatpush1.bf16.msra.mxu0 %v2815
  %3087 = vmatprep.subr.bf16.mxu0 0
  %3088 = vmatpush2.bf16.msra.mxu0 %v2830
  %3089 = vmatprep.subr.bf16.mxu0 0
  %3090 = vmatpush2.bf16.msra.mxu0 %v2829
  %3091 = vmatprep.subr.bf16.mxu0 0
  %3092 = vmatpush2.bf16.msra.mxu0 %v2828
  %3093 = vmatprep.subr.bf16.mxu0 0
  %3094 = vmatpush2.bf16.msra.mxu0 %v2827
  %3095 = vmatprep.subr.bf16.mxu0 0
  %3096 = vmatpush2.bf16.msra.mxu0 %v2826
  %3097 = vmatprep.subr.bf16.mxu0 0
  %3098 = vmatpush2.bf16.msra.mxu0 %v2825
  %3099 = vmatprep.subr.bf16.mxu0 0
  %3100 = vmatpush2.bf16.msra.mxu0 %v2824
  %3101 = vmatprep.subr.bf16.mxu0 0
  %3102 = vmatpush2.bf16.msra.mxu0 %v2823
  %3103 = vmatprep.mubr.bf16.mxu0 %v2025
  %3104 = vmatmul.mubr.bf16.gmra.mxu0 %v2024
  %v3105 = vpop.f32.mrf.mxu0
  %v3106 = vadd.f32 %v2301, %v3105
  %v3107 = vpop.f32.mrf.mxu0
  %v3108 = vpop.f32.mrf.mxu0
  %v3109 = vadd.f32 %v2301, %v3108
  %v3110 = vpop.f32.mrf.mxu0
  %3111 = vdwg.mxu0
  %3112 = vmatprep.subr.bf16.mxu0 0
  %3113 = vmatpush1.bf16.msra.mxu0 %v2838
  %3114 = vmatprep.subr.bf16.mxu0 0
  %3115 = vmatpush1.bf16.msra.mxu0 %v2837
  %3116 = vmatprep.subr.bf16.mxu0 0
  %3117 = vmatpush1.bf16.msra.mxu0 %v2836
  %3118 = vmatprep.subr.bf16.mxu0 0
  %3119 = vmatpush1.bf16.msra.mxu0 %v2835
  %3120 = vmatprep.subr.bf16.mxu0 0
  %3121 = vmatpush1.bf16.msra.mxu0 %v2834
  %3122 = vmatprep.subr.bf16.mxu0 0
  %3123 = vmatpush1.bf16.msra.mxu0 %v2833
  %3124 = vmatprep.subr.bf16.mxu0 0
  %3125 = vmatpush1.bf16.msra.mxu0 %v2832
  %3126 = vmatprep.subr.bf16.mxu0 0
  %3127 = vmatpush1.bf16.msra.mxu0 %v2831
  %3128 = vmatprep.subr.bf16.mxu0 0
  %3129 = vmatpush2.bf16.msra.mxu0 %v2846
  %3130 = vmatprep.subr.bf16.mxu0 0
  %3131 = vmatpush2.bf16.msra.mxu0 %v2845
  %3132 = vmatprep.subr.bf16.mxu0 0
  %3133 = vmatpush2.bf16.msra.mxu0 %v2844
  %3134 = vmatprep.subr.bf16.mxu0 0
  %3135 = vmatpush2.bf16.msra.mxu0 %v2843
  %3136 = vmatprep.subr.bf16.mxu0 0
  %3137 = vmatpush2.bf16.msra.mxu0 %v2842
  %3138 = vmatprep.subr.bf16.mxu0 0
  %3139 = vmatpush2.bf16.msra.mxu0 %v2841
  %3140 = vmatprep.subr.bf16.mxu0 0
  %3141 = vmatpush2.bf16.msra.mxu0 %v2840
  %3142 = vmatprep.subr.bf16.mxu0 0
  %3143 = vmatpush2.bf16.msra.mxu0 %v2839
  %3144 = vmatprep.mubr.bf16.mxu0 %v2027
  %3145 = vmatmul.mubr.bf16.gmra.mxu0 %v2026
  %v3146 = vpop.f32.mrf.mxu0
  %v3147 = vadd.f32 %v3106, %v3146
  %v3148 = vpop.f32.mrf.mxu0
  %v3149 = vpop.f32.mrf.mxu0
  %v3150 = vadd.f32 %v3109, %v3149
  %v3151 = vpop.f32.mrf.mxu0
  %3152 = vdwg.mxu0
  %3153 = vmatprep.subr.bf16.mxu0 0
  %3154 = vmatpush1.bf16.msra.mxu0 %v2854
  %3155 = vmatprep.subr.bf16.mxu0 0
  %3156 = vmatpush1.bf16.msra.mxu0 %v2853
  %3157 = vmatprep.subr.bf16.mxu0 0
  %3158 = vmatpush1.bf16.msra.mxu0 %v2852
  %3159 = vmatprep.subr.bf16.mxu0 0
  %3160 = vmatpush1.bf16.msra.mxu0 %v2851
  %3161 = vmatprep.subr.bf16.mxu0 0
  %3162 = vmatpush1.bf16.msra.mxu0 %v2850
  %3163 = vmatprep.subr.bf16.mxu0 0
  %3164 = vmatpush1.bf16.msra.mxu0 %v2849
  %3165 = vmatprep.subr.bf16.mxu0 0
  %3166 = vmatpush1.bf16.msra.mxu0 %v2848
  %3167 = vmatprep.subr.bf16.mxu0 0
  %3168 = vmatpush1.bf16.msra.mxu0 %v2847
  %3169 = vmatprep.subr.bf16.mxu0 0
  %3170 = vmatpush2.bf16.msra.mxu0 %v2862
  %3171 = vmatprep.subr.bf16.mxu0 0
  %3172 = vmatpush2.bf16.msra.mxu0 %v2861
  %3173 = vmatprep.subr.bf16.mxu0 0
  %3174 = vmatpush2.bf16.msra.mxu0 %v2860
  %3175 = vmatprep.subr.bf16.mxu0 0
  %3176 = vmatpush2.bf16.msra.mxu0 %v2859
  %3177 = vmatprep.subr.bf16.mxu0 0
  %3178 = vmatpush2.bf16.msra.mxu0 %v2858
  %3179 = vmatprep.subr.bf16.mxu0 0
  %3180 = vmatpush2.bf16.msra.mxu0 %v2857
  %3181 = vmatprep.subr.bf16.mxu0 0
  %3182 = vmatpush2.bf16.msra.mxu0 %v2856
  %3183 = vmatprep.subr.bf16.mxu0 0
  %3184 = vmatpush2.bf16.msra.mxu0 %v2855
  %3185 = vmatprep.mubr.bf16.mxu0 %v2029
  %3186 = vmatmul.mubr.bf16.gmra.mxu0 %v2028
  %v3187 = vpop.f32.mrf.mxu0
  %v3188 = vadd.f32 %v3147, %v3187
  %v3189 = vpop.f32.mrf.mxu0
  %v3190 = vpop.f32.mrf.mxu0
  %v3191 = vadd.f32 %v3150, %v3190
  %v3192 = vpop.f32.mrf.mxu0
  %3193 = vdwg.mxu0
  %3194 = vmatprep.subr.bf16.mxu0 0
  %3195 = vmatpush1.bf16.msra.mxu0 %v2870
  %3196 = vmatprep.subr.bf16.mxu0 0
  %3197 = vmatpush1.bf16.msra.mxu0 %v2869
  %3198 = vmatprep.subr.bf16.mxu0 0
  %3199 = vmatpush1.bf16.msra.mxu0 %v2868
  %3200 = vmatprep.subr.bf16.mxu0 0
  %3201 = vmatpush1.bf16.msra.mxu0 %v2867
  %3202 = vmatprep.subr.bf16.mxu0 0
  %3203 = vmatpush1.bf16.msra.mxu0 %v2866
  %3204 = vmatprep.subr.bf16.mxu0 0
  %3205 = vmatpush1.bf16.msra.mxu0 %v2865
  %3206 = vmatprep.subr.bf16.mxu0 0
  %3207 = vmatpush1.bf16.msra.mxu0 %v2864
  %3208 = vmatprep.subr.bf16.mxu0 0
  %3209 = vmatpush1.bf16.msra.mxu0 %v2863
  %3210 = vmatprep.subr.bf16.mxu0 0
  %3211 = vmatpush2.bf16.msra.mxu0 %v2878
  %3212 = vmatprep.subr.bf16.mxu0 0
  %3213 = vmatpush2.bf16.msra.mxu0 %v2877
  %3214 = vmatprep.subr.bf16.mxu0 0
  %3215 = vmatpush2.bf16.msra.mxu0 %v2876
  %3216 = vmatprep.subr.bf16.mxu0 0
  %3217 = vmatpush2.bf16.msra.mxu0 %v2875
  %3218 = vmatprep.subr.bf16.mxu0 0
  %3219 = vmatpush2.bf16.msra.mxu0 %v2874
  %3220 = vmatprep.subr.bf16.mxu0 0
  %3221 = vmatpush2.bf16.msra.mxu0 %v2873
  %3222 = vmatprep.subr.bf16.mxu0 0
  %3223 = vmatpush2.bf16.msra.mxu0 %v2872
  %3224 = vmatprep.subr.bf16.mxu0 0
  %3225 = vmatpush2.bf16.msra.mxu0 %v2871
  %3226 = vmatprep.mubr.bf16.mxu0 %v2031
  %3227 = vmatmul.mubr.bf16.gmra.mxu0 %v2030
  %v3228 = vpop.f32.mrf.mxu0
  %v3229 = vadd.f32 %v3188, %v3228
  %v3230 = vpop.f32.mrf.mxu0
  %v3231 = vpop.f32.mrf.mxu0
  %v3232 = vadd.f32 %v3191, %v3231
  %v3233 = vpop.f32.mrf.mxu0
  %3234 = vdwg.mxu0
  %3235 = vmatprep.subr.bf16.mxu0 0
  %3236 = vmatpush1.bf16.msra.mxu0 %v2886
  %3237 = vmatprep.subr.bf16.mxu0 0
  %3238 = vmatpush1.bf16.msra.mxu0 %v2885
  %3239 = vmatprep.subr.bf16.mxu0 0
  %3240 = vmatpush1.bf16.msra.mxu0 %v2884
  %3241 = vmatprep.subr.bf16.mxu0 0
  %3242 = vmatpush1.bf16.msra.mxu0 %v2883
  %3243 = vmatprep.subr.bf16.mxu0 0
  %3244 = vmatpush1.bf16.msra.mxu0 %v2882
  %3245 = vmatprep.subr.bf16.mxu0 0
  %3246 = vmatpush1.bf16.msra.mxu0 %v2881
  %3247 = vmatprep.subr.bf16.mxu0 0
  %3248 = vmatpush1.bf16.msra.mxu0 %v2880
  %3249 = vmatprep.subr.bf16.mxu0 0
  %3250 = vmatpush1.bf16.msra.mxu0 %v2879
  %3251 = vmatprep.subr.bf16.mxu0 0
  %3252 = vmatpush2.bf16.msra.mxu0 %v2894
  %3253 = vmatprep.subr.bf16.mxu0 0
  %3254 = vmatpush2.bf16.msra.mxu0 %v2893
  %3255 = vmatprep.subr.bf16.mxu0 0
  %3256 = vmatpush2.bf16.msra.mxu0 %v2892
  %3257 = vmatprep.subr.bf16.mxu0 0
  %3258 = vmatpush2.bf16.msra.mxu0 %v2891
  %3259 = vmatprep.subr.bf16.mxu0 0
  %3260 = vmatpush2.bf16.msra.mxu0 %v2890
  %3261 = vmatprep.subr.bf16.mxu0 0
  %3262 = vmatpush2.bf16.msra.mxu0 %v2889
  %3263 = vmatprep.subr.bf16.mxu0 0
  %3264 = vmatpush2.bf16.msra.mxu0 %v2888
  %3265 = vmatprep.subr.bf16.mxu0 0
  %3266 = vmatpush2.bf16.msra.mxu0 %v2887
  %3267 = vmatprep.mubr.bf16.mxu0 %v2033
  %3268 = vmatmul.mubr.bf16.gmra.mxu0 %v2032
  %v3269 = vpop.f32.mrf.mxu0
  %v3270 = vadd.f32 %v3229, %v3269
  %v3271 = vpop.f32.mrf.mxu0
  %v3272 = vpop.f32.mrf.mxu0
  %v3273 = vadd.f32 %v3232, %v3272
  %v3274 = vpop.f32.mrf.mxu0
  %3275 = vdwg.mxu0
  %3276 = vmatprep.subr.bf16.mxu0 0
  %3277 = vmatpush1.bf16.msra.mxu0 %v2902
  %3278 = vmatprep.subr.bf16.mxu0 0
  %3279 = vmatpush1.bf16.msra.mxu0 %v2901
  %3280 = vmatprep.subr.bf16.mxu0 0
  %3281 = vmatpush1.bf16.msra.mxu0 %v2900
  %3282 = vmatprep.subr.bf16.mxu0 0
  %3283 = vmatpush1.bf16.msra.mxu0 %v2899
  %3284 = vmatprep.subr.bf16.mxu0 0
  %3285 = vmatpush1.bf16.msra.mxu0 %v2898
  %3286 = vmatprep.subr.bf16.mxu0 0
  %3287 = vmatpush1.bf16.msra.mxu0 %v2897
  %3288 = vmatprep.subr.bf16.mxu0 0
  %3289 = vmatpush1.bf16.msra.mxu0 %v2896
  %3290 = vmatprep.subr.bf16.mxu0 0
  %3291 = vmatpush1.bf16.msra.mxu0 %v2895
  %3292 = vmatprep.subr.bf16.mxu0 0
  %3293 = vmatpush2.bf16.msra.mxu0 %v2910
  %3294 = vmatprep.subr.bf16.mxu0 0
  %3295 = vmatpush2.bf16.msra.mxu0 %v2909
  %3296 = vmatprep.subr.bf16.mxu0 0
  %3297 = vmatpush2.bf16.msra.mxu0 %v2908
  %3298 = vmatprep.subr.bf16.mxu0 0
  %3299 = vmatpush2.bf16.msra.mxu0 %v2907
  %3300 = vmatprep.subr.bf16.mxu0 0
  %3301 = vmatpush2.bf16.msra.mxu0 %v2906
  %3302 = vmatprep.subr.bf16.mxu0 0
  %3303 = vmatpush2.bf16.msra.mxu0 %v2905
  %3304 = vmatprep.subr.bf16.mxu0 0
  %3305 = vmatpush2.bf16.msra.mxu0 %v2904
  %3306 = vmatprep.subr.bf16.mxu0 0
  %3307 = vmatpush2.bf16.msra.mxu0 %v2903
  %3308 = vmatprep.mubr.bf16.mxu0 %v2035
  %3309 = vmatmul.mubr.bf16.gmra.mxu0 %v2034
  %v3310 = vpop.f32.mrf.mxu0
  %v3311 = vadd.f32 %v3270, %v3310
  %v3312 = vpop.f32.mrf.mxu0
  %v3313 = vpop.f32.mrf.mxu0
  %v3314 = vadd.f32 %v3273, %v3313
  %v3315 = vpop.f32.mrf.mxu0
  %3316 = vdwg.mxu0
  %3317 = vmatprep.subr.bf16.mxu0 0
  %3318 = vmatpush1.bf16.msra.mxu0 %v2918
  %3319 = vmatprep.subr.bf16.mxu0 0
  %3320 = vmatpush1.bf16.msra.mxu0 %v2917
  %3321 = vmatprep.subr.bf16.mxu0 0
  %3322 = vmatpush1.bf16.msra.mxu0 %v2916
  %3323 = vmatprep.subr.bf16.mxu0 0
  %3324 = vmatpush1.bf16.msra.mxu0 %v2915
  %3325 = vmatprep.subr.bf16.mxu0 0
  %3326 = vmatpush1.bf16.msra.mxu0 %v2914
  %3327 = vmatprep.subr.bf16.mxu0 0
  %3328 = vmatpush1.bf16.msra.mxu0 %v2913
  %3329 = vmatprep.subr.bf16.mxu0 0
  %3330 = vmatpush1.bf16.msra.mxu0 %v2912
  %3331 = vmatprep.subr.bf16.mxu0 0
  %3332 = vmatpush1.bf16.msra.mxu0 %v2911
  %3333 = vmatprep.subr.bf16.mxu0 0
  %3334 = vmatpush2.bf16.msra.mxu0 %v2926
  %3335 = vmatprep.subr.bf16.mxu0 0
  %3336 = vmatpush2.bf16.msra.mxu0 %v2925
  %3337 = vmatprep.subr.bf16.mxu0 0
  %3338 = vmatpush2.bf16.msra.mxu0 %v2924
  %3339 = vmatprep.subr.bf16.mxu0 0
  %3340 = vmatpush2.bf16.msra.mxu0 %v2923
  %3341 = vmatprep.subr.bf16.mxu0 0
  %3342 = vmatpush2.bf16.msra.mxu0 %v2922
  %3343 = vmatprep.subr.bf16.mxu0 0
  %3344 = vmatpush2.bf16.msra.mxu0 %v2921
  %3345 = vmatprep.subr.bf16.mxu0 0
  %3346 = vmatpush2.bf16.msra.mxu0 %v2920
  %3347 = vmatprep.subr.bf16.mxu0 0
  %3348 = vmatpush2.bf16.msra.mxu0 %v2919
  %3349 = vmatprep.mubr.bf16.mxu0 %v2037
  %3350 = vmatmul.mubr.bf16.gmra.mxu0 %v2036
  %v3351 = vpop.f32.mrf.mxu0
  %v3352 = vadd.f32 %v3311, %v3351
  %v3353 = vpop.f32.mrf.mxu0
  %v3354 = vpop.f32.mrf.mxu0
  %v3355 = vadd.f32 %v3314, %v3354
  %v3356 = vpop.f32.mrf.mxu0
  %3357 = vdwg.mxu0
  %3358 = vmatprep.subr.bf16.mxu0 0
  %3359 = vmatpush1.bf16.msra.mxu0 %v2934
  %3360 = vmatprep.subr.bf16.mxu0 0
  %3361 = vmatpush1.bf16.msra.mxu0 %v2933
  %3362 = vmatprep.subr.bf16.mxu0 0
  %3363 = vmatpush1.bf16.msra.mxu0 %v2932
  %3364 = vmatprep.subr.bf16.mxu0 0
  %3365 = vmatpush1.bf16.msra.mxu0 %v2931
  %3366 = vmatprep.subr.bf16.mxu0 0
  %3367 = vmatpush1.bf16.msra.mxu0 %v2930
  %3368 = vmatprep.subr.bf16.mxu0 0
  %3369 = vmatpush1.bf16.msra.mxu0 %v2929
  %3370 = vmatprep.subr.bf16.mxu0 0
  %3371 = vmatpush1.bf16.msra.mxu0 %v2928
  %3372 = vmatprep.subr.bf16.mxu0 0
  %3373 = vmatpush1.bf16.msra.mxu0 %v2927
  %3374 = vmatprep.subr.bf16.mxu0 0
  %3375 = vmatpush2.bf16.msra.mxu0 %v2942
  %3376 = vmatprep.subr.bf16.mxu0 0
  %3377 = vmatpush2.bf16.msra.mxu0 %v2941
  %3378 = vmatprep.subr.bf16.mxu0 0
  %3379 = vmatpush2.bf16.msra.mxu0 %v2940
  %3380 = vmatprep.subr.bf16.mxu0 0
  %3381 = vmatpush2.bf16.msra.mxu0 %v2939
  %3382 = vmatprep.subr.bf16.mxu0 0
  %3383 = vmatpush2.bf16.msra.mxu0 %v2938
  %3384 = vmatprep.subr.bf16.mxu0 0
  %3385 = vmatpush2.bf16.msra.mxu0 %v2937
  %3386 = vmatprep.subr.bf16.mxu0 0
  %3387 = vmatpush2.bf16.msra.mxu0 %v2936
  %3388 = vmatprep.subr.bf16.mxu0 0
  %3389 = vmatpush2.bf16.msra.mxu0 %v2935
  %3390 = vmatprep.mubr.bf16.mxu0 %v2039
  %3391 = vmatmul.mubr.bf16.gmra.mxu0 %v2038
  %v3392 = vpop.f32.mrf.mxu0
  %v3393 = vadd.f32 %v3352, %v3392
  %v3394 = vpop.f32.mrf.mxu0
  %v3395 = vpop.f32.mrf.mxu0
  %v3396 = vadd.f32 %v3355, %v3395
  %v3397 = vpop.f32.mrf.mxu0
  %3398 = vdwg.mxu0
  %v3399 = vadd.f32 %v1366, %v3393
  %v3400 = vadd.f32 %v1367, %v3396
  %v3401 = vld [vmem:[%s14] sm:$0x1]
  %v3402 = vld [vmem:[%s15] sm:$0x1]
  %v3403 = vsel %vm164, %v3399, 0.0
  %3404 = vadd.xlane.f32.xlu0 %v3403
  %v3405 = vpop.xlane.xlu0 %3404
  %v3406 = vsel %vm164, %v3400, 0.0
  %3407 = vadd.xlane.f32.xlu0 %v3406
  %v3408 = vpop.xlane.xlu0 %3407
  %v3409 = vmul.f32 %v3405, %v1331
  %v3410 = vmul.f32 %v3408, %v1331
  %v3411 = vsub.f32 %v3399, %v3409
  %v3412 = vsub.f32 %v3400, %v3410
  %v3413 = vmul.f32 %v3411, %v3411
  %v3414 = vmul.f32 %v3412, %v3412
  %v3415 = vsel %vm164, %v3413, 0.0
  %3416 = vadd.xlane.f32.xlu0 %v3415
  %v3417 = vpop.xlane.xlu0 %3416
  %v3418 = vsel %vm164, %v3414, 0.0
  %3419 = vadd.xlane.f32.xlu0 %v3418
  %v3420 = vpop.xlane.xlu0 %3419
  %v3421 = vmul.f32 %v3417, %v1331
  %v3422 = vmul.f32 %v3420, %v1331
  %v3423 = vadd.f32 %v3421, 1e-05
  %v3424 = vadd.f32 %v3422, 1e-05
  %v3425 = vrsqrt.pop %v3423
  %v3426 = vrsqrt.pop %v3424
  %v3427 = vmul.f32 %v3411, %v3425
  %v3428 = vmul.f32 %v3412, %v3426
  %v3430 = vlaneseq
  %v3431 = vshrl.u32 %v3430, 7
  %v3432 = vsub.s32 0, %v3431
  %v3433 = vrot.slane %v3401, %v3432
  %v3435 = vmul.f32 %v3427, %v3433
  %v3436 = vmul.f32 %v3428, %v3433
  %v3438 = vlaneseq
  %v3439 = vshrl.u32 %v3438, 7
  %v3440 = vsub.s32 0, %v3439
  %v3441 = vrot.slane %v3402, %v3440
  %v3443 = vadd.f32 %v3435, %v3441
  %v3444 = vadd.f32 %v3436, %v3441
  %v3445 = vpack.c.bf16 %v3444, %v3443
  %s3446 = scalar_lea.vmem %s4, 16
  %v3447 = vld [vmem:[%s3446] sm:$0xf]
  %v3448 = vld [vmem:[%s3446 + $0x4] sm:$0xf]
  %v3449 = vld [vmem:[%s3446 + $0x8] sm:$0xf]
  %v3450 = vld [vmem:[%s3446 + $0xc] sm:$0xf]
  %s3451 = scalar_lea.vmem %s5, 1
  %v3452 = vld [vmem:[%s3451] sm:$0x1]
  %v3454 = vlaneseq
  %v3455 = vshrl.u32 %v3454, 7
  %v3456 = vsub.s32 0, %v3455
  %v3457 = vrot.slane %v3452, %v3456
  %v3463 = vunpack.c.l.b16 %v3447
  %v3464 = vunpack.c.l.b16 %v3448
  %v3465 = vunpack.c.l.b16 %v3449
  %v3466 = vunpack.c.l.b16 %v3450
  %v3467 = vpack.c.b16 %v3464, %v3463
  %v3468 = vpack.c.b16 %v3466, %v3465
  %v3472 = vsel %vm164, %v3445, 0
  %3474 = vmatprep.subr.bf16.mxu0 0
  %3475 = vmatpush1.bf16.msra.mxu0 0
  %3476 = vmatprep.subr.bf16.mxu0 0
  %3477 = vmatpush1.bf16.msra.mxu0 0
  %3478 = vmatprep.subr.bf16.mxu0 0
  %3479 = vmatpush1.bf16.msra.mxu0 0
  %3480 = vmatprep.subr.bf16.mxu0 0
  %3481 = vmatpush1.bf16.msra.mxu0 0
  %3482 = vmatprep.subr.bf16.mxu0 0
  %3483 = vmatpush1.bf16.msra.mxu0 0
  %3484 = vmatprep.subr.bf16.mxu0 0
  %3485 = vmatpush1.bf16.msra.mxu0 0
  %3486 = vmatprep.subr.bf16.mxu0 0
  %3487 = vmatpush1.bf16.msra.mxu0 %v3468
  %3488 = vmatprep.subr.bf16.mxu0 0
  %3489 = vmatpush1.bf16.msra.mxu0 %v3467
  %3490 = vmatprep.subr.bf16.mxu0 0
  %3491 = vmatpush2.bf16.msra.mxu0 0
  %3492 = vmatprep.subr.bf16.mxu0 0
  %3493 = vmatpush2.bf16.msra.mxu0 0
  %3494 = vmatprep.subr.bf16.mxu0 0
  %3495 = vmatpush2.bf16.msra.mxu0 0
  %3496 = vmatprep.subr.bf16.mxu0 0
  %3497 = vmatpush2.bf16.msra.mxu0 0
  %3498 = vmatprep.subr.bf16.mxu0 0
  %3499 = vmatpush2.bf16.msra.mxu0 0
  %3500 = vmatprep.subr.bf16.mxu0 0
  %3501 = vmatpush2.bf16.msra.mxu0 0
  %3502 = vmatprep.subr.bf16.mxu0 0
  %3503 = vmatpush2.bf16.msra.mxu0 0
  %3504 = vmatprep.subr.bf16.mxu0 0
  %3505 = vmatpush2.bf16.msra.mxu0 0
  %3506 = vmatprep.mubr.bf16.mxu0 0
  %3507 = vmatmul.mubr.bf16.gmra.mxu0 %v3472
  %v3508 = vpop.f32.mrf.mxu0
  %v3509 = vadd.f32 %v3457, %v3508
  %v3510 = vpop.f32.mrf.mxu0
  %v3511 = vpop.f32.mrf.mxu0
  %v3512 = vadd.f32 %v3457, %v3511
  %v3513 = vpop.f32.mrf.mxu0
  %3514 = vdwg.mxu0
  %s3515 = scalar_lea.vmem %s6, 16
  %v3516 = vld [vmem:[%s3515] sm:$0xf]
  %v3517 = vld [vmem:[%s3515 + $0x4] sm:$0xf]
  %v3518 = vld [vmem:[%s3515 + $0x8] sm:$0xf]
  %v3519 = vld [vmem:[%s3515 + $0xc] sm:$0xf]
  %s3520 = scalar_lea.vmem %s7, 1
  %v3521 = vld [vmem:[%s3520] sm:$0x1]
  %v3523 = vlaneseq
  %v3524 = vshrl.u32 %v3523, 7
  %v3525 = vsub.s32 0, %v3524
  %v3526 = vrot.slane %v3521, %v3525
  %v3532 = vunpack.c.l.b16 %v3516
  %v3533 = vunpack.c.l.b16 %v3517
  %v3534 = vunpack.c.l.b16 %v3518
  %v3535 = vunpack.c.l.b16 %v3519
  %v3536 = vpack.c.b16 %v3533, %v3532
  %v3537 = vpack.c.b16 %v3535, %v3534
  %3540 = vmatprep.subr.bf16.mxu0 0
  %3541 = vmatpush1.bf16.msra.mxu0 0
  %3542 = vmatprep.subr.bf16.mxu0 0
  %3543 = vmatpush1.bf16.msra.mxu0 0
  %3544 = vmatprep.subr.bf16.mxu0 0
  %3545 = vmatpush1.bf16.msra.mxu0 0
  %3546 = vmatprep.subr.bf16.mxu0 0
  %3547 = vmatpush1.bf16.msra.mxu0 0
  %3548 = vmatprep.subr.bf16.mxu0 0
  %3549 = vmatpush1.bf16.msra.mxu0 0
  %3550 = vmatprep.subr.bf16.mxu0 0
  %3551 = vmatpush1.bf16.msra.mxu0 0
  %3552 = vmatprep.subr.bf16.mxu0 0
  %3553 = vmatpush1.bf16.msra.mxu0 %v3537
  %3554 = vmatprep.subr.bf16.mxu0 0
  %3555 = vmatpush1.bf16.msra.mxu0 %v3536
  %3556 = vmatprep.subr.bf16.mxu0 0
  %3557 = vmatpush2.bf16.msra.mxu0 0
  %3558 = vmatprep.subr.bf16.mxu0 0
  %3559 = vmatpush2.bf16.msra.mxu0 0
  %3560 = vmatprep.subr.bf16.mxu0 0
  %3561 = vmatpush2.bf16.msra.mxu0 0
  %3562 = vmatprep.subr.bf16.mxu0 0
  %3563 = vmatpush2.bf16.msra.mxu0 0
  %3564 = vmatprep.subr.bf16.mxu0 0
  %3565 = vmatpush2.bf16.msra.mxu0 0
  %3566 = vmatprep.subr.bf16.mxu0 0
  %3567 = vmatpush2.bf16.msra.mxu0 0
  %3568 = vmatprep.subr.bf16.mxu0 0
  %3569 = vmatpush2.bf16.msra.mxu0 0
  %3570 = vmatprep.subr.bf16.mxu0 0
  %3571 = vmatpush2.bf16.msra.mxu0 0
  %3572 = vmatprep.mubr.bf16.mxu0 0
  %3573 = vmatmul.mubr.bf16.gmra.mxu0 %v3472
  %v3574 = vpop.f32.mrf.mxu0
  %v3575 = vadd.f32 %v3526, %v3574
  %v3576 = vpop.f32.mrf.mxu0
  %v3577 = vpop.f32.mrf.mxu0
  %v3578 = vadd.f32 %v3526, %v3577
  %v3579 = vpop.f32.mrf.mxu0
  %3580 = vdwg.mxu0
  %s3581 = scalar_lea.vmem %s8, 16
  %v3582 = vld [vmem:[%s3581] sm:$0xf]
  %v3583 = vld [vmem:[%s3581 + $0x4] sm:$0xf]
  %v3584 = vld [vmem:[%s3581 + $0x8] sm:$0xf]
  %v3585 = vld [vmem:[%s3581 + $0xc] sm:$0xf]
  %s3586 = scalar_lea.vmem %s9, 1
  %v3587 = vld [vmem:[%s3586] sm:$0x1]
  %v3589 = vlaneseq
  %v3590 = vshrl.u32 %v3589, 7
  %v3591 = vsub.s32 0, %v3590
  %v3592 = vrot.slane %v3587, %v3591
  %v3598 = vunpack.c.l.b16 %v3582
  %v3599 = vunpack.c.l.b16 %v3583
  %v3600 = vunpack.c.l.b16 %v3584
  %v3601 = vunpack.c.l.b16 %v3585
  %v3602 = vpack.c.b16 %v3599, %v3598
  %v3603 = vpack.c.b16 %v3601, %v3600
  %3606 = vmatprep.subr.bf16.mxu0 0
  %3607 = vmatpush1.bf16.msra.mxu0 0
  %3608 = vmatprep.subr.bf16.mxu0 0
  %3609 = vmatpush1.bf16.msra.mxu0 0
  %3610 = vmatprep.subr.bf16.mxu0 0
  %3611 = vmatpush1.bf16.msra.mxu0 0
  %3612 = vmatprep.subr.bf16.mxu0 0
  %3613 = vmatpush1.bf16.msra.mxu0 0
  %3614 = vmatprep.subr.bf16.mxu0 0
  %3615 = vmatpush1.bf16.msra.mxu0 0
  %3616 = vmatprep.subr.bf16.mxu0 0
  %3617 = vmatpush1.bf16.msra.mxu0 0
  %3618 = vmatprep.subr.bf16.mxu0 0
  %3619 = vmatpush1.bf16.msra.mxu0 %v3603
  %3620 = vmatprep.subr.bf16.mxu0 0
  %3621 = vmatpush1.bf16.msra.mxu0 %v3602
  %3622 = vmatprep.subr.bf16.mxu0 0
  %3623 = vmatpush2.bf16.msra.mxu0 0
  %3624 = vmatprep.subr.bf16.mxu0 0
  %3625 = vmatpush2.bf16.msra.mxu0 0
  %3626 = vmatprep.subr.bf16.mxu0 0
  %3627 = vmatpush2.bf16.msra.mxu0 0
  %3628 = vmatprep.subr.bf16.mxu0 0
  %3629 = vmatpush2.bf16.msra.mxu0 0
  %3630 = vmatprep.subr.bf16.mxu0 0
  %3631 = vmatpush2.bf16.msra.mxu0 0
  %3632 = vmatprep.subr.bf16.mxu0 0
  %3633 = vmatpush2.bf16.msra.mxu0 0
  %3634 = vmatprep.subr.bf16.mxu0 0
  %3635 = vmatpush2.bf16.msra.mxu0 0
  %3636 = vmatprep.subr.bf16.mxu0 0
  %3637 = vmatpush2.bf16.msra.mxu0 0
  %3638 = vmatprep.mubr.bf16.mxu0 0
  %3639 = vmatmul.mubr.bf16.gmra.mxu0 %v3472
  %v3640 = vpop.f32.mrf.mxu0
  %v3641 = vadd.f32 %v3592, %v3640
  %v3642 = vpop.f32.mrf.mxu0
  %v3643 = vpop.f32.mrf.mxu0
  %v3644 = vadd.f32 %v3592, %v3643
  %v3645 = vpop.f32.mrf.mxu0
  %3646 = vdwg.mxu0
  %v3647 = vmul.f32 %v3509, 0.35355338
  %v3648 = vmul.f32 %v3512, 0.35355338
  %v3649 = vpack.c.bf16 %v3647, %v3647
  %v3650 = vpack.c.bf16 %v3648, %v3648
  %v3651 = vpack.c.bf16 %v3575, %v3575
  %v3652 = vpack.c.bf16 %v3578, %v3578
  %v3653 = vpack.c.bf16 %v3641, %v3641
  %v3654 = vpack.c.bf16 %v3644, %v3644
  %v3656 = vsel %vm345, %v3649, 0
  %v3659 = vsel %vm345, %v3651, 0
  %3661 = vmatprep.subr.bf16.mxu0 0
  %3662 = vmatpush1.bf16.xpose.msra.mxu0 0
  %3663 = vmatprep.subr.bf16.mxu0 0
  %3664 = vmatpush1.bf16.xpose.msra.mxu0 0
  %3665 = vmatprep.subr.bf16.mxu0 0
  %3666 = vmatpush1.bf16.xpose.msra.mxu0 0
  %3667 = vmatprep.subr.bf16.mxu0 0
  %3668 = vmatpush1.bf16.xpose.msra.mxu0 0
  %3669 = vmatprep.subr.bf16.mxu0 0
  %3670 = vmatpush1.bf16.xpose.msra.mxu0 0
  %3671 = vmatprep.subr.bf16.mxu0 0
  %3672 = vmatpush1.bf16.xpose.msra.mxu0 0
  %3673 = vmatprep.subr.bf16.mxu0 0
  %3674 = vmatpush1.bf16.xpose.msra.mxu0 0
  %3675 = vmatprep.subr.bf16.mxu0 0
  %3676 = vmatpush1.bf16.xpose.msra.mxu0 %v3659
  %3677 = vmatprep.subr.bf16.mxu0 0
  %3678 = vmatpush2.bf16.xpose.msra.mxu0 0
  %3679 = vmatprep.subr.bf16.mxu0 0
  %3680 = vmatpush2.bf16.xpose.msra.mxu0 0
  %3681 = vmatprep.subr.bf16.mxu0 0
  %3682 = vmatpush2.bf16.xpose.msra.mxu0 0
  %3683 = vmatprep.subr.bf16.mxu0 0
  %3684 = vmatpush2.bf16.xpose.msra.mxu0 0
  %3685 = vmatprep.subr.bf16.mxu0 0
  %3686 = vmatpush2.bf16.xpose.msra.mxu0 0
  %3687 = vmatprep.subr.bf16.mxu0 0
  %3688 = vmatpush2.bf16.xpose.msra.mxu0 0
  %3689 = vmatprep.subr.bf16.mxu0 0
  %3690 = vmatpush2.bf16.xpose.msra.mxu0 0
  %3691 = vmatprep.subr.bf16.mxu0 0
  %3692 = vmatpush2.bf16.xpose.msra.mxu0 0
  %3693 = vmatprep.mubr.bf16.mxu0 0
  %3694 = vmatmul.mubr.bf16.gmra.mxu0 %v3656
  %v3695 = vpop.f32.mrf.mxu0
  %v3696 = vadd.f32 0.0, %v3695
  %v3697 = vpop.f32.mrf.mxu0
  %v3698 = vpop.f32.mrf.mxu0
  %v3699 = vpop.f32.mrf.mxu0
  %3700 = vdwg.mxu0
  %v3702 = vsel %vm345, %v3650, 0
  %v3705 = vsel %vm345, %v3652, 0
  %3707 = vmatprep.subr.bf16.mxu0 0
  %3708 = vmatpush1.bf16.xpose.msra.mxu0 0
  %3709 = vmatprep.subr.bf16.mxu0 0
  %3710 = vmatpush1.bf16.xpose.msra.mxu0 0
  %3711 = vmatprep.subr.bf16.mxu0 0
  %3712 = vmatpush1.bf16.xpose.msra.mxu0 0
  %3713 = vmatprep.subr.bf16.mxu0 0
  %3714 = vmatpush1.bf16.xpose.msra.mxu0 0
  %3715 = vmatprep.subr.bf16.mxu0 0
  %3716 = vmatpush1.bf16.xpose.msra.mxu0 0
  %3717 = vmatprep.subr.bf16.mxu0 0
  %3718 = vmatpush1.bf16.xpose.msra.mxu0 0
  %3719 = vmatprep.subr.bf16.mxu0 0
  %3720 = vmatpush1.bf16.xpose.msra.mxu0 0
  %3721 = vmatprep.subr.bf16.mxu0 0
  %3722 = vmatpush1.bf16.xpose.msra.mxu0 %v3705
  %3723 = vmatprep.subr.bf16.mxu0 0
  %3724 = vmatpush2.bf16.xpose.msra.mxu0 0
  %3725 = vmatprep.subr.bf16.mxu0 0
  %3726 = vmatpush2.bf16.xpose.msra.mxu0 0
  %3727 = vmatprep.subr.bf16.mxu0 0
  %3728 = vmatpush2.bf16.xpose.msra.mxu0 0
  %3729 = vmatprep.subr.bf16.mxu0 0
  %3730 = vmatpush2.bf16.xpose.msra.mxu0 0
  %3731 = vmatprep.subr.bf16.mxu0 0
  %3732 = vmatpush2.bf16.xpose.msra.mxu0 0
  %3733 = vmatprep.subr.bf16.mxu0 0
  %3734 = vmatpush2.bf16.xpose.msra.mxu0 0
  %3735 = vmatprep.subr.bf16.mxu0 0
  %3736 = vmatpush2.bf16.xpose.msra.mxu0 0
  %3737 = vmatprep.subr.bf16.mxu0 0
  %3738 = vmatpush2.bf16.xpose.msra.mxu0 0
  %3739 = vmatprep.mubr.bf16.mxu0 0
  %3740 = vmatmul.mubr.bf16.gmra.mxu0 %v3702
  %v3741 = vpop.f32.mrf.mxu0
  %v3742 = vadd.f32 0.0, %v3741
  %v3743 = vpop.f32.mrf.mxu0
  %v3744 = vpop.f32.mrf.mxu0
  %v3745 = vpop.f32.mrf.mxu0
  %3746 = vdwg.mxu0
  %v3747 = vsel %vm345, %v3696, -inf
  %3748 = vmax.xlane.f32.xlu0 %v3747
  %v3749 = vpop.xlane.xlu0 %3748
  %v3750 = vsel %vm345, %v3742, -inf
  %3751 = vmax.xlane.f32.xlu0 %v3750
  %v3752 = vpop.xlane.xlu0 %3751
  %v3753 = vsub.f32 %v3696, %v3749
  %v3754 = vsub.f32 %v3742, %v3752
  %v3755 = vmul.f32 %v3753, 1.442695
  %v3756 = vpow.pop %v3755
  %v3757 = vmul.f32 %v3754, 1.442695
  %v3758 = vpow.pop %v3757
  %v3759 = vsel %vm345, %v3756, 0.0
  %3760 = vadd.xlane.f32.xlu0 %v3759
  %v3761 = vpop.xlane.xlu0 %3760
  %v3762 = vsel %vm345, %v3758, 0.0
  %3763 = vadd.xlane.f32.xlu0 %v3762
  %v3764 = vpop.xlane.xlu0 %3763
  %v3765 = vrcp.pop %v3761
  %v3766 = vrcp.pop %v3764
  %v3767 = vmul.f32 %v3756, %v3765
  %v3768 = vmul.f32 %v3758, %v3766
  %v3769 = vpack.c.bf16 %v3767, %v3767
  %v3770 = vpack.c.bf16 %v3768, %v3768
  %v3772 = vsel %vm345, %v3769, 0
  %v3775 = vsel %vm465, %v3653, 0
  %3777 = vmatprep.subr.bf16.mxu0 0
  %3778 = vmatpush1.bf16.msra.mxu0 0
  %3779 = vmatprep.subr.bf16.mxu0 0
  %3780 = vmatpush1.bf16.msra.mxu0 0
  %3781 = vmatprep.subr.bf16.mxu0 0
  %3782 = vmatpush1.bf16.msra.mxu0 0
  %3783 = vmatprep.subr.bf16.mxu0 0
  %3784 = vmatpush1.bf16.msra.mxu0 0
  %3785 = vmatprep.subr.bf16.mxu0 0
  %3786 = vmatpush1.bf16.msra.mxu0 0
  %3787 = vmatprep.subr.bf16.mxu0 0
  %3788 = vmatpush1.bf16.msra.mxu0 0
  %3789 = vmatprep.subr.bf16.mxu0 0
  %3790 = vmatpush1.bf16.msra.mxu0 0
  %3791 = vmatprep.subr.bf16.mxu0 0
  %3792 = vmatpush1.bf16.msra.mxu0 %v3775
  %3793 = vmatprep.subr.bf16.mxu0 0
  %3794 = vmatpush2.bf16.msra.mxu0 0
  %3795 = vmatprep.subr.bf16.mxu0 0
  %3796 = vmatpush2.bf16.msra.mxu0 0
  %3797 = vmatprep.subr.bf16.mxu0 0
  %3798 = vmatpush2.bf16.msra.mxu0 0
  %3799 = vmatprep.subr.bf16.mxu0 0
  %3800 = vmatpush2.bf16.msra.mxu0 0
  %3801 = vmatprep.subr.bf16.mxu0 0
  %3802 = vmatpush2.bf16.msra.mxu0 0
  %3803 = vmatprep.subr.bf16.mxu0 0
  %3804 = vmatpush2.bf16.msra.mxu0 0
  %3805 = vmatprep.subr.bf16.mxu0 0
  %3806 = vmatpush2.bf16.msra.mxu0 0
  %3807 = vmatprep.subr.bf16.mxu0 0
  %3808 = vmatpush2.bf16.msra.mxu0 0
  %3809 = vmatprep.mubr.bf16.mxu0 0
  %3810 = vmatmul.mubr.bf16.gmra.mxu0 %v3772
  %v3811 = vpop.f32.mrf.mxu0
  %v3812 = vadd.f32 0.0, %v3811
  %v3813 = vpop.f32.mrf.mxu0
  %v3814 = vpop.f32.mrf.mxu0
  %v3815 = vpop.f32.mrf.mxu0
  %3816 = vdwg.mxu0
  %v3818 = vsel %vm345, %v3770, 0
  %v3821 = vsel %vm465, %v3654, 0
  %3823 = vmatprep.subr.bf16.mxu0 0
  %3824 = vmatpush1.bf16.msra.mxu0 0
  %3825 = vmatprep.subr.bf16.mxu0 0
  %3826 = vmatpush1.bf16.msra.mxu0 0
  %3827 = vmatprep.subr.bf16.mxu0 0
  %3828 = vmatpush1.bf16.msra.mxu0 0
  %3829 = vmatprep.subr.bf16.mxu0 0
  %3830 = vmatpush1.bf16.msra.mxu0 0
  %3831 = vmatprep.subr.bf16.mxu0 0
  %3832 = vmatpush1.bf16.msra.mxu0 0
  %3833 = vmatprep.subr.bf16.mxu0 0
  %3834 = vmatpush1.bf16.msra.mxu0 0
  %3835 = vmatprep.subr.bf16.mxu0 0
  %3836 = vmatpush1.bf16.msra.mxu0 0
  %3837 = vmatprep.subr.bf16.mxu0 0
  %3838 = vmatpush1.bf16.msra.mxu0 %v3821
  %3839 = vmatprep.subr.bf16.mxu0 0
  %3840 = vmatpush2.bf16.msra.mxu0 0
  %3841 = vmatprep.subr.bf16.mxu0 0
  %3842 = vmatpush2.bf16.msra.mxu0 0
  %3843 = vmatprep.subr.bf16.mxu0 0
  %3844 = vmatpush2.bf16.msra.mxu0 0
  %3845 = vmatprep.subr.bf16.mxu0 0
  %3846 = vmatpush2.bf16.msra.mxu0 0
  %3847 = vmatprep.subr.bf16.mxu0 0
  %3848 = vmatpush2.bf16.msra.mxu0 0
  %3849 = vmatprep.subr.bf16.mxu0 0
  %3850 = vmatpush2.bf16.msra.mxu0 0
  %3851 = vmatprep.subr.bf16.mxu0 0
  %3852 = vmatpush2.bf16.msra.mxu0 0
  %3853 = vmatprep.subr.bf16.mxu0 0
  %3854 = vmatpush2.bf16.msra.mxu0 0
  %3855 = vmatprep.mubr.bf16.mxu0 0
  %3856 = vmatmul.mubr.bf16.gmra.mxu0 %v3818
  %v3857 = vpop.f32.mrf.mxu0
  %v3858 = vadd.f32 0.0, %v3857
  %v3859 = vpop.f32.mrf.mxu0
  %v3860 = vpop.f32.mrf.mxu0
  %v3861 = vpop.f32.mrf.mxu0
  %3862 = vdwg.mxu0
  %3864 = vrot.lane.b32.xlu0 %v3649, 120
  %v3865 = vpop.permute.xlu0 %3864
  %3867 = vrot.lane.b32.xlu0 %v3651, 120
  %v3868 = vpop.permute.xlu0 %3867
  %v3870 = vsel %vm345, %v3865, 0
  %v3873 = vsel %vm345, %v3868, 0
  %3875 = vmatprep.subr.bf16.mxu0 0
  %3876 = vmatpush1.bf16.xpose.msra.mxu0 0
  %3877 = vmatprep.subr.bf16.mxu0 0
  %3878 = vmatpush1.bf16.xpose.msra.mxu0 0
  %3879 = vmatprep.subr.bf16.mxu0 0
  %3880 = vmatpush1.bf16.xpose.msra.mxu0 0
  %3881 = vmatprep.subr.bf16.mxu0 0
  %3882 = vmatpush1.bf16.xpose.msra.mxu0 0
  %3883 = vmatprep.subr.bf16.mxu0 0
  %3884 = vmatpush1.bf16.xpose.msra.mxu0 0
  %3885 = vmatprep.subr.bf16.mxu0 0
  %3886 = vmatpush1.bf16.xpose.msra.mxu0 0
  %3887 = vmatprep.subr.bf16.mxu0 0
  %3888 = vmatpush1.bf16.xpose.msra.mxu0 0
  %3889 = vmatprep.subr.bf16.mxu0 0
  %3890 = vmatpush1.bf16.xpose.msra.mxu0 %v3873
  %3891 = vmatprep.subr.bf16.mxu0 0
  %3892 = vmatpush2.bf16.xpose.msra.mxu0 0
  %3893 = vmatprep.subr.bf16.mxu0 0
  %3894 = vmatpush2.bf16.xpose.msra.mxu0 0
  %3895 = vmatprep.subr.bf16.mxu0 0
  %3896 = vmatpush2.bf16.xpose.msra.mxu0 0
  %3897 = vmatprep.subr.bf16.mxu0 0
  %3898 = vmatpush2.bf16.xpose.msra.mxu0 0
  %3899 = vmatprep.subr.bf16.mxu0 0
  %3900 = vmatpush2.bf16.xpose.msra.mxu0 0
  %3901 = vmatprep.subr.bf16.mxu0 0
  %3902 = vmatpush2.bf16.xpose.msra.mxu0 0
  %3903 = vmatprep.subr.bf16.mxu0 0
  %3904 = vmatpush2.bf16.xpose.msra.mxu0 0
  %3905 = vmatprep.subr.bf16.mxu0 0
  %3906 = vmatpush2.bf16.xpose.msra.mxu0 0
  %3907 = vmatprep.mubr.bf16.mxu0 0
  %3908 = vmatmul.mubr.bf16.gmra.mxu0 %v3870
  %v3909 = vpop.f32.mrf.mxu0
  %v3910 = vadd.f32 0.0, %v3909
  %v3911 = vpop.f32.mrf.mxu0
  %v3912 = vpop.f32.mrf.mxu0
  %v3913 = vpop.f32.mrf.mxu0
  %3914 = vdwg.mxu0
  %3916 = vrot.lane.b32.xlu0 %v3650, 120
  %v3917 = vpop.permute.xlu0 %3916
  %3919 = vrot.lane.b32.xlu0 %v3652, 120
  %v3920 = vpop.permute.xlu0 %3919
  %v3922 = vsel %vm345, %v3917, 0
  %v3925 = vsel %vm345, %v3920, 0
  %3927 = vmatprep.subr.bf16.mxu0 0
  %3928 = vmatpush1.bf16.xpose.msra.mxu0 0
  %3929 = vmatprep.subr.bf16.mxu0 0
  %3930 = vmatpush1.bf16.xpose.msra.mxu0 0
  %3931 = vmatprep.subr.bf16.mxu0 0
  %3932 = vmatpush1.bf16.xpose.msra.mxu0 0
  %3933 = vmatprep.subr.bf16.mxu0 0
  %3934 = vmatpush1.bf16.xpose.msra.mxu0 0
  %3935 = vmatprep.subr.bf16.mxu0 0
  %3936 = vmatpush1.bf16.xpose.msra.mxu0 0
  %3937 = vmatprep.subr.bf16.mxu0 0
  %3938 = vmatpush1.bf16.xpose.msra.mxu0 0
  %3939 = vmatprep.subr.bf16.mxu0 0
  %3940 = vmatpush1.bf16.xpose.msra.mxu0 0
  %3941 = vmatprep.subr.bf16.mxu0 0
  %3942 = vmatpush1.bf16.xpose.msra.mxu0 %v3925
  %3943 = vmatprep.subr.bf16.mxu0 0
  %3944 = vmatpush2.bf16.xpose.msra.mxu0 0
  %3945 = vmatprep.subr.bf16.mxu0 0
  %3946 = vmatpush2.bf16.xpose.msra.mxu0 0
  %3947 = vmatprep.subr.bf16.mxu0 0
  %3948 = vmatpush2.bf16.xpose.msra.mxu0 0
  %3949 = vmatprep.subr.bf16.mxu0 0
  %3950 = vmatpush2.bf16.xpose.msra.mxu0 0
  %3951 = vmatprep.subr.bf16.mxu0 0
  %3952 = vmatpush2.bf16.xpose.msra.mxu0 0
  %3953 = vmatprep.subr.bf16.mxu0 0
  %3954 = vmatpush2.bf16.xpose.msra.mxu0 0
  %3955 = vmatprep.subr.bf16.mxu0 0
  %3956 = vmatpush2.bf16.xpose.msra.mxu0 0
  %3957 = vmatprep.subr.bf16.mxu0 0
  %3958 = vmatpush2.bf16.xpose.msra.mxu0 0
  %3959 = vmatprep.mubr.bf16.mxu0 0
  %3960 = vmatmul.mubr.bf16.gmra.mxu0 %v3922
  %v3961 = vpop.f32.mrf.mxu0
  %v3962 = vadd.f32 0.0, %v3961
  %v3963 = vpop.f32.mrf.mxu0
  %v3964 = vpop.f32.mrf.mxu0
  %v3965 = vpop.f32.mrf.mxu0
  %3966 = vdwg.mxu0
  %v3967 = vsel %vm345, %v3910, -inf
  %3968 = vmax.xlane.f32.xlu0 %v3967
  %v3969 = vpop.xlane.xlu0 %3968
  %v3970 = vsel %vm345, %v3962, -inf
  %3971 = vmax.xlane.f32.xlu0 %v3970
  %v3972 = vpop.xlane.xlu0 %3971
  %v3973 = vsub.f32 %v3910, %v3969
  %v3974 = vsub.f32 %v3962, %v3972
  %v3975 = vmul.f32 %v3973, 1.442695
  %v3976 = vpow.pop %v3975
  %v3977 = vmul.f32 %v3974, 1.442695
  %v3978 = vpow.pop %v3977
  %v3979 = vsel %vm345, %v3976, 0.0
  %3980 = vadd.xlane.f32.xlu0 %v3979
  %v3981 = vpop.xlane.xlu0 %3980
  %v3982 = vsel %vm345, %v3978, 0.0
  %3983 = vadd.xlane.f32.xlu0 %v3982
  %v3984 = vpop.xlane.xlu0 %3983
  %v3985 = vrcp.pop %v3981
  %v3986 = vrcp.pop %v3984
  %v3987 = vmul.f32 %v3976, %v3985
  %v3988 = vmul.f32 %v3978, %v3986
  %v3989 = vpack.c.bf16 %v3987, %v3987
  %v3990 = vpack.c.bf16 %v3988, %v3988
  %3992 = vrot.lane.b32.xlu0 %v3653, 120
  %v3993 = vpop.permute.xlu0 %3992
  %v3995 = vsel %vm345, %v3989, 0
  %v3998 = vsel %vm465, %v3993, 0
  %4000 = vmatprep.subr.bf16.mxu0 0
  %4001 = vmatpush1.bf16.msra.mxu0 0
  %4002 = vmatprep.subr.bf16.mxu0 0
  %4003 = vmatpush1.bf16.msra.mxu0 0
  %4004 = vmatprep.subr.bf16.mxu0 0
  %4005 = vmatpush1.bf16.msra.mxu0 0
  %4006 = vmatprep.subr.bf16.mxu0 0
  %4007 = vmatpush1.bf16.msra.mxu0 0
  %4008 = vmatprep.subr.bf16.mxu0 0
  %4009 = vmatpush1.bf16.msra.mxu0 0
  %4010 = vmatprep.subr.bf16.mxu0 0
  %4011 = vmatpush1.bf16.msra.mxu0 0
  %4012 = vmatprep.subr.bf16.mxu0 0
  %4013 = vmatpush1.bf16.msra.mxu0 0
  %4014 = vmatprep.subr.bf16.mxu0 0
  %4015 = vmatpush1.bf16.msra.mxu0 %v3998
  %4016 = vmatprep.subr.bf16.mxu0 0
  %4017 = vmatpush2.bf16.msra.mxu0 0
  %4018 = vmatprep.subr.bf16.mxu0 0
  %4019 = vmatpush2.bf16.msra.mxu0 0
  %4020 = vmatprep.subr.bf16.mxu0 0
  %4021 = vmatpush2.bf16.msra.mxu0 0
  %4022 = vmatprep.subr.bf16.mxu0 0
  %4023 = vmatpush2.bf16.msra.mxu0 0
  %4024 = vmatprep.subr.bf16.mxu0 0
  %4025 = vmatpush2.bf16.msra.mxu0 0
  %4026 = vmatprep.subr.bf16.mxu0 0
  %4027 = vmatpush2.bf16.msra.mxu0 0
  %4028 = vmatprep.subr.bf16.mxu0 0
  %4029 = vmatpush2.bf16.msra.mxu0 0
  %4030 = vmatprep.subr.bf16.mxu0 0
  %4031 = vmatpush2.bf16.msra.mxu0 0
  %4032 = vmatprep.mubr.bf16.mxu0 0
  %4033 = vmatmul.mubr.bf16.gmra.mxu0 %v3995
  %v4034 = vpop.f32.mrf.mxu0
  %v4035 = vadd.f32 0.0, %v4034
  %v4036 = vpop.f32.mrf.mxu0
  %v4037 = vpop.f32.mrf.mxu0
  %v4038 = vpop.f32.mrf.mxu0
  %4039 = vdwg.mxu0
  %4041 = vrot.lane.b32.xlu0 %v3654, 120
  %v4042 = vpop.permute.xlu0 %4041
  %v4044 = vsel %vm345, %v3990, 0
  %v4047 = vsel %vm465, %v4042, 0
  %4049 = vmatprep.subr.bf16.mxu0 0
  %4050 = vmatpush1.bf16.msra.mxu0 0
  %4051 = vmatprep.subr.bf16.mxu0 0
  %4052 = vmatpush1.bf16.msra.mxu0 0
  %4053 = vmatprep.subr.bf16.mxu0 0
  %4054 = vmatpush1.bf16.msra.mxu0 0
  %4055 = vmatprep.subr.bf16.mxu0 0
  %4056 = vmatpush1.bf16.msra.mxu0 0
  %4057 = vmatprep.subr.bf16.mxu0 0
  %4058 = vmatpush1.bf16.msra.mxu0 0
  %4059 = vmatprep.subr.bf16.mxu0 0
  %4060 = vmatpush1.bf16.msra.mxu0 0
  %4061 = vmatprep.subr.bf16.mxu0 0
  %4062 = vmatpush1.bf16.msra.mxu0 0
  %4063 = vmatprep.subr.bf16.mxu0 0
  %4064 = vmatpush1.bf16.msra.mxu0 %v4047
  %4065 = vmatprep.subr.bf16.mxu0 0
  %4066 = vmatpush2.bf16.msra.mxu0 0
  %4067 = vmatprep.subr.bf16.mxu0 0
  %4068 = vmatpush2.bf16.msra.mxu0 0
  %4069 = vmatprep.subr.bf16.mxu0 0
  %4070 = vmatpush2.bf16.msra.mxu0 0
  %4071 = vmatprep.subr.bf16.mxu0 0
  %4072 = vmatpush2.bf16.msra.mxu0 0
  %4073 = vmatprep.subr.bf16.mxu0 0
  %4074 = vmatpush2.bf16.msra.mxu0 0
  %4075 = vmatprep.subr.bf16.mxu0 0
  %4076 = vmatpush2.bf16.msra.mxu0 0
  %4077 = vmatprep.subr.bf16.mxu0 0
  %4078 = vmatpush2.bf16.msra.mxu0 0
  %4079 = vmatprep.subr.bf16.mxu0 0
  %4080 = vmatpush2.bf16.msra.mxu0 0
  %4081 = vmatprep.mubr.bf16.mxu0 0
  %4082 = vmatmul.mubr.bf16.gmra.mxu0 %v4044
  %v4083 = vpop.f32.mrf.mxu0
  %v4084 = vadd.f32 0.0, %v4083
  %v4085 = vpop.f32.mrf.mxu0
  %v4086 = vpop.f32.mrf.mxu0
  %v4087 = vpop.f32.mrf.mxu0
  %4088 = vdwg.mxu0
  %4089 = vrot.lane.b32.xlu0 %v3649, 112
  %v4090 = vpop.permute.xlu0 %4089
  %4091 = vrot.lane.b32.xlu0 %v3651, 112
  %v4092 = vpop.permute.xlu0 %4091
  %v4094 = vsel %vm345, %v4090, 0
  %v4097 = vsel %vm345, %v4092, 0
  %4099 = vmatprep.subr.bf16.mxu0 0
  %4100 = vmatpush1.bf16.xpose.msra.mxu0 0
  %4101 = vmatprep.subr.bf16.mxu0 0
  %4102 = vmatpush1.bf16.xpose.msra.mxu0 0
  %4103 = vmatprep.subr.bf16.mxu0 0
  %4104 = vmatpush1.bf16.xpose.msra.mxu0 0
  %4105 = vmatprep.subr.bf16.mxu0 0
  %4106 = vmatpush1.bf16.xpose.msra.mxu0 0
  %4107 = vmatprep.subr.bf16.mxu0 0
  %4108 = vmatpush1.bf16.xpose.msra.mxu0 0
  %4109 = vmatprep.subr.bf16.mxu0 0
  %4110 = vmatpush1.bf16.xpose.msra.mxu0 0
  %4111 = vmatprep.subr.bf16.mxu0 0
  %4112 = vmatpush1.bf16.xpose.msra.mxu0 0
  %4113 = vmatprep.subr.bf16.mxu0 0
  %4114 = vmatpush1.bf16.xpose.msra.mxu0 %v4097
  %4115 = vmatprep.subr.bf16.mxu0 0
  %4116 = vmatpush2.bf16.xpose.msra.mxu0 0
  %4117 = vmatprep.subr.bf16.mxu0 0
  %4118 = vmatpush2.bf16.xpose.msra.mxu0 0
  %4119 = vmatprep.subr.bf16.mxu0 0
  %4120 = vmatpush2.bf16.xpose.msra.mxu0 0
  %4121 = vmatprep.subr.bf16.mxu0 0
  %4122 = vmatpush2.bf16.xpose.msra.mxu0 0
  %4123 = vmatprep.subr.bf16.mxu0 0
  %4124 = vmatpush2.bf16.xpose.msra.mxu0 0
  %4125 = vmatprep.subr.bf16.mxu0 0
  %4126 = vmatpush2.bf16.xpose.msra.mxu0 0
  %4127 = vmatprep.subr.bf16.mxu0 0
  %4128 = vmatpush2.bf16.xpose.msra.mxu0 0
  %4129 = vmatprep.subr.bf16.mxu0 0
  %4130 = vmatpush2.bf16.xpose.msra.mxu0 0
  %4131 = vmatprep.mubr.bf16.mxu0 0
  %4132 = vmatmul.mubr.bf16.gmra.mxu0 %v4094
  %v4133 = vpop.f32.mrf.mxu0
  %v4134 = vadd.f32 0.0, %v4133
  %v4135 = vpop.f32.mrf.mxu0
  %v4136 = vpop.f32.mrf.mxu0
  %v4137 = vpop.f32.mrf.mxu0
  %4138 = vdwg.mxu0
  %4139 = vrot.lane.b32.xlu0 %v3650, 112
  %v4140 = vpop.permute.xlu0 %4139
  %4141 = vrot.lane.b32.xlu0 %v3652, 112
  %v4142 = vpop.permute.xlu0 %4141
  %v4144 = vsel %vm345, %v4140, 0
  %v4147 = vsel %vm345, %v4142, 0
  %4149 = vmatprep.subr.bf16.mxu0 0
  %4150 = vmatpush1.bf16.xpose.msra.mxu0 0
  %4151 = vmatprep.subr.bf16.mxu0 0
  %4152 = vmatpush1.bf16.xpose.msra.mxu0 0
  %4153 = vmatprep.subr.bf16.mxu0 0
  %4154 = vmatpush1.bf16.xpose.msra.mxu0 0
  %4155 = vmatprep.subr.bf16.mxu0 0
  %4156 = vmatpush1.bf16.xpose.msra.mxu0 0
  %4157 = vmatprep.subr.bf16.mxu0 0
  %4158 = vmatpush1.bf16.xpose.msra.mxu0 0
  %4159 = vmatprep.subr.bf16.mxu0 0
  %4160 = vmatpush1.bf16.xpose.msra.mxu0 0
  %4161 = vmatprep.subr.bf16.mxu0 0
  %4162 = vmatpush1.bf16.xpose.msra.mxu0 0
  %4163 = vmatprep.subr.bf16.mxu0 0
  %4164 = vmatpush1.bf16.xpose.msra.mxu0 %v4147
  %4165 = vmatprep.subr.bf16.mxu0 0
  %4166 = vmatpush2.bf16.xpose.msra.mxu0 0
  %4167 = vmatprep.subr.bf16.mxu0 0
  %4168 = vmatpush2.bf16.xpose.msra.mxu0 0
  %4169 = vmatprep.subr.bf16.mxu0 0
  %4170 = vmatpush2.bf16.xpose.msra.mxu0 0
  %4171 = vmatprep.subr.bf16.mxu0 0
  %4172 = vmatpush2.bf16.xpose.msra.mxu0 0
  %4173 = vmatprep.subr.bf16.mxu0 0
  %4174 = vmatpush2.bf16.xpose.msra.mxu0 0
  %4175 = vmatprep.subr.bf16.mxu0 0
  %4176 = vmatpush2.bf16.xpose.msra.mxu0 0
  %4177 = vmatprep.subr.bf16.mxu0 0
  %4178 = vmatpush2.bf16.xpose.msra.mxu0 0
  %4179 = vmatprep.subr.bf16.mxu0 0
  %4180 = vmatpush2.bf16.xpose.msra.mxu0 0
  %4181 = vmatprep.mubr.bf16.mxu0 0
  %4182 = vmatmul.mubr.bf16.gmra.mxu0 %v4144
  %v4183 = vpop.f32.mrf.mxu0
  %v4184 = vadd.f32 0.0, %v4183
  %v4185 = vpop.f32.mrf.mxu0
  %v4186 = vpop.f32.mrf.mxu0
  %v4187 = vpop.f32.mrf.mxu0
  %4188 = vdwg.mxu0
  %v4189 = vsel %vm345, %v4134, -inf
  %4190 = vmax.xlane.f32.xlu0 %v4189
  %v4191 = vpop.xlane.xlu0 %4190
  %v4192 = vsel %vm345, %v4184, -inf
  %4193 = vmax.xlane.f32.xlu0 %v4192
  %v4194 = vpop.xlane.xlu0 %4193
  %v4195 = vsub.f32 %v4134, %v4191
  %v4196 = vsub.f32 %v4184, %v4194
  %v4197 = vmul.f32 %v4195, 1.442695
  %v4198 = vpow.pop %v4197
  %v4199 = vmul.f32 %v4196, 1.442695
  %v4200 = vpow.pop %v4199
  %v4201 = vsel %vm345, %v4198, 0.0
  %4202 = vadd.xlane.f32.xlu0 %v4201
  %v4203 = vpop.xlane.xlu0 %4202
  %v4204 = vsel %vm345, %v4200, 0.0
  %4205 = vadd.xlane.f32.xlu0 %v4204
  %v4206 = vpop.xlane.xlu0 %4205
  %v4207 = vrcp.pop %v4203
  %v4208 = vrcp.pop %v4206
  %v4209 = vmul.f32 %v4198, %v4207
  %v4210 = vmul.f32 %v4200, %v4208
  %v4211 = vpack.c.bf16 %v4209, %v4209
  %v4212 = vpack.c.bf16 %v4210, %v4210
  %4213 = vrot.lane.b32.xlu0 %v3653, 112
  %v4214 = vpop.permute.xlu0 %4213
  %v4216 = vsel %vm345, %v4211, 0
  %v4219 = vsel %vm465, %v4214, 0
  %4221 = vmatprep.subr.bf16.mxu0 0
  %4222 = vmatpush1.bf16.msra.mxu0 0
  %4223 = vmatprep.subr.bf16.mxu0 0
  %4224 = vmatpush1.bf16.msra.mxu0 0
  %4225 = vmatprep.subr.bf16.mxu0 0
  %4226 = vmatpush1.bf16.msra.mxu0 0
  %4227 = vmatprep.subr.bf16.mxu0 0
  %4228 = vmatpush1.bf16.msra.mxu0 0
  %4229 = vmatprep.subr.bf16.mxu0 0
  %4230 = vmatpush1.bf16.msra.mxu0 0
  %4231 = vmatprep.subr.bf16.mxu0 0
  %4232 = vmatpush1.bf16.msra.mxu0 0
  %4233 = vmatprep.subr.bf16.mxu0 0
  %4234 = vmatpush1.bf16.msra.mxu0 0
  %4235 = vmatprep.subr.bf16.mxu0 0
  %4236 = vmatpush1.bf16.msra.mxu0 %v4219
  %4237 = vmatprep.subr.bf16.mxu0 0
  %4238 = vmatpush2.bf16.msra.mxu0 0
  %4239 = vmatprep.subr.bf16.mxu0 0
  %4240 = vmatpush2.bf16.msra.mxu0 0
  %4241 = vmatprep.subr.bf16.mxu0 0
  %4242 = vmatpush2.bf16.msra.mxu0 0
  %4243 = vmatprep.subr.bf16.mxu0 0
  %4244 = vmatpush2.bf16.msra.mxu0 0
  %4245 = vmatprep.subr.bf16.mxu0 0
  %4246 = vmatpush2.bf16.msra.mxu0 0
  %4247 = vmatprep.subr.bf16.mxu0 0
  %4248 = vmatpush2.bf16.msra.mxu0 0
  %4249 = vmatprep.subr.bf16.mxu0 0
  %4250 = vmatpush2.bf16.msra.mxu0 0
  %4251 = vmatprep.subr.bf16.mxu0 0
  %4252 = vmatpush2.bf16.msra.mxu0 0
  %4253 = vmatprep.mubr.bf16.mxu0 0
  %4254 = vmatmul.mubr.bf16.gmra.mxu0 %v4216
  %v4255 = vpop.f32.mrf.mxu0
  %v4256 = vadd.f32 0.0, %v4255
  %v4257 = vpop.f32.mrf.mxu0
  %v4258 = vpop.f32.mrf.mxu0
  %v4259 = vpop.f32.mrf.mxu0
  %4260 = vdwg.mxu0
  %4261 = vrot.lane.b32.xlu0 %v3654, 112
  %v4262 = vpop.permute.xlu0 %4261
  %v4264 = vsel %vm345, %v4212, 0
  %v4267 = vsel %vm465, %v4262, 0
  %4269 = vmatprep.subr.bf16.mxu0 0
  %4270 = vmatpush1.bf16.msra.mxu0 0
  %4271 = vmatprep.subr.bf16.mxu0 0
  %4272 = vmatpush1.bf16.msra.mxu0 0
  %4273 = vmatprep.subr.bf16.mxu0 0
  %4274 = vmatpush1.bf16.msra.mxu0 0
  %4275 = vmatprep.subr.bf16.mxu0 0
  %4276 = vmatpush1.bf16.msra.mxu0 0
  %4277 = vmatprep.subr.bf16.mxu0 0
  %4278 = vmatpush1.bf16.msra.mxu0 0
  %4279 = vmatprep.subr.bf16.mxu0 0
  %4280 = vmatpush1.bf16.msra.mxu0 0
  %4281 = vmatprep.subr.bf16.mxu0 0
  %4282 = vmatpush1.bf16.msra.mxu0 0
  %4283 = vmatprep.subr.bf16.mxu0 0
  %4284 = vmatpush1.bf16.msra.mxu0 %v4267
  %4285 = vmatprep.subr.bf16.mxu0 0
  %4286 = vmatpush2.bf16.msra.mxu0 0
  %4287 = vmatprep.subr.bf16.mxu0 0
  %4288 = vmatpush2.bf16.msra.mxu0 0
  %4289 = vmatprep.subr.bf16.mxu0 0
  %4290 = vmatpush2.bf16.msra.mxu0 0
  %4291 = vmatprep.subr.bf16.mxu0 0
  %4292 = vmatpush2.bf16.msra.mxu0 0
  %4293 = vmatprep.subr.bf16.mxu0 0
  %4294 = vmatpush2.bf16.msra.mxu0 0
  %4295 = vmatprep.subr.bf16.mxu0 0
  %4296 = vmatpush2.bf16.msra.mxu0 0
  %4297 = vmatprep.subr.bf16.mxu0 0
  %4298 = vmatpush2.bf16.msra.mxu0 0
  %4299 = vmatprep.subr.bf16.mxu0 0
  %4300 = vmatpush2.bf16.msra.mxu0 0
  %4301 = vmatprep.mubr.bf16.mxu0 0
  %4302 = vmatmul.mubr.bf16.gmra.mxu0 %v4264
  %v4303 = vpop.f32.mrf.mxu0
  %v4304 = vadd.f32 0.0, %v4303
  %v4305 = vpop.f32.mrf.mxu0
  %v4306 = vpop.f32.mrf.mxu0
  %v4307 = vpop.f32.mrf.mxu0
  %4308 = vdwg.mxu0
  %4309 = vrot.lane.b32.xlu0 %v3649, 104
  %v4310 = vpop.permute.xlu0 %4309
  %4311 = vrot.lane.b32.xlu0 %v3651, 104
  %v4312 = vpop.permute.xlu0 %4311
  %v4314 = vsel %vm345, %v4310, 0
  %v4317 = vsel %vm345, %v4312, 0
  %4319 = vmatprep.subr.bf16.mxu0 0
  %4320 = vmatpush1.bf16.xpose.msra.mxu0 0
  %4321 = vmatprep.subr.bf16.mxu0 0
  %4322 = vmatpush1.bf16.xpose.msra.mxu0 0
  %4323 = vmatprep.subr.bf16.mxu0 0
  %4324 = vmatpush1.bf16.xpose.msra.mxu0 0
  %4325 = vmatprep.subr.bf16.mxu0 0
  %4326 = vmatpush1.bf16.xpose.msra.mxu0 0
  %4327 = vmatprep.subr.bf16.mxu0 0
  %4328 = vmatpush1.bf16.xpose.msra.mxu0 0
  %4329 = vmatprep.subr.bf16.mxu0 0
  %4330 = vmatpush1.bf16.xpose.msra.mxu0 0
  %4331 = vmatprep.subr.bf16.mxu0 0
  %4332 = vmatpush1.bf16.xpose.msra.mxu0 0
  %4333 = vmatprep.subr.bf16.mxu0 0
  %4334 = vmatpush1.bf16.xpose.msra.mxu0 %v4317
  %4335 = vmatprep.subr.bf16.mxu0 0
  %4336 = vmatpush2.bf16.xpose.msra.mxu0 0
  %4337 = vmatprep.subr.bf16.mxu0 0
  %4338 = vmatpush2.bf16.xpose.msra.mxu0 0
  %4339 = vmatprep.subr.bf16.mxu0 0
  %4340 = vmatpush2.bf16.xpose.msra.mxu0 0
  %4341 = vmatprep.subr.bf16.mxu0 0
  %4342 = vmatpush2.bf16.xpose.msra.mxu0 0
  %4343 = vmatprep.subr.bf16.mxu0 0
  %4344 = vmatpush2.bf16.xpose.msra.mxu0 0
  %4345 = vmatprep.subr.bf16.mxu0 0
  %4346 = vmatpush2.bf16.xpose.msra.mxu0 0
  %4347 = vmatprep.subr.bf16.mxu0 0
  %4348 = vmatpush2.bf16.xpose.msra.mxu0 0
  %4349 = vmatprep.subr.bf16.mxu0 0
  %4350 = vmatpush2.bf16.xpose.msra.mxu0 0
  %4351 = vmatprep.mubr.bf16.mxu0 0
  %4352 = vmatmul.mubr.bf16.gmra.mxu0 %v4314
  %v4353 = vpop.f32.mrf.mxu0
  %v4354 = vadd.f32 0.0, %v4353
  %v4355 = vpop.f32.mrf.mxu0
  %v4356 = vpop.f32.mrf.mxu0
  %v4357 = vpop.f32.mrf.mxu0
  %4358 = vdwg.mxu0
  %4359 = vrot.lane.b32.xlu0 %v3650, 104
  %v4360 = vpop.permute.xlu0 %4359
  %4361 = vrot.lane.b32.xlu0 %v3652, 104
  %v4362 = vpop.permute.xlu0 %4361
  %v4364 = vsel %vm345, %v4360, 0
  %v4367 = vsel %vm345, %v4362, 0
  %4369 = vmatprep.subr.bf16.mxu0 0
  %4370 = vmatpush1.bf16.xpose.msra.mxu0 0
  %4371 = vmatprep.subr.bf16.mxu0 0
  %4372 = vmatpush1.bf16.xpose.msra.mxu0 0
  %4373 = vmatprep.subr.bf16.mxu0 0
  %4374 = vmatpush1.bf16.xpose.msra.mxu0 0
  %4375 = vmatprep.subr.bf16.mxu0 0
  %4376 = vmatpush1.bf16.xpose.msra.mxu0 0
  %4377 = vmatprep.subr.bf16.mxu0 0
  %4378 = vmatpush1.bf16.xpose.msra.mxu0 0
  %4379 = vmatprep.subr.bf16.mxu0 0
  %4380 = vmatpush1.bf16.xpose.msra.mxu0 0
  %4381 = vmatprep.subr.bf16.mxu0 0
  %4382 = vmatpush1.bf16.xpose.msra.mxu0 0
  %4383 = vmatprep.subr.bf16.mxu0 0
  %4384 = vmatpush1.bf16.xpose.msra.mxu0 %v4367
  %4385 = vmatprep.subr.bf16.mxu0 0
  %4386 = vmatpush2.bf16.xpose.msra.mxu0 0
  %4387 = vmatprep.subr.bf16.mxu0 0
  %4388 = vmatpush2.bf16.xpose.msra.mxu0 0
  %4389 = vmatprep.subr.bf16.mxu0 0
  %4390 = vmatpush2.bf16.xpose.msra.mxu0 0
  %4391 = vmatprep.subr.bf16.mxu0 0
  %4392 = vmatpush2.bf16.xpose.msra.mxu0 0
  %4393 = vmatprep.subr.bf16.mxu0 0
  %4394 = vmatpush2.bf16.xpose.msra.mxu0 0
  %4395 = vmatprep.subr.bf16.mxu0 0
  %4396 = vmatpush2.bf16.xpose.msra.mxu0 0
  %4397 = vmatprep.subr.bf16.mxu0 0
  %4398 = vmatpush2.bf16.xpose.msra.mxu0 0
  %4399 = vmatprep.subr.bf16.mxu0 0
  %4400 = vmatpush2.bf16.xpose.msra.mxu0 0
  %4401 = vmatprep.mubr.bf16.mxu0 0
  %4402 = vmatmul.mubr.bf16.gmra.mxu0 %v4364
  %v4403 = vpop.f32.mrf.mxu0
  %v4404 = vadd.f32 0.0, %v4403
  %v4405 = vpop.f32.mrf.mxu0
  %v4406 = vpop.f32.mrf.mxu0
  %v4407 = vpop.f32.mrf.mxu0
  %4408 = vdwg.mxu0
  %v4409 = vsel %vm345, %v4354, -inf
  %4410 = vmax.xlane.f32.xlu0 %v4409
  %v4411 = vpop.xlane.xlu0 %4410
  %v4412 = vsel %vm345, %v4404, -inf
  %4413 = vmax.xlane.f32.xlu0 %v4412
  %v4414 = vpop.xlane.xlu0 %4413
  %v4415 = vsub.f32 %v4354, %v4411
  %v4416 = vsub.f32 %v4404, %v4414
  %v4417 = vmul.f32 %v4415, 1.442695
  %v4418 = vpow.pop %v4417
  %v4419 = vmul.f32 %v4416, 1.442695
  %v4420 = vpow.pop %v4419
  %v4421 = vsel %vm345, %v4418, 0.0
  %4422 = vadd.xlane.f32.xlu0 %v4421
  %v4423 = vpop.xlane.xlu0 %4422
  %v4424 = vsel %vm345, %v4420, 0.0
  %4425 = vadd.xlane.f32.xlu0 %v4424
  %v4426 = vpop.xlane.xlu0 %4425
  %v4427 = vrcp.pop %v4423
  %v4428 = vrcp.pop %v4426
  %v4429 = vmul.f32 %v4418, %v4427
  %v4430 = vmul.f32 %v4420, %v4428
  %v4431 = vpack.c.bf16 %v4429, %v4429
  %v4432 = vpack.c.bf16 %v4430, %v4430
  %4433 = vrot.lane.b32.xlu0 %v3653, 104
  %v4434 = vpop.permute.xlu0 %4433
  %v4436 = vsel %vm345, %v4431, 0
  %v4439 = vsel %vm465, %v4434, 0
  %4441 = vmatprep.subr.bf16.mxu0 0
  %4442 = vmatpush1.bf16.msra.mxu0 0
  %4443 = vmatprep.subr.bf16.mxu0 0
  %4444 = vmatpush1.bf16.msra.mxu0 0
  %4445 = vmatprep.subr.bf16.mxu0 0
  %4446 = vmatpush1.bf16.msra.mxu0 0
  %4447 = vmatprep.subr.bf16.mxu0 0
  %4448 = vmatpush1.bf16.msra.mxu0 0
  %4449 = vmatprep.subr.bf16.mxu0 0
  %4450 = vmatpush1.bf16.msra.mxu0 0
  %4451 = vmatprep.subr.bf16.mxu0 0
  %4452 = vmatpush1.bf16.msra.mxu0 0
  %4453 = vmatprep.subr.bf16.mxu0 0
  %4454 = vmatpush1.bf16.msra.mxu0 0
  %4455 = vmatprep.subr.bf16.mxu0 0
  %4456 = vmatpush1.bf16.msra.mxu0 %v4439
  %4457 = vmatprep.subr.bf16.mxu0 0
  %4458 = vmatpush2.bf16.msra.mxu0 0
  %4459 = vmatprep.subr.bf16.mxu0 0
  %4460 = vmatpush2.bf16.msra.mxu0 0
  %4461 = vmatprep.subr.bf16.mxu0 0
  %4462 = vmatpush2.bf16.msra.mxu0 0
  %4463 = vmatprep.subr.bf16.mxu0 0
  %4464 = vmatpush2.bf16.msra.mxu0 0
  %4465 = vmatprep.subr.bf16.mxu0 0
  %4466 = vmatpush2.bf16.msra.mxu0 0
  %4467 = vmatprep.subr.bf16.mxu0 0
  %4468 = vmatpush2.bf16.msra.mxu0 0
  %4469 = vmatprep.subr.bf16.mxu0 0
  %4470 = vmatpush2.bf16.msra.mxu0 0
  %4471 = vmatprep.subr.bf16.mxu0 0
  %4472 = vmatpush2.bf16.msra.mxu0 0
  %4473 = vmatprep.mubr.bf16.mxu0 0
  %4474 = vmatmul.mubr.bf16.gmra.mxu0 %v4436
  %v4475 = vpop.f32.mrf.mxu0
  %v4476 = vadd.f32 0.0, %v4475
  %v4477 = vpop.f32.mrf.mxu0
  %v4478 = vpop.f32.mrf.mxu0
  %v4479 = vpop.f32.mrf.mxu0
  %4480 = vdwg.mxu0
  %4481 = vrot.lane.b32.xlu0 %v3654, 104
  %v4482 = vpop.permute.xlu0 %4481
  %v4484 = vsel %vm345, %v4432, 0
  %v4487 = vsel %vm465, %v4482, 0
  %4489 = vmatprep.subr.bf16.mxu0 0
  %4490 = vmatpush1.bf16.msra.mxu0 0
  %4491 = vmatprep.subr.bf16.mxu0 0
  %4492 = vmatpush1.bf16.msra.mxu0 0
  %4493 = vmatprep.subr.bf16.mxu0 0
  %4494 = vmatpush1.bf16.msra.mxu0 0
  %4495 = vmatprep.subr.bf16.mxu0 0
  %4496 = vmatpush1.bf16.msra.mxu0 0
  %4497 = vmatprep.subr.bf16.mxu0 0
  %4498 = vmatpush1.bf16.msra.mxu0 0
  %4499 = vmatprep.subr.bf16.mxu0 0
  %4500 = vmatpush1.bf16.msra.mxu0 0
  %4501 = vmatprep.subr.bf16.mxu0 0
  %4502 = vmatpush1.bf16.msra.mxu0 0
  %4503 = vmatprep.subr.bf16.mxu0 0
  %4504 = vmatpush1.bf16.msra.mxu0 %v4487
  %4505 = vmatprep.subr.bf16.mxu0 0
  %4506 = vmatpush2.bf16.msra.mxu0 0
  %4507 = vmatprep.subr.bf16.mxu0 0
  %4508 = vmatpush2.bf16.msra.mxu0 0
  %4509 = vmatprep.subr.bf16.mxu0 0
  %4510 = vmatpush2.bf16.msra.mxu0 0
  %4511 = vmatprep.subr.bf16.mxu0 0
  %4512 = vmatpush2.bf16.msra.mxu0 0
  %4513 = vmatprep.subr.bf16.mxu0 0
  %4514 = vmatpush2.bf16.msra.mxu0 0
  %4515 = vmatprep.subr.bf16.mxu0 0
  %4516 = vmatpush2.bf16.msra.mxu0 0
  %4517 = vmatprep.subr.bf16.mxu0 0
  %4518 = vmatpush2.bf16.msra.mxu0 0
  %4519 = vmatprep.subr.bf16.mxu0 0
  %4520 = vmatpush2.bf16.msra.mxu0 0
  %4521 = vmatprep.mubr.bf16.mxu0 0
  %4522 = vmatmul.mubr.bf16.gmra.mxu0 %v4484
  %v4523 = vpop.f32.mrf.mxu0
  %v4524 = vadd.f32 0.0, %v4523
  %v4525 = vpop.f32.mrf.mxu0
  %v4526 = vpop.f32.mrf.mxu0
  %v4527 = vpop.f32.mrf.mxu0
  %4528 = vdwg.mxu0
  %4531 = vrot.lane.b32.xlu0 %v4035, 8
  %v4532 = vpop.permute.xlu0 %4531
  %4533 = vrot.lane.b32.xlu0 %v4084, 8
  %v4534 = vpop.permute.xlu0 %4533
  %4539 = vrot.lane.b32.xlu0 %v4256, 16
  %v4540 = vpop.permute.xlu0 %4539
  %4541 = vrot.lane.b32.xlu0 %v4304, 16
  %v4542 = vpop.permute.xlu0 %4541
  %4547 = vrot.lane.b32.xlu0 %v4476, 24
  %v4548 = vpop.permute.xlu0 %4547
  %4549 = vrot.lane.b32.xlu0 %v4524, 24
  %v4550 = vpop.permute.xlu0 %4549
  %v4553 = vsel %vm345, %v3812, %v4532
  %v4554 = vsel %vm345, %v3858, %v4534
  %v4555 = vsel %vm1247, %v4553, %v4540
  %v4556 = vsel %vm1247, %v4554, %v4542
  %v4557 = vsel %vm1250, %v4555, %v4548
  %v4558 = vsel %vm1250, %v4556, %v4550
  %v4559 = vpack.c.bf16 %v4558, %v4557
  %s4560 = scalar_lea.vmem %s10, 16
  %v4561 = vld [vmem:[%s4560] sm:$0xf]
  %v4562 = vld [vmem:[%s4560 + $0x4] sm:$0xf]
  %v4563 = vld [vmem:[%s4560 + $0x8] sm:$0xf]
  %v4564 = vld [vmem:[%s4560 + $0xc] sm:$0xf]
  %s4565 = scalar_lea.vmem %s11, 1
  %v4566 = vld [vmem:[%s4565] sm:$0x1]
  %v4568 = vlaneseq
  %v4569 = vshrl.u32 %v4568, 7
  %v4570 = vsub.s32 0, %v4569
  %v4571 = vrot.slane %v4566, %v4570
  %v4577 = vunpack.c.l.b16 %v4561
  %v4578 = vunpack.c.l.b16 %v4562
  %v4579 = vunpack.c.l.b16 %v4563
  %v4580 = vunpack.c.l.b16 %v4564
  %v4581 = vpack.c.b16 %v4578, %v4577
  %v4582 = vpack.c.b16 %v4580, %v4579
  %v4586 = vsel %vm164, %v4559, 0
  %4588 = vmatprep.subr.bf16.mxu0 0
  %4589 = vmatpush1.bf16.msra.mxu0 0
  %4590 = vmatprep.subr.bf16.mxu0 0
  %4591 = vmatpush1.bf16.msra.mxu0 0
  %4592 = vmatprep.subr.bf16.mxu0 0
  %4593 = vmatpush1.bf16.msra.mxu0 0
  %4594 = vmatprep.subr.bf16.mxu0 0
  %4595 = vmatpush1.bf16.msra.mxu0 0
  %4596 = vmatprep.subr.bf16.mxu0 0
  %4597 = vmatpush1.bf16.msra.mxu0 0
  %4598 = vmatprep.subr.bf16.mxu0 0
  %4599 = vmatpush1.bf16.msra.mxu0 0
  %4600 = vmatprep.subr.bf16.mxu0 0
  %4601 = vmatpush1.bf16.msra.mxu0 %v4582
  %4602 = vmatprep.subr.bf16.mxu0 0
  %4603 = vmatpush1.bf16.msra.mxu0 %v4581
  %4604 = vmatprep.subr.bf16.mxu0 0
  %4605 = vmatpush2.bf16.msra.mxu0 0
  %4606 = vmatprep.subr.bf16.mxu0 0
  %4607 = vmatpush2.bf16.msra.mxu0 0
  %4608 = vmatprep.subr.bf16.mxu0 0
  %4609 = vmatpush2.bf16.msra.mxu0 0
  %4610 = vmatprep.subr.bf16.mxu0 0
  %4611 = vmatpush2.bf16.msra.mxu0 0
  %4612 = vmatprep.subr.bf16.mxu0 0
  %4613 = vmatpush2.bf16.msra.mxu0 0
  %4614 = vmatprep.subr.bf16.mxu0 0
  %4615 = vmatpush2.bf16.msra.mxu0 0
  %4616 = vmatprep.subr.bf16.mxu0 0
  %4617 = vmatpush2.bf16.msra.mxu0 0
  %4618 = vmatprep.subr.bf16.mxu0 0
  %4619 = vmatpush2.bf16.msra.mxu0 0
  %4620 = vmatprep.mubr.bf16.mxu0 0
  %4621 = vmatmul.mubr.bf16.gmra.mxu0 %v4586
  %v4622 = vpop.f32.mrf.mxu0
  %v4623 = vadd.f32 %v4571, %v4622
  %v4624 = vpop.f32.mrf.mxu0
  %v4625 = vpop.f32.mrf.mxu0
  %v4626 = vadd.f32 %v4571, %v4625
  %v4627 = vpop.f32.mrf.mxu0
  %4628 = vdwg.mxu0
  %v4629 = vadd.f32 %v3443, %v4623
  %v4630 = vadd.f32 %v3444, %v4626
  %s4631 = scalar_lea.vmem %s12, 1
  %v4632 = vld [vmem:[%s4631] sm:$0x1]
  %s4633 = scalar_lea.vmem %s13, 1
  %v4634 = vld [vmem:[%s4633] sm:$0x1]
  %v4635 = vsel %vm164, %v4629, 0.0
  %4636 = vadd.xlane.f32.xlu0 %v4635
  %v4637 = vpop.xlane.xlu0 %4636
  %v4638 = vsel %vm164, %v4630, 0.0
  %4639 = vadd.xlane.f32.xlu0 %v4638
  %v4640 = vpop.xlane.xlu0 %4639
  %v4641 = vmul.f32 %v4637, %v1331
  %v4642 = vmul.f32 %v4640, %v1331
  %v4643 = vsub.f32 %v4629, %v4641
  %v4644 = vsub.f32 %v4630, %v4642
  %v4645 = vmul.f32 %v4643, %v4643
  %v4646 = vmul.f32 %v4644, %v4644
  %v4647 = vsel %vm164, %v4645, 0.0
  %4648 = vadd.xlane.f32.xlu0 %v4647
  %v4649 = vpop.xlane.xlu0 %4648
  %v4650 = vsel %vm164, %v4646, 0.0
  %4651 = vadd.xlane.f32.xlu0 %v4650
  %v4652 = vpop.xlane.xlu0 %4651
  %v4653 = vmul.f32 %v4649, %v1331
  %v4654 = vmul.f32 %v4652, %v1331
  %v4655 = vadd.f32 %v4653, 1e-05
  %v4656 = vadd.f32 %v4654, 1e-05
  %v4657 = vrsqrt.pop %v4655
  %v4658 = vrsqrt.pop %v4656
  %v4659 = vmul.f32 %v4643, %v4657
  %v4660 = vmul.f32 %v4644, %v4658
  %v4662 = vlaneseq
  %v4663 = vshrl.u32 %v4662, 7
  %v4664 = vsub.s32 0, %v4663
  %v4665 = vrot.slane %v4632, %v4664
  %v4667 = vmul.f32 %v4659, %v4665
  %v4668 = vmul.f32 %v4660, %v4665
  %v4670 = vlaneseq
  %v4671 = vshrl.u32 %v4670, 7
  %v4672 = vsub.s32 0, %v4671
  %v4673 = vrot.slane %v4634, %v4672
  %v4675 = vadd.f32 %v4667, %v4673
  %v4676 = vadd.f32 %v4668, %v4673
  %v4677 = vpack.c.bf16 %v4676, %v4675
  %s4678 = scalar_lea.vmem %s16, 256
  %v4679 = vld [vmem:[%s4678] sm:$0xff]
  %v4680 = vld [vmem:[%s4678 + $0x8] sm:$0xff]
  %v4681 = vld [vmem:[%s4678 + $0x10] sm:$0xff]
  %v4682 = vld [vmem:[%s4678 + $0x18] sm:$0xff]
  %v4683 = vld [vmem:[%s4678 + $0x20] sm:$0xff]
  %v4684 = vld [vmem:[%s4678 + $0x28] sm:$0xff]
  %v4685 = vld [vmem:[%s4678 + $0x30] sm:$0xff]
  %v4686 = vld [vmem:[%s4678 + $0x38] sm:$0xff]
  %v4687 = vld [vmem:[%s4678 + $0x40] sm:$0xff]
  %v4688 = vld [vmem:[%s4678 + $0x48] sm:$0xff]
  %v4689 = vld [vmem:[%s4678 + $0x50] sm:$0xff]
  %v4690 = vld [vmem:[%s4678 + $0x58] sm:$0xff]
  %v4691 = vld [vmem:[%s4678 + $0x60] sm:$0xff]
  %v4692 = vld [vmem:[%s4678 + $0x68] sm:$0xff]
  %v4693 = vld [vmem:[%s4678 + $0x70] sm:$0xff]
  %v4694 = vld [vmem:[%s4678 + $0x78] sm:$0xff]
  %v4695 = vld [vmem:[%s4678 + $0x80] sm:$0xff]
  %v4696 = vld [vmem:[%s4678 + $0x88] sm:$0xff]
  %v4697 = vld [vmem:[%s4678 + $0x90] sm:$0xff]
  %v4698 = vld [vmem:[%s4678 + $0x98] sm:$0xff]
  %v4699 = vld [vmem:[%s4678 + $0xa0] sm:$0xff]
  %v4700 = vld [vmem:[%s4678 + $0xa8] sm:$0xff]
  %v4701 = vld [vmem:[%s4678 + $0xb0] sm:$0xff]
  %v4702 = vld [vmem:[%s4678 + $0xb8] sm:$0xff]
  %v4703 = vld [vmem:[%s4678 + $0xc0] sm:$0xff]
  %v4704 = vld [vmem:[%s4678 + $0xc8] sm:$0xff]
  %v4705 = vld [vmem:[%s4678 + $0xd0] sm:$0xff]
  %v4706 = vld [vmem:[%s4678 + $0xd8] sm:$0xff]
  %v4707 = vld [vmem:[%s4678 + $0xe0] sm:$0xff]
  %v4708 = vld [vmem:[%s4678 + $0xe8] sm:$0xff]
  %v4709 = vld [vmem:[%s4678 + $0xf0] sm:$0xff]
  %v4710 = vld [vmem:[%s4678 + $0xf8] sm:$0xff]
  %s4711 = scalar_lea.vmem %s17, 16
  %v4712 = vld [vmem:[%s4711] sm:$0xff]
  %v4713 = vld [vmem:[%s4711 + $0x8] sm:$0xff]
  %v4716 = vlaneseq
  %v4717 = vshrl.u32 %v4716, 7
  %v4718 = vsub.s32 0, %v4717
  %v4719 = vrot.slane %v4712, %v4718
  %v4720 = vlaneseq
  %v4721 = vshrl.u32 %v4720, 7
  %v4722 = vsub.s32 1, %v4721
  %v4723 = vrot.slane %v4712, %v4722
  %v4724 = vlaneseq
  %v4725 = vshrl.u32 %v4724, 7
  %v4726 = vsub.s32 2, %v4725
  %v4727 = vrot.slane %v4712, %v4726
  %v4728 = vlaneseq
  %v4729 = vshrl.u32 %v4728, 7
  %v4730 = vsub.s32 3, %v4729
  %v4731 = vrot.slane %v4712, %v4730
  %v4732 = vlaneseq
  %v4733 = vshrl.u32 %v4732, 7
  %v4734 = vsub.s32 4, %v4733
  %v4735 = vrot.slane %v4712, %v4734
  %v4736 = vlaneseq
  %v4737 = vshrl.u32 %v4736, 7
  %v4738 = vsub.s32 5, %v4737
  %v4739 = vrot.slane %v4712, %v4738
  %v4740 = vlaneseq
  %v4741 = vshrl.u32 %v4740, 7
  %v4742 = vsub.s32 6, %v4741
  %v4743 = vrot.slane %v4712, %v4742
  %v4744 = vlaneseq
  %v4745 = vshrl.u32 %v4744, 7
  %v4746 = vsub.s32 7, %v4745
  %v4747 = vrot.slane %v4712, %v4746
  %v4748 = vlaneseq
  %v4749 = vshrl.u32 %v4748, 7
  %v4750 = vsub.s32 0, %v4749
  %v4751 = vrot.slane %v4713, %v4750
  %v4752 = vlaneseq
  %v4753 = vshrl.u32 %v4752, 7
  %v4754 = vsub.s32 1, %v4753
  %v4755 = vrot.slane %v4713, %v4754
  %v4756 = vlaneseq
  %v4757 = vshrl.u32 %v4756, 7
  %v4758 = vsub.s32 2, %v4757
  %v4759 = vrot.slane %v4713, %v4758
  %v4760 = vlaneseq
  %v4761 = vshrl.u32 %v4760, 7
  %v4762 = vsub.s32 3, %v4761
  %v4763 = vrot.slane %v4713, %v4762
  %v4764 = vlaneseq
  %v4765 = vshrl.u32 %v4764, 7
  %v4766 = vsub.s32 4, %v4765
  %v4767 = vrot.slane %v4713, %v4766
  %v4768 = vlaneseq
  %v4769 = vshrl.u32 %v4768, 7
  %v4770 = vsub.s32 5, %v4769
  %v4771 = vrot.slane %v4713, %v4770
  %v4772 = vlaneseq
  %v4773 = vshrl.u32 %v4772, 7
  %v4774 = vsub.s32 6, %v4773
  %v4775 = vrot.slane %v4713, %v4774
  %v4776 = vlaneseq
  %v4777 = vshrl.u32 %v4776, 7
  %v4778 = vsub.s32 7, %v4777
  %v4779 = vrot.slane %v4713, %v4778
  %v4828 = vunpack.c.l.b16 %v4679
  %v4829 = vunpack.c.h.b16 %v4679
  %v4830 = vunpack.c.l.b16 %v4680
  %v4831 = vunpack.c.h.b16 %v4680
  %v4832 = vunpack.c.l.b16 %v4681
  %v4833 = vunpack.c.h.b16 %v4681
  %v4834 = vunpack.c.l.b16 %v4682
  %v4835 = vunpack.c.h.b16 %v4682
  %v4836 = vunpack.c.l.b16 %v4683
  %v4837 = vunpack.c.h.b16 %v4683
  %v4838 = vunpack.c.l.b16 %v4684
  %v4839 = vunpack.c.h.b16 %v4684
  %v4840 = vunpack.c.l.b16 %v4685
  %v4841 = vunpack.c.h.b16 %v4685
  %v4842 = vunpack.c.l.b16 %v4686
  %v4843 = vunpack.c.h.b16 %v4686
  %v4844 = vunpack.c.l.b16 %v4687
  %v4845 = vunpack.c.h.b16 %v4687
  %v4846 = vunpack.c.l.b16 %v4688
  %v4847 = vunpack.c.h.b16 %v4688
  %v4848 = vunpack.c.l.b16 %v4689
  %v4849 = vunpack.c.h.b16 %v4689
  %v4850 = vunpack.c.l.b16 %v4690
  %v4851 = vunpack.c.h.b16 %v4690
  %v4852 = vunpack.c.l.b16 %v4691
  %v4853 = vunpack.c.h.b16 %v4691
  %v4854 = vunpack.c.l.b16 %v4692
  %v4855 = vunpack.c.h.b16 %v4692
  %v4856 = vunpack.c.l.b16 %v4693
  %v4857 = vunpack.c.h.b16 %v4693
  %v4858 = vunpack.c.l.b16 %v4694
  %v4859 = vunpack.c.h.b16 %v4694
  %v4860 = vunpack.c.l.b16 %v4695
  %v4861 = vunpack.c.h.b16 %v4695
  %v4862 = vunpack.c.l.b16 %v4696
  %v4863 = vunpack.c.h.b16 %v4696
  %v4864 = vunpack.c.l.b16 %v4697
  %v4865 = vunpack.c.h.b16 %v4697
  %v4866 = vunpack.c.l.b16 %v4698
  %v4867 = vunpack.c.h.b16 %v4698
  %v4868 = vunpack.c.l.b16 %v4699
  %v4869 = vunpack.c.h.b16 %v4699
  %v4870 = vunpack.c.l.b16 %v4700
  %v4871 = vunpack.c.h.b16 %v4700
  %v4872 = vunpack.c.l.b16 %v4701
  %v4873 = vunpack.c.h.b16 %v4701
  %v4874 = vunpack.c.l.b16 %v4702
  %v4875 = vunpack.c.h.b16 %v4702
  %v4876 = vunpack.c.l.b16 %v4703
  %v4877 = vunpack.c.h.b16 %v4703
  %v4878 = vunpack.c.l.b16 %v4704
  %v4879 = vunpack.c.h.b16 %v4704
  %v4880 = vunpack.c.l.b16 %v4705
  %v4881 = vunpack.c.h.b16 %v4705
  %v4882 = vunpack.c.l.b16 %v4706
  %v4883 = vunpack.c.h.b16 %v4706
  %v4884 = vunpack.c.l.b16 %v4707
  %v4885 = vunpack.c.h.b16 %v4707
  %v4886 = vunpack.c.l.b16 %v4708
  %v4887 = vunpack.c.h.b16 %v4708
  %v4888 = vunpack.c.l.b16 %v4709
  %v4889 = vunpack.c.h.b16 %v4709
  %v4890 = vunpack.c.l.b16 %v4710
  %v4891 = vunpack.c.h.b16 %v4710
  %v4892 = vpack.c.b16 %v4844, %v4828
  %v4893 = vpack.c.b16 %v4845, %v4829
  %v4894 = vpack.c.b16 %v4846, %v4830
  %v4895 = vpack.c.b16 %v4847, %v4831
  %v4896 = vpack.c.b16 %v4848, %v4832
  %v4897 = vpack.c.b16 %v4849, %v4833
  %v4898 = vpack.c.b16 %v4850, %v4834
  %v4899 = vpack.c.b16 %v4851, %v4835
  %v4900 = vpack.c.b16 %v4852, %v4836
  %v4901 = vpack.c.b16 %v4853, %v4837
  %v4902 = vpack.c.b16 %v4854, %v4838
  %v4903 = vpack.c.b16 %v4855, %v4839
  %v4904 = vpack.c.b16 %v4856, %v4840
  %v4905 = vpack.c.b16 %v4857, %v4841
  %v4906 = vpack.c.b16 %v4858, %v4842
  %v4907 = vpack.c.b16 %v4859, %v4843
  %v4908 = vpack.c.b16 %v4876, %v4860
  %v4909 = vpack.c.b16 %v4877, %v4861
  %v4910 = vpack.c.b16 %v4878, %v4862
  %v4911 = vpack.c.b16 %v4879, %v4863
  %v4912 = vpack.c.b16 %v4880, %v4864
  %v4913 = vpack.c.b16 %v4881, %v4865
  %v4914 = vpack.c.b16 %v4882, %v4866
  %v4915 = vpack.c.b16 %v4883, %v4867
  %v4916 = vpack.c.b16 %v4884, %v4868
  %v4917 = vpack.c.b16 %v4885, %v4869
  %v4918 = vpack.c.b16 %v4886, %v4870
  %v4919 = vpack.c.b16 %v4887, %v4871
  %v4920 = vpack.c.b16 %v4888, %v4872
  %v4921 = vpack.c.b16 %v4889, %v4873
  %v4922 = vpack.c.b16 %v4890, %v4874
  %v4923 = vpack.c.b16 %v4891, %v4875
  %v4957 = vsel %vm164, %v4677, 0
  %4959 = vmatprep.subr.bf16.mxu0 0
  %4960 = vmatpush1.bf16.msra.mxu0 0
  %4961 = vmatprep.subr.bf16.mxu0 0
  %4962 = vmatpush1.bf16.msra.mxu0 0
  %4963 = vmatprep.subr.bf16.mxu0 0
  %4964 = vmatpush1.bf16.msra.mxu0 0
  %4965 = vmatprep.subr.bf16.mxu0 0
  %4966 = vmatpush1.bf16.msra.mxu0 0
  %4967 = vmatprep.subr.bf16.mxu0 0
  %4968 = vmatpush1.bf16.msra.mxu0 0
  %4969 = vmatprep.subr.bf16.mxu0 0
  %4970 = vmatpush1.bf16.msra.mxu0 0
  %4971 = vmatprep.subr.bf16.mxu0 %v4909
  %4972 = vmatpush1.bf16.msra.mxu0 %v4908
  %4973 = vmatprep.subr.bf16.mxu0 %v4893
  %4974 = vmatpush1.bf16.msra.mxu0 %v4892
  %4975 = vmatprep.subr.bf16.mxu0 0
  %4976 = vmatpush2.bf16.msra.mxu0 0
  %4977 = vmatprep.subr.bf16.mxu0 0
  %4978 = vmatpush2.bf16.msra.mxu0 0
  %4979 = vmatprep.subr.bf16.mxu0 0
  %4980 = vmatpush2.bf16.msra.mxu0 0
  %4981 = vmatprep.subr.bf16.mxu0 0
  %4982 = vmatpush2.bf16.msra.mxu0 0
  %4983 = vmatprep.subr.bf16.mxu0 0
  %4984 = vmatpush2.bf16.msra.mxu0 0
  %4985 = vmatprep.subr.bf16.mxu0 0
  %4986 = vmatpush2.bf16.msra.mxu0 0
  %4987 = vmatprep.subr.bf16.mxu0 0
  %4988 = vmatpush2.bf16.msra.mxu0 0
  %4989 = vmatprep.subr.bf16.mxu0 0
  %4990 = vmatpush2.bf16.msra.mxu0 0
  %4991 = vmatprep.mubr.bf16.mxu0 0
  %4992 = vmatmul.mubr.bf16.gmra.mxu0 %v4957
  %v4993 = vpop.f32.mrf.mxu0
  %v4994 = vadd.f32 %v4719, %v4993
  %v4995 = vpop.f32.mrf.mxu0
  %v4996 = vadd.f32 %v4723, %v4995
  %v4997 = vpop.f32.mrf.mxu0
  %v4998 = vadd.f32 %v4719, %v4997
  %v4999 = vpop.f32.mrf.mxu0
  %v5000 = vadd.f32 %v4723, %v4999
  %5001 = vdwg.mxu0
  %5002 = vmatprep.subr.bf16.mxu0 0
  %5003 = vmatpush1.bf16.msra.mxu0 0
  %5004 = vmatprep.subr.bf16.mxu0 0
  %5005 = vmatpush1.bf16.msra.mxu0 0
  %5006 = vmatprep.subr.bf16.mxu0 0
  %5007 = vmatpush1.bf16.msra.mxu0 0
  %5008 = vmatprep.subr.bf16.mxu0 0
  %5009 = vmatpush1.bf16.msra.mxu0 0
  %5010 = vmatprep.subr.bf16.mxu0 0
  %5011 = vmatpush1.bf16.msra.mxu0 0
  %5012 = vmatprep.subr.bf16.mxu0 0
  %5013 = vmatpush1.bf16.msra.mxu0 0
  %5014 = vmatprep.subr.bf16.mxu0 %v4911
  %5015 = vmatpush1.bf16.msra.mxu0 %v4910
  %5016 = vmatprep.subr.bf16.mxu0 %v4895
  %5017 = vmatpush1.bf16.msra.mxu0 %v4894
  %5018 = vmatprep.subr.bf16.mxu0 0
  %5019 = vmatpush2.bf16.msra.mxu0 0
  %5020 = vmatprep.subr.bf16.mxu0 0
  %5021 = vmatpush2.bf16.msra.mxu0 0
  %5022 = vmatprep.subr.bf16.mxu0 0
  %5023 = vmatpush2.bf16.msra.mxu0 0
  %5024 = vmatprep.subr.bf16.mxu0 0
  %5025 = vmatpush2.bf16.msra.mxu0 0
  %5026 = vmatprep.subr.bf16.mxu0 0
  %5027 = vmatpush2.bf16.msra.mxu0 0
  %5028 = vmatprep.subr.bf16.mxu0 0
  %5029 = vmatpush2.bf16.msra.mxu0 0
  %5030 = vmatprep.subr.bf16.mxu0 0
  %5031 = vmatpush2.bf16.msra.mxu0 0
  %5032 = vmatprep.subr.bf16.mxu0 0
  %5033 = vmatpush2.bf16.msra.mxu0 0
  %5034 = vmatprep.mubr.bf16.mxu0 0
  %5035 = vmatmul.mubr.bf16.gmra.mxu0 %v4957
  %v5036 = vpop.f32.mrf.mxu0
  %v5037 = vadd.f32 %v4727, %v5036
  %v5038 = vpop.f32.mrf.mxu0
  %v5039 = vadd.f32 %v4731, %v5038
  %v5040 = vpop.f32.mrf.mxu0
  %v5041 = vadd.f32 %v4727, %v5040
  %v5042 = vpop.f32.mrf.mxu0
  %v5043 = vadd.f32 %v4731, %v5042
  %5044 = vdwg.mxu0
  %5045 = vmatprep.subr.bf16.mxu0 0
  %5046 = vmatpush1.bf16.msra.mxu0 0
  %5047 = vmatprep.subr.bf16.mxu0 0
  %5048 = vmatpush1.bf16.msra.mxu0 0
  %5049 = vmatprep.subr.bf16.mxu0 0
  %5050 = vmatpush1.bf16.msra.mxu0 0
  %5051 = vmatprep.subr.bf16.mxu0 0
  %5052 = vmatpush1.bf16.msra.mxu0 0
  %5053 = vmatprep.subr.bf16.mxu0 0
  %5054 = vmatpush1.bf16.msra.mxu0 0
  %5055 = vmatprep.subr.bf16.mxu0 0
  %5056 = vmatpush1.bf16.msra.mxu0 0
  %5057 = vmatprep.subr.bf16.mxu0 %v4913
  %5058 = vmatpush1.bf16.msra.mxu0 %v4912
  %5059 = vmatprep.subr.bf16.mxu0 %v4897
  %5060 = vmatpush1.bf16.msra.mxu0 %v4896
  %5061 = vmatprep.subr.bf16.mxu0 0
  %5062 = vmatpush2.bf16.msra.mxu0 0
  %5063 = vmatprep.subr.bf16.mxu0 0
  %5064 = vmatpush2.bf16.msra.mxu0 0
  %5065 = vmatprep.subr.bf16.mxu0 0
  %5066 = vmatpush2.bf16.msra.mxu0 0
  %5067 = vmatprep.subr.bf16.mxu0 0
  %5068 = vmatpush2.bf16.msra.mxu0 0
  %5069 = vmatprep.subr.bf16.mxu0 0
  %5070 = vmatpush2.bf16.msra.mxu0 0
  %5071 = vmatprep.subr.bf16.mxu0 0
  %5072 = vmatpush2.bf16.msra.mxu0 0
  %5073 = vmatprep.subr.bf16.mxu0 0
  %5074 = vmatpush2.bf16.msra.mxu0 0
  %5075 = vmatprep.subr.bf16.mxu0 0
  %5076 = vmatpush2.bf16.msra.mxu0 0
  %5077 = vmatprep.mubr.bf16.mxu0 0
  %5078 = vmatmul.mubr.bf16.gmra.mxu0 %v4957
  %v5079 = vpop.f32.mrf.mxu0
  %v5080 = vadd.f32 %v4735, %v5079
  %v5081 = vpop.f32.mrf.mxu0
  %v5082 = vadd.f32 %v4739, %v5081
  %v5083 = vpop.f32.mrf.mxu0
  %v5084 = vadd.f32 %v4735, %v5083
  %v5085 = vpop.f32.mrf.mxu0
  %v5086 = vadd.f32 %v4739, %v5085
  %5087 = vdwg.mxu0
  %5088 = vmatprep.subr.bf16.mxu0 0
  %5089 = vmatpush1.bf16.msra.mxu0 0
  %5090 = vmatprep.subr.bf16.mxu0 0
  %5091 = vmatpush1.bf16.msra.mxu0 0
  %5092 = vmatprep.subr.bf16.mxu0 0
  %5093 = vmatpush1.bf16.msra.mxu0 0
  %5094 = vmatprep.subr.bf16.mxu0 0
  %5095 = vmatpush1.bf16.msra.mxu0 0
  %5096 = vmatprep.subr.bf16.mxu0 0
  %5097 = vmatpush1.bf16.msra.mxu0 0
  %5098 = vmatprep.subr.bf16.mxu0 0
  %5099 = vmatpush1.bf16.msra.mxu0 0
  %5100 = vmatprep.subr.bf16.mxu0 %v4915
  %5101 = vmatpush1.bf16.msra.mxu0 %v4914
  %5102 = vmatprep.subr.bf16.mxu0 %v4899
  %5103 = vmatpush1.bf16.msra.mxu0 %v4898
  %5104 = vmatprep.subr.bf16.mxu0 0
  %5105 = vmatpush2.bf16.msra.mxu0 0
  %5106 = vmatprep.subr.bf16.mxu0 0
  %5107 = vmatpush2.bf16.msra.mxu0 0
  %5108 = vmatprep.subr.bf16.mxu0 0
  %5109 = vmatpush2.bf16.msra.mxu0 0
  %5110 = vmatprep.subr.bf16.mxu0 0
  %5111 = vmatpush2.bf16.msra.mxu0 0
  %5112 = vmatprep.subr.bf16.mxu0 0
  %5113 = vmatpush2.bf16.msra.mxu0 0
  %5114 = vmatprep.subr.bf16.mxu0 0
  %5115 = vmatpush2.bf16.msra.mxu0 0
  %5116 = vmatprep.subr.bf16.mxu0 0
  %5117 = vmatpush2.bf16.msra.mxu0 0
  %5118 = vmatprep.subr.bf16.mxu0 0
  %5119 = vmatpush2.bf16.msra.mxu0 0
  %5120 = vmatprep.mubr.bf16.mxu0 0
  %5121 = vmatmul.mubr.bf16.gmra.mxu0 %v4957
  %v5122 = vpop.f32.mrf.mxu0
  %v5123 = vadd.f32 %v4743, %v5122
  %v5124 = vpop.f32.mrf.mxu0
  %v5125 = vadd.f32 %v4747, %v5124
  %v5126 = vpop.f32.mrf.mxu0
  %v5127 = vadd.f32 %v4743, %v5126
  %v5128 = vpop.f32.mrf.mxu0
  %v5129 = vadd.f32 %v4747, %v5128
  %5130 = vdwg.mxu0
  %5131 = vmatprep.subr.bf16.mxu0 0
  %5132 = vmatpush1.bf16.msra.mxu0 0
  %5133 = vmatprep.subr.bf16.mxu0 0
  %5134 = vmatpush1.bf16.msra.mxu0 0
  %5135 = vmatprep.subr.bf16.mxu0 0
  %5136 = vmatpush1.bf16.msra.mxu0 0
  %5137 = vmatprep.subr.bf16.mxu0 0
  %5138 = vmatpush1.bf16.msra.mxu0 0
  %5139 = vmatprep.subr.bf16.mxu0 0
  %5140 = vmatpush1.bf16.msra.mxu0 0
  %5141 = vmatprep.subr.bf16.mxu0 0
  %5142 = vmatpush1.bf16.msra.mxu0 0
  %5143 = vmatprep.subr.bf16.mxu0 %v4917
  %5144 = vmatpush1.bf16.msra.mxu0 %v4916
  %5145 = vmatprep.subr.bf16.mxu0 %v4901
  %5146 = vmatpush1.bf16.msra.mxu0 %v4900
  %5147 = vmatprep.subr.bf16.mxu0 0
  %5148 = vmatpush2.bf16.msra.mxu0 0
  %5149 = vmatprep.subr.bf16.mxu0 0
  %5150 = vmatpush2.bf16.msra.mxu0 0
  %5151 = vmatprep.subr.bf16.mxu0 0
  %5152 = vmatpush2.bf16.msra.mxu0 0
  %5153 = vmatprep.subr.bf16.mxu0 0
  %5154 = vmatpush2.bf16.msra.mxu0 0
  %5155 = vmatprep.subr.bf16.mxu0 0
  %5156 = vmatpush2.bf16.msra.mxu0 0
  %5157 = vmatprep.subr.bf16.mxu0 0
  %5158 = vmatpush2.bf16.msra.mxu0 0
  %5159 = vmatprep.subr.bf16.mxu0 0
  %5160 = vmatpush2.bf16.msra.mxu0 0
  %5161 = vmatprep.subr.bf16.mxu0 0
  %5162 = vmatpush2.bf16.msra.mxu0 0
  %5163 = vmatprep.mubr.bf16.mxu0 0
  %5164 = vmatmul.mubr.bf16.gmra.mxu0 %v4957
  %v5165 = vpop.f32.mrf.mxu0
  %v5166 = vadd.f32 %v4751, %v5165
  %v5167 = vpop.f32.mrf.mxu0
  %v5168 = vadd.f32 %v4755, %v5167
  %v5169 = vpop.f32.mrf.mxu0
  %v5170 = vadd.f32 %v4751, %v5169
  %v5171 = vpop.f32.mrf.mxu0
  %v5172 = vadd.f32 %v4755, %v5171
  %5173 = vdwg.mxu0
  %5174 = vmatprep.subr.bf16.mxu0 0
  %5175 = vmatpush1.bf16.msra.mxu0 0
  %5176 = vmatprep.subr.bf16.mxu0 0
  %5177 = vmatpush1.bf16.msra.mxu0 0
  %5178 = vmatprep.subr.bf16.mxu0 0
  %5179 = vmatpush1.bf16.msra.mxu0 0
  %5180 = vmatprep.subr.bf16.mxu0 0
  %5181 = vmatpush1.bf16.msra.mxu0 0
  %5182 = vmatprep.subr.bf16.mxu0 0
  %5183 = vmatpush1.bf16.msra.mxu0 0
  %5184 = vmatprep.subr.bf16.mxu0 0
  %5185 = vmatpush1.bf16.msra.mxu0 0
  %5186 = vmatprep.subr.bf16.mxu0 %v4919
  %5187 = vmatpush1.bf16.msra.mxu0 %v4918
  %5188 = vmatprep.subr.bf16.mxu0 %v4903
  %5189 = vmatpush1.bf16.msra.mxu0 %v4902
  %5190 = vmatprep.subr.bf16.mxu0 0
  %5191 = vmatpush2.bf16.msra.mxu0 0
  %5192 = vmatprep.subr.bf16.mxu0 0
  %5193 = vmatpush2.bf16.msra.mxu0 0
  %5194 = vmatprep.subr.bf16.mxu0 0
  %5195 = vmatpush2.bf16.msra.mxu0 0
  %5196 = vmatprep.subr.bf16.mxu0 0
  %5197 = vmatpush2.bf16.msra.mxu0 0
  %5198 = vmatprep.subr.bf16.mxu0 0
  %5199 = vmatpush2.bf16.msra.mxu0 0
  %5200 = vmatprep.subr.bf16.mxu0 0
  %5201 = vmatpush2.bf16.msra.mxu0 0
  %5202 = vmatprep.subr.bf16.mxu0 0
  %5203 = vmatpush2.bf16.msra.mxu0 0
  %5204 = vmatprep.subr.bf16.mxu0 0
  %5205 = vmatpush2.bf16.msra.mxu0 0
  %5206 = vmatprep.mubr.bf16.mxu0 0
  %5207 = vmatmul.mubr.bf16.gmra.mxu0 %v4957
  %v5208 = vpop.f32.mrf.mxu0
  %v5209 = vadd.f32 %v4759, %v5208
  %v5210 = vpop.f32.mrf.mxu0
  %v5211 = vadd.f32 %v4763, %v5210
  %v5212 = vpop.f32.mrf.mxu0
  %v5213 = vadd.f32 %v4759, %v5212
  %v5214 = vpop.f32.mrf.mxu0
  %v5215 = vadd.f32 %v4763, %v5214
  %5216 = vdwg.mxu0
  %5217 = vmatprep.subr.bf16.mxu0 0
  %5218 = vmatpush1.bf16.msra.mxu0 0
  %5219 = vmatprep.subr.bf16.mxu0 0
  %5220 = vmatpush1.bf16.msra.mxu0 0
  %5221 = vmatprep.subr.bf16.mxu0 0
  %5222 = vmatpush1.bf16.msra.mxu0 0
  %5223 = vmatprep.subr.bf16.mxu0 0
  %5224 = vmatpush1.bf16.msra.mxu0 0
  %5225 = vmatprep.subr.bf16.mxu0 0
  %5226 = vmatpush1.bf16.msra.mxu0 0
  %5227 = vmatprep.subr.bf16.mxu0 0
  %5228 = vmatpush1.bf16.msra.mxu0 0
  %5229 = vmatprep.subr.bf16.mxu0 %v4921
  %5230 = vmatpush1.bf16.msra.mxu0 %v4920
  %5231 = vmatprep.subr.bf16.mxu0 %v4905
  %5232 = vmatpush1.bf16.msra.mxu0 %v4904
  %5233 = vmatprep.subr.bf16.mxu0 0
  %5234 = vmatpush2.bf16.msra.mxu0 0
  %5235 = vmatprep.subr.bf16.mxu0 0
  %5236 = vmatpush2.bf16.msra.mxu0 0
  %5237 = vmatprep.subr.bf16.mxu0 0
  %5238 = vmatpush2.bf16.msra.mxu0 0
  %5239 = vmatprep.subr.bf16.mxu0 0
  %5240 = vmatpush2.bf16.msra.mxu0 0
  %5241 = vmatprep.subr.bf16.mxu0 0
  %5242 = vmatpush2.bf16.msra.mxu0 0
  %5243 = vmatprep.subr.bf16.mxu0 0
  %5244 = vmatpush2.bf16.msra.mxu0 0
  %5245 = vmatprep.subr.bf16.mxu0 0
  %5246 = vmatpush2.bf16.msra.mxu0 0
  %5247 = vmatprep.subr.bf16.mxu0 0
  %5248 = vmatpush2.bf16.msra.mxu0 0
  %5249 = vmatprep.mubr.bf16.mxu0 0
  %5250 = vmatmul.mubr.bf16.gmra.mxu0 %v4957
  %v5251 = vpop.f32.mrf.mxu0
  %v5252 = vadd.f32 %v4767, %v5251
  %v5253 = vpop.f32.mrf.mxu0
  %v5254 = vadd.f32 %v4771, %v5253
  %v5255 = vpop.f32.mrf.mxu0
  %v5256 = vadd.f32 %v4767, %v5255
  %v5257 = vpop.f32.mrf.mxu0
  %v5258 = vadd.f32 %v4771, %v5257
  %5259 = vdwg.mxu0
  %5260 = vmatprep.subr.bf16.mxu0 0
  %5261 = vmatpush1.bf16.msra.mxu0 0
  %5262 = vmatprep.subr.bf16.mxu0 0
  %5263 = vmatpush1.bf16.msra.mxu0 0
  %5264 = vmatprep.subr.bf16.mxu0 0
  %5265 = vmatpush1.bf16.msra.mxu0 0
  %5266 = vmatprep.subr.bf16.mxu0 0
  %5267 = vmatpush1.bf16.msra.mxu0 0
  %5268 = vmatprep.subr.bf16.mxu0 0
  %5269 = vmatpush1.bf16.msra.mxu0 0
  %5270 = vmatprep.subr.bf16.mxu0 0
  %5271 = vmatpush1.bf16.msra.mxu0 0
  %5272 = vmatprep.subr.bf16.mxu0 %v4923
  %5273 = vmatpush1.bf16.msra.mxu0 %v4922
  %5274 = vmatprep.subr.bf16.mxu0 %v4907
  %5275 = vmatpush1.bf16.msra.mxu0 %v4906
  %5276 = vmatprep.subr.bf16.mxu0 0
  %5277 = vmatpush2.bf16.msra.mxu0 0
  %5278 = vmatprep.subr.bf16.mxu0 0
  %5279 = vmatpush2.bf16.msra.mxu0 0
  %5280 = vmatprep.subr.bf16.mxu0 0
  %5281 = vmatpush2.bf16.msra.mxu0 0
  %5282 = vmatprep.subr.bf16.mxu0 0
  %5283 = vmatpush2.bf16.msra.mxu0 0
  %5284 = vmatprep.subr.bf16.mxu0 0
  %5285 = vmatpush2.bf16.msra.mxu0 0
  %5286 = vmatprep.subr.bf16.mxu0 0
  %5287 = vmatpush2.bf16.msra.mxu0 0
  %5288 = vmatprep.subr.bf16.mxu0 0
  %5289 = vmatpush2.bf16.msra.mxu0 0
  %5290 = vmatprep.subr.bf16.mxu0 0
  %5291 = vmatpush2.bf16.msra.mxu0 0
  %5292 = vmatprep.mubr.bf16.mxu0 0
  %5293 = vmatmul.mubr.bf16.gmra.mxu0 %v4957
  %v5294 = vpop.f32.mrf.mxu0
  %v5295 = vadd.f32 %v4775, %v5294
  %v5296 = vpop.f32.mrf.mxu0
  %v5297 = vadd.f32 %v4779, %v5296
  %v5298 = vpop.f32.mrf.mxu0
  %v5299 = vadd.f32 %v4775, %v5298
  %v5300 = vpop.f32.mrf.mxu0
  %v5301 = vadd.f32 %v4779, %v5300
  %5302 = vdwg.mxu0
  %v5303 = vmax.f32 %v4994, 0.0
  %v5304 = vmax.f32 %v4996, 0.0
  %v5305 = vmax.f32 %v5037, 0.0
  %v5306 = vmax.f32 %v5039, 0.0
  %v5307 = vmax.f32 %v5080, 0.0
  %v5308 = vmax.f32 %v5082, 0.0
  %v5309 = vmax.f32 %v5123, 0.0
  %v5310 = vmax.f32 %v5125, 0.0
  %v5311 = vmax.f32 %v5166, 0.0
  %v5312 = vmax.f32 %v5168, 0.0
  %v5313 = vmax.f32 %v5209, 0.0
  %v5314 = vmax.f32 %v5211, 0.0
  %v5315 = vmax.f32 %v5252, 0.0
  %v5316 = vmax.f32 %v5254, 0.0
  %v5317 = vmax.f32 %v5295, 0.0
  %v5318 = vmax.f32 %v5297, 0.0
  %v5319 = vmax.f32 %v4998, 0.0
  %v5320 = vmax.f32 %v5000, 0.0
  %v5321 = vmax.f32 %v5041, 0.0
  %v5322 = vmax.f32 %v5043, 0.0
  %v5323 = vmax.f32 %v5084, 0.0
  %v5324 = vmax.f32 %v5086, 0.0
  %v5325 = vmax.f32 %v5127, 0.0
  %v5326 = vmax.f32 %v5129, 0.0
  %v5327 = vmax.f32 %v5170, 0.0
  %v5328 = vmax.f32 %v5172, 0.0
  %v5329 = vmax.f32 %v5213, 0.0
  %v5330 = vmax.f32 %v5215, 0.0
  %v5331 = vmax.f32 %v5256, 0.0
  %v5332 = vmax.f32 %v5258, 0.0
  %v5333 = vmax.f32 %v5299, 0.0
  %v5334 = vmax.f32 %v5301, 0.0
  %v5335 = vpack.c.bf16 %v5319, %v5303
  %v5336 = vpack.c.bf16 %v5320, %v5304
  %v5337 = vpack.c.bf16 %v5321, %v5305
  %v5338 = vpack.c.bf16 %v5322, %v5306
  %v5339 = vpack.c.bf16 %v5323, %v5307
  %v5340 = vpack.c.bf16 %v5324, %v5308
  %v5341 = vpack.c.bf16 %v5325, %v5309
  %v5342 = vpack.c.bf16 %v5326, %v5310
  %v5343 = vpack.c.bf16 %v5327, %v5311
  %v5344 = vpack.c.bf16 %v5328, %v5312
  %v5345 = vpack.c.bf16 %v5329, %v5313
  %v5346 = vpack.c.bf16 %v5330, %v5314
  %v5347 = vpack.c.bf16 %v5331, %v5315
  %v5348 = vpack.c.bf16 %v5332, %v5316
  %v5349 = vpack.c.bf16 %v5333, %v5317
  %v5350 = vpack.c.bf16 %v5334, %v5318
  %s5351 = scalar_lea.vmem %s18, 1024
  %v5352 = vld [vmem:[%s5351] sm:$0xf]
  %v5353 = vld [vmem:[%s5351 + $0x4] sm:$0xf]
  %v5354 = vld [vmem:[%s5351 + $0x8] sm:$0xf]
  %v5355 = vld [vmem:[%s5351 + $0xc] sm:$0xf]
  %v5356 = vld [vmem:[%s5351 + $0x10] sm:$0xf]
  %v5357 = vld [vmem:[%s5351 + $0x14] sm:$0xf]
  %v5358 = vld [vmem:[%s5351 + $0x18] sm:$0xf]
  %v5359 = vld [vmem:[%s5351 + $0x1c] sm:$0xf]
  %v5360 = vld [vmem:[%s5351 + $0x20] sm:$0xf]
  %v5361 = vld [vmem:[%s5351 + $0x24] sm:$0xf]
  %v5362 = vld [vmem:[%s5351 + $0x28] sm:$0xf]
  %v5363 = vld [vmem:[%s5351 + $0x2c] sm:$0xf]
  %v5364 = vld [vmem:[%s5351 + $0x30] sm:$0xf]
  %v5365 = vld [vmem:[%s5351 + $0x34] sm:$0xf]
  %v5366 = vld [vmem:[%s5351 + $0x38] sm:$0xf]
  %v5367 = vld [vmem:[%s5351 + $0x3c] sm:$0xf]
  %v5368 = vld [vmem:[%s5351 + $0x40] sm:$0xf]
  %v5369 = vld [vmem:[%s5351 + $0x44] sm:$0xf]
  %v5370 = vld [vmem:[%s5351 + $0x48] sm:$0xf]
  %v5371 = vld [vmem:[%s5351 + $0x4c] sm:$0xf]
  %v5372 = vld [vmem:[%s5351 + $0x50] sm:$0xf]
  %v5373 = vld [vmem:[%s5351 + $0x54] sm:$0xf]
  %v5374 = vld [vmem:[%s5351 + $0x58] sm:$0xf]
  %v5375 = vld [vmem:[%s5351 + $0x5c] sm:$0xf]
  %v5376 = vld [vmem:[%s5351 + $0x60] sm:$0xf]
  %v5377 = vld [vmem:[%s5351 + $0x64] sm:$0xf]
  %v5378 = vld [vmem:[%s5351 + $0x68] sm:$0xf]
  %v5379 = vld [vmem:[%s5351 + $0x6c] sm:$0xf]
  %v5380 = vld [vmem:[%s5351 + $0x70] sm:$0xf]
  %v5381 = vld [vmem:[%s5351 + $0x74] sm:$0xf]
  %v5382 = vld [vmem:[%s5351 + $0x78] sm:$0xf]
  %v5383 = vld [vmem:[%s5351 + $0x7c] sm:$0xf]
  %v5384 = vld [vmem:[%s5351 + $0x80] sm:$0xf]
  %v5385 = vld [vmem:[%s5351 + $0x84] sm:$0xf]
  %v5386 = vld [vmem:[%s5351 + $0x88] sm:$0xf]
  %v5387 = vld [vmem:[%s5351 + $0x8c] sm:$0xf]
  %v5388 = vld [vmem:[%s5351 + $0x90] sm:$0xf]
  %v5389 = vld [vmem:[%s5351 + $0x94] sm:$0xf]
  %v5390 = vld [vmem:[%s5351 + $0x98] sm:$0xf]
  %v5391 = vld [vmem:[%s5351 + $0x9c] sm:$0xf]
  %v5392 = vld [vmem:[%s5351 + $0xa0] sm:$0xf]
  %v5393 = vld [vmem:[%s5351 + $0xa4] sm:$0xf]
  %v5394 = vld [vmem:[%s5351 + $0xa8] sm:$0xf]
  %v5395 = vld [vmem:[%s5351 + $0xac] sm:$0xf]
  %v5396 = vld [vmem:[%s5351 + $0xb0] sm:$0xf]
  %v5397 = vld [vmem:[%s5351 + $0xb4] sm:$0xf]
  %v5398 = vld [vmem:[%s5351 + $0xb8] sm:$0xf]
  %v5399 = vld [vmem:[%s5351 + $0xbc] sm:$0xf]
  %v5400 = vld [vmem:[%s5351 + $0xc0] sm:$0xf]
  %v5401 = vld [vmem:[%s5351 + $0xc4] sm:$0xf]
  %v5402 = vld [vmem:[%s5351 + $0xc8] sm:$0xf]
  %v5403 = vld [vmem:[%s5351 + $0xcc] sm:$0xf]
  %v5404 = vld [vmem:[%s5351 + $0xd0] sm:$0xf]
  %v5405 = vld [vmem:[%s5351 + $0xd4] sm:$0xf]
  %v5406 = vld [vmem:[%s5351 + $0xd8] sm:$0xf]
  %v5407 = vld [vmem:[%s5351 + $0xdc] sm:$0xf]
  %v5408 = vld [vmem:[%s5351 + $0xe0] sm:$0xf]
  %v5409 = vld [vmem:[%s5351 + $0xe4] sm:$0xf]
  %v5410 = vld [vmem:[%s5351 + $0xe8] sm:$0xf]
  %v5411 = vld [vmem:[%s5351 + $0xec] sm:$0xf]
  %v5412 = vld [vmem:[%s5351 + $0xf0] sm:$0xf]
  %v5413 = vld [vmem:[%s5351 + $0xf4] sm:$0xf]
  %v5414 = vld [vmem:[%s5351 + $0xf8] sm:$0xf]
  %v5415 = vld [vmem:[%s5351 + $0xfc] sm:$0xf]
  %v5416 = vld [vmem:[%s5351 + $0x100] sm:$0xf]
  %v5417 = vld [vmem:[%s5351 + $0x104] sm:$0xf]
  %v5418 = vld [vmem:[%s5351 + $0x108] sm:$0xf]
  %v5419 = vld [vmem:[%s5351 + $0x10c] sm:$0xf]
  %v5420 = vld [vmem:[%s5351 + $0x110] sm:$0xf]
  %v5421 = vld [vmem:[%s5351 + $0x114] sm:$0xf]
  %v5422 = vld [vmem:[%s5351 + $0x118] sm:$0xf]
  %v5423 = vld [vmem:[%s5351 + $0x11c] sm:$0xf]
  %v5424 = vld [vmem:[%s5351 + $0x120] sm:$0xf]
  %v5425 = vld [vmem:[%s5351 + $0x124] sm:$0xf]
  %v5426 = vld [vmem:[%s5351 + $0x128] sm:$0xf]
  %v5427 = vld [vmem:[%s5351 + $0x12c] sm:$0xf]
  %v5428 = vld [vmem:[%s5351 + $0x130] sm:$0xf]
  %v5429 = vld [vmem:[%s5351 + $0x134] sm:$0xf]
  %v5430 = vld [vmem:[%s5351 + $0x138] sm:$0xf]
  %v5431 = vld [vmem:[%s5351 + $0x13c] sm:$0xf]
  %v5432 = vld [vmem:[%s5351 + $0x140] sm:$0xf]
  %v5433 = vld [vmem:[%s5351 + $0x144] sm:$0xf]
  %v5434 = vld [vmem:[%s5351 + $0x148] sm:$0xf]
  %v5435 = vld [vmem:[%s5351 + $0x14c] sm:$0xf]
  %v5436 = vld [vmem:[%s5351 + $0x150] sm:$0xf]
  %v5437 = vld [vmem:[%s5351 + $0x154] sm:$0xf]
  %v5438 = vld [vmem:[%s5351 + $0x158] sm:$0xf]
  %v5439 = vld [vmem:[%s5351 + $0x15c] sm:$0xf]
  %v5440 = vld [vmem:[%s5351 + $0x160] sm:$0xf]
  %v5441 = vld [vmem:[%s5351 + $0x164] sm:$0xf]
  %v5442 = vld [vmem:[%s5351 + $0x168] sm:$0xf]
  %v5443 = vld [vmem:[%s5351 + $0x16c] sm:$0xf]
  %v5444 = vld [vmem:[%s5351 + $0x170] sm:$0xf]
  %v5445 = vld [vmem:[%s5351 + $0x174] sm:$0xf]
  %v5446 = vld [vmem:[%s5351 + $0x178] sm:$0xf]
  %v5447 = vld [vmem:[%s5351 + $0x17c] sm:$0xf]
  %v5448 = vld [vmem:[%s5351 + $0x180] sm:$0xf]
  %v5449 = vld [vmem:[%s5351 + $0x184] sm:$0xf]
  %v5450 = vld [vmem:[%s5351 + $0x188] sm:$0xf]
  %v5451 = vld [vmem:[%s5351 + $0x18c] sm:$0xf]
  %v5452 = vld [vmem:[%s5351 + $0x190] sm:$0xf]
  %v5453 = vld [vmem:[%s5351 + $0x194] sm:$0xf]
  %v5454 = vld [vmem:[%s5351 + $0x198] sm:$0xf]
  %v5455 = vld [vmem:[%s5351 + $0x19c] sm:$0xf]
  %v5456 = vld [vmem:[%s5351 + $0x1a0] sm:$0xf]
  %v5457 = vld [vmem:[%s5351 + $0x1a4] sm:$0xf]
  %v5458 = vld [vmem:[%s5351 + $0x1a8] sm:$0xf]
  %v5459 = vld [vmem:[%s5351 + $0x1ac] sm:$0xf]
  %v5460 = vld [vmem:[%s5351 + $0x1b0] sm:$0xf]
  %v5461 = vld [vmem:[%s5351 + $0x1b4] sm:$0xf]
  %v5462 = vld [vmem:[%s5351 + $0x1b8] sm:$0xf]
  %v5463 = vld [vmem:[%s5351 + $0x1bc] sm:$0xf]
  %v5464 = vld [vmem:[%s5351 + $0x1c0] sm:$0xf]
  %v5465 = vld [vmem:[%s5351 + $0x1c4] sm:$0xf]
  %v5466 = vld [vmem:[%s5351 + $0x1c8] sm:$0xf]
  %v5467 = vld [vmem:[%s5351 + $0x1cc] sm:$0xf]
  %v5468 = vld [vmem:[%s5351 + $0x1d0] sm:$0xf]
  %v5469 = vld [vmem:[%s5351 + $0x1d4] sm:$0xf]
  %v5470 = vld [vmem:[%s5351 + $0x1d8] sm:$0xf]
  %v5471 = vld [vmem:[%s5351 + $0x1dc] sm:$0xf]
  %v5472 = vld [vmem:[%s5351 + $0x1e0] sm:$0xf]
  %v5473 = vld [vmem:[%s5351 + $0x1e4] sm:$0xf]
  %v5474 = vld [vmem:[%s5351 + $0x1e8] sm:$0xf]
  %v5475 = vld [vmem:[%s5351 + $0x1ec] sm:$0xf]
  %v5476 = vld [vmem:[%s5351 + $0x1f0] sm:$0xf]
  %v5477 = vld [vmem:[%s5351 + $0x1f4] sm:$0xf]
  %v5478 = vld [vmem:[%s5351 + $0x1f8] sm:$0xf]
  %v5479 = vld [vmem:[%s5351 + $0x1fc] sm:$0xf]
  %v5480 = vld [vmem:[%s5351 + $0x200] sm:$0xf]
  %v5481 = vld [vmem:[%s5351 + $0x204] sm:$0xf]
  %v5482 = vld [vmem:[%s5351 + $0x208] sm:$0xf]
  %v5483 = vld [vmem:[%s5351 + $0x20c] sm:$0xf]
  %v5484 = vld [vmem:[%s5351 + $0x210] sm:$0xf]
  %v5485 = vld [vmem:[%s5351 + $0x214] sm:$0xf]
  %v5486 = vld [vmem:[%s5351 + $0x218] sm:$0xf]
  %v5487 = vld [vmem:[%s5351 + $0x21c] sm:$0xf]
  %v5488 = vld [vmem:[%s5351 + $0x220] sm:$0xf]
  %v5489 = vld [vmem:[%s5351 + $0x224] sm:$0xf]
  %v5490 = vld [vmem:[%s5351 + $0x228] sm:$0xf]
  %v5491 = vld [vmem:[%s5351 + $0x22c] sm:$0xf]
  %v5492 = vld [vmem:[%s5351 + $0x230] sm:$0xf]
  %v5493 = vld [vmem:[%s5351 + $0x234] sm:$0xf]
  %v5494 = vld [vmem:[%s5351 + $0x238] sm:$0xf]
  %v5495 = vld [vmem:[%s5351 + $0x23c] sm:$0xf]
  %v5496 = vld [vmem:[%s5351 + $0x240] sm:$0xf]
  %v5497 = vld [vmem:[%s5351 + $0x244] sm:$0xf]
  %v5498 = vld [vmem:[%s5351 + $0x248] sm:$0xf]
  %v5499 = vld [vmem:[%s5351 + $0x24c] sm:$0xf]
  %v5500 = vld [vmem:[%s5351 + $0x250] sm:$0xf]
  %v5501 = vld [vmem:[%s5351 + $0x254] sm:$0xf]
  %v5502 = vld [vmem:[%s5351 + $0x258] sm:$0xf]
  %v5503 = vld [vmem:[%s5351 + $0x25c] sm:$0xf]
  %v5504 = vld [vmem:[%s5351 + $0x260] sm:$0xf]
  %v5505 = vld [vmem:[%s5351 + $0x264] sm:$0xf]
  %v5506 = vld [vmem:[%s5351 + $0x268] sm:$0xf]
  %v5507 = vld [vmem:[%s5351 + $0x26c] sm:$0xf]
  %v5508 = vld [vmem:[%s5351 + $0x270] sm:$0xf]
  %v5509 = vld [vmem:[%s5351 + $0x274] sm:$0xf]
  %v5510 = vld [vmem:[%s5351 + $0x278] sm:$0xf]
  %v5511 = vld [vmem:[%s5351 + $0x27c] sm:$0xf]
  %v5512 = vld [vmem:[%s5351 + $0x280] sm:$0xf]
  %v5513 = vld [vmem:[%s5351 + $0x284] sm:$0xf]
  %v5514 = vld [vmem:[%s5351 + $0x288] sm:$0xf]
  %v5515 = vld [vmem:[%s5351 + $0x28c] sm:$0xf]
  %v5516 = vld [vmem:[%s5351 + $0x290] sm:$0xf]
  %v5517 = vld [vmem:[%s5351 + $0x294] sm:$0xf]
  %v5518 = vld [vmem:[%s5351 + $0x298] sm:$0xf]
  %v5519 = vld [vmem:[%s5351 + $0x29c] sm:$0xf]
  %v5520 = vld [vmem:[%s5351 + $0x2a0] sm:$0xf]
  %v5521 = vld [vmem:[%s5351 + $0x2a4] sm:$0xf]
  %v5522 = vld [vmem:[%s5351 + $0x2a8] sm:$0xf]
  %v5523 = vld [vmem:[%s5351 + $0x2ac] sm:$0xf]
  %v5524 = vld [vmem:[%s5351 + $0x2b0] sm:$0xf]
  %v5525 = vld [vmem:[%s5351 + $0x2b4] sm:$0xf]
  %v5526 = vld [vmem:[%s5351 + $0x2b8] sm:$0xf]
  %v5527 = vld [vmem:[%s5351 + $0x2bc] sm:$0xf]
  %v5528 = vld [vmem:[%s5351 + $0x2c0] sm:$0xf]
  %v5529 = vld [vmem:[%s5351 + $0x2c4] sm:$0xf]
  %v5530 = vld [vmem:[%s5351 + $0x2c8] sm:$0xf]
  %v5531 = vld [vmem:[%s5351 + $0x2cc] sm:$0xf]
  %v5532 = vld [vmem:[%s5351 + $0x2d0] sm:$0xf]
  %v5533 = vld [vmem:[%s5351 + $0x2d4] sm:$0xf]
  %v5534 = vld [vmem:[%s5351 + $0x2d8] sm:$0xf]
  %v5535 = vld [vmem:[%s5351 + $0x2dc] sm:$0xf]
  %v5536 = vld [vmem:[%s5351 + $0x2e0] sm:$0xf]
  %v5537 = vld [vmem:[%s5351 + $0x2e4] sm:$0xf]
  %v5538 = vld [vmem:[%s5351 + $0x2e8] sm:$0xf]
  %v5539 = vld [vmem:[%s5351 + $0x2ec] sm:$0xf]
  %v5540 = vld [vmem:[%s5351 + $0x2f0] sm:$0xf]
  %v5541 = vld [vmem:[%s5351 + $0x2f4] sm:$0xf]
  %v5542 = vld [vmem:[%s5351 + $0x2f8] sm:$0xf]
  %v5543 = vld [vmem:[%s5351 + $0x2fc] sm:$0xf]
  %v5544 = vld [vmem:[%s5351 + $0x300] sm:$0xf]
  %v5545 = vld [vmem:[%s5351 + $0x304] sm:$0xf]
  %v5546 = vld [vmem:[%s5351 + $0x308] sm:$0xf]
  %v5547 = vld [vmem:[%s5351 + $0x30c] sm:$0xf]
  %v5548 = vld [vmem:[%s5351 + $0x310] sm:$0xf]
  %v5549 = vld [vmem:[%s5351 + $0x314] sm:$0xf]
  %v5550 = vld [vmem:[%s5351 + $0x318] sm:$0xf]
  %v5551 = vld [vmem:[%s5351 + $0x31c] sm:$0xf]
  %v5552 = vld [vmem:[%s5351 + $0x320] sm:$0xf]
  %v5553 = vld [vmem:[%s5351 + $0x324] sm:$0xf]
  %v5554 = vld [vmem:[%s5351 + $0x328] sm:$0xf]
  %v5555 = vld [vmem:[%s5351 + $0x32c] sm:$0xf]
  %v5556 = vld [vmem:[%s5351 + $0x330] sm:$0xf]
  %v5557 = vld [vmem:[%s5351 + $0x334] sm:$0xf]
  %v5558 = vld [vmem:[%s5351 + $0x338] sm:$0xf]
  %v5559 = vld [vmem:[%s5351 + $0x33c] sm:$0xf]
  %v5560 = vld [vmem:[%s5351 + $0x340] sm:$0xf]
  %v5561 = vld [vmem:[%s5351 + $0x344] sm:$0xf]
  %v5562 = vld [vmem:[%s5351 + $0x348] sm:$0xf]
  %v5563 = vld [vmem:[%s5351 + $0x34c] sm:$0xf]
  %v5564 = vld [vmem:[%s5351 + $0x350] sm:$0xf]
  %v5565 = vld [vmem:[%s5351 + $0x354] sm:$0xf]
  %v5566 = vld [vmem:[%s5351 + $0x358] sm:$0xf]
  %v5567 = vld [vmem:[%s5351 + $0x35c] sm:$0xf]
  %v5568 = vld [vmem:[%s5351 + $0x360] sm:$0xf]
  %v5569 = vld [vmem:[%s5351 + $0x364] sm:$0xf]
  %v5570 = vld [vmem:[%s5351 + $0x368] sm:$0xf]
  %v5571 = vld [vmem:[%s5351 + $0x36c] sm:$0xf]
  %v5572 = vld [vmem:[%s5351 + $0x370] sm:$0xf]
  %v5573 = vld [vmem:[%s5351 + $0x374] sm:$0xf]
  %v5574 = vld [vmem:[%s5351 + $0x378] sm:$0xf]
  %v5575 = vld [vmem:[%s5351 + $0x37c] sm:$0xf]
  %v5576 = vld [vmem:[%s5351 + $0x380] sm:$0xf]
  %v5577 = vld [vmem:[%s5351 + $0x384] sm:$0xf]
  %v5578 = vld [vmem:[%s5351 + $0x388] sm:$0xf]
  %v5579 = vld [vmem:[%s5351 + $0x38c] sm:$0xf]
  %v5580 = vld [vmem:[%s5351 + $0x390] sm:$0xf]
  %v5581 = vld [vmem:[%s5351 + $0x394] sm:$0xf]
  %v5582 = vld [vmem:[%s5351 + $0x398] sm:$0xf]
  %v5583 = vld [vmem:[%s5351 + $0x39c] sm:$0xf]
  %v5584 = vld [vmem:[%s5351 + $0x3a0] sm:$0xf]
  %v5585 = vld [vmem:[%s5351 + $0x3a4] sm:$0xf]
  %v5586 = vld [vmem:[%s5351 + $0x3a8] sm:$0xf]
  %v5587 = vld [vmem:[%s5351 + $0x3ac] sm:$0xf]
  %v5588 = vld [vmem:[%s5351 + $0x3b0] sm:$0xf]
  %v5589 = vld [vmem:[%s5351 + $0x3b4] sm:$0xf]
  %v5590 = vld [vmem:[%s5351 + $0x3b8] sm:$0xf]
  %v5591 = vld [vmem:[%s5351 + $0x3bc] sm:$0xf]
  %v5592 = vld [vmem:[%s5351 + $0x3c0] sm:$0xf]
  %v5593 = vld [vmem:[%s5351 + $0x3c4] sm:$0xf]
  %v5594 = vld [vmem:[%s5351 + $0x3c8] sm:$0xf]
  %v5595 = vld [vmem:[%s5351 + $0x3cc] sm:$0xf]
  %v5596 = vld [vmem:[%s5351 + $0x3d0] sm:$0xf]
  %v5597 = vld [vmem:[%s5351 + $0x3d4] sm:$0xf]
  %v5598 = vld [vmem:[%s5351 + $0x3d8] sm:$0xf]
  %v5599 = vld [vmem:[%s5351 + $0x3dc] sm:$0xf]
  %v5600 = vld [vmem:[%s5351 + $0x3e0] sm:$0xf]
  %v5601 = vld [vmem:[%s5351 + $0x3e4] sm:$0xf]
  %v5602 = vld [vmem:[%s5351 + $0x3e8] sm:$0xf]
  %v5603 = vld [vmem:[%s5351 + $0x3ec] sm:$0xf]
  %v5604 = vld [vmem:[%s5351 + $0x3f0] sm:$0xf]
  %v5605 = vld [vmem:[%s5351 + $0x3f4] sm:$0xf]
  %v5606 = vld [vmem:[%s5351 + $0x3f8] sm:$0xf]
  %v5607 = vld [vmem:[%s5351 + $0x3fc] sm:$0xf]
  %s5608 = scalar_lea.vmem %s19, 1
  %v5609 = vld [vmem:[%s5608] sm:$0x1]
  %v5611 = vlaneseq
  %v5612 = vshrl.u32 %v5611, 7
  %v5613 = vsub.s32 0, %v5612
  %v5614 = vrot.slane %v5609, %v5613
  %v5872 = vunpack.c.l.b16 %v5352
  %v5873 = vunpack.c.l.b16 %v5353
  %v5874 = vunpack.c.l.b16 %v5354
  %v5875 = vunpack.c.l.b16 %v5355
  %v5876 = vunpack.c.l.b16 %v5356
  %v5877 = vunpack.c.l.b16 %v5357
  %v5878 = vunpack.c.l.b16 %v5358
  %v5879 = vunpack.c.l.b16 %v5359
  %v5880 = vunpack.c.l.b16 %v5360
  %v5881 = vunpack.c.l.b16 %v5361
  %v5882 = vunpack.c.l.b16 %v5362
  %v5883 = vunpack.c.l.b16 %v5363
  %v5884 = vunpack.c.l.b16 %v5364
  %v5885 = vunpack.c.l.b16 %v5365
  %v5886 = vunpack.c.l.b16 %v5366
  %v5887 = vunpack.c.l.b16 %v5367
  %v5888 = vunpack.c.l.b16 %v5368
  %v5889 = vunpack.c.l.b16 %v5369
  %v5890 = vunpack.c.l.b16 %v5370
  %v5891 = vunpack.c.l.b16 %v5371
  %v5892 = vunpack.c.l.b16 %v5372
  %v5893 = vunpack.c.l.b16 %v5373
  %v5894 = vunpack.c.l.b16 %v5374
  %v5895 = vunpack.c.l.b16 %v5375
  %v5896 = vunpack.c.l.b16 %v5376
  %v5897 = vunpack.c.l.b16 %v5377
  %v5898 = vunpack.c.l.b16 %v5378
  %v5899 = vunpack.c.l.b16 %v5379
  %v5900 = vunpack.c.l.b16 %v5380
  %v5901 = vunpack.c.l.b16 %v5381
  %v5902 = vunpack.c.l.b16 %v5382
  %v5903 = vunpack.c.l.b16 %v5383
  %v5904 = vunpack.c.l.b16 %v5384
  %v5905 = vunpack.c.l.b16 %v5385
  %v5906 = vunpack.c.l.b16 %v5386
  %v5907 = vunpack.c.l.b16 %v5387
  %v5908 = vunpack.c.l.b16 %v5388
  %v5909 = vunpack.c.l.b16 %v5389
  %v5910 = vunpack.c.l.b16 %v5390
  %v5911 = vunpack.c.l.b16 %v5391
  %v5912 = vunpack.c.l.b16 %v5392
  %v5913 = vunpack.c.l.b16 %v5393
  %v5914 = vunpack.c.l.b16 %v5394
  %v5915 = vunpack.c.l.b16 %v5395
  %v5916 = vunpack.c.l.b16 %v5396
  %v5917 = vunpack.c.l.b16 %v5397
  %v5918 = vunpack.c.l.b16 %v5398
  %v5919 = vunpack.c.l.b16 %v5399
  %v5920 = vunpack.c.l.b16 %v5400
  %v5921 = vunpack.c.l.b16 %v5401
  %v5922 = vunpack.c.l.b16 %v5402
  %v5923 = vunpack.c.l.b16 %v5403
  %v5924 = vunpack.c.l.b16 %v5404
  %v5925 = vunpack.c.l.b16 %v5405
  %v5926 = vunpack.c.l.b16 %v5406
  %v5927 = vunpack.c.l.b16 %v5407
  %v5928 = vunpack.c.l.b16 %v5408
  %v5929 = vunpack.c.l.b16 %v5409
  %v5930 = vunpack.c.l.b16 %v5410
  %v5931 = vunpack.c.l.b16 %v5411
  %v5932 = vunpack.c.l.b16 %v5412
  %v5933 = vunpack.c.l.b16 %v5413
  %v5934 = vunpack.c.l.b16 %v5414
  %v5935 = vunpack.c.l.b16 %v5415
  %v5936 = vunpack.c.l.b16 %v5416
  %v5937 = vunpack.c.l.b16 %v5417
  %v5938 = vunpack.c.l.b16 %v5418
  %v5939 = vunpack.c.l.b16 %v5419
  %v5940 = vunpack.c.l.b16 %v5420
  %v5941 = vunpack.c.l.b16 %v5421
  %v5942 = vunpack.c.l.b16 %v5422
  %v5943 = vunpack.c.l.b16 %v5423
  %v5944 = vunpack.c.l.b16 %v5424
  %v5945 = vunpack.c.l.b16 %v5425
  %v5946 = vunpack.c.l.b16 %v5426
  %v5947 = vunpack.c.l.b16 %v5427
  %v5948 = vunpack.c.l.b16 %v5428
  %v5949 = vunpack.c.l.b16 %v5429
  %v5950 = vunpack.c.l.b16 %v5430
  %v5951 = vunpack.c.l.b16 %v5431
  %v5952 = vunpack.c.l.b16 %v5432
  %v5953 = vunpack.c.l.b16 %v5433
  %v5954 = vunpack.c.l.b16 %v5434
  %v5955 = vunpack.c.l.b16 %v5435
  %v5956 = vunpack.c.l.b16 %v5436
  %v5957 = vunpack.c.l.b16 %v5437
  %v5958 = vunpack.c.l.b16 %v5438
  %v5959 = vunpack.c.l.b16 %v5439
  %v5960 = vunpack.c.l.b16 %v5440
  %v5961 = vunpack.c.l.b16 %v5441
  %v5962 = vunpack.c.l.b16 %v5442
  %v5963 = vunpack.c.l.b16 %v5443
  %v5964 = vunpack.c.l.b16 %v5444
  %v5965 = vunpack.c.l.b16 %v5445
  %v5966 = vunpack.c.l.b16 %v5446
  %v5967 = vunpack.c.l.b16 %v5447
  %v5968 = vunpack.c.l.b16 %v5448
  %v5969 = vunpack.c.l.b16 %v5449
  %v5970 = vunpack.c.l.b16 %v5450
  %v5971 = vunpack.c.l.b16 %v5451
  %v5972 = vunpack.c.l.b16 %v5452
  %v5973 = vunpack.c.l.b16 %v5453
  %v5974 = vunpack.c.l.b16 %v5454
  %v5975 = vunpack.c.l.b16 %v5455
  %v5976 = vunpack.c.l.b16 %v5456
  %v5977 = vunpack.c.l.b16 %v5457
  %v5978 = vunpack.c.l.b16 %v5458
  %v5979 = vunpack.c.l.b16 %v5459
  %v5980 = vunpack.c.l.b16 %v5460
  %v5981 = vunpack.c.l.b16 %v5461
  %v5982 = vunpack.c.l.b16 %v5462
  %v5983 = vunpack.c.l.b16 %v5463
  %v5984 = vunpack.c.l.b16 %v5464
  %v5985 = vunpack.c.l.b16 %v5465
  %v5986 = vunpack.c.l.b16 %v5466
  %v5987 = vunpack.c.l.b16 %v5467
  %v5988 = vunpack.c.l.b16 %v5468
  %v5989 = vunpack.c.l.b16 %v5469
  %v5990 = vunpack.c.l.b16 %v5470
  %v5991 = vunpack.c.l.b16 %v5471
  %v5992 = vunpack.c.l.b16 %v5472
  %v5993 = vunpack.c.l.b16 %v5473
  %v5994 = vunpack.c.l.b16 %v5474
  %v5995 = vunpack.c.l.b16 %v5475
  %v5996 = vunpack.c.l.b16 %v5476
  %v5997 = vunpack.c.l.b16 %v5477
  %v5998 = vunpack.c.l.b16 %v5478
  %v5999 = vunpack.c.l.b16 %v5479
  %v6000 = vunpack.c.l.b16 %v5480
  %v6001 = vunpack.c.l.b16 %v5481
  %v6002 = vunpack.c.l.b16 %v5482
  %v6003 = vunpack.c.l.b16 %v5483
  %v6004 = vunpack.c.l.b16 %v5484
  %v6005 = vunpack.c.l.b16 %v5485
  %v6006 = vunpack.c.l.b16 %v5486
  %v6007 = vunpack.c.l.b16 %v5487
  %v6008 = vunpack.c.l.b16 %v5488
  %v6009 = vunpack.c.l.b16 %v5489
  %v6010 = vunpack.c.l.b16 %v5490
  %v6011 = vunpack.c.l.b16 %v5491
  %v6012 = vunpack.c.l.b16 %v5492
  %v6013 = vunpack.c.l.b16 %v5493
  %v6014 = vunpack.c.l.b16 %v5494
  %v6015 = vunpack.c.l.b16 %v5495
  %v6016 = vunpack.c.l.b16 %v5496
  %v6017 = vunpack.c.l.b16 %v5497
  %v6018 = vunpack.c.l.b16 %v5498
  %v6019 = vunpack.c.l.b16 %v5499
  %v6020 = vunpack.c.l.b16 %v5500
  %v6021 = vunpack.c.l.b16 %v5501
  %v6022 = vunpack.c.l.b16 %v5502
  %v6023 = vunpack.c.l.b16 %v5503
  %v6024 = vunpack.c.l.b16 %v5504
  %v6025 = vunpack.c.l.b16 %v5505
  %v6026 = vunpack.c.l.b16 %v5506
  %v6027 = vunpack.c.l.b16 %v5507
  %v6028 = vunpack.c.l.b16 %v5508
  %v6029 = vunpack.c.l.b16 %v5509
  %v6030 = vunpack.c.l.b16 %v5510
  %v6031 = vunpack.c.l.b16 %v5511
  %v6032 = vunpack.c.l.b16 %v5512
  %v6033 = vunpack.c.l.b16 %v5513
  %v6034 = vunpack.c.l.b16 %v5514
  %v6035 = vunpack.c.l.b16 %v5515
  %v6036 = vunpack.c.l.b16 %v5516
  %v6037 = vunpack.c.l.b16 %v5517
  %v6038 = vunpack.c.l.b16 %v5518
  %v6039 = vunpack.c.l.b16 %v5519
  %v6040 = vunpack.c.l.b16 %v5520
  %v6041 = vunpack.c.l.b16 %v5521
  %v6042 = vunpack.c.l.b16 %v5522
  %v6043 = vunpack.c.l.b16 %v5523
  %v6044 = vunpack.c.l.b16 %v5524
  %v6045 = vunpack.c.l.b16 %v5525
  %v6046 = vunpack.c.l.b16 %v5526
  %v6047 = vunpack.c.l.b16 %v5527
  %v6048 = vunpack.c.l.b16 %v5528
  %v6049 = vunpack.c.l.b16 %v5529
  %v6050 = vunpack.c.l.b16 %v5530
  %v6051 = vunpack.c.l.b16 %v5531
  %v6052 = vunpack.c.l.b16 %v5532
  %v6053 = vunpack.c.l.b16 %v5533
  %v6054 = vunpack.c.l.b16 %v5534
  %v6055 = vunpack.c.l.b16 %v5535
  %v6056 = vunpack.c.l.b16 %v5536
  %v6057 = vunpack.c.l.b16 %v5537
  %v6058 = vunpack.c.l.b16 %v5538
  %v6059 = vunpack.c.l.b16 %v5539
  %v6060 = vunpack.c.l.b16 %v5540
  %v6061 = vunpack.c.l.b16 %v5541
  %v6062 = vunpack.c.l.b16 %v5542
  %v6063 = vunpack.c.l.b16 %v5543
  %v6064 = vunpack.c.l.b16 %v5544
  %v6065 = vunpack.c.l.b16 %v5545
  %v6066 = vunpack.c.l.b16 %v5546
  %v6067 = vunpack.c.l.b16 %v5547
  %v6068 = vunpack.c.l.b16 %v5548
  %v6069 = vunpack.c.l.b16 %v5549
  %v6070 = vunpack.c.l.b16 %v5550
  %v6071 = vunpack.c.l.b16 %v5551
  %v6072 = vunpack.c.l.b16 %v5552
  %v6073 = vunpack.c.l.b16 %v5553
  %v6074 = vunpack.c.l.b16 %v5554
  %v6075 = vunpack.c.l.b16 %v5555
  %v6076 = vunpack.c.l.b16 %v5556
  %v6077 = vunpack.c.l.b16 %v5557
  %v6078 = vunpack.c.l.b16 %v5558
  %v6079 = vunpack.c.l.b16 %v5559
  %v6080 = vunpack.c.l.b16 %v5560
  %v6081 = vunpack.c.l.b16 %v5561
  %v6082 = vunpack.c.l.b16 %v5562
  %v6083 = vunpack.c.l.b16 %v5563
  %v6084 = vunpack.c.l.b16 %v5564
  %v6085 = vunpack.c.l.b16 %v5565
  %v6086 = vunpack.c.l.b16 %v5566
  %v6087 = vunpack.c.l.b16 %v5567
  %v6088 = vunpack.c.l.b16 %v5568
  %v6089 = vunpack.c.l.b16 %v5569
  %v6090 = vunpack.c.l.b16 %v5570
  %v6091 = vunpack.c.l.b16 %v5571
  %v6092 = vunpack.c.l.b16 %v5572
  %v6093 = vunpack.c.l.b16 %v5573
  %v6094 = vunpack.c.l.b16 %v5574
  %v6095 = vunpack.c.l.b16 %v5575
  %v6096 = vunpack.c.l.b16 %v5576
  %v6097 = vunpack.c.l.b16 %v5577
  %v6098 = vunpack.c.l.b16 %v5578
  %v6099 = vunpack.c.l.b16 %v5579
  %v6100 = vunpack.c.l.b16 %v5580
  %v6101 = vunpack.c.l.b16 %v5581
  %v6102 = vunpack.c.l.b16 %v5582
  %v6103 = vunpack.c.l.b16 %v5583
  %v6104 = vunpack.c.l.b16 %v5584
  %v6105 = vunpack.c.l.b16 %v5585
  %v6106 = vunpack.c.l.b16 %v5586
  %v6107 = vunpack.c.l.b16 %v5587
  %v6108 = vunpack.c.l.b16 %v5588
  %v6109 = vunpack.c.l.b16 %v5589
  %v6110 = vunpack.c.l.b16 %v5590
  %v6111 = vunpack.c.l.b16 %v5591
  %v6112 = vunpack.c.l.b16 %v5592
  %v6113 = vunpack.c.l.b16 %v5593
  %v6114 = vunpack.c.l.b16 %v5594
  %v6115 = vunpack.c.l.b16 %v5595
  %v6116 = vunpack.c.l.b16 %v5596
  %v6117 = vunpack.c.l.b16 %v5597
  %v6118 = vunpack.c.l.b16 %v5598
  %v6119 = vunpack.c.l.b16 %v5599
  %v6120 = vunpack.c.l.b16 %v5600
  %v6121 = vunpack.c.l.b16 %v5601
  %v6122 = vunpack.c.l.b16 %v5602
  %v6123 = vunpack.c.l.b16 %v5603
  %v6124 = vunpack.c.l.b16 %v5604
  %v6125 = vunpack.c.l.b16 %v5605
  %v6126 = vunpack.c.l.b16 %v5606
  %v6127 = vunpack.c.l.b16 %v5607
  %v6128 = vpack.c.b16 %v5873, %v5872
  %v6129 = vpack.c.b16 %v5875, %v5874
  %v6130 = vpack.c.b16 %v5877, %v5876
  %v6131 = vpack.c.b16 %v5879, %v5878
  %v6132 = vpack.c.b16 %v5881, %v5880
  %v6133 = vpack.c.b16 %v5883, %v5882
  %v6134 = vpack.c.b16 %v5885, %v5884
  %v6135 = vpack.c.b16 %v5887, %v5886
  %v6136 = vpack.c.b16 %v5889, %v5888
  %v6137 = vpack.c.b16 %v5891, %v5890
  %v6138 = vpack.c.b16 %v5893, %v5892
  %v6139 = vpack.c.b16 %v5895, %v5894
  %v6140 = vpack.c.b16 %v5897, %v5896
  %v6141 = vpack.c.b16 %v5899, %v5898
  %v6142 = vpack.c.b16 %v5901, %v5900
  %v6143 = vpack.c.b16 %v5903, %v5902
  %v6144 = vpack.c.b16 %v5905, %v5904
  %v6145 = vpack.c.b16 %v5907, %v5906
  %v6146 = vpack.c.b16 %v5909, %v5908
  %v6147 = vpack.c.b16 %v5911, %v5910
  %v6148 = vpack.c.b16 %v5913, %v5912
  %v6149 = vpack.c.b16 %v5915, %v5914
  %v6150 = vpack.c.b16 %v5917, %v5916
  %v6151 = vpack.c.b16 %v5919, %v5918
  %v6152 = vpack.c.b16 %v5921, %v5920
  %v6153 = vpack.c.b16 %v5923, %v5922
  %v6154 = vpack.c.b16 %v5925, %v5924
  %v6155 = vpack.c.b16 %v5927, %v5926
  %v6156 = vpack.c.b16 %v5929, %v5928
  %v6157 = vpack.c.b16 %v5931, %v5930
  %v6158 = vpack.c.b16 %v5933, %v5932
  %v6159 = vpack.c.b16 %v5935, %v5934
  %v6160 = vpack.c.b16 %v5937, %v5936
  %v6161 = vpack.c.b16 %v5939, %v5938
  %v6162 = vpack.c.b16 %v5941, %v5940
  %v6163 = vpack.c.b16 %v5943, %v5942
  %v6164 = vpack.c.b16 %v5945, %v5944
  %v6165 = vpack.c.b16 %v5947, %v5946
  %v6166 = vpack.c.b16 %v5949, %v5948
  %v6167 = vpack.c.b16 %v5951, %v5950
  %v6168 = vpack.c.b16 %v5953, %v5952
  %v6169 = vpack.c.b16 %v5955, %v5954
  %v6170 = vpack.c.b16 %v5957, %v5956
  %v6171 = vpack.c.b16 %v5959, %v5958
  %v6172 = vpack.c.b16 %v5961, %v5960
  %v6173 = vpack.c.b16 %v5963, %v5962
  %v6174 = vpack.c.b16 %v5965, %v5964
  %v6175 = vpack.c.b16 %v5967, %v5966
  %v6176 = vpack.c.b16 %v5969, %v5968
  %v6177 = vpack.c.b16 %v5971, %v5970
  %v6178 = vpack.c.b16 %v5973, %v5972
  %v6179 = vpack.c.b16 %v5975, %v5974
  %v6180 = vpack.c.b16 %v5977, %v5976
  %v6181 = vpack.c.b16 %v5979, %v5978
  %v6182 = vpack.c.b16 %v5981, %v5980
  %v6183 = vpack.c.b16 %v5983, %v5982
  %v6184 = vpack.c.b16 %v5985, %v5984
  %v6185 = vpack.c.b16 %v5987, %v5986
  %v6186 = vpack.c.b16 %v5989, %v5988
  %v6187 = vpack.c.b16 %v5991, %v5990
  %v6188 = vpack.c.b16 %v5993, %v5992
  %v6189 = vpack.c.b16 %v5995, %v5994
  %v6190 = vpack.c.b16 %v5997, %v5996
  %v6191 = vpack.c.b16 %v5999, %v5998
  %v6192 = vpack.c.b16 %v6001, %v6000
  %v6193 = vpack.c.b16 %v6003, %v6002
  %v6194 = vpack.c.b16 %v6005, %v6004
  %v6195 = vpack.c.b16 %v6007, %v6006
  %v6196 = vpack.c.b16 %v6009, %v6008
  %v6197 = vpack.c.b16 %v6011, %v6010
  %v6198 = vpack.c.b16 %v6013, %v6012
  %v6199 = vpack.c.b16 %v6015, %v6014
  %v6200 = vpack.c.b16 %v6017, %v6016
  %v6201 = vpack.c.b16 %v6019, %v6018
  %v6202 = vpack.c.b16 %v6021, %v6020
  %v6203 = vpack.c.b16 %v6023, %v6022
  %v6204 = vpack.c.b16 %v6025, %v6024
  %v6205 = vpack.c.b16 %v6027, %v6026
  %v6206 = vpack.c.b16 %v6029, %v6028
  %v6207 = vpack.c.b16 %v6031, %v6030
  %v6208 = vpack.c.b16 %v6033, %v6032
  %v6209 = vpack.c.b16 %v6035, %v6034
  %v6210 = vpack.c.b16 %v6037, %v6036
  %v6211 = vpack.c.b16 %v6039, %v6038
  %v6212 = vpack.c.b16 %v6041, %v6040
  %v6213 = vpack.c.b16 %v6043, %v6042
  %v6214 = vpack.c.b16 %v6045, %v6044
  %v6215 = vpack.c.b16 %v6047, %v6046
  %v6216 = vpack.c.b16 %v6049, %v6048
  %v6217 = vpack.c.b16 %v6051, %v6050
  %v6218 = vpack.c.b16 %v6053, %v6052
  %v6219 = vpack.c.b16 %v6055, %v6054
  %v6220 = vpack.c.b16 %v6057, %v6056
  %v6221 = vpack.c.b16 %v6059, %v6058
  %v6222 = vpack.c.b16 %v6061, %v6060
  %v6223 = vpack.c.b16 %v6063, %v6062
  %v6224 = vpack.c.b16 %v6065, %v6064
  %v6225 = vpack.c.b16 %v6067, %v6066
  %v6226 = vpack.c.b16 %v6069, %v6068
  %v6227 = vpack.c.b16 %v6071, %v6070
  %v6228 = vpack.c.b16 %v6073, %v6072
  %v6229 = vpack.c.b16 %v6075, %v6074
  %v6230 = vpack.c.b16 %v6077, %v6076
  %v6231 = vpack.c.b16 %v6079, %v6078
  %v6232 = vpack.c.b16 %v6081, %v6080
  %v6233 = vpack.c.b16 %v6083, %v6082
  %v6234 = vpack.c.b16 %v6085, %v6084
  %v6235 = vpack.c.b16 %v6087, %v6086
  %v6236 = vpack.c.b16 %v6089, %v6088
  %v6237 = vpack.c.b16 %v6091, %v6090
  %v6238 = vpack.c.b16 %v6093, %v6092
  %v6239 = vpack.c.b16 %v6095, %v6094
  %v6240 = vpack.c.b16 %v6097, %v6096
  %v6241 = vpack.c.b16 %v6099, %v6098
  %v6242 = vpack.c.b16 %v6101, %v6100
  %v6243 = vpack.c.b16 %v6103, %v6102
  %v6244 = vpack.c.b16 %v6105, %v6104
  %v6245 = vpack.c.b16 %v6107, %v6106
  %v6246 = vpack.c.b16 %v6109, %v6108
  %v6247 = vpack.c.b16 %v6111, %v6110
  %v6248 = vpack.c.b16 %v6113, %v6112
  %v6249 = vpack.c.b16 %v6115, %v6114
  %v6250 = vpack.c.b16 %v6117, %v6116
  %v6251 = vpack.c.b16 %v6119, %v6118
  %v6252 = vpack.c.b16 %v6121, %v6120
  %v6253 = vpack.c.b16 %v6123, %v6122
  %v6254 = vpack.c.b16 %v6125, %v6124
  %v6255 = vpack.c.b16 %v6127, %v6126
  %6384 = vmatprep.subr.bf16.mxu0 0
  %6385 = vmatpush1.bf16.msra.mxu0 %v6135
  %6386 = vmatprep.subr.bf16.mxu0 0
  %6387 = vmatpush1.bf16.msra.mxu0 %v6134
  %6388 = vmatprep.subr.bf16.mxu0 0
  %6389 = vmatpush1.bf16.msra.mxu0 %v6133
  %6390 = vmatprep.subr.bf16.mxu0 0
  %6391 = vmatpush1.bf16.msra.mxu0 %v6132
  %6392 = vmatprep.subr.bf16.mxu0 0
  %6393 = vmatpush1.bf16.msra.mxu0 %v6131
  %6394 = vmatprep.subr.bf16.mxu0 0
  %6395 = vmatpush1.bf16.msra.mxu0 %v6130
  %6396 = vmatprep.subr.bf16.mxu0 0
  %6397 = vmatpush1.bf16.msra.mxu0 %v6129
  %6398 = vmatprep.subr.bf16.mxu0 0
  %6399 = vmatpush1.bf16.msra.mxu0 %v6128
  %6400 = vmatprep.subr.bf16.mxu0 0
  %6401 = vmatpush2.bf16.msra.mxu0 %v6143
  %6402 = vmatprep.subr.bf16.mxu0 0
  %6403 = vmatpush2.bf16.msra.mxu0 %v6142
  %6404 = vmatprep.subr.bf16.mxu0 0
  %6405 = vmatpush2.bf16.msra.mxu0 %v6141
  %6406 = vmatprep.subr.bf16.mxu0 0
  %6407 = vmatpush2.bf16.msra.mxu0 %v6140
  %6408 = vmatprep.subr.bf16.mxu0 0
  %6409 = vmatpush2.bf16.msra.mxu0 %v6139
  %6410 = vmatprep.subr.bf16.mxu0 0
  %6411 = vmatpush2.bf16.msra.mxu0 %v6138
  %6412 = vmatprep.subr.bf16.mxu0 0
  %6413 = vmatpush2.bf16.msra.mxu0 %v6137
  %6414 = vmatprep.subr.bf16.mxu0 0
  %6415 = vmatpush2.bf16.msra.mxu0 %v6136
  %6416 = vmatprep.mubr.bf16.mxu0 %v5336
  %6417 = vmatmul.mubr.bf16.gmra.mxu0 %v5335
  %v6418 = vpop.f32.mrf.mxu0
  %v6419 = vadd.f32 %v5614, %v6418
  %v6420 = vpop.f32.mrf.mxu0
  %v6421 = vpop.f32.mrf.mxu0
  %v6422 = vadd.f32 %v5614, %v6421
  %v6423 = vpop.f32.mrf.mxu0
  %6424 = vdwg.mxu0
  %6425 = vmatprep.subr.bf16.mxu0 0
  %6426 = vmatpush1.bf16.msra.mxu0 %v6151
  %6427 = vmatprep.subr.bf16.mxu0 0
  %6428 = vmatpush1.bf16.msra.mxu0 %v6150
  %6429 = vmatprep.subr.bf16.mxu0 0
  %6430 = vmatpush1.bf16.msra.mxu0 %v6149
  %6431 = vmatprep.subr.bf16.mxu0 0
  %6432 = vmatpush1.bf16.msra.mxu0 %v6148
  %6433 = vmatprep.subr.bf16.mxu0 0
  %6434 = vmatpush1.bf16.msra.mxu0 %v6147
  %6435 = vmatprep.subr.bf16.mxu0 0
  %6436 = vmatpush1.bf16.msra.mxu0 %v6146
  %6437 = vmatprep.subr.bf16.mxu0 0
  %6438 = vmatpush1.bf16.msra.mxu0 %v6145
  %6439 = vmatprep.subr.bf16.mxu0 0
  %6440 = vmatpush1.bf16.msra.mxu0 %v6144
  %6441 = vmatprep.subr.bf16.mxu0 0
  %6442 = vmatpush2.bf16.msra.mxu0 %v6159
  %6443 = vmatprep.subr.bf16.mxu0 0
  %6444 = vmatpush2.bf16.msra.mxu0 %v6158
  %6445 = vmatprep.subr.bf16.mxu0 0
  %6446 = vmatpush2.bf16.msra.mxu0 %v6157
  %6447 = vmatprep.subr.bf16.mxu0 0
  %6448 = vmatpush2.bf16.msra.mxu0 %v6156
  %6449 = vmatprep.subr.bf16.mxu0 0
  %6450 = vmatpush2.bf16.msra.mxu0 %v6155
  %6451 = vmatprep.subr.bf16.mxu0 0
  %6452 = vmatpush2.bf16.msra.mxu0 %v6154
  %6453 = vmatprep.subr.bf16.mxu0 0
  %6454 = vmatpush2.bf16.msra.mxu0 %v6153
  %6455 = vmatprep.subr.bf16.mxu0 0
  %6456 = vmatpush2.bf16.msra.mxu0 %v6152
  %6457 = vmatprep.mubr.bf16.mxu0 %v5338
  %6458 = vmatmul.mubr.bf16.gmra.mxu0 %v5337
  %v6459 = vpop.f32.mrf.mxu0
  %v6460 = vadd.f32 %v6419, %v6459
  %v6461 = vpop.f32.mrf.mxu0
  %v6462 = vpop.f32.mrf.mxu0
  %v6463 = vadd.f32 %v6422, %v6462
  %v6464 = vpop.f32.mrf.mxu0
  %6465 = vdwg.mxu0
  %6466 = vmatprep.subr.bf16.mxu0 0
  %6467 = vmatpush1.bf16.msra.mxu0 %v6167
  %6468 = vmatprep.subr.bf16.mxu0 0
  %6469 = vmatpush1.bf16.msra.mxu0 %v6166
  %6470 = vmatprep.subr.bf16.mxu0 0
  %6471 = vmatpush1.bf16.msra.mxu0 %v6165
  %6472 = vmatprep.subr.bf16.mxu0 0
  %6473 = vmatpush1.bf16.msra.mxu0 %v6164
  %6474 = vmatprep.subr.bf16.mxu0 0
  %6475 = vmatpush1.bf16.msra.mxu0 %v6163
  %6476 = vmatprep.subr.bf16.mxu0 0
  %6477 = vmatpush1.bf16.msra.mxu0 %v6162
  %6478 = vmatprep.subr.bf16.mxu0 0
  %6479 = vmatpush1.bf16.msra.mxu0 %v6161
  %6480 = vmatprep.subr.bf16.mxu0 0
  %6481 = vmatpush1.bf16.msra.mxu0 %v6160
  %6482 = vmatprep.subr.bf16.mxu0 0
  %6483 = vmatpush2.bf16.msra.mxu0 %v6175
  %6484 = vmatprep.subr.bf16.mxu0 0
  %6485 = vmatpush2.bf16.msra.mxu0 %v6174
  %6486 = vmatprep.subr.bf16.mxu0 0
  %6487 = vmatpush2.bf16.msra.mxu0 %v6173
  %6488 = vmatprep.subr.bf16.mxu0 0
  %6489 = vmatpush2.bf16.msra.mxu0 %v6172
  %6490 = vmatprep.subr.bf16.mxu0 0
  %6491 = vmatpush2.bf16.msra.mxu0 %v6171
  %6492 = vmatprep.subr.bf16.mxu0 0
  %6493 = vmatpush2.bf16.msra.mxu0 %v6170
  %6494 = vmatprep.subr.bf16.mxu0 0
  %6495 = vmatpush2.bf16.msra.mxu0 %v6169
  %6496 = vmatprep.subr.bf16.mxu0 0
  %6497 = vmatpush2.bf16.msra.mxu0 %v6168
  %6498 = vmatprep.mubr.bf16.mxu0 %v5340
  %6499 = vmatmul.mubr.bf16.gmra.mxu0 %v5339
  %v6500 = vpop.f32.mrf.mxu0
  %v6501 = vadd.f32 %v6460, %v6500
  %v6502 = vpop.f32.mrf.mxu0
  %v6503 = vpop.f32.mrf.mxu0
  %v6504 = vadd.f32 %v6463, %v6503
  %v6505 = vpop.f32.mrf.mxu0
  %6506 = vdwg.mxu0
  %6507 = vmatprep.subr.bf16.mxu0 0
  %6508 = vmatpush1.bf16.msra.mxu0 %v6183
  %6509 = vmatprep.subr.bf16.mxu0 0
  %6510 = vmatpush1.bf16.msra.mxu0 %v6182
  %6511 = vmatprep.subr.bf16.mxu0 0
  %6512 = vmatpush1.bf16.msra.mxu0 %v6181
  %6513 = vmatprep.subr.bf16.mxu0 0
  %6514 = vmatpush1.bf16.msra.mxu0 %v6180
  %6515 = vmatprep.subr.bf16.mxu0 0
  %6516 = vmatpush1.bf16.msra.mxu0 %v6179
  %6517 = vmatprep.subr.bf16.mxu0 0
  %6518 = vmatpush1.bf16.msra.mxu0 %v6178
  %6519 = vmatprep.subr.bf16.mxu0 0
  %6520 = vmatpush1.bf16.msra.mxu0 %v6177
  %6521 = vmatprep.subr.bf16.mxu0 0
  %6522 = vmatpush1.bf16.msra.mxu0 %v6176
  %6523 = vmatprep.subr.bf16.mxu0 0
  %6524 = vmatpush2.bf16.msra.mxu0 %v6191
  %6525 = vmatprep.subr.bf16.mxu0 0
  %6526 = vmatpush2.bf16.msra.mxu0 %v6190
  %6527 = vmatprep.subr.bf16.mxu0 0
  %6528 = vmatpush2.bf16.msra.mxu0 %v6189
  %6529 = vmatprep.subr.bf16.mxu0 0
  %6530 = vmatpush2.bf16.msra.mxu0 %v6188
  %6531 = vmatprep.subr.bf16.mxu0 0
  %6532 = vmatpush2.bf16.msra.mxu0 %v6187
  %6533 = vmatprep.subr.bf16.mxu0 0
  %6534 = vmatpush2.bf16.msra.mxu0 %v6186
  %6535 = vmatprep.subr.bf16.mxu0 0
  %6536 = vmatpush2.bf16.msra.mxu0 %v6185
  %6537 = vmatprep.subr.bf16.mxu0 0
  %6538 = vmatpush2.bf16.msra.mxu0 %v6184
  %6539 = vmatprep.mubr.bf16.mxu0 %v5342
  %6540 = vmatmul.mubr.bf16.gmra.mxu0 %v5341
  %v6541 = vpop.f32.mrf.mxu0
  %v6542 = vadd.f32 %v6501, %v6541
  %v6543 = vpop.f32.mrf.mxu0
  %v6544 = vpop.f32.mrf.mxu0
  %v6545 = vadd.f32 %v6504, %v6544
  %v6546 = vpop.f32.mrf.mxu0
  %6547 = vdwg.mxu0
  %6548 = vmatprep.subr.bf16.mxu0 0
  %6549 = vmatpush1.bf16.msra.mxu0 %v6199
  %6550 = vmatprep.subr.bf16.mxu0 0
  %6551 = vmatpush1.bf16.msra.mxu0 %v6198
  %6552 = vmatprep.subr.bf16.mxu0 0
  %6553 = vmatpush1.bf16.msra.mxu0 %v6197
  %6554 = vmatprep.subr.bf16.mxu0 0
  %6555 = vmatpush1.bf16.msra.mxu0 %v6196
  %6556 = vmatprep.subr.bf16.mxu0 0
  %6557 = vmatpush1.bf16.msra.mxu0 %v6195
  %6558 = vmatprep.subr.bf16.mxu0 0
  %6559 = vmatpush1.bf16.msra.mxu0 %v6194
  %6560 = vmatprep.subr.bf16.mxu0 0
  %6561 = vmatpush1.bf16.msra.mxu0 %v6193
  %6562 = vmatprep.subr.bf16.mxu0 0
  %6563 = vmatpush1.bf16.msra.mxu0 %v6192
  %6564 = vmatprep.subr.bf16.mxu0 0
  %6565 = vmatpush2.bf16.msra.mxu0 %v6207
  %6566 = vmatprep.subr.bf16.mxu0 0
  %6567 = vmatpush2.bf16.msra.mxu0 %v6206
  %6568 = vmatprep.subr.bf16.mxu0 0
  %6569 = vmatpush2.bf16.msra.mxu0 %v6205
  %6570 = vmatprep.subr.bf16.mxu0 0
  %6571 = vmatpush2.bf16.msra.mxu0 %v6204
  %6572 = vmatprep.subr.bf16.mxu0 0
  %6573 = vmatpush2.bf16.msra.mxu0 %v6203
  %6574 = vmatprep.subr.bf16.mxu0 0
  %6575 = vmatpush2.bf16.msra.mxu0 %v6202
  %6576 = vmatprep.subr.bf16.mxu0 0
  %6577 = vmatpush2.bf16.msra.mxu0 %v6201
  %6578 = vmatprep.subr.bf16.mxu0 0
  %6579 = vmatpush2.bf16.msra.mxu0 %v6200
  %6580 = vmatprep.mubr.bf16.mxu0 %v5344
  %6581 = vmatmul.mubr.bf16.gmra.mxu0 %v5343
  %v6582 = vpop.f32.mrf.mxu0
  %v6583 = vadd.f32 %v6542, %v6582
  %v6584 = vpop.f32.mrf.mxu0
  %v6585 = vpop.f32.mrf.mxu0
  %v6586 = vadd.f32 %v6545, %v6585
  %v6587 = vpop.f32.mrf.mxu0
  %6588 = vdwg.mxu0
  %6589 = vmatprep.subr.bf16.mxu0 0
  %6590 = vmatpush1.bf16.msra.mxu0 %v6215
  %6591 = vmatprep.subr.bf16.mxu0 0
  %6592 = vmatpush1.bf16.msra.mxu0 %v6214
  %6593 = vmatprep.subr.bf16.mxu0 0
  %6594 = vmatpush1.bf16.msra.mxu0 %v6213
  %6595 = vmatprep.subr.bf16.mxu0 0
  %6596 = vmatpush1.bf16.msra.mxu0 %v6212
  %6597 = vmatprep.subr.bf16.mxu0 0
  %6598 = vmatpush1.bf16.msra.mxu0 %v6211
  %6599 = vmatprep.subr.bf16.mxu0 0
  %6600 = vmatpush1.bf16.msra.mxu0 %v6210
  %6601 = vmatprep.subr.bf16.mxu0 0
  %6602 = vmatpush1.bf16.msra.mxu0 %v6209
  %6603 = vmatprep.subr.bf16.mxu0 0
  %6604 = vmatpush1.bf16.msra.mxu0 %v6208
  %6605 = vmatprep.subr.bf16.mxu0 0
  %6606 = vmatpush2.bf16.msra.mxu0 %v6223
  %6607 = vmatprep.subr.bf16.mxu0 0
  %6608 = vmatpush2.bf16.msra.mxu0 %v6222
  %6609 = vmatprep.subr.bf16.mxu0 0
  %6610 = vmatpush2.bf16.msra.mxu0 %v6221
  %6611 = vmatprep.subr.bf16.mxu0 0
  %6612 = vmatpush2.bf16.msra.mxu0 %v6220
  %6613 = vmatprep.subr.bf16.mxu0 0
  %6614 = vmatpush2.bf16.msra.mxu0 %v6219
  %6615 = vmatprep.subr.bf16.mxu0 0
  %6616 = vmatpush2.bf16.msra.mxu0 %v6218
  %6617 = vmatprep.subr.bf16.mxu0 0
  %6618 = vmatpush2.bf16.msra.mxu0 %v6217
  %6619 = vmatprep.subr.bf16.mxu0 0
  %6620 = vmatpush2.bf16.msra.mxu0 %v6216
  %6621 = vmatprep.mubr.bf16.mxu0 %v5346
  %6622 = vmatmul.mubr.bf16.gmra.mxu0 %v5345
  %v6623 = vpop.f32.mrf.mxu0
  %v6624 = vadd.f32 %v6583, %v6623
  %v6625 = vpop.f32.mrf.mxu0
  %v6626 = vpop.f32.mrf.mxu0
  %v6627 = vadd.f32 %v6586, %v6626
  %v6628 = vpop.f32.mrf.mxu0
  %6629 = vdwg.mxu0
  %6630 = vmatprep.subr.bf16.mxu0 0
  %6631 = vmatpush1.bf16.msra.mxu0 %v6231
  %6632 = vmatprep.subr.bf16.mxu0 0
  %6633 = vmatpush1.bf16.msra.mxu0 %v6230
  %6634 = vmatprep.subr.bf16.mxu0 0
  %6635 = vmatpush1.bf16.msra.mxu0 %v6229
  %6636 = vmatprep.subr.bf16.mxu0 0
  %6637 = vmatpush1.bf16.msra.mxu0 %v6228
  %6638 = vmatprep.subr.bf16.mxu0 0
  %6639 = vmatpush1.bf16.msra.mxu0 %v6227
  %6640 = vmatprep.subr.bf16.mxu0 0
  %6641 = vmatpush1.bf16.msra.mxu0 %v6226
  %6642 = vmatprep.subr.bf16.mxu0 0
  %6643 = vmatpush1.bf16.msra.mxu0 %v6225
  %6644 = vmatprep.subr.bf16.mxu0 0
  %6645 = vmatpush1.bf16.msra.mxu0 %v6224
  %6646 = vmatprep.subr.bf16.mxu0 0
  %6647 = vmatpush2.bf16.msra.mxu0 %v6239
  %6648 = vmatprep.subr.bf16.mxu0 0
  %6649 = vmatpush2.bf16.msra.mxu0 %v6238
  %6650 = vmatprep.subr.bf16.mxu0 0
  %6651 = vmatpush2.bf16.msra.mxu0 %v6237
  %6652 = vmatprep.subr.bf16.mxu0 0
  %6653 = vmatpush2.bf16.msra.mxu0 %v6236
  %6654 = vmatprep.subr.bf16.mxu0 0
  %6655 = vmatpush2.bf16.msra.mxu0 %v6235
  %6656 = vmatprep.subr.bf16.mxu0 0
  %6657 = vmatpush2.bf16.msra.mxu0 %v6234
  %6658 = vmatprep.subr.bf16.mxu0 0
  %6659 = vmatpush2.bf16.msra.mxu0 %v6233
  %6660 = vmatprep.subr.bf16.mxu0 0
  %6661 = vmatpush2.bf16.msra.mxu0 %v6232
  %6662 = vmatprep.mubr.bf16.mxu0 %v5348
  %6663 = vmatmul.mubr.bf16.gmra.mxu0 %v5347
  %v6664 = vpop.f32.mrf.mxu0
  %v6665 = vadd.f32 %v6624, %v6664
  %v6666 = vpop.f32.mrf.mxu0
  %v6667 = vpop.f32.mrf.mxu0
  %v6668 = vadd.f32 %v6627, %v6667
  %v6669 = vpop.f32.mrf.mxu0
  %6670 = vdwg.mxu0
  %6671 = vmatprep.subr.bf16.mxu0 0
  %6672 = vmatpush1.bf16.msra.mxu0 %v6247
  %6673 = vmatprep.subr.bf16.mxu0 0
  %6674 = vmatpush1.bf16.msra.mxu0 %v6246
  %6675 = vmatprep.subr.bf16.mxu0 0
  %6676 = vmatpush1.bf16.msra.mxu0 %v6245
  %6677 = vmatprep.subr.bf16.mxu0 0
  %6678 = vmatpush1.bf16.msra.mxu0 %v6244
  %6679 = vmatprep.subr.bf16.mxu0 0
  %6680 = vmatpush1.bf16.msra.mxu0 %v6243
  %6681 = vmatprep.subr.bf16.mxu0 0
  %6682 = vmatpush1.bf16.msra.mxu0 %v6242
  %6683 = vmatprep.subr.bf16.mxu0 0
  %6684 = vmatpush1.bf16.msra.mxu0 %v6241
  %6685 = vmatprep.subr.bf16.mxu0 0
  %6686 = vmatpush1.bf16.msra.mxu0 %v6240
  %6687 = vmatprep.subr.bf16.mxu0 0
  %6688 = vmatpush2.bf16.msra.mxu0 %v6255
  %6689 = vmatprep.subr.bf16.mxu0 0
  %6690 = vmatpush2.bf16.msra.mxu0 %v6254
  %6691 = vmatprep.subr.bf16.mxu0 0
  %6692 = vmatpush2.bf16.msra.mxu0 %v6253
  %6693 = vmatprep.subr.bf16.mxu0 0
  %6694 = vmatpush2.bf16.msra.mxu0 %v6252
  %6695 = vmatprep.subr.bf16.mxu0 0
  %6696 = vmatpush2.bf16.msra.mxu0 %v6251
  %6697 = vmatprep.subr.bf16.mxu0 0
  %6698 = vmatpush2.bf16.msra.mxu0 %v6250
  %6699 = vmatprep.subr.bf16.mxu0 0
  %6700 = vmatpush2.bf16.msra.mxu0 %v6249
  %6701 = vmatprep.subr.bf16.mxu0 0
  %6702 = vmatpush2.bf16.msra.mxu0 %v6248
  %6703 = vmatprep.mubr.bf16.mxu0 %v5350
  %6704 = vmatmul.mubr.bf16.gmra.mxu0 %v5349
  %v6705 = vpop.f32.mrf.mxu0
  %v6706 = vadd.f32 %v6665, %v6705
  %v6707 = vpop.f32.mrf.mxu0
  %v6708 = vpop.f32.mrf.mxu0
  %v6709 = vadd.f32 %v6668, %v6708
  %v6710 = vpop.f32.mrf.mxu0
  %6711 = vdwg.mxu0
  %v6712 = vadd.f32 %v4675, %v6706
  %v6713 = vadd.f32 %v4676, %v6709
  %s6714 = scalar_lea.vmem %s14, 1
  %v6715 = vld [vmem:[%s6714] sm:$0x1]
  %s6716 = scalar_lea.vmem %s15, 1
  %v6717 = vld [vmem:[%s6716] sm:$0x1]
  %v6718 = vsel %vm164, %v6712, 0.0
  %6719 = vadd.xlane.f32.xlu0 %v6718
  %v6720 = vpop.xlane.xlu0 %6719
  %v6721 = vsel %vm164, %v6713, 0.0
  %6722 = vadd.xlane.f32.xlu0 %v6721
  %v6723 = vpop.xlane.xlu0 %6722
  %v6724 = vmul.f32 %v6720, %v1331
  %v6725 = vmul.f32 %v6723, %v1331
  %v6726 = vsub.f32 %v6712, %v6724
  %v6727 = vsub.f32 %v6713, %v6725
  %v6728 = vmul.f32 %v6726, %v6726
  %v6729 = vmul.f32 %v6727, %v6727
  %v6730 = vsel %vm164, %v6728, 0.0
  %6731 = vadd.xlane.f32.xlu0 %v6730
  %v6732 = vpop.xlane.xlu0 %6731
  %v6733 = vsel %vm164, %v6729, 0.0
  %6734 = vadd.xlane.f32.xlu0 %v6733
  %v6735 = vpop.xlane.xlu0 %6734
  %v6736 = vmul.f32 %v6732, %v1331
  %v6737 = vmul.f32 %v6735, %v1331
  %v6738 = vadd.f32 %v6736, 1e-05
  %v6739 = vadd.f32 %v6737, 1e-05
  %v6740 = vrsqrt.pop %v6738
  %v6741 = vrsqrt.pop %v6739
  %v6742 = vmul.f32 %v6726, %v6740
  %v6743 = vmul.f32 %v6727, %v6741
  %v6745 = vlaneseq
  %v6746 = vshrl.u32 %v6745, 7
  %v6747 = vsub.s32 0, %v6746
  %v6748 = vrot.slane %v6715, %v6747
  %v6750 = vmul.f32 %v6742, %v6748
  %v6751 = vmul.f32 %v6743, %v6748
  %v6753 = vlaneseq
  %v6754 = vshrl.u32 %v6753, 7
  %v6755 = vsub.s32 0, %v6754
  %v6756 = vrot.slane %v6717, %v6755
  %v6758 = vadd.f32 %v6750, %v6756
  %v6759 = vadd.f32 %v6751, %v6756
  %v6760 = vsel %vm164, %v6758, 0.0
  %v6761 = vrot.slane %v6760, 4
  %v6762 = vadd.f32 %v6760, %v6761
  %v6763 = vrot.slane %v6762, 2
  %v6764 = vadd.f32 %v6762, %v6763
  %v6765 = vrot.slane %v6764, 1
  %v6766 = vadd.f32 %v6764, %v6765
  %v6767 = vsel %vm164, %v6759, 0.0
  %v6768 = vrot.slane %v6767, 4
  %v6769 = vadd.f32 %v6767, %v6768
  %v6770 = vrot.slane %v6769, 2
  %v6771 = vadd.f32 %v6769, %v6770
  %v6772 = vrot.slane %v6771, 1
  %v6773 = vadd.f32 %v6771, %v6772
  %v6774 = vmul.f32 %v6766, 0.125
  %v6775 = vmul.f32 %v6773, 0.125
  %v6776 = vpack.c.bf16 %v6774, %v6774
  %v6777 = vpack.c.bf16 %v6775, %v6775
  %v6778 = vld [vmem:[%s20] sm:$0xf]
  %v6779 = vld [vmem:[%s20 + $0x4] sm:$0xf]
  %v6780 = vld [vmem:[%s20 + $0x8] sm:$0xf]
  %v6781 = vld [vmem:[%s20 + $0xc] sm:$0xf]
  %v6782 = vld [vmem:[%s21] sm:$0x1]
  %v6784 = vlaneseq
  %v6785 = vshrl.u32 %v6784, 7
  %v6786 = vsub.s32 0, %v6785
  %v6787 = vrot.slane %v6782, %v6786
  %v6791 = vunpack.c.l.b16 %v6776
  %v6792 = vunpack.c.l.b16 %v6777
  %vm6793 = vcmask 1041409
  %v6794 = vsel %vm6793, %v6792, %v6791
  %v6795 = vpack.c.b16 %v6794, %v6794
  %v6800 = vunpack.c.l.b16 %v6778
  %v6801 = vunpack.c.l.b16 %v6779
  %v6802 = vunpack.c.l.b16 %v6780
  %v6803 = vunpack.c.l.b16 %v6781
  %v6804 = vpack.c.b16 %v6801, %v6800
  %v6805 = vpack.c.b16 %v6803, %v6802
  %v6809 = vsel %vm164, %v6795, 0
  %6811 = vmatprep.subr.bf16.mxu0 0
  %6812 = vmatpush1.bf16.msra.mxu0 0
  %6813 = vmatprep.subr.bf16.mxu0 0
  %6814 = vmatpush1.bf16.msra.mxu0 0
  %6815 = vmatprep.subr.bf16.mxu0 0
  %6816 = vmatpush1.bf16.msra.mxu0 0
  %6817 = vmatprep.subr.bf16.mxu0 0
  %6818 = vmatpush1.bf16.msra.mxu0 0
  %6819 = vmatprep.subr.bf16.mxu0 0
  %6820 = vmatpush1.bf16.msra.mxu0 0
  %6821 = vmatprep.subr.bf16.mxu0 0
  %6822 = vmatpush1.bf16.msra.mxu0 0
  %6823 = vmatprep.subr.bf16.mxu0 0
  %6824 = vmatpush1.bf16.msra.mxu0 %v6805
  %6825 = vmatprep.subr.bf16.mxu0 0
  %6826 = vmatpush1.bf16.msra.mxu0 %v6804
  %6827 = vmatprep.subr.bf16.mxu0 0
  %6828 = vmatpush2.bf16.msra.mxu0 0
  %6829 = vmatprep.subr.bf16.mxu0 0
  %6830 = vmatpush2.bf16.msra.mxu0 0
  %6831 = vmatprep.subr.bf16.mxu0 0
  %6832 = vmatpush2.bf16.msra.mxu0 0
  %6833 = vmatprep.subr.bf16.mxu0 0
  %6834 = vmatpush2.bf16.msra.mxu0 0
  %6835 = vmatprep.subr.bf16.mxu0 0
  %6836 = vmatpush2.bf16.msra.mxu0 0
  %6837 = vmatprep.subr.bf16.mxu0 0
  %6838 = vmatpush2.bf16.msra.mxu0 0
  %6839 = vmatprep.subr.bf16.mxu0 0
  %6840 = vmatpush2.bf16.msra.mxu0 0
  %6841 = vmatprep.subr.bf16.mxu0 0
  %6842 = vmatpush2.bf16.msra.mxu0 0
  %6843 = vmatprep.mubr.bf16.mxu0 0
  %6844 = vmatmul.mubr.bf16.gmra.mxu0 %v6809
  %v6845 = vpop.f32.mrf.mxu0
  %v6846 = vadd.f32 %v6787, %v6845
  %v6847 = vpop.f32.mrf.mxu0
  %v6848 = vpop.f32.mrf.mxu0
  %v6849 = vpop.f32.mrf.mxu0
  %6850 = vdwg.mxu0
  %6851 = vst [vmem:[%s22] sm:$0x3] %v6846
  // Predicated region
  $region90: #{_forward.1} parent=0 // pred_check
    _
  $region91: #{_forward.1} parent=0 // pred_check_branch
    %6853 = sbr.rel (0) target = $region93
  $region92: #{_forward.1} parent=0 // pred_region
    _
  $region93: #{_forward.1} parent=0 // pred_fallthru
    _
  // Predicated region
  $region94: #{_forward.1} parent=0 // pred_check
    _
  $region95: #{_forward.1} parent=0 // pred_check_branch
    %6855 = sbr.rel (0) target = $region97
  $region96: #{_forward.1} parent=0 // pred_region
    _
  $region97: #{_forward.1} parent=0 // pred_fallthru
    _

</llo_original>
